<compile_context>
chip_gen: v6e
topology: v6e:2x2x1
jax: 0.10.0
libtpu: 0.0.40
codegen_flags: <defaults>
</compile_context>

<pallas_src>
import numpy as np
import jax
import jax.numpy as jnp
from jax.experimental import pallas as pl
from jax.experimental.pallas import tpu as pltpu

NEG_SLOPE = 0.01     # nn.LeakyReLU default
BN_EPS = 1e-5
CHANNELS = [(1, 4), (4, 8), (8, 16), (16, 8)]   # (n_inputs, n_outputs) per DBlock
NUM_BLOCKS = len(CHANNELS)
K = 3                # DBlock conv kernel size
KF = 4               # final conv kernel size


def _leaky(z):
    return jnp.where(z >= 0, z, NEG_SLOPE * z)


def _rup8(n):
    return ((n + 7) // 8) * 8


# ---------------------------------------------------------------------------
# Fused Pallas kernel: the whole Dnet forward for one batch element.
# ---------------------------------------------------------------------------
def _dnet_kernel(x_ref, *refs):
    # refs = 4 blocks x [w1p, w2p, wd, aux, S1, S2, S4], wfp, bfp, o_ref
    o_ref = refs[-1]
    wf_ref = refs[-3]
    bf_ref = refs[-2]

    def ktap_conv(wp, u, k_taps, l_out):
        # Stack the k shifted views on the sublane axis (k-major) and do one
        # MXU matmul against the (Cout, k*Cin)-packed weights.
        taps = [u[:, k:k + l_out] for k in range(k_taps)]
        return jnp.dot(wp, jnp.concatenate(taps, axis=0),
                       preferred_element_type=jnp.float32)

    h = x_ref[0]                                           # (8, L) f32
    for blk in range(NUM_BLOCKS):
        (w1_ref, w2_ref, wd_ref, aux_ref,
         s1_ref, s2_ref, s4_ref) = refs[7 * blk: 7 * blk + 7]
        aux = aux_ref[...]                                 # (Co, 7)
        b1, sc1, sh1 = aux[:, 0:1], aux[:, 1:2], aux[:, 2:3]
        b2, sc2, sh2 = aux[:, 3:4], aux[:, 4:5], aux[:, 5:6]
        bd = aux[:, 6:7]

        # conv1: pad=2 / stride=2 / dilation=2  ->  exact selection matmul
        # (pad + even subsample) followed by a 3-tap valid conv.
        u1 = jnp.dot(h, s1_ref[...], preferred_element_type=jnp.float32)
        L1 = u1.shape[1] - (K - 1)
        z1 = ktap_conv(w1_ref[...], u1, K, L1)
        h1 = _leaky(z1 + b1) * sc1 + sh1                   # LeakyReLU + BN (eval)

        # conv2: same rewrite on h1.
        u2 = jnp.dot(h1, s2_ref[...], preferred_element_type=jnp.float32)
        L2 = u2.shape[1] - (K - 1)
        z2 = ktap_conv(w2_ref[...], u2, K, L2)
        h2 = _leaky(z2 + b2) * sc2 + sh2

        # residual branch: 1x1 conv with stride 4 (selection matmul + dot).
        xr = jnp.dot(h, s4_ref[...], preferred_element_type=jnp.float32)
        res = jnp.dot(wd_ref[...], xr, preferred_element_type=jnp.float32) + bd

        h = _leaky(h2 + res)

    # final conv (kernel=4, stride=1, valid) + bias + sigmoid.
    Lf = o_ref.shape[2]
    yf = ktap_conv(wf_ref[...], h, KF, Lf) + bf_ref[...]   # (8, Lf); row 0 is real
    o_ref[0] = jax.nn.sigmoid(yf[0:1, :])


# ---------------------------------------------------------------------------
# One-time (outside jit) parameter folding / packing + selection matrices.
# ---------------------------------------------------------------------------
def _pad_to(a, shape):
    a = np.asarray(a, np.float32)
    return np.pad(a, [(0, s - d) for d, s in zip(a.shape, shape)])


def _pack_conv_w(w, co_p, ci_p):
    """(cout, cin, K) -> zero-padded (co_p, ci_p, K) -> (co_p, K*ci_p), k-major."""
    wp = _pad_to(w, (co_p, ci_p, np.asarray(w).shape[2]))
    return np.ascontiguousarray(np.transpose(wp, (0, 2, 1)).reshape(co_p, -1))


def _sel_even_pad(L):
    """u = (pad(x, 2) )[::2], length L//2 + 2, as a 0/1 right-multiply matrix."""
    Lu = L // 2 + 2
    S = np.zeros((L, Lu), np.float32)
    j = np.arange(1, L // 2 + 1)
    S[2 * j - 2, j] = 1.0
    return S


def _sel_stride4(L):
    """x[::4] (length L//4) as a 0/1 right-multiply matrix."""
    Lo = L // 4
    S = np.zeros((L, Lo), np.float32)
    j = np.arange(Lo)
    S[4 * j, j] = 1.0
    return S


def pack_dnet_params(params, L):
    """Pre-pad / pre-pack all Dnet parameters and build subsample selection
    matrices. Call ONCE outside jax.jit."""
    assert L % 256 == 0 and L // 256 >= KF, \
        "fused Dnet kernel assumes L % 256 == 0 and L >= 1024"
    blocks, (wf, bf) = params
    flat = []
    Lb = L
    for (cin, cout), bp in zip(CHANNELS, blocks):
        ci, co = _rup8(cin), _rup8(cout)
        w1p = _pack_conv_w(bp["w1"], co, ci)
        w2p = _pack_conv_w(bp["w2"], co, co)
        wd = _pad_to(bp["wd"], (co, ci))
        aux = np.zeros((co, 7), np.float32)
        for idx, name in enumerate(
                ["b1", "scale1", "shift1", "b2", "scale2", "shift2", "bd"]):
            aux[:cout, idx] = np.asarray(bp[name], np.float32)
        flat += [w1p, w2p, wd, aux,
                 _sel_even_pad(Lb), _sel_even_pad(Lb // 2), _sel_stride4(Lb)]
        Lb //= 4
    wfp = _pack_conv_w(wf, _rup8(1), _rup8(CHANNELS[-1][1]))      # (8, 32)
    bfp = _pad_to(np.asarray(bf, np.float32)[:, None], (_rup8(1), 1))
    flat += [wfp, bfp]
    return tuple(jnp.asarray(a) for a in flat)


# ---------------------------------------------------------------------------
# Forward: one fused pallas_call, grid over batch.
# ---------------------------------------------------------------------------
def dnet_forward(x, packed):
    """x: (B, 1, L) float32;  packed: output of pack_dnet_params(params, L)."""
    B, cin, L = x.shape
    ci0 = _rup8(cin)
    Lf = L // 256 - (KF - 1)
    xp = jnp.pad(x, ((0, 0), (0, ci0 - cin), (0, 0)))              # (B, 8, L)

    in_specs = [pl.BlockSpec((1, ci0, L), lambda i: (i, 0, 0))]
    in_specs += [pl.BlockSpec(a.shape, lambda i: (0, 0)) for a in packed]

    return pl.pallas_call(
        _dnet_kernel,
        out_shape=jax.ShapeDtypeStruct((B, 1, Lf), jnp.float32),
        grid=(B,),
        in_specs=in_specs,
        out_specs=pl.BlockSpec((1, 1, Lf), lambda i: (i, 0, 0)),
        compiler_params=pltpu.CompilerParams(
            dimension_semantics=("parallel",),
            vmem_limit_bytes=32 * 1024 * 1024),
    )(xp, *packed)


# ---------------------------------------------------------------------------
# Deterministic parameter init (mirrors the shapes in Dnet.__init__)
# ---------------------------------------------------------------------------
def _wn_weight(kv, kg, shape):
    """weight_norm-ed conv weight: w = g * v / ||v||  (norm per out-channel)."""
    v = jax.random.normal(kv, shape, jnp.float32) * 0.3
    g = jax.random.uniform(kg, (shape[0],) + (1,) * (len(shape) - 1),
                           jnp.float32, 0.5, 1.5)
    norm = jnp.sqrt(jnp.sum(v * v, axis=tuple(range(1, len(shape))),
                            keepdims=True))
    return g * v / norm


def _bn_affine(k, c):
    k1, k2, k3, k4 = jax.random.split(k, 4)
    gamma = jax.random.uniform(k1, (c,), jnp.float32, 0.5, 1.5)
    beta = jax.random.normal(k2, (c,), jnp.float32) * 0.1
    rmean = jax.random.normal(k3, (c,), jnp.float32) * 0.1
    rvar = jax.random.uniform(k4, (c,), jnp.float32, 0.5, 1.5)
    scale = gamma / jnp.sqrt(rvar + BN_EPS)
    shift = beta - rmean * scale
    return scale, shift


def init_dnet(key):
    keys = jax.random.split(key, NUM_BLOCKS + 1)
    blocks = []
    for (cin, cout), k in zip(CHANNELS, keys[:-1]):
        ks = jax.random.split(k, 8)
        bp = dict(
            w1=_wn_weight(ks[0], ks[1], (cout, cin, K)),
            b1=jax.random.normal(ks[2], (cout,)) * 0.1,
            w2=_wn_weight(ks[3], ks[4], (cout, cout, K)),
            b2=jax.random.normal(ks[5], (cout,)) * 0.1,
            wd=jax.random.normal(ks[6], (cout, cin)) * 0.3,   # 1x1 conv weight
            bd=jax.random.normal(ks[7], (cout,)) * 0.1,
        )
        kb1, kb2 = jax.random.split(jax.random.fold_in(k, 123))
        bp["scale1"], bp["shift1"] = _bn_affine(kb1, cout)
        bp["scale2"], bp["shift2"] = _bn_affine(kb2, cout)
        blocks.append(bp)
    kf1, kf2 = jax.random.split(keys[-1])
    wf = jax.random.normal(kf1, (1, CHANNELS[-1][1], KF)) * 0.3
    bf = jax.random.normal(kf2, (1,)) * 0.1
    return blocks, (wf, bf)


# ---------------------------------------------------------------------------
# Pure-JAX reference (for correctness check)
# ---------------------------------------------------------------------------
def _ref_conv1d(x, w, b, stride, padding, dilation):
    y = jax.lax.conv_general_dilated(
        x, w, window_strides=(stride,), padding=[(padding, padding)],
        rhs_dilation=(dilation,), dimension_numbers=("NCH", "OIH", "NCH"))
    return y + b[None, :, None]


def dnet_reference(x, params):
    blocks, (wf, bf) = params
    h = x
    for bp in blocks:
        h1 = _leaky(_ref_conv1d(h, bp["w1"], bp["b1"], 2, 2, 2))
        h1 = h1 * bp["scale1"][None, :, None] + bp["shift1"][None, :, None]
        h2 = _leaky(_ref_conv1d(h1, bp["w2"], bp["b2"], 2, 2, 2))
        h2 = h2 * bp["scale2"][None, :, None] + bp["shift2"][None, :, None]
        res = _ref_conv1d(h, bp["wd"][:, :, None], bp["bd"], 4, 0, 1)
        h = _leaky(h2 + res)
    return jax.nn.sigmoid(_ref_conv1d(h, wf, bf, 1, 0, 1))


# ---------------------------------------------------------------------------
if __name__ == "__main__":
    key = jax.random.PRNGKey(0)
    kx, kp = jax.random.split(key)
    B, L = 2, 1024                       # min L so the final kernel-4 conv fits
    x = jax.random.normal(kx, (B, 1, L), jnp.float32)
    params = init_dnet(kp)
    packed = pack_dnet_params(params, L)   # one-time packing, outside jit

    fwd = jax.jit(dnet_forward)
    y = jax.block_until_ready(fwd(x, packed))

    y_ref = dnet_reference(x, params)
    assert y.shape == (B, 1, 1), y.shape
    assert bool(jnp.allclose(y, y_ref, rtol=1e-4, atol=1e-5)), (y, y_ref)
    print("KERNEL_OK")
</pallas_src>

<mosaic_0001>
module attributes {stable_mosaic.version = 11 : i64} {
  func.func @_dnet_kernel(%arg0: i32, %arg1: memref<1x8x1024xf32, #tpu.memory_space<vmem>>, %arg2: memref<8x24xf32, #tpu.memory_space<vmem>>, %arg3: memref<8x24xf32, #tpu.memory_space<vmem>>, %arg4: memref<8x8xf32, #tpu.memory_space<vmem>>, %arg5: memref<8x7xf32, #tpu.memory_space<vmem>>, %arg6: memref<1024x514xf32, #tpu.memory_space<vmem>>, %arg7: memref<512x258xf32, #tpu.memory_space<vmem>>, %arg8: memref<1024x256xf32, #tpu.memory_space<vmem>>, %arg9: memref<8x24xf32, #tpu.memory_space<vmem>>, %arg10: memref<8x24xf32, #tpu.memory_space<vmem>>, %arg11: memref<8x8xf32, #tpu.memory_space<vmem>>, %arg12: memref<8x7xf32, #tpu.memory_space<vmem>>, %arg13: memref<256x130xf32, #tpu.memory_space<vmem>>, %arg14: memref<128x66xf32, #tpu.memory_space<vmem>>, %arg15: memref<256x64xf32, #tpu.memory_space<vmem>>, %arg16: memref<16x24xf32, #tpu.memory_space<vmem>>, %arg17: memref<16x48xf32, #tpu.memory_space<vmem>>, %arg18: memref<16x8xf32, #tpu.memory_space<vmem>>, %arg19: memref<16x7xf32, #tpu.memory_space<vmem>>, %arg20: memref<64x34xf32, #tpu.memory_space<vmem>>, %arg21: memref<32x18xf32, #tpu.memory_space<vmem>>, %arg22: memref<64x16xf32, #tpu.memory_space<vmem>>, %arg23: memref<8x48xf32, #tpu.memory_space<vmem>>, %arg24: memref<8x24xf32, #tpu.memory_space<vmem>>, %arg25: memref<8x16xf32, #tpu.memory_space<vmem>>, %arg26: memref<8x7xf32, #tpu.memory_space<vmem>>, %arg27: memref<16x10xf32, #tpu.memory_space<vmem>>, %arg28: memref<8x6xf32, #tpu.memory_space<vmem>>, %arg29: memref<16x4xf32, #tpu.memory_space<vmem>>, %arg30: memref<8x32xf32, #tpu.memory_space<vmem>>, %arg31: memref<8x1xf32, #tpu.memory_space<vmem>>, %arg32: memref<1x1x1xf32, #tpu.memory_space<vmem>>) attributes {dimension_semantics = [#tpu.dimension_semantics<parallel>], iteration_bounds = array<i64: 2>, scalar_prefetch = 0 : i64, scratch_operands = 0 : i64, tpu.core_type = #tpu.core_type<tc>, window_params = [{transform_indices = @transform_0, window_bounds = array<i64: 1, 8, 1024>}, {pipeline_mode = #tpu.pipeline_mode<synchronous>, transform_indices = @transform_1, window_bounds = array<i64: 8, 24>}, {pipeline_mode = #tpu.pipeline_mode<synchronous>, transform_indices = @transform_2, window_bounds = array<i64: 8, 24>}, {pipeline_mode = #tpu.pipeline_mode<synchronous>, transform_indices = @transform_3, window_bounds = array<i64: 8, 8>}, {pipeline_mode = #tpu.pipeline_mode<synchronous>, transform_indices = @transform_4, window_bounds = array<i64: 8, 7>}, {pipeline_mode = #tpu.pipeline_mode<synchronous>, transform_indices = @transform_5, window_bounds = array<i64: 1024, 514>}, {pipeline_mode = #tpu.pipeline_mode<synchronous>, transform_indices = @transform_6, window_bounds = array<i64: 512, 258>}, {pipeline_mode = #tpu.pipeline_mode<synchronous>, transform_indices = @transform_7, window_bounds = array<i64: 1024, 256>}, {pipeline_mode = #tpu.pipeline_mode<synchronous>, transform_indices = @transform_8, window_bounds = array<i64: 8, 24>}, {pipeline_mode = #tpu.pipeline_mode<synchronous>, transform_indices = @transform_9, window_bounds = array<i64: 8, 24>}, {pipeline_mode = #tpu.pipeline_mode<synchronous>, transform_indices = @transform_10, window_bounds = array<i64: 8, 8>}, {pipeline_mode = #tpu.pipeline_mode<synchronous>, transform_indices = @transform_11, window_bounds = array<i64: 8, 7>}, {pipeline_mode = #tpu.pipeline_mode<synchronous>, transform_indices = @transform_12, window_bounds = array<i64: 256, 130>}, {pipeline_mode = #tpu.pipeline_mode<synchronous>, transform_indices = @transform_13, window_bounds = array<i64: 128, 66>}, {pipeline_mode = #tpu.pipeline_mode<synchronous>, transform_indices = @transform_14, window_bounds = array<i64: 256, 64>}, {pipeline_mode = #tpu.pipeline_mode<synchronous>, transform_indices = @transform_15, window_bounds = array<i64: 16, 24>}, {pipeline_mode = #tpu.pipeline_mode<synchronous>, transform_indices = @transform_16, window_bounds = array<i64: 16, 48>}, {pipeline_mode = #tpu.pipeline_mode<synchronous>, transform_indices = @transform_17, window_bounds = array<i64: 16, 8>}, {pipeline_mode = #tpu.pipeline_mode<synchronous>, transform_indices = @transform_18, window_bounds = array<i64: 16, 7>}, {pipeline_mode = #tpu.pipeline_mode<synchronous>, transform_indices = @transform_19, window_bounds = array<i64: 64, 34>}, {pipeline_mode = #tpu.pipeline_mode<synchronous>, transform_indices = @transform_20, window_bounds = array<i64: 32, 18>}, {pipeline_mode = #tpu.pipeline_mode<synchronous>, transform_indices = @transform_21, window_bounds = array<i64: 64, 16>}, {pipeline_mode = #tpu.pipeline_mode<synchronous>, transform_indices = @transform_22, window_bounds = array<i64: 8, 48>}, {pipeline_mode = #tpu.pipeline_mode<synchronous>, transform_indices = @transform_23, window_bounds = array<i64: 8, 24>}, {pipeline_mode = #tpu.pipeline_mode<synchronous>, transform_indices = @transform_24, window_bounds = array<i64: 8, 16>}, {pipeline_mode = #tpu.pipeline_mode<synchronous>, transform_indices = @transform_25, window_bounds = array<i64: 8, 7>}, {pipeline_mode = #tpu.pipeline_mode<synchronous>, transform_indices = @transform_26, window_bounds = array<i64: 16, 10>}, {pipeline_mode = #tpu.pipeline_mode<synchronous>, transform_indices = @transform_27, window_bounds = array<i64: 8, 6>}, {pipeline_mode = #tpu.pipeline_mode<synchronous>, transform_indices = @transform_28, window_bounds = array<i64: 16, 4>}, {pipeline_mode = #tpu.pipeline_mode<synchronous>, transform_indices = @transform_29, window_bounds = array<i64: 8, 32>}, {pipeline_mode = #tpu.pipeline_mode<synchronous>, transform_indices = @transform_30, window_bounds = array<i64: 8, 1>}, {transform_indices = @transform_31, window_bounds = array<i64: 1, 1, 1>}]} {
    %c0 = arith.constant 0 : index
    %c0_0 = arith.constant 0 : index
    %c0_1 = arith.constant 0 : index
    %0 = vector.load %arg1[%c0, %c0_0, %c0_1] : memref<1x8x1024xf32, #tpu.memory_space<vmem>>, vector<1x8x1024xf32>
    %1 = vector.shape_cast %0 : vector<1x8x1024xf32> to vector<8x1024xf32>
    %c0_2 = arith.constant 0 : index
    %c0_3 = arith.constant 0 : index
    %2 = vector.load %arg5[%c0_2, %c0_3] : memref<8x7xf32, #tpu.memory_space<vmem>>, vector<8x7xf32>
    %3 = vector.extract_strided_slice %2 {offsets = [0, 0], sizes = [8, 1], strides = [1, 1]} : vector<8x7xf32> to vector<8x1xf32>
    %4 = vector.extract_strided_slice %2 {offsets = [0, 1], sizes = [8, 1], strides = [1, 1]} : vector<8x7xf32> to vector<8x1xf32>
    %5 = vector.extract_strided_slice %2 {offsets = [0, 2], sizes = [8, 1], strides = [1, 1]} : vector<8x7xf32> to vector<8x1xf32>
    %6 = vector.extract_strided_slice %2 {offsets = [0, 3], sizes = [8, 1], strides = [1, 1]} : vector<8x7xf32> to vector<8x1xf32>
    %7 = vector.extract_strided_slice %2 {offsets = [0, 4], sizes = [8, 1], strides = [1, 1]} : vector<8x7xf32> to vector<8x1xf32>
    %8 = vector.extract_strided_slice %2 {offsets = [0, 5], sizes = [8, 1], strides = [1, 1]} : vector<8x7xf32> to vector<8x1xf32>
    %9 = vector.extract_strided_slice %2 {offsets = [0, 6], sizes = [8, 1], strides = [1, 1]} : vector<8x7xf32> to vector<8x1xf32>
    %c0_4 = arith.constant 0 : index
    %c0_5 = arith.constant 0 : index
    %10 = vector.load %arg6[%c0_4, %c0_5] : memref<1024x514xf32, #tpu.memory_space<vmem>>, vector<1024x514xf32>
    %cst = arith.constant dense<0.000000e+00> : vector<8x514xf32>
    %11 = tpu.matmul %1, %10, %cst {dimension_numbers = #tpu.dot_dimension_numbers<[1], [0], [0], [1], [0, 0, 1, 1], [], []>} : vector<8x1024xf32>, vector<1024x514xf32>, vector<8x514xf32> -> vector<8x514xf32>
    %c0_6 = arith.constant 0 : index
    %c0_7 = arith.constant 0 : index
    %12 = vector.load %arg2[%c0_6, %c0_7] : memref<8x24xf32, #tpu.memory_space<vmem>>, vector<8x24xf32>
    %13 = vector.extract_strided_slice %11 {offsets = [0, 0], sizes = [8, 512], strides = [1, 1]} : vector<8x514xf32> to vector<8x512xf32>
    %14 = vector.extract_strided_slice %11 {offsets = [0, 1], sizes = [8, 512], strides = [1, 1]} : vector<8x514xf32> to vector<8x512xf32>
    %15 = vector.extract_strided_slice %11 {offsets = [0, 2], sizes = [8, 512], strides = [1, 1]} : vector<8x514xf32> to vector<8x512xf32>
    %16 = tpu.concatenate %13, %14, %15 in 0 : vector<8x512xf32>, vector<8x512xf32>, vector<8x512xf32> -> vector<24x512xf32>
    %cst_8 = arith.constant dense<0.000000e+00> : vector<8x512xf32>
    %17 = tpu.matmul %12, %16, %cst_8 {dimension_numbers = #tpu.dot_dimension_numbers<[1], [0], [0], [1], [0, 0, 1, 1], [], []>} : vector<8x24xf32>, vector<24x512xf32>, vector<8x512xf32> -> vector<8x512xf32>
    %18 = vector.broadcast %3 : vector<8x1xf32> to vector<8x512xf32>
    %19 = arith.addf %17, %18 : vector<8x512xf32>
    %cst_9 = arith.constant 0.000000e+00 : f32
    %20 = vector.broadcast %cst_9 : f32 to vector<8x512xf32>
    %21 = arith.cmpf oge, %19, %20 : vector<8x512xf32>
    %cst_10 = arith.constant 0.00999999977 : f32
    %22 = vector.broadcast %cst_10 : f32 to vector<8x512xf32>
    %23 = arith.mulf %22, %19 : vector<8x512xf32>
    %24 = arith.select %21, %19, %23 : vector<8x512xi1>, vector<8x512xf32>
    %25 = vector.broadcast %4 : vector<8x1xf32> to vector<8x512xf32>
    %26 = arith.mulf %24, %25 : vector<8x512xf32>
    %27 = vector.broadcast %5 : vector<8x1xf32> to vector<8x512xf32>
    %28 = arith.addf %26, %27 : vector<8x512xf32>
    %c0_11 = arith.constant 0 : index
    %c0_12 = arith.constant 0 : index
    %29 = vector.load %arg7[%c0_11, %c0_12] : memref<512x258xf32, #tpu.memory_space<vmem>>, vector<512x258xf32>
    %cst_13 = arith.constant dense<0.000000e+00> : vector<8x258xf32>
    %30 = tpu.matmul %28, %29, %cst_13 {dimension_numbers = #tpu.dot_dimension_numbers<[1], [0], [0], [1], [0, 0, 1, 1], [], []>} : vector<8x512xf32>, vector<512x258xf32>, vector<8x258xf32> -> vector<8x258xf32>
    %c0_14 = arith.constant 0 : index
    %c0_15 = arith.constant 0 : index
    %31 = vector.load %arg3[%c0_14, %c0_15] : memref<8x24xf32, #tpu.memory_space<vmem>>, vector<8x24xf32>
    %32 = vector.extract_strided_slice %30 {offsets = [0, 0], sizes = [8, 256], strides = [1, 1]} : vector<8x258xf32> to vector<8x256xf32>
    %33 = vector.extract_strided_slice %30 {offsets = [0, 1], sizes = [8, 256], strides = [1, 1]} : vector<8x258xf32> to vector<8x256xf32>
    %34 = vector.extract_strided_slice %30 {offsets = [0, 2], sizes = [8, 256], strides = [1, 1]} : vector<8x258xf32> to vector<8x256xf32>
    %35 = tpu.concatenate %32, %33, %34 in 0 : vector<8x256xf32>, vector<8x256xf32>, vector<8x256xf32> -> vector<24x256xf32>
    %cst_16 = arith.constant dense<0.000000e+00> : vector<8x256xf32>
    %36 = tpu.matmul %31, %35, %cst_16 {dimension_numbers = #tpu.dot_dimension_numbers<[1], [0], [0], [1], [0, 0, 1, 1], [], []>} : vector<8x24xf32>, vector<24x256xf32>, vector<8x256xf32> -> vector<8x256xf32>
    %37 = vector.broadcast %6 : vector<8x1xf32> to vector<8x256xf32>
    %38 = arith.addf %36, %37 : vector<8x256xf32>
    %cst_17 = arith.constant 0.000000e+00 : f32
    %39 = vector.broadcast %cst_17 : f32 to vector<8x256xf32>
    %40 = arith.cmpf oge, %38, %39 : vector<8x256xf32>
    %cst_18 = arith.constant 0.00999999977 : f32
    %41 = vector.broadcast %cst_18 : f32 to vector<8x256xf32>
    %42 = arith.mulf %41, %38 : vector<8x256xf32>
    %43 = arith.select %40, %38, %42 : vector<8x256xi1>, vector<8x256xf32>
    %44 = vector.broadcast %7 : vector<8x1xf32> to vector<8x256xf32>
    %45 = arith.mulf %43, %44 : vector<8x256xf32>
    %46 = vector.broadcast %8 : vector<8x1xf32> to vector<8x256xf32>
    %47 = arith.addf %45, %46 : vector<8x256xf32>
    %c0_19 = arith.constant 0 : index
    %c0_20 = arith.constant 0 : index
    %48 = vector.load %arg8[%c0_19, %c0_20] : memref<1024x256xf32, #tpu.memory_space<vmem>>, vector<1024x256xf32>
    %cst_21 = arith.constant dense<0.000000e+00> : vector<8x256xf32>
    %49 = tpu.matmul %1, %48, %cst_21 {dimension_numbers = #tpu.dot_dimension_numbers<[1], [0], [0], [1], [0, 0, 1, 1], [], []>} : vector<8x1024xf32>, vector<1024x256xf32>, vector<8x256xf32> -> vector<8x256xf32>
    %c0_22 = arith.constant 0 : index
    %c0_23 = arith.constant 0 : index
    %50 = vector.load %arg4[%c0_22, %c0_23] : memref<8x8xf32, #tpu.memory_space<vmem>>, vector<8x8xf32>
    %cst_24 = arith.constant dense<0.000000e+00> : vector<8x256xf32>
    %51 = tpu.matmul %50, %49, %cst_24 {dimension_numbers = #tpu.dot_dimension_numbers<[1], [0], [0], [1], [0, 0, 1, 1], [], []>} : vector<8x8xf32>, vector<8x256xf32>, vector<8x256xf32> -> vector<8x256xf32>
    %52 = vector.broadcast %9 : vector<8x1xf32> to vector<8x256xf32>
    %53 = arith.addf %51, %52 : vector<8x256xf32>
    %54 = arith.addf %47, %53 : vector<8x256xf32>
    %cst_25 = arith.constant 0.000000e+00 : f32
    %55 = vector.broadcast %cst_25 : f32 to vector<8x256xf32>
    %56 = arith.cmpf oge, %54, %55 : vector<8x256xf32>
    %cst_26 = arith.constant 0.00999999977 : f32
    %57 = vector.broadcast %cst_26 : f32 to vector<8x256xf32>
    %58 = arith.mulf %57, %54 : vector<8x256xf32>
    %59 = arith.select %56, %54, %58 : vector<8x256xi1>, vector<8x256xf32>
    %c0_27 = arith.constant 0 : index
    %c0_28 = arith.constant 0 : index
    %60 = vector.load %arg12[%c0_27, %c0_28] : memref<8x7xf32, #tpu.memory_space<vmem>>, vector<8x7xf32>
    %61 = vector.extract_strided_slice %60 {offsets = [0, 0], sizes = [8, 1], strides = [1, 1]} : vector<8x7xf32> to vector<8x1xf32>
    %62 = vector.extract_strided_slice %60 {offsets = [0, 1], sizes = [8, 1], strides = [1, 1]} : vector<8x7xf32> to vector<8x1xf32>
    %63 = vector.extract_strided_slice %60 {offsets = [0, 2], sizes = [8, 1], strides = [1, 1]} : vector<8x7xf32> to vector<8x1xf32>
    %64 = vector.extract_strided_slice %60 {offsets = [0, 3], sizes = [8, 1], strides = [1, 1]} : vector<8x7xf32> to vector<8x1xf32>
    %65 = vector.extract_strided_slice %60 {offsets = [0, 4], sizes = [8, 1], strides = [1, 1]} : vector<8x7xf32> to vector<8x1xf32>
    %66 = vector.extract_strided_slice %60 {offsets = [0, 5], sizes = [8, 1], strides = [1, 1]} : vector<8x7xf32> to vector<8x1xf32>
    %67 = vector.extract_strided_slice %60 {offsets = [0, 6], sizes = [8, 1], strides = [1, 1]} : vector<8x7xf32> to vector<8x1xf32>
    %c0_29 = arith.constant 0 : index
    %c0_30 = arith.constant 0 : index
    %68 = vector.load %arg13[%c0_29, %c0_30] : memref<256x130xf32, #tpu.memory_space<vmem>>, vector<256x130xf32>
    %cst_31 = arith.constant dense<0.000000e+00> : vector<8x130xf32>
    %69 = tpu.matmul %59, %68, %cst_31 {dimension_numbers = #tpu.dot_dimension_numbers<[1], [0], [0], [1], [0, 0, 1, 1], [], []>} : vector<8x256xf32>, vector<256x130xf32>, vector<8x130xf32> -> vector<8x130xf32>
    %c0_32 = arith.constant 0 : index
    %c0_33 = arith.constant 0 : index
    %70 = vector.load %arg9[%c0_32, %c0_33] : memref<8x24xf32, #tpu.memory_space<vmem>>, vector<8x24xf32>
    %71 = vector.extract_strided_slice %69 {offsets = [0, 0], sizes = [8, 128], strides = [1, 1]} : vector<8x130xf32> to vector<8x128xf32>
    %72 = vector.extract_strided_slice %69 {offsets = [0, 1], sizes = [8, 128], strides = [1, 1]} : vector<8x130xf32> to vector<8x128xf32>
    %73 = vector.extract_strided_slice %69 {offsets = [0, 2], sizes = [8, 128], strides = [1, 1]} : vector<8x130xf32> to vector<8x128xf32>
    %74 = tpu.concatenate %71, %72, %73 in 0 : vector<8x128xf32>, vector<8x128xf32>, vector<8x128xf32> -> vector<24x128xf32>
    %cst_34 = arith.constant dense<0.000000e+00> : vector<8x128xf32>
    %75 = tpu.matmul %70, %74, %cst_34 {dimension_numbers = #tpu.dot_dimension_numbers<[1], [0], [0], [1], [0, 0, 1, 1], [], []>} : vector<8x24xf32>, vector<24x128xf32>, vector<8x128xf32> -> vector<8x128xf32>
    %76 = vector.broadcast %61 : vector<8x1xf32> to vector<8x128xf32>
    %77 = arith.addf %75, %76 : vector<8x128xf32>
    %cst_35 = arith.constant 0.000000e+00 : f32
    %78 = vector.broadcast %cst_35 : f32 to vector<8x128xf32>
    %79 = arith.cmpf oge, %77, %78 : vector<8x128xf32>
    %cst_36 = arith.constant 0.00999999977 : f32
    %80 = vector.broadcast %cst_36 : f32 to vector<8x128xf32>
    %81 = arith.mulf %80, %77 : vector<8x128xf32>
    %82 = arith.select %79, %77, %81 : vector<8x128xi1>, vector<8x128xf32>
    %83 = vector.broadcast %62 : vector<8x1xf32> to vector<8x128xf32>
    %84 = arith.mulf %82, %83 : vector<8x128xf32>
    %85 = vector.broadcast %63 : vector<8x1xf32> to vector<8x128xf32>
    %86 = arith.addf %84, %85 : vector<8x128xf32>
    %c0_37 = arith.constant 0 : index
    %c0_38 = arith.constant 0 : index
    %87 = vector.load %arg14[%c0_37, %c0_38] : memref<128x66xf32, #tpu.memory_space<vmem>>, vector<128x66xf32>
    %cst_39 = arith.constant dense<0.000000e+00> : vector<8x66xf32>
    %88 = tpu.matmul %86, %87, %cst_39 {dimension_numbers = #tpu.dot_dimension_numbers<[1], [0], [0], [1], [0, 0, 1, 1], [], []>} : vector<8x128xf32>, vector<128x66xf32>, vector<8x66xf32> -> vector<8x66xf32>
    %c0_40 = arith.constant 0 : index
    %c0_41 = arith.constant 0 : index
    %89 = vector.load %arg10[%c0_40, %c0_41] : memref<8x24xf32, #tpu.memory_space<vmem>>, vector<8x24xf32>
    %90 = vector.extract_strided_slice %88 {offsets = [0, 0], sizes = [8, 64], strides = [1, 1]} : vector<8x66xf32> to vector<8x64xf32>
    %91 = vector.extract_strided_slice %88 {offsets = [0, 1], sizes = [8, 64], strides = [1, 1]} : vector<8x66xf32> to vector<8x64xf32>
    %92 = vector.extract_strided_slice %88 {offsets = [0, 2], sizes = [8, 64], strides = [1, 1]} : vector<8x66xf32> to vector<8x64xf32>
    %93 = tpu.concatenate %90, %91, %92 in 0 : vector<8x64xf32>, vector<8x64xf32>, vector<8x64xf32> -> vector<24x64xf32>
    %cst_42 = arith.constant dense<0.000000e+00> : vector<8x64xf32>
    %94 = tpu.matmul %89, %93, %cst_42 {dimension_numbers = #tpu.dot_dimension_numbers<[1], [0], [0], [1], [0, 0, 1, 1], [], []>} : vector<8x24xf32>, vector<24x64xf32>, vector<8x64xf32> -> vector<8x64xf32>
    %95 = vector.broadcast %64 : vector<8x1xf32> to vector<8x64xf32>
    %96 = arith.addf %94, %95 : vector<8x64xf32>
    %cst_43 = arith.constant 0.000000e+00 : f32
    %97 = vector.broadcast %cst_43 : f32 to vector<8x64xf32>
    %98 = arith.cmpf oge, %96, %97 : vector<8x64xf32>
    %cst_44 = arith.constant 0.00999999977 : f32
    %99 = vector.broadcast %cst_44 : f32 to vector<8x64xf32>
    %100 = arith.mulf %99, %96 : vector<8x64xf32>
    %101 = arith.select %98, %96, %100 : vector<8x64xi1>, vector<8x64xf32>
    %102 = vector.broadcast %65 : vector<8x1xf32> to vector<8x64xf32>
    %103 = arith.mulf %101, %102 : vector<8x64xf32>
    %104 = vector.broadcast %66 : vector<8x1xf32> to vector<8x64xf32>
    %105 = arith.addf %103, %104 : vector<8x64xf32>
    %c0_45 = arith.constant 0 : index
    %c0_46 = arith.constant 0 : index
    %106 = vector.load %arg15[%c0_45, %c0_46] : memref<256x64xf32, #tpu.memory_space<vmem>>, vector<256x64xf32>
    %cst_47 = arith.constant dense<0.000000e+00> : vector<8x64xf32>
    %107 = tpu.matmul %59, %106, %cst_47 {dimension_numbers = #tpu.dot_dimension_numbers<[1], [0], [0], [1], [0, 0, 1, 1], [], []>} : vector<8x256xf32>, vector<256x64xf32>, vector<8x64xf32> -> vector<8x64xf32>
    %c0_48 = arith.constant 0 : index
    %c0_49 = arith.constant 0 : index
    %108 = vector.load %arg11[%c0_48, %c0_49] : memref<8x8xf32, #tpu.memory_space<vmem>>, vector<8x8xf32>
    %cst_50 = arith.constant dense<0.000000e+00> : vector<8x64xf32>
    %109 = tpu.matmul %108, %107, %cst_50 {dimension_numbers = #tpu.dot_dimension_numbers<[1], [0], [0], [1], [0, 0, 1, 1], [], []>} : vector<8x8xf32>, vector<8x64xf32>, vector<8x64xf32> -> vector<8x64xf32>
    %110 = vector.broadcast %67 : vector<8x1xf32> to vector<8x64xf32>
    %111 = arith.addf %109, %110 : vector<8x64xf32>
    %112 = arith.addf %105, %111 : vector<8x64xf32>
    %cst_51 = arith.constant 0.000000e+00 : f32
    %113 = vector.broadcast %cst_51 : f32 to vector<8x64xf32>
    %114 = arith.cmpf oge, %112, %113 : vector<8x64xf32>
    %cst_52 = arith.constant 0.00999999977 : f32
    %115 = vector.broadcast %cst_52 : f32 to vector<8x64xf32>
    %116 = arith.mulf %115, %112 : vector<8x64xf32>
    %117 = arith.select %114, %112, %116 : vector<8x64xi1>, vector<8x64xf32>
    %c0_53 = arith.constant 0 : index
    %c0_54 = arith.constant 0 : index
    %118 = vector.load %arg19[%c0_53, %c0_54] : memref<16x7xf32, #tpu.memory_space<vmem>>, vector<16x7xf32>
    %119 = vector.extract_strided_slice %118 {offsets = [0, 0], sizes = [16, 1], strides = [1, 1]} : vector<16x7xf32> to vector<16x1xf32>
    %120 = vector.extract_strided_slice %118 {offsets = [0, 1], sizes = [16, 1], strides = [1, 1]} : vector<16x7xf32> to vector<16x1xf32>
    %121 = vector.extract_strided_slice %118 {offsets = [0, 2], sizes = [16, 1], strides = [1, 1]} : vector<16x7xf32> to vector<16x1xf32>
    %122 = vector.extract_strided_slice %118 {offsets = [0, 3], sizes = [16, 1], strides = [1, 1]} : vector<16x7xf32> to vector<16x1xf32>
    %123 = vector.extract_strided_slice %118 {offsets = [0, 4], sizes = [16, 1], strides = [1, 1]} : vector<16x7xf32> to vector<16x1xf32>
    %124 = vector.extract_strided_slice %118 {offsets = [0, 5], sizes = [16, 1], strides = [1, 1]} : vector<16x7xf32> to vector<16x1xf32>
    %125 = vector.extract_strided_slice %118 {offsets = [0, 6], sizes = [16, 1], strides = [1, 1]} : vector<16x7xf32> to vector<16x1xf32>
    %c0_55 = arith.constant 0 : index
    %c0_56 = arith.constant 0 : index
    %126 = vector.load %arg20[%c0_55, %c0_56] : memref<64x34xf32, #tpu.memory_space<vmem>>, vector<64x34xf32>
    %cst_57 = arith.constant dense<0.000000e+00> : vector<8x34xf32>
    %127 = tpu.matmul %117, %126, %cst_57 {dimension_numbers = #tpu.dot_dimension_numbers<[1], [0], [0], [1], [0, 0, 1, 1], [], []>} : vector<8x64xf32>, vector<64x34xf32>, vector<8x34xf32> -> vector<8x34xf32>
    %c0_58 = arith.constant 0 : index
    %c0_59 = arith.constant 0 : index
    %128 = vector.load %arg16[%c0_58, %c0_59] : memref<16x24xf32, #tpu.memory_space<vmem>>, vector<16x24xf32>
    %129 = vector.extract_strided_slice %127 {offsets = [0, 0], sizes = [8, 32], strides = [1, 1]} : vector<8x34xf32> to vector<8x32xf32>
    %130 = vector.extract_strided_slice %127 {offsets = [0, 1], sizes = [8, 32], strides = [1, 1]} : vector<8x34xf32> to vector<8x32xf32>
    %131 = vector.extract_strided_slice %127 {offsets = [0, 2], sizes = [8, 32], strides = [1, 1]} : vector<8x34xf32> to vector<8x32xf32>
    %132 = tpu.concatenate %129, %130, %131 in 0 : vector<8x32xf32>, vector<8x32xf32>, vector<8x32xf32> -> vector<24x32xf32>
    %cst_60 = arith.constant dense<0.000000e+00> : vector<16x32xf32>
    %133 = tpu.matmul %128, %132, %cst_60 {dimension_numbers = #tpu.dot_dimension_numbers<[1], [0], [0], [1], [0, 0, 1, 1], [], []>} : vector<16x24xf32>, vector<24x32xf32>, vector<16x32xf32> -> vector<16x32xf32>
    %134 = vector.broadcast %119 : vector<16x1xf32> to vector<16x32xf32>
    %135 = arith.addf %133, %134 : vector<16x32xf32>
    %cst_61 = arith.constant 0.000000e+00 : f32
    %136 = vector.broadcast %cst_61 : f32 to vector<16x32xf32>
    %137 = arith.cmpf oge, %135, %136 : vector<16x32xf32>
    %cst_62 = arith.constant 0.00999999977 : f32
    %138 = vector.broadcast %cst_62 : f32 to vector<16x32xf32>
    %139 = arith.mulf %138, %135 : vector<16x32xf32>
    %140 = arith.select %137, %135, %139 : vector<16x32xi1>, vector<16x32xf32>
    %141 = vector.broadcast %120 : vector<16x1xf32> to vector<16x32xf32>
    %142 = arith.mulf %140, %141 : vector<16x32xf32>
    %143 = vector.broadcast %121 : vector<16x1xf32> to vector<16x32xf32>
    %144 = arith.addf %142, %143 : vector<16x32xf32>
    %c0_63 = arith.constant 0 : index
    %c0_64 = arith.constant 0 : index
    %145 = vector.load %arg21[%c0_63, %c0_64] : memref<32x18xf32, #tpu.memory_space<vmem>>, vector<32x18xf32>
    %cst_65 = arith.constant dense<0.000000e+00> : vector<16x18xf32>
    %146 = tpu.matmul %144, %145, %cst_65 {dimension_numbers = #tpu.dot_dimension_numbers<[1], [0], [0], [1], [0, 0, 1, 1], [], []>} : vector<16x32xf32>, vector<32x18xf32>, vector<16x18xf32> -> vector<16x18xf32>
    %c0_66 = arith.constant 0 : index
    %c0_67 = arith.constant 0 : index
    %147 = vector.load %arg17[%c0_66, %c0_67] : memref<16x48xf32, #tpu.memory_space<vmem>>, vector<16x48xf32>
    %148 = vector.extract_strided_slice %146 {offsets = [0, 0], sizes = [16, 16], strides = [1, 1]} : vector<16x18xf32> to vector<16x16xf32>
    %149 = vector.extract_strided_slice %146 {offsets = [0, 1], sizes = [16, 16], strides = [1, 1]} : vector<16x18xf32> to vector<16x16xf32>
    %150 = vector.extract_strided_slice %146 {offsets = [0, 2], sizes = [16, 16], strides = [1, 1]} : vector<16x18xf32> to vector<16x16xf32>
    %151 = tpu.concatenate %148, %149, %150 in 0 : vector<16x16xf32>, vector<16x16xf32>, vector<16x16xf32> -> vector<48x16xf32>
    %cst_68 = arith.constant dense<0.000000e+00> : vector<16x16xf32>
    %152 = tpu.matmul %147, %151, %cst_68 {dimension_numbers = #tpu.dot_dimension_numbers<[1], [0], [0], [1], [0, 0, 1, 1], [], []>} : vector<16x48xf32>, vector<48x16xf32>, vector<16x16xf32> -> vector<16x16xf32>
    %153 = vector.broadcast %122 : vector<16x1xf32> to vector<16x16xf32>
    %154 = arith.addf %152, %153 : vector<16x16xf32>
    %cst_69 = arith.constant 0.000000e+00 : f32
    %155 = vector.broadcast %cst_69 : f32 to vector<16x16xf32>
    %156 = arith.cmpf oge, %154, %155 : vector<16x16xf32>
    %cst_70 = arith.constant 0.00999999977 : f32
    %157 = vector.broadcast %cst_70 : f32 to vector<16x16xf32>
    %158 = arith.mulf %157, %154 : vector<16x16xf32>
    %159 = arith.select %156, %154, %158 : vector<16x16xi1>, vector<16x16xf32>
    %160 = vector.broadcast %123 : vector<16x1xf32> to vector<16x16xf32>
    %161 = arith.mulf %159, %160 : vector<16x16xf32>
    %162 = vector.broadcast %124 : vector<16x1xf32> to vector<16x16xf32>
    %163 = arith.addf %161, %162 : vector<16x16xf32>
    %c0_71 = arith.constant 0 : index
    %c0_72 = arith.constant 0 : index
    %164 = vector.load %arg22[%c0_71, %c0_72] : memref<64x16xf32, #tpu.memory_space<vmem>>, vector<64x16xf32>
    %cst_73 = arith.constant dense<0.000000e+00> : vector<8x16xf32>
    %165 = tpu.matmul %117, %164, %cst_73 {dimension_numbers = #tpu.dot_dimension_numbers<[1], [0], [0], [1], [0, 0, 1, 1], [], []>} : vector<8x64xf32>, vector<64x16xf32>, vector<8x16xf32> -> vector<8x16xf32>
    %c0_74 = arith.constant 0 : index
    %c0_75 = arith.constant 0 : index
    %166 = vector.load %arg18[%c0_74, %c0_75] : memref<16x8xf32, #tpu.memory_space<vmem>>, vector<16x8xf32>
    %cst_76 = arith.constant dense<0.000000e+00> : vector<16x16xf32>
    %167 = tpu.matmul %166, %165, %cst_76 {dimension_numbers = #tpu.dot_dimension_numbers<[1], [0], [0], [1], [0, 0, 1, 1], [], []>} : vector<16x8xf32>, vector<8x16xf32>, vector<16x16xf32> -> vector<16x16xf32>
    %168 = vector.broadcast %125 : vector<16x1xf32> to vector<16x16xf32>
    %169 = arith.addf %167, %168 : vector<16x16xf32>
    %170 = arith.addf %163, %169 : vector<16x16xf32>
    %cst_77 = arith.constant 0.000000e+00 : f32
    %171 = vector.broadcast %cst_77 : f32 to vector<16x16xf32>
    %172 = arith.cmpf oge, %170, %171 : vector<16x16xf32>
    %cst_78 = arith.constant 0.00999999977 : f32
    %173 = vector.broadcast %cst_78 : f32 to vector<16x16xf32>
    %174 = arith.mulf %173, %170 : vector<16x16xf32>
    %175 = arith.select %172, %170, %174 : vector<16x16xi1>, vector<16x16xf32>
    %c0_79 = arith.constant 0 : index
    %c0_80 = arith.constant 0 : index
    %176 = vector.load %arg26[%c0_79, %c0_80] : memref<8x7xf32, #tpu.memory_space<vmem>>, vector<8x7xf32>
    %177 = vector.extract_strided_slice %176 {offsets = [0, 0], sizes = [8, 1], strides = [1, 1]} : vector<8x7xf32> to vector<8x1xf32>
    %178 = vector.extract_strided_slice %176 {offsets = [0, 1], sizes = [8, 1], strides = [1, 1]} : vector<8x7xf32> to vector<8x1xf32>
    %179 = vector.extract_strided_slice %176 {offsets = [0, 2], sizes = [8, 1], strides = [1, 1]} : vector<8x7xf32> to vector<8x1xf32>
    %180 = vector.extract_strided_slice %176 {offsets = [0, 3], sizes = [8, 1], strides = [1, 1]} : vector<8x7xf32> to vector<8x1xf32>
    %181 = vector.extract_strided_slice %176 {offsets = [0, 4], sizes = [8, 1], strides = [1, 1]} : vector<8x7xf32> to vector<8x1xf32>
    %182 = vector.extract_strided_slice %176 {offsets = [0, 5], sizes = [8, 1], strides = [1, 1]} : vector<8x7xf32> to vector<8x1xf32>
    %183 = vector.extract_strided_slice %176 {offsets = [0, 6], sizes = [8, 1], strides = [1, 1]} : vector<8x7xf32> to vector<8x1xf32>
    %c0_81 = arith.constant 0 : index
    %c0_82 = arith.constant 0 : index
    %184 = vector.load %arg27[%c0_81, %c0_82] : memref<16x10xf32, #tpu.memory_space<vmem>>, vector<16x10xf32>
    %cst_83 = arith.constant dense<0.000000e+00> : vector<16x10xf32>
    %185 = tpu.matmul %175, %184, %cst_83 {dimension_numbers = #tpu.dot_dimension_numbers<[1], [0], [0], [1], [0, 0, 1, 1], [], []>} : vector<16x16xf32>, vector<16x10xf32>, vector<16x10xf32> -> vector<16x10xf32>
    %c0_84 = arith.constant 0 : index
    %c0_85 = arith.constant 0 : index
    %186 = vector.load %arg23[%c0_84, %c0_85] : memref<8x48xf32, #tpu.memory_space<vmem>>, vector<8x48xf32>
    %187 = vector.extract_strided_slice %185 {offsets = [0, 0], sizes = [16, 8], strides = [1, 1]} : vector<16x10xf32> to vector<16x8xf32>
    %188 = vector.extract_strided_slice %185 {offsets = [0, 1], sizes = [16, 8], strides = [1, 1]} : vector<16x10xf32> to vector<16x8xf32>
    %189 = vector.extract_strided_slice %185 {offsets = [0, 2], sizes = [16, 8], strides = [1, 1]} : vector<16x10xf32> to vector<16x8xf32>
    %190 = tpu.concatenate %187, %188, %189 in 0 : vector<16x8xf32>, vector<16x8xf32>, vector<16x8xf32> -> vector<48x8xf32>
    %cst_86 = arith.constant dense<0.000000e+00> : vector<8x8xf32>
    %191 = tpu.matmul %186, %190, %cst_86 {dimension_numbers = #tpu.dot_dimension_numbers<[1], [0], [0], [1], [0, 0, 1, 1], [], []>} : vector<8x48xf32>, vector<48x8xf32>, vector<8x8xf32> -> vector<8x8xf32>
    %192 = vector.broadcast %177 : vector<8x1xf32> to vector<8x8xf32>
    %193 = arith.addf %191, %192 : vector<8x8xf32>
    %cst_87 = arith.constant 0.000000e+00 : f32
    %194 = vector.broadcast %cst_87 : f32 to vector<8x8xf32>
    %195 = arith.cmpf oge, %193, %194 : vector<8x8xf32>
    %cst_88 = arith.constant 0.00999999977 : f32
    %196 = vector.broadcast %cst_88 : f32 to vector<8x8xf32>
    %197 = arith.mulf %196, %193 : vector<8x8xf32>
    %198 = arith.select %195, %193, %197 : vector<8x8xi1>, vector<8x8xf32>
    %199 = vector.broadcast %178 : vector<8x1xf32> to vector<8x8xf32>
    %200 = arith.mulf %198, %199 : vector<8x8xf32>
    %201 = vector.broadcast %179 : vector<8x1xf32> to vector<8x8xf32>
    %202 = arith.addf %200, %201 : vector<8x8xf32>
    %c0_89 = arith.constant 0 : index
    %c0_90 = arith.constant 0 : index
    %203 = vector.load %arg28[%c0_89, %c0_90] : memref<8x6xf32, #tpu.memory_space<vmem>>, vector<8x6xf32>
    %cst_91 = arith.constant dense<0.000000e+00> : vector<8x6xf32>
    %204 = tpu.matmul %202, %203, %cst_91 {dimension_numbers = #tpu.dot_dimension_numbers<[1], [0], [0], [1], [0, 0, 1, 1], [], []>} : vector<8x8xf32>, vector<8x6xf32>, vector<8x6xf32> -> vector<8x6xf32>
    %c0_92 = arith.constant 0 : index
    %c0_93 = arith.constant 0 : index
    %205 = vector.load %arg24[%c0_92, %c0_93] : memref<8x24xf32, #tpu.memory_space<vmem>>, vector<8x24xf32>
    %206 = vector.extract_strided_slice %204 {offsets = [0, 0], sizes = [8, 4], strides = [1, 1]} : vector<8x6xf32> to vector<8x4xf32>
    %207 = vector.extract_strided_slice %204 {offsets = [0, 1], sizes = [8, 4], strides = [1, 1]} : vector<8x6xf32> to vector<8x4xf32>
    %208 = vector.extract_strided_slice %204 {offsets = [0, 2], sizes = [8, 4], strides = [1, 1]} : vector<8x6xf32> to vector<8x4xf32>
    %209 = tpu.concatenate %206, %207, %208 in 0 : vector<8x4xf32>, vector<8x4xf32>, vector<8x4xf32> -> vector<24x4xf32>
    %cst_94 = arith.constant dense<0.000000e+00> : vector<8x4xf32>
    %210 = tpu.matmul %205, %209, %cst_94 {dimension_numbers = #tpu.dot_dimension_numbers<[1], [0], [0], [1], [0, 0, 1, 1], [], []>} : vector<8x24xf32>, vector<24x4xf32>, vector<8x4xf32> -> vector<8x4xf32>
    %211 = vector.broadcast %180 : vector<8x1xf32> to vector<8x4xf32>
    %212 = arith.addf %210, %211 : vector<8x4xf32>
    %cst_95 = arith.constant 0.000000e+00 : f32
    %213 = vector.broadcast %cst_95 : f32 to vector<8x4xf32>
    %214 = arith.cmpf oge, %212, %213 : vector<8x4xf32>
    %cst_96 = arith.constant 0.00999999977 : f32
    %215 = vector.broadcast %cst_96 : f32 to vector<8x4xf32>
    %216 = arith.mulf %215, %212 : vector<8x4xf32>
    %217 = arith.select %214, %212, %216 : vector<8x4xi1>, vector<8x4xf32>
    %218 = vector.broadcast %181 : vector<8x1xf32> to vector<8x4xf32>
    %219 = arith.mulf %217, %218 : vector<8x4xf32>
    %220 = vector.broadcast %182 : vector<8x1xf32> to vector<8x4xf32>
    %221 = arith.addf %219, %220 : vector<8x4xf32>
    %c0_97 = arith.constant 0 : index
    %c0_98 = arith.constant 0 : index
    %222 = vector.load %arg29[%c0_97, %c0_98] : memref<16x4xf32, #tpu.memory_space<vmem>>, vector<16x4xf32>
    %cst_99 = arith.constant dense<0.000000e+00> : vector<16x4xf32>
    %223 = tpu.matmul %175, %222, %cst_99 {dimension_numbers = #tpu.dot_dimension_numbers<[1], [0], [0], [1], [0, 0, 1, 1], [], []>} : vector<16x16xf32>, vector<16x4xf32>, vector<16x4xf32> -> vector<16x4xf32>
    %c0_100 = arith.constant 0 : index
    %c0_101 = arith.constant 0 : index
    %224 = vector.load %arg25[%c0_100, %c0_101] : memref<8x16xf32, #tpu.memory_space<vmem>>, vector<8x16xf32>
    %cst_102 = arith.constant dense<0.000000e+00> : vector<8x4xf32>
    %225 = tpu.matmul %224, %223, %cst_102 {dimension_numbers = #tpu.dot_dimension_numbers<[1], [0], [0], [1], [0, 0, 1, 1], [], []>} : vector<8x16xf32>, vector<16x4xf32>, vector<8x4xf32> -> vector<8x4xf32>
    %226 = vector.broadcast %183 : vector<8x1xf32> to vector<8x4xf32>
    %227 = arith.addf %225, %226 : vector<8x4xf32>
    %228 = arith.addf %221, %227 : vector<8x4xf32>
    %cst_103 = arith.constant 0.000000e+00 : f32
    %229 = vector.broadcast %cst_103 : f32 to vector<8x4xf32>
    %230 = arith.cmpf oge, %228, %229 : vector<8x4xf32>
    %cst_104 = arith.constant 0.00999999977 : f32
    %231 = vector.broadcast %cst_104 : f32 to vector<8x4xf32>
    %232 = arith.mulf %231, %228 : vector<8x4xf32>
    %233 = arith.select %230, %228, %232 : vector<8x4xi1>, vector<8x4xf32>
    %c0_105 = arith.constant 0 : index
    %c0_106 = arith.constant 0 : index
    %234 = vector.load %arg30[%c0_105, %c0_106] : memref<8x32xf32, #tpu.memory_space<vmem>>, vector<8x32xf32>
    %235 = vector.extract_strided_slice %233 {offsets = [0, 0], sizes = [8, 1], strides = [1, 1]} : vector<8x4xf32> to vector<8x1xf32>
    %236 = vector.extract_strided_slice %233 {offsets = [0, 1], sizes = [8, 1], strides = [1, 1]} : vector<8x4xf32> to vector<8x1xf32>
    %237 = vector.extract_strided_slice %233 {offsets = [0, 2], sizes = [8, 1], strides = [1, 1]} : vector<8x4xf32> to vector<8x1xf32>
    %238 = vector.extract_strided_slice %233 {offsets = [0, 3], sizes = [8, 1], strides = [1, 1]} : vector<8x4xf32> to vector<8x1xf32>
    %239 = tpu.concatenate %235, %236, %237, %238 in 0 : vector<8x1xf32>, vector<8x1xf32>, vector<8x1xf32>, vector<8x1xf32> -> vector<32x1xf32>
    %cst_107 = arith.constant dense<0.000000e+00> : vector<8x1xf32>
    %240 = tpu.matmul %234, %239, %cst_107 {dimension_numbers = #tpu.dot_dimension_numbers<[1], [0], [0], [1], [0, 0, 1, 1], [], []>} : vector<8x32xf32>, vector<32x1xf32>, vector<8x1xf32> -> vector<8x1xf32>
    %c0_108 = arith.constant 0 : index
    %c0_109 = arith.constant 0 : index
    %241 = vector.load %arg31[%c0_108, %c0_109] : memref<8x1xf32, #tpu.memory_space<vmem>>, vector<8x1xf32>
    %242 = arith.addf %240, %241 : vector<8x1xf32>
    %243 = vector.extract_strided_slice %242 {offsets = [0, 0], sizes = [1, 1], strides = [1, 1]} : vector<8x1xf32> to vector<1x1xf32>
    %244 = arith.negf %243 : vector<1x1xf32>
    %245 = math.exp %244 : vector<1x1xf32>
    %cst_110 = arith.constant 1.000000e+00 : f32
    %246 = vector.broadcast %cst_110 : f32 to vector<1x1xf32>
    %247 = arith.addf %246, %245 : vector<1x1xf32>
    %248 = arith.divf %246, %247 : vector<1x1xf32>
    %c0_111 = arith.constant 0 : index
    %c0_112 = arith.constant 0 : index
    %c0_113 = arith.constant 0 : index
    %249 = vector.load %arg32[%c0_111, %c0_112, %c0_113] : memref<1x1x1xf32, #tpu.memory_space<vmem>>, vector<1x1x1xf32>
    %250 = vector.shape_cast %249 : vector<1x1x1xf32> to vector<1x1xf32>
    %251 = vector.shape_cast %248 : vector<1x1xf32> to vector<1x1x1xf32>
    tpu.vector_store %arg32[%c0_111, %c0_112, %c0_113], %251 {strides = array<i32>} : memref<1x1x1xf32, #tpu.memory_space<vmem>>, vector<1x1x1xf32>,
    return
  }
  func.func @transform_0(%arg0: i32) -> (i32, i32, i32) {
    %c0_i32 = arith.constant 0 : i32
    %c0_i32_0 = arith.constant 0 : i32
    %c0_i32_1 = arith.constant 0 : i32
    return %arg0, %c0_i32, %c0_i32_0 : i32, i32, i32
  }
  func.func @transform_1(%arg0: i32) -> (i32, i32) {
    %c0_i32 = arith.constant 0 : i32
    %c0_i32_0 = arith.constant 0 : i32
    %c0_i32_1 = arith.constant 0 : i32
    return %c0_i32, %c0_i32_0 : i32, i32
  }
  func.func @transform_2(%arg0: i32) -> (i32, i32) {
    %c0_i32 = arith.constant 0 : i32
    %c0_i32_0 = arith.constant 0 : i32
    %c0_i32_1 = arith.constant 0 : i32
    return %c0_i32, %c0_i32_0 : i32, i32
  }
  func.func @transform_3(%arg0: i32) -> (i32, i32) {
    %c0_i32 = arith.constant 0 : i32
    %c0_i32_0 = arith.constant 0 : i32
    %c0_i32_1 = arith.constant 0 : i32
    return %c0_i32, %c0_i32_0 : i32, i32
  }
  func.func @transform_4(%arg0: i32) -> (i32, i32) {
    %c0_i32 = arith.constant 0 : i32
    %c0_i32_0 = arith.constant 0 : i32
    %c0_i32_1 = arith.constant 0 : i32
    return %c0_i32, %c0_i32_0 : i32, i32
  }
  func.func @transform_5(%arg0: i32) -> (i32, i32) {
    %c0_i32 = arith.constant 0 : i32
    %c0_i32_0 = arith.constant 0 : i32
    %c0_i32_1 = arith.constant 0 : i32
    return %c0_i32, %c0_i32_0 : i32, i32
  }
  func.func @transform_6(%arg0: i32) -> (i32, i32) {
    %c0_i32 = arith.constant 0 : i32
    %c0_i32_0 = arith.constant 0 : i32
    %c0_i32_1 = arith.constant 0 : i32
    return %c0_i32, %c0_i32_0 : i32, i32
  }
  func.func @transform_7(%arg0: i32) -> (i32, i32) {
    %c0_i32 = arith.constant 0 : i32
    %c0_i32_0 = arith.constant 0 : i32
    %c0_i32_1 = arith.constant 0 : i32
    return %c0_i32, %c0_i32_0 : i32, i32
  }
  func.func @transform_8(%arg0: i32) -> (i32, i32) {
    %c0_i32 = arith.constant 0 : i32
    %c0_i32_0 = arith.constant 0 : i32
    %c0_i32_1 = arith.constant 0 : i32
    return %c0_i32, %c0_i32_0 : i32, i32
  }
  func.func @transform_9(%arg0: i32) -> (i32, i32) {
    %c0_i32 = arith.constant 0 : i32
    %c0_i32_0 = arith.constant 0 : i32
    %c0_i32_1 = arith.constant 0 : i32
    return %c0_i32, %c0_i32_0 : i32, i32
  }
  func.func @transform_10(%arg0: i32) -> (i32, i32) {
    %c0_i32 = arith.constant 0 : i32
    %c0_i32_0 = arith.constant 0 : i32
    %c0_i32_1 = arith.constant 0 : i32
    return %c0_i32, %c0_i32_0 : i32, i32
  }
  func.func @transform_11(%arg0: i32) -> (i32, i32) {
    %c0_i32 = arith.constant 0 : i32
    %c0_i32_0 = arith.constant 0 : i32
    %c0_i32_1 = arith.constant 0 : i32
    return %c0_i32, %c0_i32_0 : i32, i32
  }
  func.func @transform_12(%arg0: i32) -> (i32, i32) {
    %c0_i32 = arith.constant 0 : i32
    %c0_i32_0 = arith.constant 0 : i32
    %c0_i32_1 = arith.constant 0 : i32
    return %c0_i32, %c0_i32_0 : i32, i32
  }
  func.func @transform_13(%arg0: i32) -> (i32, i32) {
    %c0_i32 = arith.constant 0 : i32
    %c0_i32_0 = arith.constant 0 : i32
    %c0_i32_1 = arith.constant 0 : i32
    return %c0_i32, %c0_i32_0 : i32, i32
  }
  func.func @transform_14(%arg0: i32) -> (i32, i32) {
    %c0_i32 = arith.constant 0 : i32
    %c0_i32_0 = arith.constant 0 : i32
    %c0_i32_1 = arith.constant 0 : i32
    return %c0_i32, %c0_i32_0 : i32, i32
  }
  func.func @transform_15(%arg0: i32) -> (i32, i32) {
    %c0_i32 = arith.constant 0 : i32
    %c0_i32_0 = arith.constant 0 : i32
    %c0_i32_1 = arith.constant 0 : i32
    return %c0_i32, %c0_i32_0 : i32, i32
  }
  func.func @transform_16(%arg0: i32) -> (i32, i32) {
    %c0_i32 = arith.constant 0 : i32
    %c0_i32_0 = arith.constant 0 : i32
    %c0_i32_1 = arith.constant 0 : i32
    return %c0_i32, %c0_i32_0 : i32, i32
  }
  func.func @transform_17(%arg0: i32) -> (i32, i32) {
    %c0_i32 = arith.constant 0 : i32
    %c0_i32_0 = arith.constant 0 : i32
    %c0_i32_1 = arith.constant 0 : i32
    return %c0_i32, %c0_i32_0 : i32, i32
  }
  func.func @transform_18(%arg0: i32) -> (i32, i32) {
    %c0_i32 = arith.constant 0 : i32
    %c0_i32_0 = arith.constant 0 : i32
    %c0_i32_1 = arith.constant 0 : i32
    return %c0_i32, %c0_i32_0 : i32, i32
  }
  func.func @transform_19(%arg0: i32) -> (i32, i32) {
    %c0_i32 = arith.constant 0 : i32
    %c0_i32_0 = arith.constant 0 : i32
    %c0_i32_1 = arith.constant 0 : i32
    return %c0_i32, %c0_i32_0 : i32, i32
  }
  func.func @transform_20(%arg0: i32) -> (i32, i32) {
    %c0_i32 = arith.constant 0 : i32
    %c0_i32_0 = arith.constant 0 : i32
    %c0_i32_1 = arith.constant 0 : i32
    return %c0_i32, %c0_i32_0 : i32, i32
  }
  func.func @transform_21(%arg0: i32) -> (i32, i32) {
    %c0_i32 = arith.constant 0 : i32
    %c0_i32_0 = arith.constant 0 : i32
    %c0_i32_1 = arith.constant 0 : i32
    return %c0_i32, %c0_i32_0 : i32, i32
  }
  func.func @transform_22(%arg0: i32) -> (i32, i32) {
    %c0_i32 = arith.constant 0 : i32
    %c0_i32_0 = arith.constant 0 : i32
    %c0_i32_1 = arith.constant 0 : i32
    return %c0_i32, %c0_i32_0 : i32, i32
  }
  func.func @transform_23(%arg0: i32) -> (i32, i32) {
    %c0_i32 = arith.constant 0 : i32
    %c0_i32_0 = arith.constant 0 : i32
    %c0_i32_1 = arith.constant 0 : i32
    return %c0_i32, %c0_i32_0 : i32, i32
  }
  func.func @transform_24(%arg0: i32) -> (i32, i32) {
    %c0_i32 = arith.constant 0 : i32
    %c0_i32_0 = arith.constant 0 : i32
    %c0_i32_1 = arith.constant 0 : i32
    return %c0_i32, %c0_i32_0 : i32, i32
  }
  func.func @transform_25(%arg0: i32) -> (i32, i32) {
    %c0_i32 = arith.constant 0 : i32
    %c0_i32_0 = arith.constant 0 : i32
    %c0_i32_1 = arith.constant 0 : i32
    return %c0_i32, %c0_i32_0 : i32, i32
  }
  func.func @transform_26(%arg0: i32) -> (i32, i32) {
    %c0_i32 = arith.constant 0 : i32
    %c0_i32_0 = arith.constant 0 : i32
    %c0_i32_1 = arith.constant 0 : i32
    return %c0_i32, %c0_i32_0 : i32, i32
  }
  func.func @transform_27(%arg0: i32) -> (i32, i32) {
    %c0_i32 = arith.constant 0 : i32
    %c0_i32_0 = arith.constant 0 : i32
    %c0_i32_1 = arith.constant 0 : i32
    return %c0_i32, %c0_i32_0 : i32, i32
  }
  func.func @transform_28(%arg0: i32) -> (i32, i32) {
    %c0_i32 = arith.constant 0 : i32
    %c0_i32_0 = arith.constant 0 : i32
    %c0_i32_1 = arith.constant 0 : i32
    return %c0_i32, %c0_i32_0 : i32, i32
  }
  func.func @transform_29(%arg0: i32) -> (i32, i32) {
    %c0_i32 = arith.constant 0 : i32
    %c0_i32_0 = arith.constant 0 : i32
    %c0_i32_1 = arith.constant 0 : i32
    return %c0_i32, %c0_i32_0 : i32, i32
  }
  func.func @transform_30(%arg0: i32) -> (i32, i32) {
    %c0_i32 = arith.constant 0 : i32
    %c0_i32_0 = arith.constant 0 : i32
    %c0_i32_1 = arith.constant 0 : i32
    return %c0_i32, %c0_i32_0 : i32, i32
  }
  func.func @transform_31(%arg0: i32) -> (i32, i32, i32) {
    %c0_i32 = arith.constant 0 : i32
    %c0_i32_0 = arith.constant 0 : i32
    %c0_i32_1 = arith.constant 0 : i32
    return %arg0, %c0_i32, %c0_i32_0 : i32, i32, i32
  }
}

</mosaic_0001>

<llo_original>
// kernel: dnet_forward.1
$region0: #{dnet_forward.1}
  #allocation0 [shape = 'u32[]', space=smem, size = 0x4, offset = 0x4, fixed_abs, tag = 'smem constant byte address 0x4 - core index']
  #allocation1 [shape = 'u32[144,128]{1,0:T(1,128)}', space=vmem, size = 0x12000, scoped, tag = 'internal scratch']
  %s0 = inlined_call_operand.smem [shape: u32[32], index: -1, kind: input, shape index: {}]
  %s1 = sld [smem:[%s0]]
  %s2 = scalar_lea.smem %s0, 1
  %s3 = sld [smem:[%s2]]
  %s4 = scalar_lea.smem %s0, 2
  %s5 = sld [smem:[%s4]]
  %s6 = scalar_lea.smem %s0, 3
  %s7 = sld [smem:[%s6]]
  %s8 = scalar_lea.smem %s0, 4
  %s9 = sld [smem:[%s8]]
  %s10 = scalar_lea.smem %s0, 5
  %s11 = sld [smem:[%s10]]
  %s12 = scalar_lea.smem %s0, 6
  %s13 = sld [smem:[%s12]]
  %s14 = scalar_lea.smem %s0, 7
  %s15 = sld [smem:[%s14]]
  %s16 = scalar_lea.smem %s0, 8
  %s17 = sld [smem:[%s16]]
  %s18 = scalar_lea.smem %s0, 9
  %s19 = sld [smem:[%s18]]
  %s20 = scalar_lea.smem %s0, 10
  %s21 = sld [smem:[%s20]]
  %s22 = scalar_lea.smem %s0, 11
  %s23 = sld [smem:[%s22]]
  %s24 = scalar_lea.smem %s0, 12
  %s25 = sld [smem:[%s24]]
  %s26 = scalar_lea.smem %s0, 13
  %s27 = sld [smem:[%s26]]
  %s28 = scalar_lea.smem %s0, 14
  %s29 = sld [smem:[%s28]]
  %s30 = scalar_lea.smem %s0, 15
  %s31 = sld [smem:[%s30]]
  %s32 = scalar_lea.smem %s0, 16
  %s33 = sld [smem:[%s32]]
  %s34 = scalar_lea.smem %s0, 17
  %s35 = sld [smem:[%s34]]
  %s36 = scalar_lea.smem %s0, 18
  %s37 = sld [smem:[%s36]]
  %s38 = scalar_lea.smem %s0, 19
  %s39 = sld [smem:[%s38]]
  %s40 = scalar_lea.smem %s0, 20
  %s41 = sld [smem:[%s40]]
  %s42 = scalar_lea.smem %s0, 21
  %s43 = sld [smem:[%s42]]
  %s44 = scalar_lea.smem %s0, 22
  %s45 = sld [smem:[%s44]]
  %s46 = scalar_lea.smem %s0, 23
  %s47 = sld [smem:[%s46]]
  %s48 = scalar_lea.smem %s0, 24
  %s49 = sld [smem:[%s48]]
  %s50 = scalar_lea.smem %s0, 25
  %s51 = sld [smem:[%s50]]
  %s52 = scalar_lea.smem %s0, 26
  %s53 = sld [smem:[%s52]]
  %s54 = scalar_lea.smem %s0, 27
  %s55 = sld [smem:[%s54]]
  %s56 = scalar_lea.smem %s0, 28
  %s57 = sld [smem:[%s56]]
  %s58 = scalar_lea.smem %s0, 29
  %s59 = sld [smem:[%s58]]
  %s60 = scalar_lea.smem %s0, 30
  %s61 = sld [smem:[%s60]]
  %s62 = scalar_lea.smem %s0, 31
  %s63 = sld [smem:[%s62]]
  %s64 = sld [smem:[#allocation0]]
  $region157: #{dnet_forward.1} parent=0
    _
  %s66 = ssub.s32 1, %s64
  %s67 = scalar_select 0, %s66, %s64
  loop: start=0, step=1, limit=4
  $region2: #{dnet_forward.1} parent=0 // loop_pre_header
    _
  $region3: #{dnet_forward.1} parent=0 // loop_header
    %s69 = sphi 0, %s73
    %p70 = scmp.ge.s32.totalorder %s69, 4
    %s79 = sphi 0, %s81
    %s82 = sphi 0, %s79
    %s83 = sphi 0, %s82
    %s99 = sphi 0, %s83
    %s103 = sphi 0, %s103
    %s105 = sphi 0, %s103
    %s106 = sphi 0, %s105
    %s120 = sphi 0, %s106
    %s124 = sphi 0, %s124
    %s126 = sphi 0, %s124
    %s127 = sphi 0, %s126
    %s141 = sphi 0, %s127
    %s145 = sphi 0, %s145
    %s147 = sphi 0, %s145
    %s148 = sphi 0, %s147
    %s162 = sphi 0, %s148
    %s166 = sphi 0, %s166
    %s168 = sphi 0, %s166
    %s169 = sphi 0, %s168
    %s183 = sphi 0, %s169
    %s187 = sphi 0, %s187
    %s189 = sphi 0, %s187
    %s190 = sphi 0, %s189
    %s204 = sphi 0, %s190
    %s208 = sphi 0, %s208
    %s210 = sphi 0, %s208
    %s211 = sphi 0, %s210
    %s225 = sphi 0, %s211
    %s229 = sphi 0, %s229
    %s231 = sphi 0, %s229
    %s232 = sphi 0, %s231
    %s246 = sphi 0, %s232
    %s250 = sphi 0, %s250
    %s252 = sphi 0, %s250
    %s253 = sphi 0, %s252
    %s267 = sphi 0, %s253
    %s271 = sphi 0, %s271
    %s273 = sphi 0, %s271
    %s274 = sphi 0, %s273
    %s288 = sphi 0, %s274
    %s292 = sphi 0, %s292
    %s294 = sphi 0, %s292
    %s295 = sphi 0, %s294
    %s309 = sphi 0, %s295
    %s313 = sphi 0, %s313
    %s315 = sphi 0, %s313
    %s316 = sphi 0, %s315
    %s330 = sphi 0, %s316
    %s334 = sphi 0, %s334
    %s336 = sphi 0, %s334
    %s337 = sphi 0, %s336
    %s351 = sphi 0, %s337
    %s355 = sphi 0, %s355
    %s357 = sphi 0, %s355
    %s358 = sphi 0, %s357
    %s372 = sphi 0, %s358
    %s376 = sphi 0, %s376
    %s378 = sphi 0, %s376
    %s379 = sphi 0, %s378
    %s393 = sphi 0, %s379
    %s397 = sphi 0, %s397
    %s399 = sphi 0, %s397
    %s400 = sphi 0, %s399
    %s414 = sphi 0, %s400
    %s418 = sphi 0, %s418
    %s420 = sphi 0, %s418
    %s421 = sphi 0, %s420
    %s435 = sphi 0, %s421
    %s439 = sphi 0, %s439
    %s441 = sphi 0, %s439
    %s442 = sphi 0, %s441
    %s456 = sphi 0, %s442
    %s460 = sphi 0, %s460
    %s462 = sphi 0, %s460
    %s463 = sphi 0, %s462
    %s477 = sphi 0, %s463
    %s481 = sphi 0, %s481
    %s483 = sphi 0, %s481
    %s484 = sphi 0, %s483
    %s498 = sphi 0, %s484
    %s502 = sphi 0, %s502
    %s504 = sphi 0, %s502
    %s505 = sphi 0, %s504
    %s519 = sphi 0, %s505
    %s523 = sphi 0, %s523
    %s525 = sphi 0, %s523
    %s526 = sphi 0, %s525
    %s540 = sphi 0, %s526
    %s544 = sphi 0, %s544
    %s546 = sphi 0, %s544
    %s547 = sphi 0, %s546
    %s561 = sphi 0, %s547
    %s565 = sphi 0, %s565
    %s567 = sphi 0, %s565
    %s568 = sphi 0, %s567
    %s582 = sphi 0, %s568
    %s586 = sphi 0, %s586
    %s588 = sphi 0, %s586
    %s589 = sphi 0, %s588
    %s603 = sphi 0, %s589
    %s607 = sphi 0, %s607
    %s609 = sphi 0, %s607
    %s610 = sphi 0, %s609
    %s624 = sphi 0, %s610
    %s628 = sphi 0, %s628
    %s630 = sphi 0, %s628
    %s631 = sphi 0, %s630
    %s645 = sphi 0, %s631
    %s649 = sphi 0, %s649
    %s651 = sphi 0, %s649
    %s652 = sphi 0, %s651
    %s666 = sphi 0, %s652
    %s670 = sphi 0, %s670
    %s672 = sphi 0, %s670
    %s673 = sphi 0, %s672
    %s687 = sphi 0, %s673
    %s691 = sphi 0, %s691
    %s693 = sphi 0, %s691
    %s694 = sphi 0, %s693
    %s708 = sphi 0, %s694
    %s712 = sphi 0, %s712
    %s714 = sphi 0, %s712
    %s715 = sphi 0, %s714
    %s729 = sphi 0, %s715
    %s735 = sphi 0, %s737
    %s738 = sphi 0, %s735
    %s739 = sphi 0, %s738
    %s755 = sphi 0, %s739
  $region4: #{dnet_forward.1} parent=0 // loop_header_branch
    %72 = sbr.rel (%p70) target = $region8
  $region5: #{dnet_forward.1} parent=0 // loop_body
    %s74 = ssub.s32 %s69, 1
    %s75 = ssub.s32 %s69, 2
    %s76 = sadd.s32 %s69, 1
    %s77 = ssub.s32 %s69, %s76
    %p78 = scmp.eq.s32.totalorder %s77, 0
    %s80 = sadd.s32 %s79, 1
    %s81 = scalar_select %p78, %s79, %s80
    %p84 = pneg %p78
    %p85 = scmp.eq.s32.totalorder %s69, 1
    %p86 = por %p84, %p85
    %p87 = scmp.ne.s32.totalorder %s79, %s82
    %p88 = scmp.eq.s32.totalorder %s69, 0
    %p89 = por %p87, %p88
    %p90 = scmp.ne.s32.totalorder %s79, %s82
    %p91 = scmp.eq.s32.totalorder %s74, 1
    %p92 = por %p90, %p91
    %p93 = scmp.ne.s32.totalorder %s82, %s83
    %p94 = scmp.eq.s32.totalorder %s74, 0
    %p95 = por %p93, %p94
    %p96 = scmp.ne.s32.totalorder %s82, %s83
    %p97 = scmp.eq.s32.totalorder %s75, 1
    %p98 = por %p96, %p97
    %p100 = scmp.ne.s32.totalorder %s83, %s99
    %p101 = scmp.eq.s32.totalorder %s75, 0
    %p102 = por %p100, %p101
    %s104 = sadd.s32 %s103, 1
    %p107 = scmp.eq.s32.totalorder %s69, 1
    %p108 = scmp.ne.s32.totalorder %s103, %s105
    %p109 = scmp.eq.s32.totalorder %s69, 0
    %p110 = por %p108, %p109
    %p111 = scmp.ne.s32.totalorder %s103, %s105
    %p112 = scmp.eq.s32.totalorder %s74, 1
    %p113 = por %p111, %p112
    %p114 = scmp.ne.s32.totalorder %s105, %s106
    %p115 = scmp.eq.s32.totalorder %s74, 0
    %p116 = por %p114, %p115
    %p117 = scmp.ne.s32.totalorder %s105, %s106
    %p118 = scmp.eq.s32.totalorder %s75, 1
    %p119 = por %p117, %p118
    %p121 = scmp.ne.s32.totalorder %s106, %s120
    %p122 = scmp.eq.s32.totalorder %s75, 0
    %p123 = por %p121, %p122
    %s125 = sadd.s32 %s124, 1
    %p128 = scmp.eq.s32.totalorder %s69, 1
    %p129 = scmp.ne.s32.totalorder %s124, %s126
    %p130 = scmp.eq.s32.totalorder %s69, 0
    %p131 = por %p129, %p130
    %p132 = scmp.ne.s32.totalorder %s124, %s126
    %p133 = scmp.eq.s32.totalorder %s74, 1
    %p134 = por %p132, %p133
    %p135 = scmp.ne.s32.totalorder %s126, %s127
    %p136 = scmp.eq.s32.totalorder %s74, 0
    %p137 = por %p135, %p136
    %p138 = scmp.ne.s32.totalorder %s126, %s127
    %p139 = scmp.eq.s32.totalorder %s75, 1
    %p140 = por %p138, %p139
    %p142 = scmp.ne.s32.totalorder %s127, %s141
    %p143 = scmp.eq.s32.totalorder %s75, 0
    %p144 = por %p142, %p143
    %s146 = sadd.s32 %s145, 1
    %p149 = scmp.eq.s32.totalorder %s69, 1
    %p150 = scmp.ne.s32.totalorder %s145, %s147
    %p151 = scmp.eq.s32.totalorder %s69, 0
    %p152 = por %p150, %p151
    %p153 = scmp.ne.s32.totalorder %s145, %s147
    %p154 = scmp.eq.s32.totalorder %s74, 1
    %p155 = por %p153, %p154
    %p156 = scmp.ne.s32.totalorder %s147, %s148
    %p157 = scmp.eq.s32.totalorder %s74, 0
    %p158 = por %p156, %p157
    %p159 = scmp.ne.s32.totalorder %s147, %s148
    %p160 = scmp.eq.s32.totalorder %s75, 1
    %p161 = por %p159, %p160
    %p163 = scmp.ne.s32.totalorder %s148, %s162
    %p164 = scmp.eq.s32.totalorder %s75, 0
    %p165 = por %p163, %p164
    %s167 = sadd.s32 %s166, 1
    %p170 = scmp.eq.s32.totalorder %s69, 1
    %p171 = scmp.ne.s32.totalorder %s166, %s168
    %p172 = scmp.eq.s32.totalorder %s69, 0
    %p173 = por %p171, %p172
    %p174 = scmp.ne.s32.totalorder %s166, %s168
    %p175 = scmp.eq.s32.totalorder %s74, 1
    %p176 = por %p174, %p175
    %p177 = scmp.ne.s32.totalorder %s168, %s169
    %p178 = scmp.eq.s32.totalorder %s74, 0
    %p179 = por %p177, %p178
    %p180 = scmp.ne.s32.totalorder %s168, %s169
    %p181 = scmp.eq.s32.totalorder %s75, 1
    %p182 = por %p180, %p181
    %p184 = scmp.ne.s32.totalorder %s169, %s183
    %p185 = scmp.eq.s32.totalorder %s75, 0
    %p186 = por %p184, %p185
    %s188 = sadd.s32 %s187, 1
    %p191 = scmp.eq.s32.totalorder %s69, 1
    %p192 = scmp.ne.s32.totalorder %s187, %s189
    %p193 = scmp.eq.s32.totalorder %s69, 0
    %p194 = por %p192, %p193
    %p195 = scmp.ne.s32.totalorder %s187, %s189
    %p196 = scmp.eq.s32.totalorder %s74, 1
    %p197 = por %p195, %p196
    %p198 = scmp.ne.s32.totalorder %s189, %s190
    %p199 = scmp.eq.s32.totalorder %s74, 0
    %p200 = por %p198, %p199
    %p201 = scmp.ne.s32.totalorder %s189, %s190
    %p202 = scmp.eq.s32.totalorder %s75, 1
    %p203 = por %p201, %p202
    %p205 = scmp.ne.s32.totalorder %s190, %s204
    %p206 = scmp.eq.s32.totalorder %s75, 0
    %p207 = por %p205, %p206
    %s209 = sadd.s32 %s208, 1
    %p212 = scmp.eq.s32.totalorder %s69, 1
    %p213 = scmp.ne.s32.totalorder %s208, %s210
    %p214 = scmp.eq.s32.totalorder %s69, 0
    %p215 = por %p213, %p214
    %p216 = scmp.ne.s32.totalorder %s208, %s210
    %p217 = scmp.eq.s32.totalorder %s74, 1
    %p218 = por %p216, %p217
    %p219 = scmp.ne.s32.totalorder %s210, %s211
    %p220 = scmp.eq.s32.totalorder %s74, 0
    %p221 = por %p219, %p220
    %p222 = scmp.ne.s32.totalorder %s210, %s211
    %p223 = scmp.eq.s32.totalorder %s75, 1
    %p224 = por %p222, %p223
    %p226 = scmp.ne.s32.totalorder %s211, %s225
    %p227 = scmp.eq.s32.totalorder %s75, 0
    %p228 = por %p226, %p227
    %s230 = sadd.s32 %s229, 1
    %p233 = scmp.eq.s32.totalorder %s69, 1
    %p234 = scmp.ne.s32.totalorder %s229, %s231
    %p235 = scmp.eq.s32.totalorder %s69, 0
    %p236 = por %p234, %p235
    %p237 = scmp.ne.s32.totalorder %s229, %s231
    %p238 = scmp.eq.s32.totalorder %s74, 1
    %p239 = por %p237, %p238
    %p240 = scmp.ne.s32.totalorder %s231, %s232
    %p241 = scmp.eq.s32.totalorder %s74, 0
    %p242 = por %p240, %p241
    %p243 = scmp.ne.s32.totalorder %s231, %s232
    %p244 = scmp.eq.s32.totalorder %s75, 1
    %p245 = por %p243, %p244
    %p247 = scmp.ne.s32.totalorder %s232, %s246
    %p248 = scmp.eq.s32.totalorder %s75, 0
    %p249 = por %p247, %p248
    %s251 = sadd.s32 %s250, 1
    %p254 = scmp.eq.s32.totalorder %s69, 1
    %p255 = scmp.ne.s32.totalorder %s250, %s252
    %p256 = scmp.eq.s32.totalorder %s69, 0
    %p257 = por %p255, %p256
    %p258 = scmp.ne.s32.totalorder %s250, %s252
    %p259 = scmp.eq.s32.totalorder %s74, 1
    %p260 = por %p258, %p259
    %p261 = scmp.ne.s32.totalorder %s252, %s253
    %p262 = scmp.eq.s32.totalorder %s74, 0
    %p263 = por %p261, %p262
    %p264 = scmp.ne.s32.totalorder %s252, %s253
    %p265 = scmp.eq.s32.totalorder %s75, 1
    %p266 = por %p264, %p265
    %p268 = scmp.ne.s32.totalorder %s253, %s267
    %p269 = scmp.eq.s32.totalorder %s75, 0
    %p270 = por %p268, %p269
    %s272 = sadd.s32 %s271, 1
    %p275 = scmp.eq.s32.totalorder %s69, 1
    %p276 = scmp.ne.s32.totalorder %s271, %s273
    %p277 = scmp.eq.s32.totalorder %s69, 0
    %p278 = por %p276, %p277
    %p279 = scmp.ne.s32.totalorder %s271, %s273
    %p280 = scmp.eq.s32.totalorder %s74, 1
    %p281 = por %p279, %p280
    %p282 = scmp.ne.s32.totalorder %s273, %s274
    %p283 = scmp.eq.s32.totalorder %s74, 0
    %p284 = por %p282, %p283
    %p285 = scmp.ne.s32.totalorder %s273, %s274
    %p286 = scmp.eq.s32.totalorder %s75, 1
    %p287 = por %p285, %p286
    %p289 = scmp.ne.s32.totalorder %s274, %s288
    %p290 = scmp.eq.s32.totalorder %s75, 0
    %p291 = por %p289, %p290
    %s293 = sadd.s32 %s292, 1
    %p296 = scmp.eq.s32.totalorder %s69, 1
    %p297 = scmp.ne.s32.totalorder %s292, %s294
    %p298 = scmp.eq.s32.totalorder %s69, 0
    %p299 = por %p297, %p298
    %p300 = scmp.ne.s32.totalorder %s292, %s294
    %p301 = scmp.eq.s32.totalorder %s74, 1
    %p302 = por %p300, %p301
    %p303 = scmp.ne.s32.totalorder %s294, %s295
    %p304 = scmp.eq.s32.totalorder %s74, 0
    %p305 = por %p303, %p304
    %p306 = scmp.ne.s32.totalorder %s294, %s295
    %p307 = scmp.eq.s32.totalorder %s75, 1
    %p308 = por %p306, %p307
    %p310 = scmp.ne.s32.totalorder %s295, %s309
    %p311 = scmp.eq.s32.totalorder %s75, 0
    %p312 = por %p310, %p311
    %s314 = sadd.s32 %s313, 1
    %p317 = scmp.eq.s32.totalorder %s69, 1
    %p318 = scmp.ne.s32.totalorder %s313, %s315
    %p319 = scmp.eq.s32.totalorder %s69, 0
    %p320 = por %p318, %p319
    %p321 = scmp.ne.s32.totalorder %s313, %s315
    %p322 = scmp.eq.s32.totalorder %s74, 1
    %p323 = por %p321, %p322
    %p324 = scmp.ne.s32.totalorder %s315, %s316
    %p325 = scmp.eq.s32.totalorder %s74, 0
    %p326 = por %p324, %p325
    %p327 = scmp.ne.s32.totalorder %s315, %s316
    %p328 = scmp.eq.s32.totalorder %s75, 1
    %p329 = por %p327, %p328
    %p331 = scmp.ne.s32.totalorder %s316, %s330
    %p332 = scmp.eq.s32.totalorder %s75, 0
    %p333 = por %p331, %p332
    %s335 = sadd.s32 %s334, 1
    %p338 = scmp.eq.s32.totalorder %s69, 1
    %p339 = scmp.ne.s32.totalorder %s334, %s336
    %p340 = scmp.eq.s32.totalorder %s69, 0
    %p341 = por %p339, %p340
    %p342 = scmp.ne.s32.totalorder %s334, %s336
    %p343 = scmp.eq.s32.totalorder %s74, 1
    %p344 = por %p342, %p343
    %p345 = scmp.ne.s32.totalorder %s336, %s337
    %p346 = scmp.eq.s32.totalorder %s74, 0
    %p347 = por %p345, %p346
    %p348 = scmp.ne.s32.totalorder %s336, %s337
    %p349 = scmp.eq.s32.totalorder %s75, 1
    %p350 = por %p348, %p349
    %p352 = scmp.ne.s32.totalorder %s337, %s351
    %p353 = scmp.eq.s32.totalorder %s75, 0
    %p354 = por %p352, %p353
    %s356 = sadd.s32 %s355, 1
    %p359 = scmp.eq.s32.totalorder %s69, 1
    %p360 = scmp.ne.s32.totalorder %s355, %s357
    %p361 = scmp.eq.s32.totalorder %s69, 0
    %p362 = por %p360, %p361
    %p363 = scmp.ne.s32.totalorder %s355, %s357
    %p364 = scmp.eq.s32.totalorder %s74, 1
    %p365 = por %p363, %p364
    %p366 = scmp.ne.s32.totalorder %s357, %s358
    %p367 = scmp.eq.s32.totalorder %s74, 0
    %p368 = por %p366, %p367
    %p369 = scmp.ne.s32.totalorder %s357, %s358
    %p370 = scmp.eq.s32.totalorder %s75, 1
    %p371 = por %p369, %p370
    %p373 = scmp.ne.s32.totalorder %s358, %s372
    %p374 = scmp.eq.s32.totalorder %s75, 0
    %p375 = por %p373, %p374
    %s377 = sadd.s32 %s376, 1
    %p380 = scmp.eq.s32.totalorder %s69, 1
    %p381 = scmp.ne.s32.totalorder %s376, %s378
    %p382 = scmp.eq.s32.totalorder %s69, 0
    %p383 = por %p381, %p382
    %p384 = scmp.ne.s32.totalorder %s376, %s378
    %p385 = scmp.eq.s32.totalorder %s74, 1
    %p386 = por %p384, %p385
    %p387 = scmp.ne.s32.totalorder %s378, %s379
    %p388 = scmp.eq.s32.totalorder %s74, 0
    %p389 = por %p387, %p388
    %p390 = scmp.ne.s32.totalorder %s378, %s379
    %p391 = scmp.eq.s32.totalorder %s75, 1
    %p392 = por %p390, %p391
    %p394 = scmp.ne.s32.totalorder %s379, %s393
    %p395 = scmp.eq.s32.totalorder %s75, 0
    %p396 = por %p394, %p395
    %s398 = sadd.s32 %s397, 1
    %p401 = scmp.eq.s32.totalorder %s69, 1
    %p402 = scmp.ne.s32.totalorder %s397, %s399
    %p403 = scmp.eq.s32.totalorder %s69, 0
    %p404 = por %p402, %p403
    %p405 = scmp.ne.s32.totalorder %s397, %s399
    %p406 = scmp.eq.s32.totalorder %s74, 1
    %p407 = por %p405, %p406
    %p408 = scmp.ne.s32.totalorder %s399, %s400
    %p409 = scmp.eq.s32.totalorder %s74, 0
    %p410 = por %p408, %p409
    %p411 = scmp.ne.s32.totalorder %s399, %s400
    %p412 = scmp.eq.s32.totalorder %s75, 1
    %p413 = por %p411, %p412
    %p415 = scmp.ne.s32.totalorder %s400, %s414
    %p416 = scmp.eq.s32.totalorder %s75, 0
    %p417 = por %p415, %p416
    %s419 = sadd.s32 %s418, 1
    %p422 = scmp.eq.s32.totalorder %s69, 1
    %p423 = scmp.ne.s32.totalorder %s418, %s420
    %p424 = scmp.eq.s32.totalorder %s69, 0
    %p425 = por %p423, %p424
    %p426 = scmp.ne.s32.totalorder %s418, %s420
    %p427 = scmp.eq.s32.totalorder %s74, 1
    %p428 = por %p426, %p427
    %p429 = scmp.ne.s32.totalorder %s420, %s421
    %p430 = scmp.eq.s32.totalorder %s74, 0
    %p431 = por %p429, %p430
    %p432 = scmp.ne.s32.totalorder %s420, %s421
    %p433 = scmp.eq.s32.totalorder %s75, 1
    %p434 = por %p432, %p433
    %p436 = scmp.ne.s32.totalorder %s421, %s435
    %p437 = scmp.eq.s32.totalorder %s75, 0
    %p438 = por %p436, %p437
    %s440 = sadd.s32 %s439, 1
    %p443 = scmp.eq.s32.totalorder %s69, 1
    %p444 = scmp.ne.s32.totalorder %s439, %s441
    %p445 = scmp.eq.s32.totalorder %s69, 0
    %p446 = por %p444, %p445
    %p447 = scmp.ne.s32.totalorder %s439, %s441
    %p448 = scmp.eq.s32.totalorder %s74, 1
    %p449 = por %p447, %p448
    %p450 = scmp.ne.s32.totalorder %s441, %s442
    %p451 = scmp.eq.s32.totalorder %s74, 0
    %p452 = por %p450, %p451
    %p453 = scmp.ne.s32.totalorder %s441, %s442
    %p454 = scmp.eq.s32.totalorder %s75, 1
    %p455 = por %p453, %p454
    %p457 = scmp.ne.s32.totalorder %s442, %s456
    %p458 = scmp.eq.s32.totalorder %s75, 0
    %p459 = por %p457, %p458
    %s461 = sadd.s32 %s460, 1
    %p464 = scmp.eq.s32.totalorder %s69, 1
    %p465 = scmp.ne.s32.totalorder %s460, %s462
    %p466 = scmp.eq.s32.totalorder %s69, 0
    %p467 = por %p465, %p466
    %p468 = scmp.ne.s32.totalorder %s460, %s462
    %p469 = scmp.eq.s32.totalorder %s74, 1
    %p470 = por %p468, %p469
    %p471 = scmp.ne.s32.totalorder %s462, %s463
    %p472 = scmp.eq.s32.totalorder %s74, 0
    %p473 = por %p471, %p472
    %p474 = scmp.ne.s32.totalorder %s462, %s463
    %p475 = scmp.eq.s32.totalorder %s75, 1
    %p476 = por %p474, %p475
    %p478 = scmp.ne.s32.totalorder %s463, %s477
    %p479 = scmp.eq.s32.totalorder %s75, 0
    %p480 = por %p478, %p479
    %s482 = sadd.s32 %s481, 1
    %p485 = scmp.eq.s32.totalorder %s69, 1
    %p486 = scmp.ne.s32.totalorder %s481, %s483
    %p487 = scmp.eq.s32.totalorder %s69, 0
    %p488 = por %p486, %p487
    %p489 = scmp.ne.s32.totalorder %s481, %s483
    %p490 = scmp.eq.s32.totalorder %s74, 1
    %p491 = por %p489, %p490
    %p492 = scmp.ne.s32.totalorder %s483, %s484
    %p493 = scmp.eq.s32.totalorder %s74, 0
    %p494 = por %p492, %p493
    %p495 = scmp.ne.s32.totalorder %s483, %s484
    %p496 = scmp.eq.s32.totalorder %s75, 1
    %p497 = por %p495, %p496
    %p499 = scmp.ne.s32.totalorder %s484, %s498
    %p500 = scmp.eq.s32.totalorder %s75, 0
    %p501 = por %p499, %p500
    %s503 = sadd.s32 %s502, 1
    %p506 = scmp.eq.s32.totalorder %s69, 1
    %p507 = scmp.ne.s32.totalorder %s502, %s504
    %p508 = scmp.eq.s32.totalorder %s69, 0
    %p509 = por %p507, %p508
    %p510 = scmp.ne.s32.totalorder %s502, %s504
    %p511 = scmp.eq.s32.totalorder %s74, 1
    %p512 = por %p510, %p511
    %p513 = scmp.ne.s32.totalorder %s504, %s505
    %p514 = scmp.eq.s32.totalorder %s74, 0
    %p515 = por %p513, %p514
    %p516 = scmp.ne.s32.totalorder %s504, %s505
    %p517 = scmp.eq.s32.totalorder %s75, 1
    %p518 = por %p516, %p517
    %p520 = scmp.ne.s32.totalorder %s505, %s519
    %p521 = scmp.eq.s32.totalorder %s75, 0
    %p522 = por %p520, %p521
    %s524 = sadd.s32 %s523, 1
    %p527 = scmp.eq.s32.totalorder %s69, 1
    %p528 = scmp.ne.s32.totalorder %s523, %s525
    %p529 = scmp.eq.s32.totalorder %s69, 0
    %p530 = por %p528, %p529
    %p531 = scmp.ne.s32.totalorder %s523, %s525
    %p532 = scmp.eq.s32.totalorder %s74, 1
    %p533 = por %p531, %p532
    %p534 = scmp.ne.s32.totalorder %s525, %s526
    %p535 = scmp.eq.s32.totalorder %s74, 0
    %p536 = por %p534, %p535
    %p537 = scmp.ne.s32.totalorder %s525, %s526
    %p538 = scmp.eq.s32.totalorder %s75, 1
    %p539 = por %p537, %p538
    %p541 = scmp.ne.s32.totalorder %s526, %s540
    %p542 = scmp.eq.s32.totalorder %s75, 0
    %p543 = por %p541, %p542
    %s545 = sadd.s32 %s544, 1
    %p548 = scmp.eq.s32.totalorder %s69, 1
    %p549 = scmp.ne.s32.totalorder %s544, %s546
    %p550 = scmp.eq.s32.totalorder %s69, 0
    %p551 = por %p549, %p550
    %p552 = scmp.ne.s32.totalorder %s544, %s546
    %p553 = scmp.eq.s32.totalorder %s74, 1
    %p554 = por %p552, %p553
    %p555 = scmp.ne.s32.totalorder %s546, %s547
    %p556 = scmp.eq.s32.totalorder %s74, 0
    %p557 = por %p555, %p556
    %p558 = scmp.ne.s32.totalorder %s546, %s547
    %p559 = scmp.eq.s32.totalorder %s75, 1
    %p560 = por %p558, %p559
    %p562 = scmp.ne.s32.totalorder %s547, %s561
    %p563 = scmp.eq.s32.totalorder %s75, 0
    %p564 = por %p562, %p563
    %s566 = sadd.s32 %s565, 1
    %p569 = scmp.eq.s32.totalorder %s69, 1
    %p570 = scmp.ne.s32.totalorder %s565, %s567
    %p571 = scmp.eq.s32.totalorder %s69, 0
    %p572 = por %p570, %p571
    %p573 = scmp.ne.s32.totalorder %s565, %s567
    %p574 = scmp.eq.s32.totalorder %s74, 1
    %p575 = por %p573, %p574
    %p576 = scmp.ne.s32.totalorder %s567, %s568
    %p577 = scmp.eq.s32.totalorder %s74, 0
    %p578 = por %p576, %p577
    %p579 = scmp.ne.s32.totalorder %s567, %s568
    %p580 = scmp.eq.s32.totalorder %s75, 1
    %p581 = por %p579, %p580
    %p583 = scmp.ne.s32.totalorder %s568, %s582
    %p584 = scmp.eq.s32.totalorder %s75, 0
    %p585 = por %p583, %p584
    %s587 = sadd.s32 %s586, 1
    %p590 = scmp.eq.s32.totalorder %s69, 1
    %p591 = scmp.ne.s32.totalorder %s586, %s588
    %p592 = scmp.eq.s32.totalorder %s69, 0
    %p593 = por %p591, %p592
    %p594 = scmp.ne.s32.totalorder %s586, %s588
    %p595 = scmp.eq.s32.totalorder %s74, 1
    %p596 = por %p594, %p595
    %p597 = scmp.ne.s32.totalorder %s588, %s589
    %p598 = scmp.eq.s32.totalorder %s74, 0
    %p599 = por %p597, %p598
    %p600 = scmp.ne.s32.totalorder %s588, %s589
    %p601 = scmp.eq.s32.totalorder %s75, 1
    %p602 = por %p600, %p601
    %p604 = scmp.ne.s32.totalorder %s589, %s603
    %p605 = scmp.eq.s32.totalorder %s75, 0
    %p606 = por %p604, %p605
    %s608 = sadd.s32 %s607, 1
    %p611 = scmp.eq.s32.totalorder %s69, 1
    %p612 = scmp.ne.s32.totalorder %s607, %s609
    %p613 = scmp.eq.s32.totalorder %s69, 0
    %p614 = por %p612, %p613
    %p615 = scmp.ne.s32.totalorder %s607, %s609
    %p616 = scmp.eq.s32.totalorder %s74, 1
    %p617 = por %p615, %p616
    %p618 = scmp.ne.s32.totalorder %s609, %s610
    %p619 = scmp.eq.s32.totalorder %s74, 0
    %p620 = por %p618, %p619
    %p621 = scmp.ne.s32.totalorder %s609, %s610
    %p622 = scmp.eq.s32.totalorder %s75, 1
    %p623 = por %p621, %p622
    %p625 = scmp.ne.s32.totalorder %s610, %s624
    %p626 = scmp.eq.s32.totalorder %s75, 0
    %p627 = por %p625, %p626
    %s629 = sadd.s32 %s628, 1
    %p632 = scmp.eq.s32.totalorder %s69, 1
    %p633 = scmp.ne.s32.totalorder %s628, %s630
    %p634 = scmp.eq.s32.totalorder %s69, 0
    %p635 = por %p633, %p634
    %p636 = scmp.ne.s32.totalorder %s628, %s630
    %p637 = scmp.eq.s32.totalorder %s74, 1
    %p638 = por %p636, %p637
    %p639 = scmp.ne.s32.totalorder %s630, %s631
    %p640 = scmp.eq.s32.totalorder %s74, 0
    %p641 = por %p639, %p640
    %p642 = scmp.ne.s32.totalorder %s630, %s631
    %p643 = scmp.eq.s32.totalorder %s75, 1
    %p644 = por %p642, %p643
    %p646 = scmp.ne.s32.totalorder %s631, %s645
    %p647 = scmp.eq.s32.totalorder %s75, 0
    %p648 = por %p646, %p647
    %s650 = sadd.s32 %s649, 1
    %p653 = scmp.eq.s32.totalorder %s69, 1
    %p654 = scmp.ne.s32.totalorder %s649, %s651
    %p655 = scmp.eq.s32.totalorder %s69, 0
    %p656 = por %p654, %p655
    %p657 = scmp.ne.s32.totalorder %s649, %s651
    %p658 = scmp.eq.s32.totalorder %s74, 1
    %p659 = por %p657, %p658
    %p660 = scmp.ne.s32.totalorder %s651, %s652
    %p661 = scmp.eq.s32.totalorder %s74, 0
    %p662 = por %p660, %p661
    %p663 = scmp.ne.s32.totalorder %s651, %s652
    %p664 = scmp.eq.s32.totalorder %s75, 1
    %p665 = por %p663, %p664
    %p667 = scmp.ne.s32.totalorder %s652, %s666
    %p668 = scmp.eq.s32.totalorder %s75, 0
    %p669 = por %p667, %p668
    %s671 = sadd.s32 %s670, 1
    %p674 = scmp.eq.s32.totalorder %s69, 1
    %p675 = scmp.ne.s32.totalorder %s670, %s672
    %p676 = scmp.eq.s32.totalorder %s69, 0
    %p677 = por %p675, %p676
    %p678 = scmp.ne.s32.totalorder %s670, %s672
    %p679 = scmp.eq.s32.totalorder %s74, 1
    %p680 = por %p678, %p679
    %p681 = scmp.ne.s32.totalorder %s672, %s673
    %p682 = scmp.eq.s32.totalorder %s74, 0
    %p683 = por %p681, %p682
    %p684 = scmp.ne.s32.totalorder %s672, %s673
    %p685 = scmp.eq.s32.totalorder %s75, 1
    %p686 = por %p684, %p685
    %p688 = scmp.ne.s32.totalorder %s673, %s687
    %p689 = scmp.eq.s32.totalorder %s75, 0
    %p690 = por %p688, %p689
    %s692 = sadd.s32 %s691, 1
    %p695 = scmp.eq.s32.totalorder %s69, 1
    %p696 = scmp.ne.s32.totalorder %s691, %s693
    %p697 = scmp.eq.s32.totalorder %s69, 0
    %p698 = por %p696, %p697
    %p699 = scmp.ne.s32.totalorder %s691, %s693
    %p700 = scmp.eq.s32.totalorder %s74, 1
    %p701 = por %p699, %p700
    %p702 = scmp.ne.s32.totalorder %s693, %s694
    %p703 = scmp.eq.s32.totalorder %s74, 0
    %p704 = por %p702, %p703
    %p705 = scmp.ne.s32.totalorder %s693, %s694
    %p706 = scmp.eq.s32.totalorder %s75, 1
    %p707 = por %p705, %p706
    %p709 = scmp.ne.s32.totalorder %s694, %s708
    %p710 = scmp.eq.s32.totalorder %s75, 0
    %p711 = por %p709, %p710
    %s713 = sadd.s32 %s712, 1
    %p716 = scmp.eq.s32.totalorder %s69, 1
    %p717 = scmp.ne.s32.totalorder %s712, %s714
    %p718 = scmp.eq.s32.totalorder %s69, 0
    %p719 = por %p717, %p718
    %p720 = scmp.ne.s32.totalorder %s712, %s714
    %p721 = scmp.eq.s32.totalorder %s74, 1
    %p722 = por %p720, %p721
    %p723 = scmp.ne.s32.totalorder %s714, %s715
    %p724 = scmp.eq.s32.totalorder %s74, 0
    %p725 = por %p723, %p724
    %p726 = scmp.ne.s32.totalorder %s714, %s715
    %p727 = scmp.eq.s32.totalorder %s75, 1
    %p728 = por %p726, %p727
    %p730 = scmp.ne.s32.totalorder %s715, %s729
    %p731 = scmp.eq.s32.totalorder %s75, 0
    %p732 = por %p730, %p731
    %s733 = ssub.s32 %s69, %s76
    %p734 = scmp.eq.s32.totalorder %s733, 0
    %s736 = sadd.s32 %s735, 1
    %s737 = scalar_select %p734, %s735, %s736
    %p740 = pneg %p734
    %p741 = scmp.eq.s32.totalorder %s69, 1
    %p742 = por %p740, %p741
    %p743 = scmp.ne.s32.totalorder %s735, %s738
    %p744 = scmp.eq.s32.totalorder %s69, 0
    %p745 = por %p743, %p744
    %p746 = scmp.ne.s32.totalorder %s735, %s738
    %p747 = scmp.eq.s32.totalorder %s74, 1
    %p748 = por %p746, %p747
    %p749 = scmp.ne.s32.totalorder %s738, %s739
    %p750 = scmp.eq.s32.totalorder %s74, 0
    %p751 = por %p749, %p750
    %p752 = scmp.ne.s32.totalorder %s738, %s739
    %p753 = scmp.eq.s32.totalorder %s75, 1
    %p754 = por %p752, %p753
    %p756 = scmp.ne.s32.totalorder %s739, %s755
    %p757 = scmp.eq.s32.totalorder %s75, 0
    %p758 = por %p756, %p757
    %p759 = scmp.le.s32.totalorder 1, %s69
    %p760 = scmp.lt.s32.totalorder %s69, 3
    %p761 = pnand %p759, %p760
    %p762 = pneg %p761
    // Predicated region
    $region9: #{dnet_forward.1} parent=5 // pred_check
      _
    $region10: #{dnet_forward.1} parent=5 // pred_check_branch
      %764 = sbr.rel (%p761) target = $region12
    $region11: #{dnet_forward.1} parent=5 // pred_region
      %s765 = ssub.s32 %s69, 1
      // Predicated region
      $region13: #{dnet_forward.1} parent=11 // pred_check
        %p766 = pneg %p116
      $region14: #{dnet_forward.1} parent=11 // pred_check_branch
        %768 = sbr.rel (%p766) target = $region16
      $region15: #{dnet_forward.1} parent=11 // pred_region
        _
      $region16: #{dnet_forward.1} parent=11 // pred_fallthru
        _
      // Predicated region
      $region17: #{dnet_forward.1} parent=11 // pred_check
        %p769 = pneg %p137
      $region18: #{dnet_forward.1} parent=11 // pred_check_branch
        %771 = sbr.rel (%p769) target = $region20
      $region19: #{dnet_forward.1} parent=11 // pred_region
        _
      $region20: #{dnet_forward.1} parent=11 // pred_fallthru
        _
      // Predicated region
      $region21: #{dnet_forward.1} parent=11 // pred_check
        %p772 = pneg %p158
      $region22: #{dnet_forward.1} parent=11 // pred_check_branch
        %774 = sbr.rel (%p772) target = $region24
      $region23: #{dnet_forward.1} parent=11 // pred_region
        _
      $region24: #{dnet_forward.1} parent=11 // pred_fallthru
        _
      // Predicated region
      $region25: #{dnet_forward.1} parent=11 // pred_check
        %p775 = pneg %p179
      $region26: #{dnet_forward.1} parent=11 // pred_check_branch
        %777 = sbr.rel (%p775) target = $region28
      $region27: #{dnet_forward.1} parent=11 // pred_region
        _
      $region28: #{dnet_forward.1} parent=11 // pred_fallthru
        _
      // Predicated region
      $region29: #{dnet_forward.1} parent=11 // pred_check
        %p778 = pneg %p200
      $region30: #{dnet_forward.1} parent=11 // pred_check_branch
        %780 = sbr.rel (%p778) target = $region32
      $region31: #{dnet_forward.1} parent=11 // pred_region
        _
      $region32: #{dnet_forward.1} parent=11 // pred_fallthru
        _
      // Predicated region
      $region33: #{dnet_forward.1} parent=11 // pred_check
        %p781 = pneg %p221
      $region34: #{dnet_forward.1} parent=11 // pred_check_branch
        %783 = sbr.rel (%p781) target = $region36
      $region35: #{dnet_forward.1} parent=11 // pred_region
        _
      $region36: #{dnet_forward.1} parent=11 // pred_fallthru
        _
      // Predicated region
      $region37: #{dnet_forward.1} parent=11 // pred_check
        %p784 = pneg %p242
      $region38: #{dnet_forward.1} parent=11 // pred_check_branch
        %786 = sbr.rel (%p784) target = $region40
      $region39: #{dnet_forward.1} parent=11 // pred_region
        _
      $region40: #{dnet_forward.1} parent=11 // pred_fallthru
        _
      // Predicated region
      $region41: #{dnet_forward.1} parent=11 // pred_check
        %p787 = pneg %p263
      $region42: #{dnet_forward.1} parent=11 // pred_check_branch
        %789 = sbr.rel (%p787) target = $region44
      $region43: #{dnet_forward.1} parent=11 // pred_region
        _
      $region44: #{dnet_forward.1} parent=11 // pred_fallthru
        _
      // Predicated region
      $region45: #{dnet_forward.1} parent=11 // pred_check
        %p790 = pneg %p284
      $region46: #{dnet_forward.1} parent=11 // pred_check_branch
        %792 = sbr.rel (%p790) target = $region48
      $region47: #{dnet_forward.1} parent=11 // pred_region
        _
      $region48: #{dnet_forward.1} parent=11 // pred_fallthru
        _
      // Predicated region
      $region49: #{dnet_forward.1} parent=11 // pred_check
        %p793 = pneg %p305
      $region50: #{dnet_forward.1} parent=11 // pred_check_branch
        %795 = sbr.rel (%p793) target = $region52
      $region51: #{dnet_forward.1} parent=11 // pred_region
        _
      $region52: #{dnet_forward.1} parent=11 // pred_fallthru
        _
      // Predicated region
      $region53: #{dnet_forward.1} parent=11 // pred_check
        %p796 = pneg %p326
      $region54: #{dnet_forward.1} parent=11 // pred_check_branch
        %798 = sbr.rel (%p796) target = $region56
      $region55: #{dnet_forward.1} parent=11 // pred_region
        _
      $region56: #{dnet_forward.1} parent=11 // pred_fallthru
        _
      // Predicated region
      $region57: #{dnet_forward.1} parent=11 // pred_check
        %p799 = pneg %p347
      $region58: #{dnet_forward.1} parent=11 // pred_check_branch
        %801 = sbr.rel (%p799) target = $region60
      $region59: #{dnet_forward.1} parent=11 // pred_region
        _
      $region60: #{dnet_forward.1} parent=11 // pred_fallthru
        _
      // Predicated region
      $region61: #{dnet_forward.1} parent=11 // pred_check
        %p802 = pneg %p368
      $region62: #{dnet_forward.1} parent=11 // pred_check_branch
        %804 = sbr.rel (%p802) target = $region64
      $region63: #{dnet_forward.1} parent=11 // pred_region
        _
      $region64: #{dnet_forward.1} parent=11 // pred_fallthru
        _
      // Predicated region
      $region65: #{dnet_forward.1} parent=11 // pred_check
        %p805 = pneg %p389
      $region66: #{dnet_forward.1} parent=11 // pred_check_branch
        %807 = sbr.rel (%p805) target = $region68
      $region67: #{dnet_forward.1} parent=11 // pred_region
        _
      $region68: #{dnet_forward.1} parent=11 // pred_fallthru
        _
      // Predicated region
      $region69: #{dnet_forward.1} parent=11 // pred_check
        %p808 = pneg %p410
      $region70: #{dnet_forward.1} parent=11 // pred_check_branch
        %810 = sbr.rel (%p808) target = $region72
      $region71: #{dnet_forward.1} parent=11 // pred_region
        _
      $region72: #{dnet_forward.1} parent=11 // pred_fallthru
        _
      // Predicated region
      $region73: #{dnet_forward.1} parent=11 // pred_check
        %p811 = pneg %p431
      $region74: #{dnet_forward.1} parent=11 // pred_check_branch
        %813 = sbr.rel (%p811) target = $region76
      $region75: #{dnet_forward.1} parent=11 // pred_region
        _
      $region76: #{dnet_forward.1} parent=11 // pred_fallthru
        _
      // Predicated region
      $region77: #{dnet_forward.1} parent=11 // pred_check
        %p814 = pneg %p452
      $region78: #{dnet_forward.1} parent=11 // pred_check_branch
        %816 = sbr.rel (%p814) target = $region80
      $region79: #{dnet_forward.1} parent=11 // pred_region
        _
      $region80: #{dnet_forward.1} parent=11 // pred_fallthru
        _
      // Predicated region
      $region81: #{dnet_forward.1} parent=11 // pred_check
        %p817 = pneg %p473
      $region82: #{dnet_forward.1} parent=11 // pred_check_branch
        %819 = sbr.rel (%p817) target = $region84
      $region83: #{dnet_forward.1} parent=11 // pred_region
        _
      $region84: #{dnet_forward.1} parent=11 // pred_fallthru
        _
      // Predicated region
      $region85: #{dnet_forward.1} parent=11 // pred_check
        %p820 = pneg %p494
      $region86: #{dnet_forward.1} parent=11 // pred_check_branch
        %822 = sbr.rel (%p820) target = $region88
      $region87: #{dnet_forward.1} parent=11 // pred_region
        _
      $region88: #{dnet_forward.1} parent=11 // pred_fallthru
        _
      // Predicated region
      $region89: #{dnet_forward.1} parent=11 // pred_check
        %p823 = pneg %p515
      $region90: #{dnet_forward.1} parent=11 // pred_check_branch
        %825 = sbr.rel (%p823) target = $region92
      $region91: #{dnet_forward.1} parent=11 // pred_region
        _
      $region92: #{dnet_forward.1} parent=11 // pred_fallthru
        _
      // Predicated region
      $region93: #{dnet_forward.1} parent=11 // pred_check
        %p826 = pneg %p536
      $region94: #{dnet_forward.1} parent=11 // pred_check_branch
        %828 = sbr.rel (%p826) target = $region96
      $region95: #{dnet_forward.1} parent=11 // pred_region
        _
      $region96: #{dnet_forward.1} parent=11 // pred_fallthru
        _
      // Predicated region
      $region97: #{dnet_forward.1} parent=11 // pred_check
        %p829 = pneg %p557
      $region98: #{dnet_forward.1} parent=11 // pred_check_branch
        %831 = sbr.rel (%p829) target = $region100
      $region99: #{dnet_forward.1} parent=11 // pred_region
        _
      $region100: #{dnet_forward.1} parent=11 // pred_fallthru
        _
      // Predicated region
      $region101: #{dnet_forward.1} parent=11 // pred_check
        %p832 = pneg %p578
      $region102: #{dnet_forward.1} parent=11 // pred_check_branch
        %834 = sbr.rel (%p832) target = $region104
      $region103: #{dnet_forward.1} parent=11 // pred_region
        _
      $region104: #{dnet_forward.1} parent=11 // pred_fallthru
        _
      // Predicated region
      $region105: #{dnet_forward.1} parent=11 // pred_check
        %p835 = pneg %p599
      $region106: #{dnet_forward.1} parent=11 // pred_check_branch
        %837 = sbr.rel (%p835) target = $region108
      $region107: #{dnet_forward.1} parent=11 // pred_region
        _
      $region108: #{dnet_forward.1} parent=11 // pred_fallthru
        _
      // Predicated region
      $region109: #{dnet_forward.1} parent=11 // pred_check
        %p838 = pneg %p620
      $region110: #{dnet_forward.1} parent=11 // pred_check_branch
        %840 = sbr.rel (%p838) target = $region112
      $region111: #{dnet_forward.1} parent=11 // pred_region
        _
      $region112: #{dnet_forward.1} parent=11 // pred_fallthru
        _
      // Predicated region
      $region113: #{dnet_forward.1} parent=11 // pred_check
        %p841 = pneg %p641
      $region114: #{dnet_forward.1} parent=11 // pred_check_branch
        %843 = sbr.rel (%p841) target = $region116
      $region115: #{dnet_forward.1} parent=11 // pred_region
        _
      $region116: #{dnet_forward.1} parent=11 // pred_fallthru
        _
      // Predicated region
      $region117: #{dnet_forward.1} parent=11 // pred_check
        %p844 = pneg %p662
      $region118: #{dnet_forward.1} parent=11 // pred_check_branch
        %846 = sbr.rel (%p844) target = $region120
      $region119: #{dnet_forward.1} parent=11 // pred_region
        _
      $region120: #{dnet_forward.1} parent=11 // pred_fallthru
        _
      // Predicated region
      $region121: #{dnet_forward.1} parent=11 // pred_check
        %p847 = pneg %p683
      $region122: #{dnet_forward.1} parent=11 // pred_check_branch
        %849 = sbr.rel (%p847) target = $region124
      $region123: #{dnet_forward.1} parent=11 // pred_region
        _
      $region124: #{dnet_forward.1} parent=11 // pred_fallthru
        _
      // Predicated region
      $region125: #{dnet_forward.1} parent=11 // pred_check
        %p850 = pneg %p704
      $region126: #{dnet_forward.1} parent=11 // pred_check_branch
        %852 = sbr.rel (%p850) target = $region128
      $region127: #{dnet_forward.1} parent=11 // pred_region
        _
      $region128: #{dnet_forward.1} parent=11 // pred_fallthru
        _
      // Predicated region
      $region129: #{dnet_forward.1} parent=11 // pred_check
        %p853 = pneg %p725
      $region130: #{dnet_forward.1} parent=11 // pred_check_branch
        %855 = sbr.rel (%p853) target = $region132
      $region131: #{dnet_forward.1} parent=11 // pred_region
        _
      $region132: #{dnet_forward.1} parent=11 // pred_fallthru
        _
    $region12: #{dnet_forward.1} parent=5 // pred_fallthru
      _
    %p856 = scmp.lt.s32.totalorder %s69, 2
    // Predicated region
    $region133: #{dnet_forward.1} parent=5 // pred_check
      %p857 = pneg %p856
    $region134: #{dnet_forward.1} parent=5 // pred_check_branch
      %859 = sbr.rel (%p857) target = $region136
    $region135: #{dnet_forward.1} parent=5 // pred_region
      // Predicated region
      $region137: #{dnet_forward.1} parent=135 // pred_check
        %p860 = pneg %p89
      $region138: #{dnet_forward.1} parent=135 // pred_check_branch
        %862 = sbr.rel (%p860) target = $region140
      $region139: #{dnet_forward.1} parent=135 // pred_region
        %p863 = scmp.lt.s32.totalorder %s69, 1
        %s864 = scalar_select %p863, %s69, 1
        %s865 = smul.addr %s864, 8
        %s866 = smul.addr %s865, 8
        %s867 = scalar_lea.vmem %s1, %s866
      $region140: #{dnet_forward.1} parent=135 // pred_fallthru
        _
    $region136: #{dnet_forward.1} parent=5 // pred_fallthru
      _
    %p868 = scmp.le.s32.totalorder 1, %s69
    %p869 = scmp.lt.s32.totalorder %s69, 3
    %p870 = pnand %p868, %p869
    %p871 = pneg %p870
    // Predicated region
    $region141: #{dnet_forward.1} parent=5 // pred_check
      _
    $region142: #{dnet_forward.1} parent=5 // pred_check_branch
      %873 = sbr.rel (%p870) target = $region144
    $region143: #{dnet_forward.1} parent=5 // pred_region
      %s874 = ssub.s32 %s69, 1
      %p875 = scmp.lt.s32.totalorder %s74, 1
      %s876 = scalar_select %p875, %s74, 1
      %s877 = smul.addr %s876, 8
      %s878 = smul.addr %s877, 8
      %s879 = scalar_lea.vmem %s1, %s878
      %p880 = pneg %p95
      %p881 = pneg %p92
      %p882 = pneg %p116
      %p883 = pneg %p113
      %p884 = pneg %p137
      %p885 = pneg %p134
      %p886 = pneg %p158
      %p887 = pneg %p155
      %p888 = pneg %p179
      %p889 = pneg %p176
      %p890 = pneg %p200
      %p891 = pneg %p197
      %p892 = pneg %p221
      %p893 = pneg %p218
      %p894 = pneg %p242
      %p895 = pneg %p239
      %p896 = pneg %p263
      %p897 = pneg %p260
      %p898 = pneg %p284
      %p899 = pneg %p281
      %p900 = pneg %p305
      %p901 = pneg %p302
      %p902 = pneg %p326
      %p903 = pneg %p323
      %p904 = pneg %p347
      %p905 = pneg %p344
      %p906 = pneg %p368
      %p907 = pneg %p365
      %p908 = pneg %p389
      %p909 = pneg %p386
      %p910 = pneg %p410
      %p911 = pneg %p407
      %p912 = pneg %p431
      %p913 = pneg %p428
      %p914 = pneg %p452
      %p915 = pneg %p449
      %p916 = pneg %p473
      %p917 = pneg %p470
      %p918 = pneg %p494
      %p919 = pneg %p491
      %p920 = pneg %p515
      %p921 = pneg %p512
      %p922 = pneg %p536
      %p923 = pneg %p533
      %p924 = pneg %p557
      %p925 = pneg %p554
      %p926 = pneg %p578
      %p927 = pneg %p575
      %p928 = pneg %p599
      %p929 = pneg %p596
      %p930 = pneg %p620
      %p931 = pneg %p617
      %p932 = pneg %p641
      %p933 = pneg %p638
      %p934 = pneg %p662
      %p935 = pneg %p659
      %p936 = pneg %p683
      %p937 = pneg %p680
      %p938 = pneg %p704
      %p939 = pneg %p701
      %p940 = pneg %p725
      %p941 = pneg %p722
      %p942 = pneg %p751
      %p943 = pneg %p748
      %p944 = scmp.lt.s32.totalorder %s74, 1
      %s945 = scalar_select %p944, %s74, 1
      %s946 = scalar_lea.vmem %s63, %s945
      %p947 = scmp.lt.s32.totalorder %s74, 1
      %s948 = scalar_select %p947, %s74, 1
      %s949 = smul.addr %s948, 8
      %s950 = smul.addr %s949, 8
      %s951 = scalar_lea.vmem %s1, %s950
      %p952 = scmp.lt.s32.totalorder %s74, 1
      %s953 = scalar_select %p952, %s74, 1
      %s954 = scalar_lea.vmem %s63, %s953
      %v955 = vld [vmem:[%s951] sm:$0xff]
      %v956 = vld [vmem:[%s951 + $0x8] sm:$0xff]
      %v957 = vld [vmem:[%s951 + $0x10] sm:$0xff]
      %v958 = vld [vmem:[%s951 + $0x18] sm:$0xff]
      %v959 = vld [vmem:[%s951 + $0x20] sm:$0xff]
      %v960 = vld [vmem:[%s951 + $0x28] sm:$0xff]
      %v961 = vld [vmem:[%s951 + $0x30] sm:$0xff]
      %v962 = vld [vmem:[%s951 + $0x38] sm:$0xff]
      %v963 = vld [vmem:[%s9] sm:$0xff]
      %v964 = vld [vmem:[%s11] sm:$0xff]
      %v965 = vld [vmem:[%s11 + $0x8] sm:$0xff]
      %v966 = vld [vmem:[%s11 + $0x10] sm:$0xff]
      %v967 = vld [vmem:[%s11 + $0x18] sm:$0xff]
      %v968 = vld [vmem:[%s11 + $0x20] sm:$0xff]
      %v969 = vld [vmem:[%s11 + $0x28] sm:$0xff]
      %v970 = vld [vmem:[%s11 + $0x30] sm:$0xff]
      %v971 = vld [vmem:[%s11 + $0x38] sm:$0xff]
      %v972 = vld [vmem:[%s11 + $0x40] sm:$0xff]
      %v973 = vld [vmem:[%s11 + $0x48] sm:$0xff]
      %v974 = vld [vmem:[%s11 + $0x50] sm:$0xff]
      %v975 = vld [vmem:[%s11 + $0x58] sm:$0xff]
      %v976 = vld [vmem:[%s11 + $0x60] sm:$0xff]
      %v977 = vld [vmem:[%s11 + $0x68] sm:$0xff]
      %v978 = vld [vmem:[%s11 + $0x70] sm:$0xff]
      %v979 = vld [vmem:[%s11 + $0x78] sm:$0xff]
      %v980 = vld [vmem:[%s11 + $0x80] sm:$0xff]
      %v981 = vld [vmem:[%s11 + $0x88] sm:$0xff]
      %v982 = vld [vmem:[%s11 + $0x90] sm:$0xff]
      %v983 = vld [vmem:[%s11 + $0x98] sm:$0xff]
      %v984 = vld [vmem:[%s11 + $0xa0] sm:$0xff]
      %v985 = vld [vmem:[%s11 + $0xa8] sm:$0xff]
      %v986 = vld [vmem:[%s11 + $0xb0] sm:$0xff]
      %v987 = vld [vmem:[%s11 + $0xb8] sm:$0xff]
      %v988 = vld [vmem:[%s11 + $0xc0] sm:$0xff]
      %v989 = vld [vmem:[%s11 + $0xc8] sm:$0xff]
      %v990 = vld [vmem:[%s11 + $0xd0] sm:$0xff]
      %v991 = vld [vmem:[%s11 + $0xd8] sm:$0xff]
      %v992 = vld [vmem:[%s11 + $0xe0] sm:$0xff]
      %v993 = vld [vmem:[%s11 + $0xe8] sm:$0xff]
      %v994 = vld [vmem:[%s11 + $0xf0] sm:$0xff]
      %v995 = vld [vmem:[%s11 + $0xf8] sm:$0xff]
      %v996 = vld [vmem:[%s11 + $0x100] sm:$0xff]
      %v997 = vld [vmem:[%s11 + $0x108] sm:$0xff]
      %v998 = vld [vmem:[%s11 + $0x110] sm:$0xff]
      %v999 = vld [vmem:[%s11 + $0x118] sm:$0xff]
      %v1000 = vld [vmem:[%s11 + $0x120] sm:$0xff]
      %v1001 = vld [vmem:[%s11 + $0x128] sm:$0xff]
      %v1002 = vld [vmem:[%s11 + $0x130] sm:$0xff]
      %v1003 = vld [vmem:[%s11 + $0x138] sm:$0xff]
      %v1004 = vld [vmem:[%s11 + $0x140] sm:$0xff]
      %v1005 = vld [vmem:[%s11 + $0x148] sm:$0xff]
      %v1006 = vld [vmem:[%s11 + $0x150] sm:$0xff]
      %v1007 = vld [vmem:[%s11 + $0x158] sm:$0xff]
      %v1008 = vld [vmem:[%s11 + $0x160] sm:$0xff]
      %v1009 = vld [vmem:[%s11 + $0x168] sm:$0xff]
      %v1010 = vld [vmem:[%s11 + $0x170] sm:$0xff]
      %v1011 = vld [vmem:[%s11 + $0x178] sm:$0xff]
      %v1012 = vld [vmem:[%s11 + $0x180] sm:$0xff]
      %v1013 = vld [vmem:[%s11 + $0x188] sm:$0xff]
      %v1014 = vld [vmem:[%s11 + $0x190] sm:$0xff]
      %v1015 = vld [vmem:[%s11 + $0x198] sm:$0xff]
      %v1016 = vld [vmem:[%s11 + $0x1a0] sm:$0xff]
      %v1017 = vld [vmem:[%s11 + $0x1a8] sm:$0xff]
      %v1018 = vld [vmem:[%s11 + $0x1b0] sm:$0xff]
      %v1019 = vld [vmem:[%s11 + $0x1b8] sm:$0xff]
      %v1020 = vld [vmem:[%s11 + $0x1c0] sm:$0xff]
      %v1021 = vld [vmem:[%s11 + $0x1c8] sm:$0xff]
      %v1022 = vld [vmem:[%s11 + $0x1d0] sm:$0xff]
      %v1023 = vld [vmem:[%s11 + $0x1d8] sm:$0xff]
      %v1024 = vld [vmem:[%s11 + $0x1e0] sm:$0xff]
      %v1025 = vld [vmem:[%s11 + $0x1e8] sm:$0xff]
      %v1026 = vld [vmem:[%s11 + $0x1f0] sm:$0xff]
      %v1027 = vld [vmem:[%s11 + $0x1f8] sm:$0xff]
      %v1028 = vld [vmem:[%s11 + $0x200] sm:$0xff]
      %v1029 = vld [vmem:[%s11 + $0x208] sm:$0xff]
      %v1030 = vld [vmem:[%s11 + $0x210] sm:$0xff]
      %v1031 = vld [vmem:[%s11 + $0x218] sm:$0xff]
      %v1032 = vld [vmem:[%s11 + $0x220] sm:$0xff]
      %v1033 = vld [vmem:[%s11 + $0x228] sm:$0xff]
      %v1034 = vld [vmem:[%s11 + $0x230] sm:$0xff]
      %v1035 = vld [vmem:[%s11 + $0x238] sm:$0xff]
      %v1036 = vld [vmem:[%s11 + $0x240] sm:$0xff]
      %v1037 = vld [vmem:[%s11 + $0x248] sm:$0xff]
      %v1038 = vld [vmem:[%s11 + $0x250] sm:$0xff]
      %v1039 = vld [vmem:[%s11 + $0x258] sm:$0xff]
      %v1040 = vld [vmem:[%s11 + $0x260] sm:$0xff]
      %v1041 = vld [vmem:[%s11 + $0x268] sm:$0xff]
      %v1042 = vld [vmem:[%s11 + $0x270] sm:$0xff]
      %v1043 = vld [vmem:[%s11 + $0x278] sm:$0xff]
      %v1044 = vld [vmem:[%s11 + $0x280] sm:$0xff]
      %v1045 = vld [vmem:[%s11 + $0x288] sm:$0xff]
      %v1046 = vld [vmem:[%s11 + $0x290] sm:$0xff]
      %v1047 = vld [vmem:[%s11 + $0x298] sm:$0xff]
      %v1048 = vld [vmem:[%s11 + $0x2a0] sm:$0xff]
      %v1049 = vld [vmem:[%s11 + $0x2a8] sm:$0xff]
      %v1050 = vld [vmem:[%s11 + $0x2b0] sm:$0xff]
      %v1051 = vld [vmem:[%s11 + $0x2b8] sm:$0xff]
      %v1052 = vld [vmem:[%s11 + $0x2c0] sm:$0xff]
      %v1053 = vld [vmem:[%s11 + $0x2c8] sm:$0xff]
      %v1054 = vld [vmem:[%s11 + $0x2d0] sm:$0xff]
      %v1055 = vld [vmem:[%s11 + $0x2d8] sm:$0xff]
      %v1056 = vld [vmem:[%s11 + $0x2e0] sm:$0xff]
      %v1057 = vld [vmem:[%s11 + $0x2e8] sm:$0xff]
      %v1058 = vld [vmem:[%s11 + $0x2f0] sm:$0xff]
      %v1059 = vld [vmem:[%s11 + $0x2f8] sm:$0xff]
      %v1060 = vld [vmem:[%s11 + $0x300] sm:$0xff]
      %v1061 = vld [vmem:[%s11 + $0x308] sm:$0xff]
      %v1062 = vld [vmem:[%s11 + $0x310] sm:$0xff]
      %v1063 = vld [vmem:[%s11 + $0x318] sm:$0xff]
      %v1064 = vld [vmem:[%s11 + $0x320] sm:$0xff]
      %v1065 = vld [vmem:[%s11 + $0x328] sm:$0xff]
      %v1066 = vld [vmem:[%s11 + $0x330] sm:$0xff]
      %v1067 = vld [vmem:[%s11 + $0x338] sm:$0xff]
      %v1068 = vld [vmem:[%s11 + $0x340] sm:$0xff]
      %v1069 = vld [vmem:[%s11 + $0x348] sm:$0xff]
      %v1070 = vld [vmem:[%s11 + $0x350] sm:$0xff]
      %v1071 = vld [vmem:[%s11 + $0x358] sm:$0xff]
      %v1072 = vld [vmem:[%s11 + $0x360] sm:$0xff]
      %v1073 = vld [vmem:[%s11 + $0x368] sm:$0xff]
      %v1074 = vld [vmem:[%s11 + $0x370] sm:$0xff]
      %v1075 = vld [vmem:[%s11 + $0x378] sm:$0xff]
      %v1076 = vld [vmem:[%s11 + $0x380] sm:$0xff]
      %v1077 = vld [vmem:[%s11 + $0x388] sm:$0xff]
      %v1078 = vld [vmem:[%s11 + $0x390] sm:$0xff]
      %v1079 = vld [vmem:[%s11 + $0x398] sm:$0xff]
      %v1080 = vld [vmem:[%s11 + $0x3a0] sm:$0xff]
      %v1081 = vld [vmem:[%s11 + $0x3a8] sm:$0xff]
      %v1082 = vld [vmem:[%s11 + $0x3b0] sm:$0xff]
      %v1083 = vld [vmem:[%s11 + $0x3b8] sm:$0xff]
      %v1084 = vld [vmem:[%s11 + $0x3c0] sm:$0xff]
      %v1085 = vld [vmem:[%s11 + $0x3c8] sm:$0xff]
      %v1086 = vld [vmem:[%s11 + $0x3d0] sm:$0xff]
      %v1087 = vld [vmem:[%s11 + $0x3d8] sm:$0xff]
      %v1088 = vld [vmem:[%s11 + $0x3e0] sm:$0xff]
      %v1089 = vld [vmem:[%s11 + $0x3e8] sm:$0xff]
      %v1090 = vld [vmem:[%s11 + $0x3f0] sm:$0xff]
      %v1091 = vld [vmem:[%s11 + $0x3f8] sm:$0xff]
      %v1092 = vld [vmem:[%s11 + $0x400] sm:$0xff]
      %v1093 = vld [vmem:[%s11 + $0x408] sm:$0xff]
      %v1094 = vld [vmem:[%s11 + $0x410] sm:$0xff]
      %v1095 = vld [vmem:[%s11 + $0x418] sm:$0xff]
      %v1096 = vld [vmem:[%s11 + $0x420] sm:$0xff]
      %v1097 = vld [vmem:[%s11 + $0x428] sm:$0xff]
      %v1098 = vld [vmem:[%s11 + $0x430] sm:$0xff]
      %v1099 = vld [vmem:[%s11 + $0x438] sm:$0xff]
      %v1100 = vld [vmem:[%s11 + $0x440] sm:$0xff]
      %v1101 = vld [vmem:[%s11 + $0x448] sm:$0xff]
      %v1102 = vld [vmem:[%s11 + $0x450] sm:$0xff]
      %v1103 = vld [vmem:[%s11 + $0x458] sm:$0xff]
      %v1104 = vld [vmem:[%s11 + $0x460] sm:$0xff]
      %v1105 = vld [vmem:[%s11 + $0x468] sm:$0xff]
      %v1106 = vld [vmem:[%s11 + $0x470] sm:$0xff]
      %v1107 = vld [vmem:[%s11 + $0x478] sm:$0xff]
      %v1108 = vld [vmem:[%s11 + $0x480] sm:$0xff]
      %v1109 = vld [vmem:[%s11 + $0x488] sm:$0xff]
      %v1110 = vld [vmem:[%s11 + $0x490] sm:$0xff]
      %v1111 = vld [vmem:[%s11 + $0x498] sm:$0xff]
      %v1112 = vld [vmem:[%s11 + $0x4a0] sm:$0xff]
      %v1113 = vld [vmem:[%s11 + $0x4a8] sm:$0xff]
      %v1114 = vld [vmem:[%s11 + $0x4b0] sm:$0xff]
      %v1115 = vld [vmem:[%s11 + $0x4b8] sm:$0xff]
      %v1116 = vld [vmem:[%s11 + $0x4c0] sm:$0xff]
      %v1117 = vld [vmem:[%s11 + $0x4c8] sm:$0xff]
      %v1118 = vld [vmem:[%s11 + $0x4d0] sm:$0xff]
      %v1119 = vld [vmem:[%s11 + $0x4d8] sm:$0xff]
      %v1120 = vld [vmem:[%s11 + $0x4e0] sm:$0xff]
      %v1121 = vld [vmem:[%s11 + $0x4e8] sm:$0xff]
      %v1122 = vld [vmem:[%s11 + $0x4f0] sm:$0xff]
      %v1123 = vld [vmem:[%s11 + $0x4f8] sm:$0xff]
      %v1124 = vld [vmem:[%s11 + $0x500] sm:$0xff]
      %v1125 = vld [vmem:[%s11 + $0x508] sm:$0xff]
      %v1126 = vld [vmem:[%s11 + $0x510] sm:$0xff]
      %v1127 = vld [vmem:[%s11 + $0x518] sm:$0xff]
      %v1128 = vld [vmem:[%s11 + $0x520] sm:$0xff]
      %v1129 = vld [vmem:[%s11 + $0x528] sm:$0xff]
      %v1130 = vld [vmem:[%s11 + $0x530] sm:$0xff]
      %v1131 = vld [vmem:[%s11 + $0x538] sm:$0xff]
      %v1132 = vld [vmem:[%s11 + $0x540] sm:$0xff]
      %v1133 = vld [vmem:[%s11 + $0x548] sm:$0xff]
      %v1134 = vld [vmem:[%s11 + $0x550] sm:$0xff]
      %v1135 = vld [vmem:[%s11 + $0x558] sm:$0xff]
      %v1136 = vld [vmem:[%s11 + $0x560] sm:$0xff]
      %v1137 = vld [vmem:[%s11 + $0x568] sm:$0xff]
      %v1138 = vld [vmem:[%s11 + $0x570] sm:$0xff]
      %v1139 = vld [vmem:[%s11 + $0x578] sm:$0xff]
      %v1140 = vld [vmem:[%s11 + $0x580] sm:$0xff]
      %v1141 = vld [vmem:[%s11 + $0x588] sm:$0xff]
      %v1142 = vld [vmem:[%s11 + $0x590] sm:$0xff]
      %v1143 = vld [vmem:[%s11 + $0x598] sm:$0xff]
      %v1144 = vld [vmem:[%s11 + $0x5a0] sm:$0xff]
      %v1145 = vld [vmem:[%s11 + $0x5a8] sm:$0xff]
      %v1146 = vld [vmem:[%s11 + $0x5b0] sm:$0xff]
      %v1147 = vld [vmem:[%s11 + $0x5b8] sm:$0xff]
      %v1148 = vld [vmem:[%s11 + $0x5c0] sm:$0xff]
      %v1149 = vld [vmem:[%s11 + $0x5c8] sm:$0xff]
      %v1150 = vld [vmem:[%s11 + $0x5d0] sm:$0xff]
      %v1151 = vld [vmem:[%s11 + $0x5d8] sm:$0xff]
      %v1152 = vld [vmem:[%s11 + $0x5e0] sm:$0xff]
      %v1153 = vld [vmem:[%s11 + $0x5e8] sm:$0xff]
      %v1154 = vld [vmem:[%s11 + $0x5f0] sm:$0xff]
      %v1155 = vld [vmem:[%s11 + $0x5f8] sm:$0xff]
      %v1156 = vld [vmem:[%s11 + $0x600] sm:$0xff]
      %v1157 = vld [vmem:[%s11 + $0x608] sm:$0xff]
      %v1158 = vld [vmem:[%s11 + $0x610] sm:$0xff]
      %v1159 = vld [vmem:[%s11 + $0x618] sm:$0xff]
      %v1160 = vld [vmem:[%s11 + $0x620] sm:$0xff]
      %v1161 = vld [vmem:[%s11 + $0x628] sm:$0xff]
      %v1162 = vld [vmem:[%s11 + $0x630] sm:$0xff]
      %v1163 = vld [vmem:[%s11 + $0x638] sm:$0xff]
      %v1164 = vld [vmem:[%s11 + $0x640] sm:$0xff]
      %v1165 = vld [vmem:[%s11 + $0x648] sm:$0xff]
      %v1166 = vld [vmem:[%s11 + $0x650] sm:$0xff]
      %v1167 = vld [vmem:[%s11 + $0x658] sm:$0xff]
      %v1168 = vld [vmem:[%s11 + $0x660] sm:$0xff]
      %v1169 = vld [vmem:[%s11 + $0x668] sm:$0xff]
      %v1170 = vld [vmem:[%s11 + $0x670] sm:$0xff]
      %v1171 = vld [vmem:[%s11 + $0x678] sm:$0xff]
      %v1172 = vld [vmem:[%s11 + $0x680] sm:$0xff]
      %v1173 = vld [vmem:[%s11 + $0x688] sm:$0xff]
      %v1174 = vld [vmem:[%s11 + $0x690] sm:$0xff]
      %v1175 = vld [vmem:[%s11 + $0x698] sm:$0xff]
      %v1176 = vld [vmem:[%s11 + $0x6a0] sm:$0xff]
      %v1177 = vld [vmem:[%s11 + $0x6a8] sm:$0xff]
      %v1178 = vld [vmem:[%s11 + $0x6b0] sm:$0xff]
      %v1179 = vld [vmem:[%s11 + $0x6b8] sm:$0xff]
      %v1180 = vld [vmem:[%s11 + $0x6c0] sm:$0xff]
      %v1181 = vld [vmem:[%s11 + $0x6c8] sm:$0xff]
      %v1182 = vld [vmem:[%s11 + $0x6d0] sm:$0xff]
      %v1183 = vld [vmem:[%s11 + $0x6d8] sm:$0xff]
      %v1184 = vld [vmem:[%s11 + $0x6e0] sm:$0xff]
      %v1185 = vld [vmem:[%s11 + $0x6e8] sm:$0xff]
      %v1186 = vld [vmem:[%s11 + $0x6f0] sm:$0xff]
      %v1187 = vld [vmem:[%s11 + $0x6f8] sm:$0xff]
      %v1188 = vld [vmem:[%s11 + $0x700] sm:$0xff]
      %v1189 = vld [vmem:[%s11 + $0x708] sm:$0xff]
      %v1190 = vld [vmem:[%s11 + $0x710] sm:$0xff]
      %v1191 = vld [vmem:[%s11 + $0x718] sm:$0xff]
      %v1192 = vld [vmem:[%s11 + $0x720] sm:$0xff]
      %v1193 = vld [vmem:[%s11 + $0x728] sm:$0xff]
      %v1194 = vld [vmem:[%s11 + $0x730] sm:$0xff]
      %v1195 = vld [vmem:[%s11 + $0x738] sm:$0xff]
      %v1196 = vld [vmem:[%s11 + $0x740] sm:$0xff]
      %v1197 = vld [vmem:[%s11 + $0x748] sm:$0xff]
      %v1198 = vld [vmem:[%s11 + $0x750] sm:$0xff]
      %v1199 = vld [vmem:[%s11 + $0x758] sm:$0xff]
      %v1200 = vld [vmem:[%s11 + $0x760] sm:$0xff]
      %v1201 = vld [vmem:[%s11 + $0x768] sm:$0xff]
      %v1202 = vld [vmem:[%s11 + $0x770] sm:$0xff]
      %v1203 = vld [vmem:[%s11 + $0x778] sm:$0xff]
      %v1204 = vld [vmem:[%s11 + $0x780] sm:$0xff]
      %v1205 = vld [vmem:[%s11 + $0x788] sm:$0xff]
      %v1206 = vld [vmem:[%s11 + $0x790] sm:$0xff]
      %v1207 = vld [vmem:[%s11 + $0x798] sm:$0xff]
      %v1208 = vld [vmem:[%s11 + $0x7a0] sm:$0xff]
      %v1209 = vld [vmem:[%s11 + $0x7a8] sm:$0xff]
      %v1210 = vld [vmem:[%s11 + $0x7b0] sm:$0xff]
      %v1211 = vld [vmem:[%s11 + $0x7b8] sm:$0xff]
      %v1212 = vld [vmem:[%s11 + $0x7c0] sm:$0xff]
      %v1213 = vld [vmem:[%s11 + $0x7c8] sm:$0xff]
      %v1214 = vld [vmem:[%s11 + $0x7d0] sm:$0xff]
      %v1215 = vld [vmem:[%s11 + $0x7d8] sm:$0xff]
      %v1216 = vld [vmem:[%s11 + $0x7e0] sm:$0xff]
      %v1217 = vld [vmem:[%s11 + $0x7e8] sm:$0xff]
      %v1218 = vld [vmem:[%s11 + $0x7f0] sm:$0xff]
      %v1219 = vld [vmem:[%s11 + $0x7f8] sm:$0xff]
      %v1220 = vld [vmem:[%s11 + $0x800] sm:$0xff]
      %v1221 = vld [vmem:[%s11 + $0x808] sm:$0xff]
      %v1222 = vld [vmem:[%s11 + $0x810] sm:$0xff]
      %v1223 = vld [vmem:[%s11 + $0x818] sm:$0xff]
      %v1224 = vld [vmem:[%s11 + $0x820] sm:$0xff]
      %v1225 = vld [vmem:[%s11 + $0x828] sm:$0xff]
      %v1226 = vld [vmem:[%s11 + $0x830] sm:$0xff]
      %v1227 = vld [vmem:[%s11 + $0x838] sm:$0xff]
      %v1228 = vld [vmem:[%s11 + $0x840] sm:$0xff]
      %v1229 = vld [vmem:[%s11 + $0x848] sm:$0xff]
      %v1230 = vld [vmem:[%s11 + $0x850] sm:$0xff]
      %v1231 = vld [vmem:[%s11 + $0x858] sm:$0xff]
      %v1232 = vld [vmem:[%s11 + $0x860] sm:$0xff]
      %v1233 = vld [vmem:[%s11 + $0x868] sm:$0xff]
      %v1234 = vld [vmem:[%s11 + $0x870] sm:$0xff]
      %v1235 = vld [vmem:[%s11 + $0x878] sm:$0xff]
      %v1236 = vld [vmem:[%s11 + $0x880] sm:$0xff]
      %v1237 = vld [vmem:[%s11 + $0x888] sm:$0xff]
      %v1238 = vld [vmem:[%s11 + $0x890] sm:$0xff]
      %v1239 = vld [vmem:[%s11 + $0x898] sm:$0xff]
      %v1240 = vld [vmem:[%s11 + $0x8a0] sm:$0xff]
      %v1241 = vld [vmem:[%s11 + $0x8a8] sm:$0xff]
      %v1242 = vld [vmem:[%s11 + $0x8b0] sm:$0xff]
      %v1243 = vld [vmem:[%s11 + $0x8b8] sm:$0xff]
      %v1244 = vld [vmem:[%s11 + $0x8c0] sm:$0xff]
      %v1245 = vld [vmem:[%s11 + $0x8c8] sm:$0xff]
      %v1246 = vld [vmem:[%s11 + $0x8d0] sm:$0xff]
      %v1247 = vld [vmem:[%s11 + $0x8d8] sm:$0xff]
      %v1248 = vld [vmem:[%s11 + $0x8e0] sm:$0xff]
      %v1249 = vld [vmem:[%s11 + $0x8e8] sm:$0xff]
      %v1250 = vld [vmem:[%s11 + $0x8f0] sm:$0xff]
      %v1251 = vld [vmem:[%s11 + $0x8f8] sm:$0xff]
      %v1252 = vld [vmem:[%s11 + $0x900] sm:$0xff]
      %v1253 = vld [vmem:[%s11 + $0x908] sm:$0xff]
      %v1254 = vld [vmem:[%s11 + $0x910] sm:$0xff]
      %v1255 = vld [vmem:[%s11 + $0x918] sm:$0xff]
      %v1256 = vld [vmem:[%s11 + $0x920] sm:$0xff]
      %v1257 = vld [vmem:[%s11 + $0x928] sm:$0xff]
      %v1258 = vld [vmem:[%s11 + $0x930] sm:$0xff]
      %v1259 = vld [vmem:[%s11 + $0x938] sm:$0xff]
      %v1260 = vld [vmem:[%s11 + $0x940] sm:$0xff]
      %v1261 = vld [vmem:[%s11 + $0x948] sm:$0xff]
      %v1262 = vld [vmem:[%s11 + $0x950] sm:$0xff]
      %v1263 = vld [vmem:[%s11 + $0x958] sm:$0xff]
      %v1264 = vld [vmem:[%s11 + $0x960] sm:$0xff]
      %v1265 = vld [vmem:[%s11 + $0x968] sm:$0xff]
      %v1266 = vld [vmem:[%s11 + $0x970] sm:$0xff]
      %v1267 = vld [vmem:[%s11 + $0x978] sm:$0xff]
      %v1268 = vld [vmem:[%s11 + $0x980] sm:$0xff]
      %v1269 = vld [vmem:[%s11 + $0x988] sm:$0xff]
      %v1270 = vld [vmem:[%s11 + $0x990] sm:$0xff]
      %v1271 = vld [vmem:[%s11 + $0x998] sm:$0xff]
      %v1272 = vld [vmem:[%s11 + $0x9a0] sm:$0xff]
      %v1273 = vld [vmem:[%s11 + $0x9a8] sm:$0xff]
      %v1274 = vld [vmem:[%s11 + $0x9b0] sm:$0xff]
      %v1275 = vld [vmem:[%s11 + $0x9b8] sm:$0xff]
      %v1276 = vld [vmem:[%s11 + $0x9c0] sm:$0xff]
      %v1277 = vld [vmem:[%s11 + $0x9c8] sm:$0xff]
      %v1278 = vld [vmem:[%s11 + $0x9d0] sm:$0xff]
      %v1279 = vld [vmem:[%s11 + $0x9d8] sm:$0xff]
      %v1280 = vld [vmem:[%s11 + $0x9e0] sm:$0xff]
      %v1281 = vld [vmem:[%s11 + $0x9e8] sm:$0xff]
      %v1282 = vld [vmem:[%s11 + $0x9f0] sm:$0xff]
      %v1283 = vld [vmem:[%s11 + $0x9f8] sm:$0xff]
      %v1284 = vld [vmem:[%s11 + $0xa00] sm:$0xff]
      %v1285 = vld [vmem:[%s11 + $0xa08] sm:$0xff]
      %v1286 = vld [vmem:[%s11 + $0xa10] sm:$0xff]
      %v1287 = vld [vmem:[%s11 + $0xa18] sm:$0xff]
      %v1288 = vld [vmem:[%s11 + $0xa20] sm:$0xff]
      %v1289 = vld [vmem:[%s11 + $0xa28] sm:$0xff]
      %v1290 = vld [vmem:[%s11 + $0xa30] sm:$0xff]
      %v1291 = vld [vmem:[%s11 + $0xa38] sm:$0xff]
      %v1292 = vld [vmem:[%s11 + $0xa40] sm:$0xff]
      %v1293 = vld [vmem:[%s11 + $0xa48] sm:$0xff]
      %v1294 = vld [vmem:[%s11 + $0xa50] sm:$0xff]
      %v1295 = vld [vmem:[%s11 + $0xa58] sm:$0xff]
      %v1296 = vld [vmem:[%s11 + $0xa60] sm:$0xff]
      %v1297 = vld [vmem:[%s11 + $0xa68] sm:$0xff]
      %v1298 = vld [vmem:[%s11 + $0xa70] sm:$0xff]
      %v1299 = vld [vmem:[%s11 + $0xa78] sm:$0xff]
      %v1300 = vld [vmem:[%s11 + $0xa80] sm:$0xff]
      %v1301 = vld [vmem:[%s11 + $0xa88] sm:$0xff]
      %v1302 = vld [vmem:[%s11 + $0xa90] sm:$0xff]
      %v1303 = vld [vmem:[%s11 + $0xa98] sm:$0xff]
      %v1304 = vld [vmem:[%s11 + $0xaa0] sm:$0xff]
      %v1305 = vld [vmem:[%s11 + $0xaa8] sm:$0xff]
      %v1306 = vld [vmem:[%s11 + $0xab0] sm:$0xff]
      %v1307 = vld [vmem:[%s11 + $0xab8] sm:$0xff]
      %v1308 = vld [vmem:[%s11 + $0xac0] sm:$0xff]
      %v1309 = vld [vmem:[%s11 + $0xac8] sm:$0xff]
      %v1310 = vld [vmem:[%s11 + $0xad0] sm:$0xff]
      %v1311 = vld [vmem:[%s11 + $0xad8] sm:$0xff]
      %v1312 = vld [vmem:[%s11 + $0xae0] sm:$0xff]
      %v1313 = vld [vmem:[%s11 + $0xae8] sm:$0xff]
      %v1314 = vld [vmem:[%s11 + $0xaf0] sm:$0xff]
      %v1315 = vld [vmem:[%s11 + $0xaf8] sm:$0xff]
      %v1316 = vld [vmem:[%s11 + $0xb00] sm:$0xff]
      %v1317 = vld [vmem:[%s11 + $0xb08] sm:$0xff]
      %v1318 = vld [vmem:[%s11 + $0xb10] sm:$0xff]
      %v1319 = vld [vmem:[%s11 + $0xb18] sm:$0xff]
      %v1320 = vld [vmem:[%s11 + $0xb20] sm:$0xff]
      %v1321 = vld [vmem:[%s11 + $0xb28] sm:$0xff]
      %v1322 = vld [vmem:[%s11 + $0xb30] sm:$0xff]
      %v1323 = vld [vmem:[%s11 + $0xb38] sm:$0xff]
      %v1324 = vld [vmem:[%s11 + $0xb40] sm:$0xff]
      %v1325 = vld [vmem:[%s11 + $0xb48] sm:$0xff]
      %v1326 = vld [vmem:[%s11 + $0xb50] sm:$0xff]
      %v1327 = vld [vmem:[%s11 + $0xb58] sm:$0xff]
      %v1328 = vld [vmem:[%s11 + $0xb60] sm:$0xff]
      %v1329 = vld [vmem:[%s11 + $0xb68] sm:$0xff]
      %v1330 = vld [vmem:[%s11 + $0xb70] sm:$0xff]
      %v1331 = vld [vmem:[%s11 + $0xb78] sm:$0xff]
      %v1332 = vld [vmem:[%s11 + $0xb80] sm:$0xff]
      %v1333 = vld [vmem:[%s11 + $0xb88] sm:$0xff]
      %v1334 = vld [vmem:[%s11 + $0xb90] sm:$0xff]
      %v1335 = vld [vmem:[%s11 + $0xb98] sm:$0xff]
      %v1336 = vld [vmem:[%s11 + $0xba0] sm:$0xff]
      %v1337 = vld [vmem:[%s11 + $0xba8] sm:$0xff]
      %v1338 = vld [vmem:[%s11 + $0xbb0] sm:$0xff]
      %v1339 = vld [vmem:[%s11 + $0xbb8] sm:$0xff]
      %v1340 = vld [vmem:[%s11 + $0xbc0] sm:$0xff]
      %v1341 = vld [vmem:[%s11 + $0xbc8] sm:$0xff]
      %v1342 = vld [vmem:[%s11 + $0xbd0] sm:$0xff]
      %v1343 = vld [vmem:[%s11 + $0xbd8] sm:$0xff]
      %v1344 = vld [vmem:[%s11 + $0xbe0] sm:$0xff]
      %v1345 = vld [vmem:[%s11 + $0xbe8] sm:$0xff]
      %v1346 = vld [vmem:[%s11 + $0xbf0] sm:$0xff]
      %v1347 = vld [vmem:[%s11 + $0xbf8] sm:$0xff]
      %v1348 = vld [vmem:[%s11 + $0xc00] sm:$0xff]
      %v1349 = vld [vmem:[%s11 + $0xc08] sm:$0xff]
      %v1350 = vld [vmem:[%s11 + $0xc10] sm:$0xff]
      %v1351 = vld [vmem:[%s11 + $0xc18] sm:$0xff]
      %v1352 = vld [vmem:[%s11 + $0xc20] sm:$0xff]
      %v1353 = vld [vmem:[%s11 + $0xc28] sm:$0xff]
      %v1354 = vld [vmem:[%s11 + $0xc30] sm:$0xff]
      %v1355 = vld [vmem:[%s11 + $0xc38] sm:$0xff]
      %v1356 = vld [vmem:[%s11 + $0xc40] sm:$0xff]
      %v1357 = vld [vmem:[%s11 + $0xc48] sm:$0xff]
      %v1358 = vld [vmem:[%s11 + $0xc50] sm:$0xff]
      %v1359 = vld [vmem:[%s11 + $0xc58] sm:$0xff]
      %v1360 = vld [vmem:[%s11 + $0xc60] sm:$0xff]
      %v1361 = vld [vmem:[%s11 + $0xc68] sm:$0xff]
      %v1362 = vld [vmem:[%s11 + $0xc70] sm:$0xff]
      %v1363 = vld [vmem:[%s11 + $0xc78] sm:$0xff]
      %v1364 = vld [vmem:[%s11 + $0xc80] sm:$0xff]
      %v1365 = vld [vmem:[%s11 + $0xc88] sm:$0xff]
      %v1366 = vld [vmem:[%s11 + $0xc90] sm:$0xff]
      %v1367 = vld [vmem:[%s11 + $0xc98] sm:$0xff]
      %v1368 = vld [vmem:[%s11 + $0xca0] sm:$0xff]
      %v1369 = vld [vmem:[%s11 + $0xca8] sm:$0xff]
      %v1370 = vld [vmem:[%s11 + $0xcb0] sm:$0xff]
      %v1371 = vld [vmem:[%s11 + $0xcb8] sm:$0xff]
      %v1372 = vld [vmem:[%s11 + $0xcc0] sm:$0xff]
      %v1373 = vld [vmem:[%s11 + $0xcc8] sm:$0xff]
      %v1374 = vld [vmem:[%s11 + $0xcd0] sm:$0xff]
      %v1375 = vld [vmem:[%s11 + $0xcd8] sm:$0xff]
      %v1376 = vld [vmem:[%s11 + $0xce0] sm:$0xff]
      %v1377 = vld [vmem:[%s11 + $0xce8] sm:$0xff]
      %v1378 = vld [vmem:[%s11 + $0xcf0] sm:$0xff]
      %v1379 = vld [vmem:[%s11 + $0xcf8] sm:$0xff]
      %v1380 = vld [vmem:[%s11 + $0xd00] sm:$0xff]
      %v1381 = vld [vmem:[%s11 + $0xd08] sm:$0xff]
      %v1382 = vld [vmem:[%s11 + $0xd10] sm:$0xff]
      %v1383 = vld [vmem:[%s11 + $0xd18] sm:$0xff]
      %v1384 = vld [vmem:[%s11 + $0xd20] sm:$0xff]
      %v1385 = vld [vmem:[%s11 + $0xd28] sm:$0xff]
      %v1386 = vld [vmem:[%s11 + $0xd30] sm:$0xff]
      %v1387 = vld [vmem:[%s11 + $0xd38] sm:$0xff]
      %v1388 = vld [vmem:[%s11 + $0xd40] sm:$0xff]
      %v1389 = vld [vmem:[%s11 + $0xd48] sm:$0xff]
      %v1390 = vld [vmem:[%s11 + $0xd50] sm:$0xff]
      %v1391 = vld [vmem:[%s11 + $0xd58] sm:$0xff]
      %v1392 = vld [vmem:[%s11 + $0xd60] sm:$0xff]
      %v1393 = vld [vmem:[%s11 + $0xd68] sm:$0xff]
      %v1394 = vld [vmem:[%s11 + $0xd70] sm:$0xff]
      %v1395 = vld [vmem:[%s11 + $0xd78] sm:$0xff]
      %v1396 = vld [vmem:[%s11 + $0xd80] sm:$0xff]
      %v1397 = vld [vmem:[%s11 + $0xd88] sm:$0xff]
      %v1398 = vld [vmem:[%s11 + $0xd90] sm:$0xff]
      %v1399 = vld [vmem:[%s11 + $0xd98] sm:$0xff]
      %v1400 = vld [vmem:[%s11 + $0xda0] sm:$0xff]
      %v1401 = vld [vmem:[%s11 + $0xda8] sm:$0xff]
      %v1402 = vld [vmem:[%s11 + $0xdb0] sm:$0xff]
      %v1403 = vld [vmem:[%s11 + $0xdb8] sm:$0xff]
      %v1404 = vld [vmem:[%s11 + $0xdc0] sm:$0xff]
      %v1405 = vld [vmem:[%s11 + $0xdc8] sm:$0xff]
      %v1406 = vld [vmem:[%s11 + $0xdd0] sm:$0xff]
      %v1407 = vld [vmem:[%s11 + $0xdd8] sm:$0xff]
      %v1408 = vld [vmem:[%s11 + $0xde0] sm:$0xff]
      %v1409 = vld [vmem:[%s11 + $0xde8] sm:$0xff]
      %v1410 = vld [vmem:[%s11 + $0xdf0] sm:$0xff]
      %v1411 = vld [vmem:[%s11 + $0xdf8] sm:$0xff]
      %v1412 = vld [vmem:[%s11 + $0xe00] sm:$0xff]
      %v1413 = vld [vmem:[%s11 + $0xe08] sm:$0xff]
      %v1414 = vld [vmem:[%s11 + $0xe10] sm:$0xff]
      %v1415 = vld [vmem:[%s11 + $0xe18] sm:$0xff]
      %v1416 = vld [vmem:[%s11 + $0xe20] sm:$0xff]
      %v1417 = vld [vmem:[%s11 + $0xe28] sm:$0xff]
      %v1418 = vld [vmem:[%s11 + $0xe30] sm:$0xff]
      %v1419 = vld [vmem:[%s11 + $0xe38] sm:$0xff]
      %v1420 = vld [vmem:[%s11 + $0xe40] sm:$0xff]
      %v1421 = vld [vmem:[%s11 + $0xe48] sm:$0xff]
      %v1422 = vld [vmem:[%s11 + $0xe50] sm:$0xff]
      %v1423 = vld [vmem:[%s11 + $0xe58] sm:$0xff]
      %v1424 = vld [vmem:[%s11 + $0xe60] sm:$0xff]
      %v1425 = vld [vmem:[%s11 + $0xe68] sm:$0xff]
      %v1426 = vld [vmem:[%s11 + $0xe70] sm:$0xff]
      %v1427 = vld [vmem:[%s11 + $0xe78] sm:$0xff]
      %v1428 = vld [vmem:[%s11 + $0xe80] sm:$0xff]
      %v1429 = vld [vmem:[%s11 + $0xe88] sm:$0xff]
      %v1430 = vld [vmem:[%s11 + $0xe90] sm:$0xff]
      %v1431 = vld [vmem:[%s11 + $0xe98] sm:$0xff]
      %v1432 = vld [vmem:[%s11 + $0xea0] sm:$0xff]
      %v1433 = vld [vmem:[%s11 + $0xea8] sm:$0xff]
      %v1434 = vld [vmem:[%s11 + $0xeb0] sm:$0xff]
      %v1435 = vld [vmem:[%s11 + $0xeb8] sm:$0xff]
      %v1436 = vld [vmem:[%s11 + $0xec0] sm:$0xff]
      %v1437 = vld [vmem:[%s11 + $0xec8] sm:$0xff]
      %v1438 = vld [vmem:[%s11 + $0xed0] sm:$0xff]
      %v1439 = vld [vmem:[%s11 + $0xed8] sm:$0xff]
      %v1440 = vld [vmem:[%s11 + $0xee0] sm:$0xff]
      %v1441 = vld [vmem:[%s11 + $0xee8] sm:$0xff]
      %v1442 = vld [vmem:[%s11 + $0xef0] sm:$0xff]
      %v1443 = vld [vmem:[%s11 + $0xef8] sm:$0xff]
      %v1444 = vld [vmem:[%s11 + $0xf00] sm:$0xff]
      %v1445 = vld [vmem:[%s11 + $0xf08] sm:$0xff]
      %v1446 = vld [vmem:[%s11 + $0xf10] sm:$0xff]
      %v1447 = vld [vmem:[%s11 + $0xf18] sm:$0xff]
      %v1448 = vld [vmem:[%s11 + $0xf20] sm:$0xff]
      %v1449 = vld [vmem:[%s11 + $0xf28] sm:$0xff]
      %v1450 = vld [vmem:[%s11 + $0xf30] sm:$0xff]
      %v1451 = vld [vmem:[%s11 + $0xf38] sm:$0xff]
      %v1452 = vld [vmem:[%s11 + $0xf40] sm:$0xff]
      %v1453 = vld [vmem:[%s11 + $0xf48] sm:$0xff]
      %v1454 = vld [vmem:[%s11 + $0xf50] sm:$0xff]
      %v1455 = vld [vmem:[%s11 + $0xf58] sm:$0xff]
      %v1456 = vld [vmem:[%s11 + $0xf60] sm:$0xff]
      %v1457 = vld [vmem:[%s11 + $0xf68] sm:$0xff]
      %v1458 = vld [vmem:[%s11 + $0xf70] sm:$0xff]
      %v1459 = vld [vmem:[%s11 + $0xf78] sm:$0xff]
      %v1460 = vld [vmem:[%s11 + $0xf80] sm:$0xff]
      %v1461 = vld [vmem:[%s11 + $0xf88] sm:$0xff]
      %v1462 = vld [vmem:[%s11 + $0xf90] sm:$0xff]
      %v1463 = vld [vmem:[%s11 + $0xf98] sm:$0xff]
      %v1464 = vld [vmem:[%s11 + $0xfa0] sm:$0xff]
      %v1465 = vld [vmem:[%s11 + $0xfa8] sm:$0xff]
      %v1466 = vld [vmem:[%s11 + $0xfb0] sm:$0xff]
      %v1467 = vld [vmem:[%s11 + $0xfb8] sm:$0xff]
      %v1468 = vld [vmem:[%s11 + $0xfc0] sm:$0xff]
      %v1469 = vld [vmem:[%s11 + $0xfc8] sm:$0xff]
      %v1470 = vld [vmem:[%s11 + $0xfd0] sm:$0xff]
      %v1471 = vld [vmem:[%s11 + $0xfd8] sm:$0xff]
      %v1472 = vld [vmem:[%s11 + $0xfe0] sm:$0xff]
      %v1473 = vld [vmem:[%s11 + $0xfe8] sm:$0xff]
      %v1474 = vld [vmem:[%s11 + $0xff0] sm:$0xff]
      %v1475 = vld [vmem:[%s11 + $0xff8] sm:$0xff]
      %v1476 = vld [vmem:[%s11 + $0x1000] sm:$0xff]
      %v1477 = vld [vmem:[%s11 + $0x1008] sm:$0xff]
      %v1478 = vld [vmem:[%s11 + $0x1010] sm:$0xff]
      %v1479 = vld [vmem:[%s11 + $0x1018] sm:$0xff]
      %v1480 = vld [vmem:[%s11 + $0x1020] sm:$0xff]
      %v1481 = vld [vmem:[%s11 + $0x1028] sm:$0xff]
      %v1482 = vld [vmem:[%s11 + $0x1030] sm:$0xff]
      %v1483 = vld [vmem:[%s11 + $0x1038] sm:$0xff]
      %v1484 = vld [vmem:[%s11 + $0x1040] sm:$0xff]
      %v1485 = vld [vmem:[%s11 + $0x1048] sm:$0xff]
      %v1486 = vld [vmem:[%s11 + $0x1050] sm:$0xff]
      %v1487 = vld [vmem:[%s11 + $0x1058] sm:$0xff]
      %v1488 = vld [vmem:[%s11 + $0x1060] sm:$0xff]
      %v1489 = vld [vmem:[%s11 + $0x1068] sm:$0xff]
      %v1490 = vld [vmem:[%s11 + $0x1070] sm:$0xff]
      %v1491 = vld [vmem:[%s11 + $0x1078] sm:$0xff]
      %v1492 = vld [vmem:[%s11 + $0x1080] sm:$0xff]
      %v1493 = vld [vmem:[%s11 + $0x1088] sm:$0xff]
      %v1494 = vld [vmem:[%s11 + $0x1090] sm:$0xff]
      %v1495 = vld [vmem:[%s11 + $0x1098] sm:$0xff]
      %v1496 = vld [vmem:[%s11 + $0x10a0] sm:$0xff]
      %v1497 = vld [vmem:[%s11 + $0x10a8] sm:$0xff]
      %v1498 = vld [vmem:[%s11 + $0x10b0] sm:$0xff]
      %v1499 = vld [vmem:[%s11 + $0x10b8] sm:$0xff]
      %v1500 = vld [vmem:[%s11 + $0x10c0] sm:$0xff]
      %v1501 = vld [vmem:[%s11 + $0x10c8] sm:$0xff]
      %v1502 = vld [vmem:[%s11 + $0x10d0] sm:$0xff]
      %v1503 = vld [vmem:[%s11 + $0x10d8] sm:$0xff]
      %v1504 = vld [vmem:[%s11 + $0x10e0] sm:$0xff]
      %v1505 = vld [vmem:[%s11 + $0x10e8] sm:$0xff]
      %v1506 = vld [vmem:[%s11 + $0x10f0] sm:$0xff]
      %v1507 = vld [vmem:[%s11 + $0x10f8] sm:$0xff]
      %v1508 = vld [vmem:[%s11 + $0x1100] sm:$0xff]
      %v1509 = vld [vmem:[%s11 + $0x1108] sm:$0xff]
      %v1510 = vld [vmem:[%s11 + $0x1110] sm:$0xff]
      %v1511 = vld [vmem:[%s11 + $0x1118] sm:$0xff]
      %v1512 = vld [vmem:[%s11 + $0x1120] sm:$0xff]
      %v1513 = vld [vmem:[%s11 + $0x1128] sm:$0xff]
      %v1514 = vld [vmem:[%s11 + $0x1130] sm:$0xff]
      %v1515 = vld [vmem:[%s11 + $0x1138] sm:$0xff]
      %v1516 = vld [vmem:[%s11 + $0x1140] sm:$0xff]
      %v1517 = vld [vmem:[%s11 + $0x1148] sm:$0xff]
      %v1518 = vld [vmem:[%s11 + $0x1150] sm:$0xff]
      %v1519 = vld [vmem:[%s11 + $0x1158] sm:$0xff]
      %v1520 = vld [vmem:[%s11 + $0x1160] sm:$0xff]
      %v1521 = vld [vmem:[%s11 + $0x1168] sm:$0xff]
      %v1522 = vld [vmem:[%s11 + $0x1170] sm:$0xff]
      %v1523 = vld [vmem:[%s11 + $0x1178] sm:$0xff]
      %v1524 = vld [vmem:[%s11 + $0x1180] sm:$0xff]
      %v1525 = vld [vmem:[%s11 + $0x1188] sm:$0xff]
      %v1526 = vld [vmem:[%s11 + $0x1190] sm:$0xff]
      %v1527 = vld [vmem:[%s11 + $0x1198] sm:$0xff]
      %v1528 = vld [vmem:[%s11 + $0x11a0] sm:$0xff]
      %v1529 = vld [vmem:[%s11 + $0x11a8] sm:$0xff]
      %v1530 = vld [vmem:[%s11 + $0x11b0] sm:$0xff]
      %v1531 = vld [vmem:[%s11 + $0x11b8] sm:$0xff]
      %v1532 = vld [vmem:[%s11 + $0x11c0] sm:$0xff]
      %v1533 = vld [vmem:[%s11 + $0x11c8] sm:$0xff]
      %v1534 = vld [vmem:[%s11 + $0x11d0] sm:$0xff]
      %v1535 = vld [vmem:[%s11 + $0x11d8] sm:$0xff]
      %v1536 = vld [vmem:[%s11 + $0x11e0] sm:$0xff]
      %v1537 = vld [vmem:[%s11 + $0x11e8] sm:$0xff]
      %v1538 = vld [vmem:[%s11 + $0x11f0] sm:$0xff]
      %v1539 = vld [vmem:[%s11 + $0x11f8] sm:$0xff]
      %v1540 = vld [vmem:[%s11 + $0x1200] sm:$0xff]
      %v1541 = vld [vmem:[%s11 + $0x1208] sm:$0xff]
      %v1542 = vld [vmem:[%s11 + $0x1210] sm:$0xff]
      %v1543 = vld [vmem:[%s11 + $0x1218] sm:$0xff]
      %v1544 = vld [vmem:[%s11 + $0x1220] sm:$0xff]
      %v1545 = vld [vmem:[%s11 + $0x1228] sm:$0xff]
      %v1546 = vld [vmem:[%s11 + $0x1230] sm:$0xff]
      %v1547 = vld [vmem:[%s11 + $0x1238] sm:$0xff]
      %v1548 = vld [vmem:[%s11 + $0x1240] sm:$0xff]
      %v1549 = vld [vmem:[%s11 + $0x1248] sm:$0xff]
      %v1550 = vld [vmem:[%s11 + $0x1250] sm:$0xff]
      %v1551 = vld [vmem:[%s11 + $0x1258] sm:$0xff]
      %v1552 = vld [vmem:[%s11 + $0x1260] sm:$0xff]
      %v1553 = vld [vmem:[%s11 + $0x1268] sm:$0xff]
      %v1554 = vld [vmem:[%s11 + $0x1270] sm:$0xff]
      %v1555 = vld [vmem:[%s11 + $0x1278] sm:$0xff]
      %v1556 = vld [vmem:[%s11 + $0x1280] sm:$0xff]
      %v1557 = vld [vmem:[%s11 + $0x1288] sm:$0xff]
      %v1558 = vld [vmem:[%s11 + $0x1290] sm:$0xff]
      %v1559 = vld [vmem:[%s11 + $0x1298] sm:$0xff]
      %v1560 = vld [vmem:[%s11 + $0x12a0] sm:$0xff]
      %v1561 = vld [vmem:[%s11 + $0x12a8] sm:$0xff]
      %v1562 = vld [vmem:[%s11 + $0x12b0] sm:$0xff]
      %v1563 = vld [vmem:[%s11 + $0x12b8] sm:$0xff]
      %v1564 = vld [vmem:[%s11 + $0x12c0] sm:$0xff]
      %v1565 = vld [vmem:[%s11 + $0x12c8] sm:$0xff]
      %v1566 = vld [vmem:[%s11 + $0x12d0] sm:$0xff]
      %v1567 = vld [vmem:[%s11 + $0x12d8] sm:$0xff]
      %v1568 = vld [vmem:[%s11 + $0x12e0] sm:$0xff]
      %v1569 = vld [vmem:[%s11 + $0x12e8] sm:$0xff]
      %v1570 = vld [vmem:[%s11 + $0x12f0] sm:$0xff]
      %v1571 = vld [vmem:[%s11 + $0x12f8] sm:$0xff]
      %v1572 = vld [vmem:[%s11 + $0x1300] sm:$0xff]
      %v1573 = vld [vmem:[%s11 + $0x1308] sm:$0xff]
      %v1574 = vld [vmem:[%s11 + $0x1310] sm:$0xff]
      %v1575 = vld [vmem:[%s11 + $0x1318] sm:$0xff]
      %v1576 = vld [vmem:[%s11 + $0x1320] sm:$0xff]
      %v1577 = vld [vmem:[%s11 + $0x1328] sm:$0xff]
      %v1578 = vld [vmem:[%s11 + $0x1330] sm:$0xff]
      %v1579 = vld [vmem:[%s11 + $0x1338] sm:$0xff]
      %v1580 = vld [vmem:[%s11 + $0x1340] sm:$0xff]
      %v1581 = vld [vmem:[%s11 + $0x1348] sm:$0xff]
      %v1582 = vld [vmem:[%s11 + $0x1350] sm:$0xff]
      %v1583 = vld [vmem:[%s11 + $0x1358] sm:$0xff]
      %v1584 = vld [vmem:[%s11 + $0x1360] sm:$0xff]
      %v1585 = vld [vmem:[%s11 + $0x1368] sm:$0xff]
      %v1586 = vld [vmem:[%s11 + $0x1370] sm:$0xff]
      %v1587 = vld [vmem:[%s11 + $0x1378] sm:$0xff]
      %v1588 = vld [vmem:[%s11 + $0x1380] sm:$0xff]
      %v1589 = vld [vmem:[%s11 + $0x1388] sm:$0xff]
      %v1590 = vld [vmem:[%s11 + $0x1390] sm:$0xff]
      %v1591 = vld [vmem:[%s11 + $0x1398] sm:$0xff]
      %v1592 = vld [vmem:[%s11 + $0x13a0] sm:$0xff]
      %v1593 = vld [vmem:[%s11 + $0x13a8] sm:$0xff]
      %v1594 = vld [vmem:[%s11 + $0x13b0] sm:$0xff]
      %v1595 = vld [vmem:[%s11 + $0x13b8] sm:$0xff]
      %v1596 = vld [vmem:[%s11 + $0x13c0] sm:$0xff]
      %v1597 = vld [vmem:[%s11 + $0x13c8] sm:$0xff]
      %v1598 = vld [vmem:[%s11 + $0x13d0] sm:$0xff]
      %v1599 = vld [vmem:[%s11 + $0x13d8] sm:$0xff]
      %v1600 = vld [vmem:[%s11 + $0x13e0] sm:$0xff]
      %v1601 = vld [vmem:[%s11 + $0x13e8] sm:$0xff]
      %v1602 = vld [vmem:[%s11 + $0x13f0] sm:$0xff]
      %v1603 = vld [vmem:[%s11 + $0x13f8] sm:$0xff]
      %1604 = vmatprep.subr.mxu0 %v1040
      %1605 = vmatpush1.msra.mxu0 %v1039
      %1606 = vmatprep.subr.mxu0 %v1035
      %1607 = vmatpush1.msra.mxu0 %v1034
      %1608 = vmatprep.subr.mxu0 %v1030
      %1609 = vmatpush1.msra.mxu0 %v1029
      %1610 = vmatprep.subr.mxu0 %v1025
      %1611 = vmatpush1.msra.mxu0 %v1024
      %1612 = vmatprep.subr.mxu0 %v1020
      %1613 = vmatpush1.msra.mxu0 %v1019
      %1614 = vmatprep.subr.mxu0 %v1015
      %1615 = vmatpush1.msra.mxu0 %v1014
      %1616 = vmatprep.subr.mxu0 %v1010
      %1617 = vmatpush1.msra.mxu0 %v1009
      %1618 = vmatprep.subr.mxu0 %v1005
      %1619 = vmatpush1.msra.mxu0 %v1004
      %1620 = vmatprep.subr.mxu0 %v1000
      %1621 = vmatpush1.msra.mxu0 %v999
      %1622 = vmatprep.subr.mxu0 %v995
      %1623 = vmatpush1.msra.mxu0 %v994
      %1624 = vmatprep.subr.mxu0 %v990
      %1625 = vmatpush1.msra.mxu0 %v989
      %1626 = vmatprep.subr.mxu0 %v985
      %1627 = vmatpush1.msra.mxu0 %v984
      %1628 = vmatprep.subr.mxu0 %v980
      %1629 = vmatpush1.msra.mxu0 %v979
      %1630 = vmatprep.subr.mxu0 %v975
      %1631 = vmatpush1.msra.mxu0 %v974
      %1632 = vmatprep.subr.mxu0 %v970
      %1633 = vmatpush1.msra.mxu0 %v969
      %1634 = vmatprep.subr.mxu0 %v965
      %1635 = vmatpush1.msra.mxu0 %v964
      %1636 = vmatprep.subr.mxu0 %v1120
      %1637 = vmatpush2.msra.mxu0 %v1119
      %1638 = vmatprep.subr.mxu0 %v1115
      %1639 = vmatpush2.msra.mxu0 %v1114
      %1640 = vmatprep.subr.mxu0 %v1110
      %1641 = vmatpush2.msra.mxu0 %v1109
      %1642 = vmatprep.subr.mxu0 %v1105
      %1643 = vmatpush2.msra.mxu0 %v1104
      %1644 = vmatprep.subr.mxu0 %v1100
      %1645 = vmatpush2.msra.mxu0 %v1099
      %1646 = vmatprep.subr.mxu0 %v1095
      %1647 = vmatpush2.msra.mxu0 %v1094
      %1648 = vmatprep.subr.mxu0 %v1090
      %1649 = vmatpush2.msra.mxu0 %v1089
      %1650 = vmatprep.subr.mxu0 %v1085
      %1651 = vmatpush2.msra.mxu0 %v1084
      %1652 = vmatprep.subr.mxu0 %v1080
      %1653 = vmatpush2.msra.mxu0 %v1079
      %1654 = vmatprep.subr.mxu0 %v1075
      %1655 = vmatpush2.msra.mxu0 %v1074
      %1656 = vmatprep.subr.mxu0 %v1070
      %1657 = vmatpush2.msra.mxu0 %v1069
      %1658 = vmatprep.subr.mxu0 %v1065
      %1659 = vmatpush2.msra.mxu0 %v1064
      %1660 = vmatprep.subr.mxu0 %v1060
      %1661 = vmatpush2.msra.mxu0 %v1059
      %1662 = vmatprep.subr.mxu0 %v1055
      %1663 = vmatpush2.msra.mxu0 %v1054
      %1664 = vmatprep.subr.mxu0 %v1050
      %1665 = vmatpush2.msra.mxu0 %v1049
      %1666 = vmatprep.subr.mxu0 %v1045
      %1667 = vmatpush2.msra.mxu0 %v1044
      %1668 = vmatprep.mubr.f32.mxu0 %v956
      %1669 = vmatmul.mubr.f32.gmra.mxu0 %v955
      %v1670 = vpop.f32.mrf.mxu0
      %v1671 = vadd.f32 0.0, %v1670
      %v1672 = vpop.f32.mrf.mxu0
      %v1673 = vadd.f32 0.0, %v1672
      %1674 = vdwg.mxu0
      %1675 = vmatprep.subr.mxu0 %v1200
      %1676 = vmatpush1.msra.mxu0 %v1199
      %1677 = vmatprep.subr.mxu0 %v1195
      %1678 = vmatpush1.msra.mxu0 %v1194
      %1679 = vmatprep.subr.mxu0 %v1190
      %1680 = vmatpush1.msra.mxu0 %v1189
      %1681 = vmatprep.subr.mxu0 %v1185
      %1682 = vmatpush1.msra.mxu0 %v1184
      %1683 = vmatprep.subr.mxu0 %v1180
      %1684 = vmatpush1.msra.mxu0 %v1179
      %1685 = vmatprep.subr.mxu0 %v1175
      %1686 = vmatpush1.msra.mxu0 %v1174
      %1687 = vmatprep.subr.mxu0 %v1170
      %1688 = vmatpush1.msra.mxu0 %v1169
      %1689 = vmatprep.subr.mxu0 %v1165
      %1690 = vmatpush1.msra.mxu0 %v1164
      %1691 = vmatprep.subr.mxu0 %v1160
      %1692 = vmatpush1.msra.mxu0 %v1159
      %1693 = vmatprep.subr.mxu0 %v1155
      %1694 = vmatpush1.msra.mxu0 %v1154
      %1695 = vmatprep.subr.mxu0 %v1150
      %1696 = vmatpush1.msra.mxu0 %v1149
      %1697 = vmatprep.subr.mxu0 %v1145
      %1698 = vmatpush1.msra.mxu0 %v1144
      %1699 = vmatprep.subr.mxu0 %v1140
      %1700 = vmatpush1.msra.mxu0 %v1139
      %1701 = vmatprep.subr.mxu0 %v1135
      %1702 = vmatpush1.msra.mxu0 %v1134
      %1703 = vmatprep.subr.mxu0 %v1130
      %1704 = vmatpush1.msra.mxu0 %v1129
      %1705 = vmatprep.subr.mxu0 %v1125
      %1706 = vmatpush1.msra.mxu0 %v1124
      %1707 = vmatprep.subr.mxu0 %v1280
      %1708 = vmatpush2.msra.mxu0 %v1279
      %1709 = vmatprep.subr.mxu0 %v1275
      %1710 = vmatpush2.msra.mxu0 %v1274
      %1711 = vmatprep.subr.mxu0 %v1270
      %1712 = vmatpush2.msra.mxu0 %v1269
      %1713 = vmatprep.subr.mxu0 %v1265
      %1714 = vmatpush2.msra.mxu0 %v1264
      %1715 = vmatprep.subr.mxu0 %v1260
      %1716 = vmatpush2.msra.mxu0 %v1259
      %1717 = vmatprep.subr.mxu0 %v1255
      %1718 = vmatpush2.msra.mxu0 %v1254
      %1719 = vmatprep.subr.mxu0 %v1250
      %1720 = vmatpush2.msra.mxu0 %v1249
      %1721 = vmatprep.subr.mxu0 %v1245
      %1722 = vmatpush2.msra.mxu0 %v1244
      %1723 = vmatprep.subr.mxu0 %v1240
      %1724 = vmatpush2.msra.mxu0 %v1239
      %1725 = vmatprep.subr.mxu0 %v1235
      %1726 = vmatpush2.msra.mxu0 %v1234
      %1727 = vmatprep.subr.mxu0 %v1230
      %1728 = vmatpush2.msra.mxu0 %v1229
      %1729 = vmatprep.subr.mxu0 %v1225
      %1730 = vmatpush2.msra.mxu0 %v1224
      %1731 = vmatprep.subr.mxu0 %v1220
      %1732 = vmatpush2.msra.mxu0 %v1219
      %1733 = vmatprep.subr.mxu0 %v1215
      %1734 = vmatpush2.msra.mxu0 %v1214
      %1735 = vmatprep.subr.mxu0 %v1210
      %1736 = vmatpush2.msra.mxu0 %v1209
      %1737 = vmatprep.subr.mxu0 %v1205
      %1738 = vmatpush2.msra.mxu0 %v1204
      %1739 = vmatprep.mubr.f32.mxu0 %v958
      %1740 = vmatmul.mubr.f32.gmra.mxu0 %v957
      %v1741 = vpop.f32.mrf.mxu0
      %v1742 = vadd.f32 %v1671, %v1741
      %v1743 = vpop.f32.mrf.mxu0
      %v1744 = vadd.f32 %v1673, %v1743
      %1745 = vdwg.mxu0
      %1746 = vmatprep.subr.mxu0 %v1360
      %1747 = vmatpush1.msra.mxu0 %v1359
      %1748 = vmatprep.subr.mxu0 %v1355
      %1749 = vmatpush1.msra.mxu0 %v1354
      %1750 = vmatprep.subr.mxu0 %v1350
      %1751 = vmatpush1.msra.mxu0 %v1349
      %1752 = vmatprep.subr.mxu0 %v1345
      %1753 = vmatpush1.msra.mxu0 %v1344
      %1754 = vmatprep.subr.mxu0 %v1340
      %1755 = vmatpush1.msra.mxu0 %v1339
      %1756 = vmatprep.subr.mxu0 %v1335
      %1757 = vmatpush1.msra.mxu0 %v1334
      %1758 = vmatprep.subr.mxu0 %v1330
      %1759 = vmatpush1.msra.mxu0 %v1329
      %1760 = vmatprep.subr.mxu0 %v1325
      %1761 = vmatpush1.msra.mxu0 %v1324
      %1762 = vmatprep.subr.mxu0 %v1320
      %1763 = vmatpush1.msra.mxu0 %v1319
      %1764 = vmatprep.subr.mxu0 %v1315
      %1765 = vmatpush1.msra.mxu0 %v1314
      %1766 = vmatprep.subr.mxu0 %v1310
      %1767 = vmatpush1.msra.mxu0 %v1309
      %1768 = vmatprep.subr.mxu0 %v1305
      %1769 = vmatpush1.msra.mxu0 %v1304
      %1770 = vmatprep.subr.mxu0 %v1300
      %1771 = vmatpush1.msra.mxu0 %v1299
      %1772 = vmatprep.subr.mxu0 %v1295
      %1773 = vmatpush1.msra.mxu0 %v1294
      %1774 = vmatprep.subr.mxu0 %v1290
      %1775 = vmatpush1.msra.mxu0 %v1289
      %1776 = vmatprep.subr.mxu0 %v1285
      %1777 = vmatpush1.msra.mxu0 %v1284
      %1778 = vmatprep.subr.mxu0 %v1440
      %1779 = vmatpush2.msra.mxu0 %v1439
      %1780 = vmatprep.subr.mxu0 %v1435
      %1781 = vmatpush2.msra.mxu0 %v1434
      %1782 = vmatprep.subr.mxu0 %v1430
      %1783 = vmatpush2.msra.mxu0 %v1429
      %1784 = vmatprep.subr.mxu0 %v1425
      %1785 = vmatpush2.msra.mxu0 %v1424
      %1786 = vmatprep.subr.mxu0 %v1420
      %1787 = vmatpush2.msra.mxu0 %v1419
      %1788 = vmatprep.subr.mxu0 %v1415
      %1789 = vmatpush2.msra.mxu0 %v1414
      %1790 = vmatprep.subr.mxu0 %v1410
      %1791 = vmatpush2.msra.mxu0 %v1409
      %1792 = vmatprep.subr.mxu0 %v1405
      %1793 = vmatpush2.msra.mxu0 %v1404
      %1794 = vmatprep.subr.mxu0 %v1400
      %1795 = vmatpush2.msra.mxu0 %v1399
      %1796 = vmatprep.subr.mxu0 %v1395
      %1797 = vmatpush2.msra.mxu0 %v1394
      %1798 = vmatprep.subr.mxu0 %v1390
      %1799 = vmatpush2.msra.mxu0 %v1389
      %1800 = vmatprep.subr.mxu0 %v1385
      %1801 = vmatpush2.msra.mxu0 %v1384
      %1802 = vmatprep.subr.mxu0 %v1380
      %1803 = vmatpush2.msra.mxu0 %v1379
      %1804 = vmatprep.subr.mxu0 %v1375
      %1805 = vmatpush2.msra.mxu0 %v1374
      %1806 = vmatprep.subr.mxu0 %v1370
      %1807 = vmatpush2.msra.mxu0 %v1369
      %1808 = vmatprep.subr.mxu0 %v1365
      %1809 = vmatpush2.msra.mxu0 %v1364
      %1810 = vmatprep.mubr.f32.mxu0 %v960
      %1811 = vmatmul.mubr.f32.gmra.mxu0 %v959
      %v1812 = vpop.f32.mrf.mxu0
      %v1813 = vadd.f32 %v1742, %v1812
      %v1814 = vpop.f32.mrf.mxu0
      %v1815 = vadd.f32 %v1744, %v1814
      %1816 = vdwg.mxu0
      %1817 = vmatprep.subr.mxu0 %v1520
      %1818 = vmatpush1.msra.mxu0 %v1519
      %1819 = vmatprep.subr.mxu0 %v1515
      %1820 = vmatpush1.msra.mxu0 %v1514
      %1821 = vmatprep.subr.mxu0 %v1510
      %1822 = vmatpush1.msra.mxu0 %v1509
      %1823 = vmatprep.subr.mxu0 %v1505
      %1824 = vmatpush1.msra.mxu0 %v1504
      %1825 = vmatprep.subr.mxu0 %v1500
      %1826 = vmatpush1.msra.mxu0 %v1499
      %1827 = vmatprep.subr.mxu0 %v1495
      %1828 = vmatpush1.msra.mxu0 %v1494
      %1829 = vmatprep.subr.mxu0 %v1490
      %1830 = vmatpush1.msra.mxu0 %v1489
      %1831 = vmatprep.subr.mxu0 %v1485
      %1832 = vmatpush1.msra.mxu0 %v1484
      %1833 = vmatprep.subr.mxu0 %v1480
      %1834 = vmatpush1.msra.mxu0 %v1479
      %1835 = vmatprep.subr.mxu0 %v1475
      %1836 = vmatpush1.msra.mxu0 %v1474
      %1837 = vmatprep.subr.mxu0 %v1470
      %1838 = vmatpush1.msra.mxu0 %v1469
      %1839 = vmatprep.subr.mxu0 %v1465
      %1840 = vmatpush1.msra.mxu0 %v1464
      %1841 = vmatprep.subr.mxu0 %v1460
      %1842 = vmatpush1.msra.mxu0 %v1459
      %1843 = vmatprep.subr.mxu0 %v1455
      %1844 = vmatpush1.msra.mxu0 %v1454
      %1845 = vmatprep.subr.mxu0 %v1450
      %1846 = vmatpush1.msra.mxu0 %v1449
      %1847 = vmatprep.subr.mxu0 %v1445
      %1848 = vmatpush1.msra.mxu0 %v1444
      %1849 = vmatprep.subr.mxu0 %v1600
      %1850 = vmatpush2.msra.mxu0 %v1599
      %1851 = vmatprep.subr.mxu0 %v1595
      %1852 = vmatpush2.msra.mxu0 %v1594
      %1853 = vmatprep.subr.mxu0 %v1590
      %1854 = vmatpush2.msra.mxu0 %v1589
      %1855 = vmatprep.subr.mxu0 %v1585
      %1856 = vmatpush2.msra.mxu0 %v1584
      %1857 = vmatprep.subr.mxu0 %v1580
      %1858 = vmatpush2.msra.mxu0 %v1579
      %1859 = vmatprep.subr.mxu0 %v1575
      %1860 = vmatpush2.msra.mxu0 %v1574
      %1861 = vmatprep.subr.mxu0 %v1570
      %1862 = vmatpush2.msra.mxu0 %v1569
      %1863 = vmatprep.subr.mxu0 %v1565
      %1864 = vmatpush2.msra.mxu0 %v1564
      %1865 = vmatprep.subr.mxu0 %v1560
      %1866 = vmatpush2.msra.mxu0 %v1559
      %1867 = vmatprep.subr.mxu0 %v1555
      %1868 = vmatpush2.msra.mxu0 %v1554
      %1869 = vmatprep.subr.mxu0 %v1550
      %1870 = vmatpush2.msra.mxu0 %v1549
      %1871 = vmatprep.subr.mxu0 %v1545
      %1872 = vmatpush2.msra.mxu0 %v1544
      %1873 = vmatprep.subr.mxu0 %v1540
      %1874 = vmatpush2.msra.mxu0 %v1539
      %1875 = vmatprep.subr.mxu0 %v1535
      %1876 = vmatpush2.msra.mxu0 %v1534
      %1877 = vmatprep.subr.mxu0 %v1530
      %1878 = vmatpush2.msra.mxu0 %v1529
      %1879 = vmatprep.subr.mxu0 %v1525
      %1880 = vmatpush2.msra.mxu0 %v1524
      %1881 = vmatprep.mubr.f32.mxu0 %v962
      %1882 = vmatmul.mubr.f32.gmra.mxu0 %v961
      %v1883 = vpop.f32.mrf.mxu0
      %v1884 = vadd.f32 %v1813, %v1883
      %v1885 = vpop.f32.mrf.mxu0
      %v1886 = vadd.f32 %v1815, %v1885
      %1887 = vdwg.mxu0
      %1888 = vmatprep.subr.mxu0 %v1042
      %1889 = vmatpush1.msra.mxu0 %v1041
      %1890 = vmatprep.subr.mxu0 %v1037
      %1891 = vmatpush1.msra.mxu0 %v1036
      %1892 = vmatprep.subr.mxu0 %v1032
      %1893 = vmatpush1.msra.mxu0 %v1031
      %1894 = vmatprep.subr.mxu0 %v1027
      %1895 = vmatpush1.msra.mxu0 %v1026
      %1896 = vmatprep.subr.mxu0 %v1022
      %1897 = vmatpush1.msra.mxu0 %v1021
      %1898 = vmatprep.subr.mxu0 %v1017
      %1899 = vmatpush1.msra.mxu0 %v1016
      %1900 = vmatprep.subr.mxu0 %v1012
      %1901 = vmatpush1.msra.mxu0 %v1011
      %1902 = vmatprep.subr.mxu0 %v1007
      %1903 = vmatpush1.msra.mxu0 %v1006
      %1904 = vmatprep.subr.mxu0 %v1002
      %1905 = vmatpush1.msra.mxu0 %v1001
      %1906 = vmatprep.subr.mxu0 %v997
      %1907 = vmatpush1.msra.mxu0 %v996
      %1908 = vmatprep.subr.mxu0 %v992
      %1909 = vmatpush1.msra.mxu0 %v991
      %1910 = vmatprep.subr.mxu0 %v987
      %1911 = vmatpush1.msra.mxu0 %v986
      %1912 = vmatprep.subr.mxu0 %v982
      %1913 = vmatpush1.msra.mxu0 %v981
      %1914 = vmatprep.subr.mxu0 %v977
      %1915 = vmatpush1.msra.mxu0 %v976
      %1916 = vmatprep.subr.mxu0 %v972
      %1917 = vmatpush1.msra.mxu0 %v971
      %1918 = vmatprep.subr.mxu0 %v967
      %1919 = vmatpush1.msra.mxu0 %v966
      %1920 = vmatprep.subr.mxu0 %v1122
      %1921 = vmatpush2.msra.mxu0 %v1121
      %1922 = vmatprep.subr.mxu0 %v1117
      %1923 = vmatpush2.msra.mxu0 %v1116
      %1924 = vmatprep.subr.mxu0 %v1112
      %1925 = vmatpush2.msra.mxu0 %v1111
      %1926 = vmatprep.subr.mxu0 %v1107
      %1927 = vmatpush2.msra.mxu0 %v1106
      %1928 = vmatprep.subr.mxu0 %v1102
      %1929 = vmatpush2.msra.mxu0 %v1101
      %1930 = vmatprep.subr.mxu0 %v1097
      %1931 = vmatpush2.msra.mxu0 %v1096
      %1932 = vmatprep.subr.mxu0 %v1092
      %1933 = vmatpush2.msra.mxu0 %v1091
      %1934 = vmatprep.subr.mxu0 %v1087
      %1935 = vmatpush2.msra.mxu0 %v1086
      %1936 = vmatprep.subr.mxu0 %v1082
      %1937 = vmatpush2.msra.mxu0 %v1081
      %1938 = vmatprep.subr.mxu0 %v1077
      %1939 = vmatpush2.msra.mxu0 %v1076
      %1940 = vmatprep.subr.mxu0 %v1072
      %1941 = vmatpush2.msra.mxu0 %v1071
      %1942 = vmatprep.subr.mxu0 %v1067
      %1943 = vmatpush2.msra.mxu0 %v1066
      %1944 = vmatprep.subr.mxu0 %v1062
      %1945 = vmatpush2.msra.mxu0 %v1061
      %1946 = vmatprep.subr.mxu0 %v1057
      %1947 = vmatpush2.msra.mxu0 %v1056
      %1948 = vmatprep.subr.mxu0 %v1052
      %1949 = vmatpush2.msra.mxu0 %v1051
      %1950 = vmatprep.subr.mxu0 %v1047
      %1951 = vmatpush2.msra.mxu0 %v1046
      %1952 = vmatprep.mubr.f32.mxu0 %v956
      %1953 = vmatmul.mubr.f32.gmra.mxu0 %v955
      %v1954 = vpop.f32.mrf.mxu0
      %v1955 = vadd.f32 0.0, %v1954
      %v1956 = vpop.f32.mrf.mxu0
      %v1957 = vadd.f32 0.0, %v1956
      %1958 = vdwg.mxu0
      %1959 = vmatprep.subr.mxu0 %v1202
      %1960 = vmatpush1.msra.mxu0 %v1201
      %1961 = vmatprep.subr.mxu0 %v1197
      %1962 = vmatpush1.msra.mxu0 %v1196
      %1963 = vmatprep.subr.mxu0 %v1192
      %1964 = vmatpush1.msra.mxu0 %v1191
      %1965 = vmatprep.subr.mxu0 %v1187
      %1966 = vmatpush1.msra.mxu0 %v1186
      %1967 = vmatprep.subr.mxu0 %v1182
      %1968 = vmatpush1.msra.mxu0 %v1181
      %1969 = vmatprep.subr.mxu0 %v1177
      %1970 = vmatpush1.msra.mxu0 %v1176
      %1971 = vmatprep.subr.mxu0 %v1172
      %1972 = vmatpush1.msra.mxu0 %v1171
      %1973 = vmatprep.subr.mxu0 %v1167
      %1974 = vmatpush1.msra.mxu0 %v1166
      %1975 = vmatprep.subr.mxu0 %v1162
      %1976 = vmatpush1.msra.mxu0 %v1161
      %1977 = vmatprep.subr.mxu0 %v1157
      %1978 = vmatpush1.msra.mxu0 %v1156
      %1979 = vmatprep.subr.mxu0 %v1152
      %1980 = vmatpush1.msra.mxu0 %v1151
      %1981 = vmatprep.subr.mxu0 %v1147
      %1982 = vmatpush1.msra.mxu0 %v1146
      %1983 = vmatprep.subr.mxu0 %v1142
      %1984 = vmatpush1.msra.mxu0 %v1141
      %1985 = vmatprep.subr.mxu0 %v1137
      %1986 = vmatpush1.msra.mxu0 %v1136
      %1987 = vmatprep.subr.mxu0 %v1132
      %1988 = vmatpush1.msra.mxu0 %v1131
      %1989 = vmatprep.subr.mxu0 %v1127
      %1990 = vmatpush1.msra.mxu0 %v1126
      %1991 = vmatprep.subr.mxu0 %v1282
      %1992 = vmatpush2.msra.mxu0 %v1281
      %1993 = vmatprep.subr.mxu0 %v1277
      %1994 = vmatpush2.msra.mxu0 %v1276
      %1995 = vmatprep.subr.mxu0 %v1272
      %1996 = vmatpush2.msra.mxu0 %v1271
      %1997 = vmatprep.subr.mxu0 %v1267
      %1998 = vmatpush2.msra.mxu0 %v1266
      %1999 = vmatprep.subr.mxu0 %v1262
      %2000 = vmatpush2.msra.mxu0 %v1261
      %2001 = vmatprep.subr.mxu0 %v1257
      %2002 = vmatpush2.msra.mxu0 %v1256
      %2003 = vmatprep.subr.mxu0 %v1252
      %2004 = vmatpush2.msra.mxu0 %v1251
      %2005 = vmatprep.subr.mxu0 %v1247
      %2006 = vmatpush2.msra.mxu0 %v1246
      %2007 = vmatprep.subr.mxu0 %v1242
      %2008 = vmatpush2.msra.mxu0 %v1241
      %2009 = vmatprep.subr.mxu0 %v1237
      %2010 = vmatpush2.msra.mxu0 %v1236
      %2011 = vmatprep.subr.mxu0 %v1232
      %2012 = vmatpush2.msra.mxu0 %v1231
      %2013 = vmatprep.subr.mxu0 %v1227
      %2014 = vmatpush2.msra.mxu0 %v1226
      %2015 = vmatprep.subr.mxu0 %v1222
      %2016 = vmatpush2.msra.mxu0 %v1221
      %2017 = vmatprep.subr.mxu0 %v1217
      %2018 = vmatpush2.msra.mxu0 %v1216
      %2019 = vmatprep.subr.mxu0 %v1212
      %2020 = vmatpush2.msra.mxu0 %v1211
      %2021 = vmatprep.subr.mxu0 %v1207
      %2022 = vmatpush2.msra.mxu0 %v1206
      %2023 = vmatprep.mubr.f32.mxu0 %v958
      %2024 = vmatmul.mubr.f32.gmra.mxu0 %v957
      %v2025 = vpop.f32.mrf.mxu0
      %v2026 = vadd.f32 %v1955, %v2025
      %v2027 = vpop.f32.mrf.mxu0
      %v2028 = vadd.f32 %v1957, %v2027
      %2029 = vdwg.mxu0
      %2030 = vmatprep.subr.mxu0 %v1362
      %2031 = vmatpush1.msra.mxu0 %v1361
      %2032 = vmatprep.subr.mxu0 %v1357
      %2033 = vmatpush1.msra.mxu0 %v1356
      %2034 = vmatprep.subr.mxu0 %v1352
      %2035 = vmatpush1.msra.mxu0 %v1351
      %2036 = vmatprep.subr.mxu0 %v1347
      %2037 = vmatpush1.msra.mxu0 %v1346
      %2038 = vmatprep.subr.mxu0 %v1342
      %2039 = vmatpush1.msra.mxu0 %v1341
      %2040 = vmatprep.subr.mxu0 %v1337
      %2041 = vmatpush1.msra.mxu0 %v1336
      %2042 = vmatprep.subr.mxu0 %v1332
      %2043 = vmatpush1.msra.mxu0 %v1331
      %2044 = vmatprep.subr.mxu0 %v1327
      %2045 = vmatpush1.msra.mxu0 %v1326
      %2046 = vmatprep.subr.mxu0 %v1322
      %2047 = vmatpush1.msra.mxu0 %v1321
      %2048 = vmatprep.subr.mxu0 %v1317
      %2049 = vmatpush1.msra.mxu0 %v1316
      %2050 = vmatprep.subr.mxu0 %v1312
      %2051 = vmatpush1.msra.mxu0 %v1311
      %2052 = vmatprep.subr.mxu0 %v1307
      %2053 = vmatpush1.msra.mxu0 %v1306
      %2054 = vmatprep.subr.mxu0 %v1302
      %2055 = vmatpush1.msra.mxu0 %v1301
      %2056 = vmatprep.subr.mxu0 %v1297
      %2057 = vmatpush1.msra.mxu0 %v1296
      %2058 = vmatprep.subr.mxu0 %v1292
      %2059 = vmatpush1.msra.mxu0 %v1291
      %2060 = vmatprep.subr.mxu0 %v1287
      %2061 = vmatpush1.msra.mxu0 %v1286
      %2062 = vmatprep.subr.mxu0 %v1442
      %2063 = vmatpush2.msra.mxu0 %v1441
      %2064 = vmatprep.subr.mxu0 %v1437
      %2065 = vmatpush2.msra.mxu0 %v1436
      %2066 = vmatprep.subr.mxu0 %v1432
      %2067 = vmatpush2.msra.mxu0 %v1431
      %2068 = vmatprep.subr.mxu0 %v1427
      %2069 = vmatpush2.msra.mxu0 %v1426
      %2070 = vmatprep.subr.mxu0 %v1422
      %2071 = vmatpush2.msra.mxu0 %v1421
      %2072 = vmatprep.subr.mxu0 %v1417
      %2073 = vmatpush2.msra.mxu0 %v1416
      %2074 = vmatprep.subr.mxu0 %v1412
      %2075 = vmatpush2.msra.mxu0 %v1411
      %2076 = vmatprep.subr.mxu0 %v1407
      %2077 = vmatpush2.msra.mxu0 %v1406
      %2078 = vmatprep.subr.mxu0 %v1402
      %2079 = vmatpush2.msra.mxu0 %v1401
      %2080 = vmatprep.subr.mxu0 %v1397
      %2081 = vmatpush2.msra.mxu0 %v1396
      %2082 = vmatprep.subr.mxu0 %v1392
      %2083 = vmatpush2.msra.mxu0 %v1391
      %2084 = vmatprep.subr.mxu0 %v1387
      %2085 = vmatpush2.msra.mxu0 %v1386
      %2086 = vmatprep.subr.mxu0 %v1382
      %2087 = vmatpush2.msra.mxu0 %v1381
      %2088 = vmatprep.subr.mxu0 %v1377
      %2089 = vmatpush2.msra.mxu0 %v1376
      %2090 = vmatprep.subr.mxu0 %v1372
      %2091 = vmatpush2.msra.mxu0 %v1371
      %2092 = vmatprep.subr.mxu0 %v1367
      %2093 = vmatpush2.msra.mxu0 %v1366
      %2094 = vmatprep.mubr.f32.mxu0 %v960
      %2095 = vmatmul.mubr.f32.gmra.mxu0 %v959
      %v2096 = vpop.f32.mrf.mxu0
      %v2097 = vadd.f32 %v2026, %v2096
      %v2098 = vpop.f32.mrf.mxu0
      %v2099 = vadd.f32 %v2028, %v2098
      %2100 = vdwg.mxu0
      %2101 = vmatprep.subr.mxu0 %v1522
      %2102 = vmatpush1.msra.mxu0 %v1521
      %2103 = vmatprep.subr.mxu0 %v1517
      %2104 = vmatpush1.msra.mxu0 %v1516
      %2105 = vmatprep.subr.mxu0 %v1512
      %2106 = vmatpush1.msra.mxu0 %v1511
      %2107 = vmatprep.subr.mxu0 %v1507
      %2108 = vmatpush1.msra.mxu0 %v1506
      %2109 = vmatprep.subr.mxu0 %v1502
      %2110 = vmatpush1.msra.mxu0 %v1501
      %2111 = vmatprep.subr.mxu0 %v1497
      %2112 = vmatpush1.msra.mxu0 %v1496
      %2113 = vmatprep.subr.mxu0 %v1492
      %2114 = vmatpush1.msra.mxu0 %v1491
      %2115 = vmatprep.subr.mxu0 %v1487
      %2116 = vmatpush1.msra.mxu0 %v1486
      %2117 = vmatprep.subr.mxu0 %v1482
      %2118 = vmatpush1.msra.mxu0 %v1481
      %2119 = vmatprep.subr.mxu0 %v1477
      %2120 = vmatpush1.msra.mxu0 %v1476
      %2121 = vmatprep.subr.mxu0 %v1472
      %2122 = vmatpush1.msra.mxu0 %v1471
      %2123 = vmatprep.subr.mxu0 %v1467
      %2124 = vmatpush1.msra.mxu0 %v1466
      %2125 = vmatprep.subr.mxu0 %v1462
      %2126 = vmatpush1.msra.mxu0 %v1461
      %2127 = vmatprep.subr.mxu0 %v1457
      %2128 = vmatpush1.msra.mxu0 %v1456
      %2129 = vmatprep.subr.mxu0 %v1452
      %2130 = vmatpush1.msra.mxu0 %v1451
      %2131 = vmatprep.subr.mxu0 %v1447
      %2132 = vmatpush1.msra.mxu0 %v1446
      %2133 = vmatprep.subr.mxu0 %v1602
      %2134 = vmatpush2.msra.mxu0 %v1601
      %2135 = vmatprep.subr.mxu0 %v1597
      %2136 = vmatpush2.msra.mxu0 %v1596
      %2137 = vmatprep.subr.mxu0 %v1592
      %2138 = vmatpush2.msra.mxu0 %v1591
      %2139 = vmatprep.subr.mxu0 %v1587
      %2140 = vmatpush2.msra.mxu0 %v1586
      %2141 = vmatprep.subr.mxu0 %v1582
      %2142 = vmatpush2.msra.mxu0 %v1581
      %2143 = vmatprep.subr.mxu0 %v1577
      %2144 = vmatpush2.msra.mxu0 %v1576
      %2145 = vmatprep.subr.mxu0 %v1572
      %2146 = vmatpush2.msra.mxu0 %v1571
      %2147 = vmatprep.subr.mxu0 %v1567
      %2148 = vmatpush2.msra.mxu0 %v1566
      %2149 = vmatprep.subr.mxu0 %v1562
      %2150 = vmatpush2.msra.mxu0 %v1561
      %2151 = vmatprep.subr.mxu0 %v1557
      %2152 = vmatpush2.msra.mxu0 %v1556
      %2153 = vmatprep.subr.mxu0 %v1552
      %2154 = vmatpush2.msra.mxu0 %v1551
      %2155 = vmatprep.subr.mxu0 %v1547
      %2156 = vmatpush2.msra.mxu0 %v1546
      %2157 = vmatprep.subr.mxu0 %v1542
      %2158 = vmatpush2.msra.mxu0 %v1541
      %2159 = vmatprep.subr.mxu0 %v1537
      %2160 = vmatpush2.msra.mxu0 %v1536
      %2161 = vmatprep.subr.mxu0 %v1532
      %2162 = vmatpush2.msra.mxu0 %v1531
      %2163 = vmatprep.subr.mxu0 %v1527
      %2164 = vmatpush2.msra.mxu0 %v1526
      %2165 = vmatprep.mubr.f32.mxu0 %v962
      %2166 = vmatmul.mubr.f32.gmra.mxu0 %v961
      %v2167 = vpop.f32.mrf.mxu0
      %v2168 = vadd.f32 %v2097, %v2167
      %v2169 = vpop.f32.mrf.mxu0
      %v2170 = vadd.f32 %v2099, %v2169
      %2171 = vdwg.mxu0
      %2172 = vmatprep.subr.mxu0 0.0
      %2173 = vmatpush1.msra.mxu0 %v1043
      %2174 = vmatprep.subr.mxu0 0.0
      %2175 = vmatpush1.msra.mxu0 %v1038
      %2176 = vmatprep.subr.mxu0 0.0
      %2177 = vmatpush1.msra.mxu0 %v1033
      %2178 = vmatprep.subr.mxu0 0.0
      %2179 = vmatpush1.msra.mxu0 %v1028
      %2180 = vmatprep.subr.mxu0 0.0
      %2181 = vmatpush1.msra.mxu0 %v1023
      %2182 = vmatprep.subr.mxu0 0.0
      %2183 = vmatpush1.msra.mxu0 %v1018
      %2184 = vmatprep.subr.mxu0 0.0
      %2185 = vmatpush1.msra.mxu0 %v1013
      %2186 = vmatprep.subr.mxu0 0.0
      %2187 = vmatpush1.msra.mxu0 %v1008
      %2188 = vmatprep.subr.mxu0 0.0
      %2189 = vmatpush1.msra.mxu0 %v1003
      %2190 = vmatprep.subr.mxu0 0.0
      %2191 = vmatpush1.msra.mxu0 %v998
      %2192 = vmatprep.subr.mxu0 0.0
      %2193 = vmatpush1.msra.mxu0 %v993
      %2194 = vmatprep.subr.mxu0 0.0
      %2195 = vmatpush1.msra.mxu0 %v988
      %2196 = vmatprep.subr.mxu0 0.0
      %2197 = vmatpush1.msra.mxu0 %v983
      %2198 = vmatprep.subr.mxu0 0.0
      %2199 = vmatpush1.msra.mxu0 %v978
      %2200 = vmatprep.subr.mxu0 0.0
      %2201 = vmatpush1.msra.mxu0 %v973
      %2202 = vmatprep.subr.mxu0 0.0
      %2203 = vmatpush1.msra.mxu0 %v968
      %2204 = vmatprep.subr.mxu0 0.0
      %2205 = vmatpush2.msra.mxu0 %v1123
      %2206 = vmatprep.subr.mxu0 0.0
      %2207 = vmatpush2.msra.mxu0 %v1118
      %2208 = vmatprep.subr.mxu0 0.0
      %2209 = vmatpush2.msra.mxu0 %v1113
      %2210 = vmatprep.subr.mxu0 0.0
      %2211 = vmatpush2.msra.mxu0 %v1108
      %2212 = vmatprep.subr.mxu0 0.0
      %2213 = vmatpush2.msra.mxu0 %v1103
      %2214 = vmatprep.subr.mxu0 0.0
      %2215 = vmatpush2.msra.mxu0 %v1098
      %2216 = vmatprep.subr.mxu0 0.0
      %2217 = vmatpush2.msra.mxu0 %v1093
      %2218 = vmatprep.subr.mxu0 0.0
      %2219 = vmatpush2.msra.mxu0 %v1088
      %2220 = vmatprep.subr.mxu0 0.0
      %2221 = vmatpush2.msra.mxu0 %v1083
      %2222 = vmatprep.subr.mxu0 0.0
      %2223 = vmatpush2.msra.mxu0 %v1078
      %2224 = vmatprep.subr.mxu0 0.0
      %2225 = vmatpush2.msra.mxu0 %v1073
      %2226 = vmatprep.subr.mxu0 0.0
      %2227 = vmatpush2.msra.mxu0 %v1068
      %2228 = vmatprep.subr.mxu0 0.0
      %2229 = vmatpush2.msra.mxu0 %v1063
      %2230 = vmatprep.subr.mxu0 0.0
      %2231 = vmatpush2.msra.mxu0 %v1058
      %2232 = vmatprep.subr.mxu0 0.0
      %2233 = vmatpush2.msra.mxu0 %v1053
      %2234 = vmatprep.subr.mxu0 0.0
      %2235 = vmatpush2.msra.mxu0 %v1048
      %2236 = vmatprep.mubr.f32.mxu0 %v956
      %2237 = vmatmul.mubr.f32.gmra.mxu0 %v955
      %v2238 = vpop.f32.mrf.mxu0
      %v2239 = vadd.f32 0.0, %v2238
      %v2240 = vpop.f32.mrf.mxu0
      %2241 = vdwg.mxu0
      %2242 = vmatprep.subr.mxu0 0.0
      %2243 = vmatpush1.msra.mxu0 %v1203
      %2244 = vmatprep.subr.mxu0 0.0
      %2245 = vmatpush1.msra.mxu0 %v1198
      %2246 = vmatprep.subr.mxu0 0.0
      %2247 = vmatpush1.msra.mxu0 %v1193
      %2248 = vmatprep.subr.mxu0 0.0
      %2249 = vmatpush1.msra.mxu0 %v1188
      %2250 = vmatprep.subr.mxu0 0.0
      %2251 = vmatpush1.msra.mxu0 %v1183
      %2252 = vmatprep.subr.mxu0 0.0
      %2253 = vmatpush1.msra.mxu0 %v1178
      %2254 = vmatprep.subr.mxu0 0.0
      %2255 = vmatpush1.msra.mxu0 %v1173
      %2256 = vmatprep.subr.mxu0 0.0
      %2257 = vmatpush1.msra.mxu0 %v1168
      %2258 = vmatprep.subr.mxu0 0.0
      %2259 = vmatpush1.msra.mxu0 %v1163
      %2260 = vmatprep.subr.mxu0 0.0
      %2261 = vmatpush1.msra.mxu0 %v1158
      %2262 = vmatprep.subr.mxu0 0.0
      %2263 = vmatpush1.msra.mxu0 %v1153
      %2264 = vmatprep.subr.mxu0 0.0
      %2265 = vmatpush1.msra.mxu0 %v1148
      %2266 = vmatprep.subr.mxu0 0.0
      %2267 = vmatpush1.msra.mxu0 %v1143
      %2268 = vmatprep.subr.mxu0 0.0
      %2269 = vmatpush1.msra.mxu0 %v1138
      %2270 = vmatprep.subr.mxu0 0.0
      %2271 = vmatpush1.msra.mxu0 %v1133
      %2272 = vmatprep.subr.mxu0 0.0
      %2273 = vmatpush1.msra.mxu0 %v1128
      %2274 = vmatprep.subr.mxu0 0.0
      %2275 = vmatpush2.msra.mxu0 %v1283
      %2276 = vmatprep.subr.mxu0 0.0
      %2277 = vmatpush2.msra.mxu0 %v1278
      %2278 = vmatprep.subr.mxu0 0.0
      %2279 = vmatpush2.msra.mxu0 %v1273
      %2280 = vmatprep.subr.mxu0 0.0
      %2281 = vmatpush2.msra.mxu0 %v1268
      %2282 = vmatprep.subr.mxu0 0.0
      %2283 = vmatpush2.msra.mxu0 %v1263
      %2284 = vmatprep.subr.mxu0 0.0
      %2285 = vmatpush2.msra.mxu0 %v1258
      %2286 = vmatprep.subr.mxu0 0.0
      %2287 = vmatpush2.msra.mxu0 %v1253
      %2288 = vmatprep.subr.mxu0 0.0
      %2289 = vmatpush2.msra.mxu0 %v1248
      %2290 = vmatprep.subr.mxu0 0.0
      %2291 = vmatpush2.msra.mxu0 %v1243
      %2292 = vmatprep.subr.mxu0 0.0
      %2293 = vmatpush2.msra.mxu0 %v1238
      %2294 = vmatprep.subr.mxu0 0.0
      %2295 = vmatpush2.msra.mxu0 %v1233
      %2296 = vmatprep.subr.mxu0 0.0
      %2297 = vmatpush2.msra.mxu0 %v1228
      %2298 = vmatprep.subr.mxu0 0.0
      %2299 = vmatpush2.msra.mxu0 %v1223
      %2300 = vmatprep.subr.mxu0 0.0
      %2301 = vmatpush2.msra.mxu0 %v1218
      %2302 = vmatprep.subr.mxu0 0.0
      %2303 = vmatpush2.msra.mxu0 %v1213
      %2304 = vmatprep.subr.mxu0 0.0
      %2305 = vmatpush2.msra.mxu0 %v1208
      %2306 = vmatprep.mubr.f32.mxu0 %v958
      %2307 = vmatmul.mubr.f32.gmra.mxu0 %v957
      %v2308 = vpop.f32.mrf.mxu0
      %v2309 = vadd.f32 %v2239, %v2308
      %v2310 = vpop.f32.mrf.mxu0
      %2311 = vdwg.mxu0
      %2312 = vmatprep.subr.mxu0 0.0
      %2313 = vmatpush1.msra.mxu0 %v1363
      %2314 = vmatprep.subr.mxu0 0.0
      %2315 = vmatpush1.msra.mxu0 %v1358
      %2316 = vmatprep.subr.mxu0 0.0
      %2317 = vmatpush1.msra.mxu0 %v1353
      %2318 = vmatprep.subr.mxu0 0.0
      %2319 = vmatpush1.msra.mxu0 %v1348
      %2320 = vmatprep.subr.mxu0 0.0
      %2321 = vmatpush1.msra.mxu0 %v1343
      %2322 = vmatprep.subr.mxu0 0.0
      %2323 = vmatpush1.msra.mxu0 %v1338
      %2324 = vmatprep.subr.mxu0 0.0
      %2325 = vmatpush1.msra.mxu0 %v1333
      %2326 = vmatprep.subr.mxu0 0.0
      %2327 = vmatpush1.msra.mxu0 %v1328
      %2328 = vmatprep.subr.mxu0 0.0
      %2329 = vmatpush1.msra.mxu0 %v1323
      %2330 = vmatprep.subr.mxu0 0.0
      %2331 = vmatpush1.msra.mxu0 %v1318
      %2332 = vmatprep.subr.mxu0 0.0
      %2333 = vmatpush1.msra.mxu0 %v1313
      %2334 = vmatprep.subr.mxu0 0.0
      %2335 = vmatpush1.msra.mxu0 %v1308
      %2336 = vmatprep.subr.mxu0 0.0
      %2337 = vmatpush1.msra.mxu0 %v1303
      %2338 = vmatprep.subr.mxu0 0.0
      %2339 = vmatpush1.msra.mxu0 %v1298
      %2340 = vmatprep.subr.mxu0 0.0
      %2341 = vmatpush1.msra.mxu0 %v1293
      %2342 = vmatprep.subr.mxu0 0.0
      %2343 = vmatpush1.msra.mxu0 %v1288
      %2344 = vmatprep.subr.mxu0 0.0
      %2345 = vmatpush2.msra.mxu0 %v1443
      %2346 = vmatprep.subr.mxu0 0.0
      %2347 = vmatpush2.msra.mxu0 %v1438
      %2348 = vmatprep.subr.mxu0 0.0
      %2349 = vmatpush2.msra.mxu0 %v1433
      %2350 = vmatprep.subr.mxu0 0.0
      %2351 = vmatpush2.msra.mxu0 %v1428
      %2352 = vmatprep.subr.mxu0 0.0
      %2353 = vmatpush2.msra.mxu0 %v1423
      %2354 = vmatprep.subr.mxu0 0.0
      %2355 = vmatpush2.msra.mxu0 %v1418
      %2356 = vmatprep.subr.mxu0 0.0
      %2357 = vmatpush2.msra.mxu0 %v1413
      %2358 = vmatprep.subr.mxu0 0.0
      %2359 = vmatpush2.msra.mxu0 %v1408
      %2360 = vmatprep.subr.mxu0 0.0
      %2361 = vmatpush2.msra.mxu0 %v1403
      %2362 = vmatprep.subr.mxu0 0.0
      %2363 = vmatpush2.msra.mxu0 %v1398
      %2364 = vmatprep.subr.mxu0 0.0
      %2365 = vmatpush2.msra.mxu0 %v1393
      %2366 = vmatprep.subr.mxu0 0.0
      %2367 = vmatpush2.msra.mxu0 %v1388
      %2368 = vmatprep.subr.mxu0 0.0
      %2369 = vmatpush2.msra.mxu0 %v1383
      %2370 = vmatprep.subr.mxu0 0.0
      %2371 = vmatpush2.msra.mxu0 %v1378
      %2372 = vmatprep.subr.mxu0 0.0
      %2373 = vmatpush2.msra.mxu0 %v1373
      %2374 = vmatprep.subr.mxu0 0.0
      %2375 = vmatpush2.msra.mxu0 %v1368
      %2376 = vmatprep.mubr.f32.mxu0 %v960
      %2377 = vmatmul.mubr.f32.gmra.mxu0 %v959
      %v2378 = vpop.f32.mrf.mxu0
      %v2379 = vadd.f32 %v2309, %v2378
      %v2380 = vpop.f32.mrf.mxu0
      %2381 = vdwg.mxu0
      %2382 = vmatprep.subr.mxu0 0.0
      %2383 = vmatpush1.msra.mxu0 %v1523
      %2384 = vmatprep.subr.mxu0 0.0
      %2385 = vmatpush1.msra.mxu0 %v1518
      %2386 = vmatprep.subr.mxu0 0.0
      %2387 = vmatpush1.msra.mxu0 %v1513
      %2388 = vmatprep.subr.mxu0 0.0
      %2389 = vmatpush1.msra.mxu0 %v1508
      %2390 = vmatprep.subr.mxu0 0.0
      %2391 = vmatpush1.msra.mxu0 %v1503
      %2392 = vmatprep.subr.mxu0 0.0
      %2393 = vmatpush1.msra.mxu0 %v1498
      %2394 = vmatprep.subr.mxu0 0.0
      %2395 = vmatpush1.msra.mxu0 %v1493
      %2396 = vmatprep.subr.mxu0 0.0
      %2397 = vmatpush1.msra.mxu0 %v1488
      %2398 = vmatprep.subr.mxu0 0.0
      %2399 = vmatpush1.msra.mxu0 %v1483
      %2400 = vmatprep.subr.mxu0 0.0
      %2401 = vmatpush1.msra.mxu0 %v1478
      %2402 = vmatprep.subr.mxu0 0.0
      %2403 = vmatpush1.msra.mxu0 %v1473
      %2404 = vmatprep.subr.mxu0 0.0
      %2405 = vmatpush1.msra.mxu0 %v1468
      %2406 = vmatprep.subr.mxu0 0.0
      %2407 = vmatpush1.msra.mxu0 %v1463
      %2408 = vmatprep.subr.mxu0 0.0
      %2409 = vmatpush1.msra.mxu0 %v1458
      %2410 = vmatprep.subr.mxu0 0.0
      %2411 = vmatpush1.msra.mxu0 %v1453
      %2412 = vmatprep.subr.mxu0 0.0
      %2413 = vmatpush1.msra.mxu0 %v1448
      %2414 = vmatprep.subr.mxu0 0.0
      %2415 = vmatpush2.msra.mxu0 %v1603
      %2416 = vmatprep.subr.mxu0 0.0
      %2417 = vmatpush2.msra.mxu0 %v1598
      %2418 = vmatprep.subr.mxu0 0.0
      %2419 = vmatpush2.msra.mxu0 %v1593
      %2420 = vmatprep.subr.mxu0 0.0
      %2421 = vmatpush2.msra.mxu0 %v1588
      %2422 = vmatprep.subr.mxu0 0.0
      %2423 = vmatpush2.msra.mxu0 %v1583
      %2424 = vmatprep.subr.mxu0 0.0
      %2425 = vmatpush2.msra.mxu0 %v1578
      %2426 = vmatprep.subr.mxu0 0.0
      %2427 = vmatpush2.msra.mxu0 %v1573
      %2428 = vmatprep.subr.mxu0 0.0
      %2429 = vmatpush2.msra.mxu0 %v1568
      %2430 = vmatprep.subr.mxu0 0.0
      %2431 = vmatpush2.msra.mxu0 %v1563
      %2432 = vmatprep.subr.mxu0 0.0
      %2433 = vmatpush2.msra.mxu0 %v1558
      %2434 = vmatprep.subr.mxu0 0.0
      %2435 = vmatpush2.msra.mxu0 %v1553
      %2436 = vmatprep.subr.mxu0 0.0
      %2437 = vmatpush2.msra.mxu0 %v1548
      %2438 = vmatprep.subr.mxu0 0.0
      %2439 = vmatpush2.msra.mxu0 %v1543
      %2440 = vmatprep.subr.mxu0 0.0
      %2441 = vmatpush2.msra.mxu0 %v1538
      %2442 = vmatprep.subr.mxu0 0.0
      %2443 = vmatpush2.msra.mxu0 %v1533
      %2444 = vmatprep.subr.mxu0 0.0
      %2445 = vmatpush2.msra.mxu0 %v1528
      %2446 = vmatprep.mubr.f32.mxu0 %v962
      %2447 = vmatmul.mubr.f32.gmra.mxu0 %v961
      %v2448 = vpop.f32.mrf.mxu0
      %v2449 = vadd.f32 %v2379, %v2448
      %v2450 = vpop.f32.mrf.mxu0
      %2451 = vdwg.mxu0
      %v2452 = vld [vmem:[%s3] sm:$0xff]
      %2458 = vrot.lane.b32.xlu0 %v1884, 127
      %v2459 = vpop.permute.xlu0 %2458
      %2460 = vrot.lane.b32.xlu0 %v1886, 127
      %v2461 = vpop.permute.xlu0 %2460
      %2462 = vrot.lane.b32.xlu0 %v2168, 127
      %v2463 = vpop.permute.xlu0 %2462
      %2464 = vrot.lane.b32.xlu0 %v2170, 127
      %v2465 = vpop.permute.xlu0 %2464
      %2466 = vrot.lane.b32.xlu0 %v2449, 127
      %v2467 = vpop.permute.xlu0 %2466
      %vm2468 = vcmask 1039360
      %v2469 = vsel %vm2468, %v2459, %v2461
      %v2470 = vsel %vm2468, %v2461, %v2463
      %v2471 = vsel %vm2468, %v2463, %v2465
      %v2472 = vsel %vm2468, %v2465, %v2467
      %2477 = vrot.lane.b32.xlu0 %v1884, 126
      %v2478 = vpop.permute.xlu0 %2477
      %2479 = vrot.lane.b32.xlu0 %v1886, 126
      %v2480 = vpop.permute.xlu0 %2479
      %2481 = vrot.lane.b32.xlu0 %v2168, 126
      %v2482 = vpop.permute.xlu0 %2481
      %2483 = vrot.lane.b32.xlu0 %v2170, 126
      %v2484 = vpop.permute.xlu0 %2483
      %2485 = vrot.lane.b32.xlu0 %v2449, 126
      %v2486 = vpop.permute.xlu0 %2485
      %vm2487 = vcmask 1031168
      %v2488 = vsel %vm2487, %v2478, %v2480
      %v2489 = vsel %vm2487, %v2480, %v2482
      %v2490 = vsel %vm2487, %v2482, %v2484
      %v2491 = vsel %vm2487, %v2484, %v2486
      %2497 = vset.pattern.permute.xlu0 0
      %2498 = vperm.xlu0 %2497, %v963
      %v2499 = vpop.permute.xlu0 %2498
      %vm2501 = vcmask 195584
      %v2503 = vsel %vm2501, %v2452, 0
      %2505 = vmatprep.subr.mxu0 0.0
      %2506 = vmatpush1.msra.mxu0 0.0
      %2507 = vmatprep.subr.mxu0 0.0
      %2508 = vmatpush1.msra.mxu0 0.0
      %2509 = vmatprep.subr.mxu0 0.0
      %2510 = vmatpush1.msra.mxu0 0.0
      %2511 = vmatprep.subr.mxu0 0.0
      %2512 = vmatpush1.msra.mxu0 0.0
      %2513 = vmatprep.subr.mxu0 0.0
      %2514 = vmatpush1.msra.mxu0 0.0
      %2515 = vmatprep.subr.mxu0 0.0
      %2516 = vmatpush1.msra.mxu0 0.0
      %2517 = vmatprep.subr.mxu0 0.0
      %2518 = vmatpush1.msra.mxu0 0.0
      %2519 = vmatprep.subr.mxu0 0.0
      %2520 = vmatpush1.msra.mxu0 0.0
      %2521 = vmatprep.subr.mxu0 0.0
      %2522 = vmatpush1.msra.mxu0 0.0
      %2523 = vmatprep.subr.mxu0 0.0
      %2524 = vmatpush1.msra.mxu0 0.0
      %2525 = vmatprep.subr.mxu0 0.0
      %2526 = vmatpush1.msra.mxu0 0.0
      %2527 = vmatprep.subr.mxu0 0.0
      %2528 = vmatpush1.msra.mxu0 0.0
      %2529 = vmatprep.subr.mxu0 0.0
      %2530 = vmatpush1.msra.mxu0 0.0
      %2531 = vmatprep.subr.mxu0 %v2489
      %2532 = vmatpush1.msra.mxu0 %v2488
      %2533 = vmatprep.subr.mxu0 %v2470
      %2534 = vmatpush1.msra.mxu0 %v2469
      %2535 = vmatprep.subr.mxu0 %v1886
      %2536 = vmatpush1.msra.mxu0 %v1884
      %2537 = vmatprep.subr.mxu0 0.0
      %2538 = vmatpush2.msra.mxu0 0.0
      %2539 = vmatprep.subr.mxu0 0.0
      %2540 = vmatpush2.msra.mxu0 0.0
      %2541 = vmatprep.subr.mxu0 0.0
      %2542 = vmatpush2.msra.mxu0 0.0
      %2543 = vmatprep.subr.mxu0 0.0
      %2544 = vmatpush2.msra.mxu0 0.0
      %2545 = vmatprep.subr.mxu0 0.0
      %2546 = vmatpush2.msra.mxu0 0.0
      %2547 = vmatprep.subr.mxu0 0.0
      %2548 = vmatpush2.msra.mxu0 0.0
      %2549 = vmatprep.subr.mxu0 0.0
      %2550 = vmatpush2.msra.mxu0 0.0
      %2551 = vmatprep.subr.mxu0 0.0
      %2552 = vmatpush2.msra.mxu0 0.0
      %2553 = vmatprep.subr.mxu0 0.0
      %2554 = vmatpush2.msra.mxu0 0.0
      %2555 = vmatprep.subr.mxu0 0.0
      %2556 = vmatpush2.msra.mxu0 0.0
      %2557 = vmatprep.subr.mxu0 0.0
      %2558 = vmatpush2.msra.mxu0 0.0
      %2559 = vmatprep.subr.mxu0 0.0
      %2560 = vmatpush2.msra.mxu0 0.0
      %2561 = vmatprep.subr.mxu0 0.0
      %2562 = vmatpush2.msra.mxu0 0.0
      %2563 = vmatprep.subr.mxu0 0.0
      %2564 = vmatpush2.msra.mxu0 0.0
      %2565 = vmatprep.subr.mxu0 0.0
      %2566 = vmatpush2.msra.mxu0 0.0
      %2567 = vmatprep.subr.mxu0 0.0
      %2568 = vmatpush2.msra.mxu0 0.0
      %2569 = vmatprep.mubr.f32.mxu0 0.0
      %2570 = vmatmul.mubr.f32.gmra.mxu0 %v2503
      %v2571 = vpop.f32.mrf.mxu0
      %v2572 = vadd.f32 %v2499, %v2571
      %v2573 = vpop.f32.mrf.mxu0
      %v2574 = vadd.f32 %v2499, %v2573
      %2575 = vdwg.mxu0
      %2576 = vmatprep.subr.mxu0 0.0
      %2577 = vmatpush1.msra.mxu0 0.0
      %2578 = vmatprep.subr.mxu0 0.0
      %2579 = vmatpush1.msra.mxu0 0.0
      %2580 = vmatprep.subr.mxu0 0.0
      %2581 = vmatpush1.msra.mxu0 0.0
      %2582 = vmatprep.subr.mxu0 0.0
      %2583 = vmatpush1.msra.mxu0 0.0
      %2584 = vmatprep.subr.mxu0 0.0
      %2585 = vmatpush1.msra.mxu0 0.0
      %2586 = vmatprep.subr.mxu0 0.0
      %2587 = vmatpush1.msra.mxu0 0.0
      %2588 = vmatprep.subr.mxu0 0.0
      %2589 = vmatpush1.msra.mxu0 0.0
      %2590 = vmatprep.subr.mxu0 0.0
      %2591 = vmatpush1.msra.mxu0 0.0
      %2592 = vmatprep.subr.mxu0 0.0
      %2593 = vmatpush1.msra.mxu0 0.0
      %2594 = vmatprep.subr.mxu0 0.0
      %2595 = vmatpush1.msra.mxu0 0.0
      %2596 = vmatprep.subr.mxu0 0.0
      %2597 = vmatpush1.msra.mxu0 0.0
      %2598 = vmatprep.subr.mxu0 0.0
      %2599 = vmatpush1.msra.mxu0 0.0
      %2600 = vmatprep.subr.mxu0 0.0
      %2601 = vmatpush1.msra.mxu0 0.0
      %2602 = vmatprep.subr.mxu0 %v2491
      %2603 = vmatpush1.msra.mxu0 %v2490
      %2604 = vmatprep.subr.mxu0 %v2472
      %2605 = vmatpush1.msra.mxu0 %v2471
      %2606 = vmatprep.subr.mxu0 %v2170
      %2607 = vmatpush1.msra.mxu0 %v2168
      %2608 = vmatprep.subr.mxu0 0.0
      %2609 = vmatpush2.msra.mxu0 0.0
      %2610 = vmatprep.subr.mxu0 0.0
      %2611 = vmatpush2.msra.mxu0 0.0
      %2612 = vmatprep.subr.mxu0 0.0
      %2613 = vmatpush2.msra.mxu0 0.0
      %2614 = vmatprep.subr.mxu0 0.0
      %2615 = vmatpush2.msra.mxu0 0.0
      %2616 = vmatprep.subr.mxu0 0.0
      %2617 = vmatpush2.msra.mxu0 0.0
      %2618 = vmatprep.subr.mxu0 0.0
      %2619 = vmatpush2.msra.mxu0 0.0
      %2620 = vmatprep.subr.mxu0 0.0
      %2621 = vmatpush2.msra.mxu0 0.0
      %2622 = vmatprep.subr.mxu0 0.0
      %2623 = vmatpush2.msra.mxu0 0.0
      %2624 = vmatprep.subr.mxu0 0.0
      %2625 = vmatpush2.msra.mxu0 0.0
      %2626 = vmatprep.subr.mxu0 0.0
      %2627 = vmatpush2.msra.mxu0 0.0
      %2628 = vmatprep.subr.mxu0 0.0
      %2629 = vmatpush2.msra.mxu0 0.0
      %2630 = vmatprep.subr.mxu0 0.0
      %2631 = vmatpush2.msra.mxu0 0.0
      %2632 = vmatprep.subr.mxu0 0.0
      %2633 = vmatpush2.msra.mxu0 0.0
      %2634 = vmatprep.subr.mxu0 0.0
      %2635 = vmatpush2.msra.mxu0 0.0
      %2636 = vmatprep.subr.mxu0 0.0
      %2637 = vmatpush2.msra.mxu0 0.0
      %2638 = vmatprep.subr.mxu0 0.0
      %2639 = vmatpush2.msra.mxu0 0.0
      %2640 = vmatprep.mubr.f32.mxu0 0.0
      %2641 = vmatmul.mubr.f32.gmra.mxu0 %v2503
      %v2642 = vpop.f32.mrf.mxu0
      %v2643 = vadd.f32 %v2499, %v2642
      %v2644 = vpop.f32.mrf.mxu0
      %v2645 = vadd.f32 %v2499, %v2644
      %2646 = vdwg.mxu0
      %vm2647 = vcmp.ge.f32.partialorder %v2572, 0.0
      %vm2648 = vcmp.ge.f32.partialorder %v2574, 0.0
      %vm2649 = vcmp.ge.f32.partialorder %v2643, 0.0
      %vm2650 = vcmp.ge.f32.partialorder %v2645, 0.0
      %v2651 = vmul.f32 %v2572, 0.01
      %v2652 = vmul.f32 %v2574, 0.01
      %v2653 = vmul.f32 %v2643, 0.01
      %v2654 = vmul.f32 %v2645, 0.01
      %v2655 = vsel %vm2647, %v2572, %v2651
      %v2656 = vsel %vm2648, %v2574, %v2652
      %v2657 = vsel %vm2649, %v2643, %v2653
      %v2658 = vsel %vm2650, %v2645, %v2654
      %2659 = vset.pattern.permute.xlu0 1
      %2660 = vperm.xlu0 %2659, %v963
      %v2661 = vpop.permute.xlu0 %2660
      %v2663 = vmul.f32 %v2655, %v2661
      %v2664 = vmul.f32 %v2656, %v2661
      %v2665 = vmul.f32 %v2657, %v2661
      %v2666 = vmul.f32 %v2658, %v2661
      %2667 = vset.pattern.permute.xlu0 2
      %2668 = vperm.xlu0 %2667, %v963
      %v2669 = vpop.permute.xlu0 %2668
      %v2671 = vadd.f32 %v2663, %v2669
      %v2672 = vadd.f32 %v2664, %v2669
      %v2673 = vadd.f32 %v2665, %v2669
      %v2674 = vadd.f32 %v2666, %v2669
      %v2675 = vld [vmem:[%s13] sm:$0xff]
      %v2676 = vld [vmem:[%s13 + $0x8] sm:$0xff]
      %v2677 = vld [vmem:[%s13 + $0x10] sm:$0xff]
      %v2678 = vld [vmem:[%s13 + $0x18] sm:$0xff]
      %v2679 = vld [vmem:[%s13 + $0x20] sm:$0xff]
      %v2680 = vld [vmem:[%s13 + $0x28] sm:$0xff]
      %v2681 = vld [vmem:[%s13 + $0x30] sm:$0xff]
      %v2682 = vld [vmem:[%s13 + $0x38] sm:$0xff]
      %v2683 = vld [vmem:[%s13 + $0x40] sm:$0xff]
      %v2684 = vld [vmem:[%s13 + $0x48] sm:$0xff]
      %v2685 = vld [vmem:[%s13 + $0x50] sm:$0xff]
      %v2686 = vld [vmem:[%s13 + $0x58] sm:$0xff]
      %v2687 = vld [vmem:[%s13 + $0x60] sm:$0xff]
      %v2688 = vld [vmem:[%s13 + $0x68] sm:$0xff]
      %v2689 = vld [vmem:[%s13 + $0x70] sm:$0xff]
      %v2690 = vld [vmem:[%s13 + $0x78] sm:$0xff]
      %v2691 = vld [vmem:[%s13 + $0x80] sm:$0xff]
      %v2692 = vld [vmem:[%s13 + $0x88] sm:$0xff]
      %v2693 = vld [vmem:[%s13 + $0x90] sm:$0xff]
      %v2694 = vld [vmem:[%s13 + $0x98] sm:$0xff]
      %v2695 = vld [vmem:[%s13 + $0xa0] sm:$0xff]
      %v2696 = vld [vmem:[%s13 + $0xa8] sm:$0xff]
      %v2697 = vld [vmem:[%s13 + $0xb0] sm:$0xff]
      %v2698 = vld [vmem:[%s13 + $0xb8] sm:$0xff]
      %v2699 = vld [vmem:[%s13 + $0xc0] sm:$0xff]
      %v2700 = vld [vmem:[%s13 + $0xc8] sm:$0xff]
      %v2701 = vld [vmem:[%s13 + $0xd0] sm:$0xff]
      %v2702 = vld [vmem:[%s13 + $0xd8] sm:$0xff]
      %v2703 = vld [vmem:[%s13 + $0xe0] sm:$0xff]
      %v2704 = vld [vmem:[%s13 + $0xe8] sm:$0xff]
      %v2705 = vld [vmem:[%s13 + $0xf0] sm:$0xff]
      %v2706 = vld [vmem:[%s13 + $0xf8] sm:$0xff]
      %v2707 = vld [vmem:[%s13 + $0x100] sm:$0xff]
      %v2708 = vld [vmem:[%s13 + $0x108] sm:$0xff]
      %v2709 = vld [vmem:[%s13 + $0x110] sm:$0xff]
      %v2710 = vld [vmem:[%s13 + $0x118] sm:$0xff]
      %v2711 = vld [vmem:[%s13 + $0x120] sm:$0xff]
      %v2712 = vld [vmem:[%s13 + $0x128] sm:$0xff]
      %v2713 = vld [vmem:[%s13 + $0x130] sm:$0xff]
      %v2714 = vld [vmem:[%s13 + $0x138] sm:$0xff]
      %v2715 = vld [vmem:[%s13 + $0x140] sm:$0xff]
      %v2716 = vld [vmem:[%s13 + $0x148] sm:$0xff]
      %v2717 = vld [vmem:[%s13 + $0x150] sm:$0xff]
      %v2718 = vld [vmem:[%s13 + $0x158] sm:$0xff]
      %v2719 = vld [vmem:[%s13 + $0x160] sm:$0xff]
      %v2720 = vld [vmem:[%s13 + $0x168] sm:$0xff]
      %v2721 = vld [vmem:[%s13 + $0x170] sm:$0xff]
      %v2722 = vld [vmem:[%s13 + $0x178] sm:$0xff]
      %v2723 = vld [vmem:[%s13 + $0x180] sm:$0xff]
      %v2724 = vld [vmem:[%s13 + $0x188] sm:$0xff]
      %v2725 = vld [vmem:[%s13 + $0x190] sm:$0xff]
      %v2726 = vld [vmem:[%s13 + $0x198] sm:$0xff]
      %v2727 = vld [vmem:[%s13 + $0x1a0] sm:$0xff]
      %v2728 = vld [vmem:[%s13 + $0x1a8] sm:$0xff]
      %v2729 = vld [vmem:[%s13 + $0x1b0] sm:$0xff]
      %v2730 = vld [vmem:[%s13 + $0x1b8] sm:$0xff]
      %v2731 = vld [vmem:[%s13 + $0x1c0] sm:$0xff]
      %v2732 = vld [vmem:[%s13 + $0x1c8] sm:$0xff]
      %v2733 = vld [vmem:[%s13 + $0x1d0] sm:$0xff]
      %v2734 = vld [vmem:[%s13 + $0x1d8] sm:$0xff]
      %v2735 = vld [vmem:[%s13 + $0x1e0] sm:$0xff]
      %v2736 = vld [vmem:[%s13 + $0x1e8] sm:$0xff]
      %v2737 = vld [vmem:[%s13 + $0x1f0] sm:$0xff]
      %v2738 = vld [vmem:[%s13 + $0x1f8] sm:$0xff]
      %v2739 = vld [vmem:[%s13 + $0x200] sm:$0xff]
      %v2740 = vld [vmem:[%s13 + $0x208] sm:$0xff]
      %v2741 = vld [vmem:[%s13 + $0x210] sm:$0xff]
      %v2742 = vld [vmem:[%s13 + $0x218] sm:$0xff]
      %v2743 = vld [vmem:[%s13 + $0x220] sm:$0xff]
      %v2744 = vld [vmem:[%s13 + $0x228] sm:$0xff]
      %v2745 = vld [vmem:[%s13 + $0x230] sm:$0xff]
      %v2746 = vld [vmem:[%s13 + $0x238] sm:$0xff]
      %v2747 = vld [vmem:[%s13 + $0x240] sm:$0xff]
      %v2748 = vld [vmem:[%s13 + $0x248] sm:$0xff]
      %v2749 = vld [vmem:[%s13 + $0x250] sm:$0xff]
      %v2750 = vld [vmem:[%s13 + $0x258] sm:$0xff]
      %v2751 = vld [vmem:[%s13 + $0x260] sm:$0xff]
      %v2752 = vld [vmem:[%s13 + $0x268] sm:$0xff]
      %v2753 = vld [vmem:[%s13 + $0x270] sm:$0xff]
      %v2754 = vld [vmem:[%s13 + $0x278] sm:$0xff]
      %v2755 = vld [vmem:[%s13 + $0x280] sm:$0xff]
      %v2756 = vld [vmem:[%s13 + $0x288] sm:$0xff]
      %v2757 = vld [vmem:[%s13 + $0x290] sm:$0xff]
      %v2758 = vld [vmem:[%s13 + $0x298] sm:$0xff]
      %v2759 = vld [vmem:[%s13 + $0x2a0] sm:$0xff]
      %v2760 = vld [vmem:[%s13 + $0x2a8] sm:$0xff]
      %v2761 = vld [vmem:[%s13 + $0x2b0] sm:$0xff]
      %v2762 = vld [vmem:[%s13 + $0x2b8] sm:$0xff]
      %v2763 = vld [vmem:[%s13 + $0x2c0] sm:$0xff]
      %v2764 = vld [vmem:[%s13 + $0x2c8] sm:$0xff]
      %v2765 = vld [vmem:[%s13 + $0x2d0] sm:$0xff]
      %v2766 = vld [vmem:[%s13 + $0x2d8] sm:$0xff]
      %v2767 = vld [vmem:[%s13 + $0x2e0] sm:$0xff]
      %v2768 = vld [vmem:[%s13 + $0x2e8] sm:$0xff]
      %v2769 = vld [vmem:[%s13 + $0x2f0] sm:$0xff]
      %v2770 = vld [vmem:[%s13 + $0x2f8] sm:$0xff]
      %v2771 = vld [vmem:[%s13 + $0x300] sm:$0xff]
      %v2772 = vld [vmem:[%s13 + $0x308] sm:$0xff]
      %v2773 = vld [vmem:[%s13 + $0x310] sm:$0xff]
      %v2774 = vld [vmem:[%s13 + $0x318] sm:$0xff]
      %v2775 = vld [vmem:[%s13 + $0x320] sm:$0xff]
      %v2776 = vld [vmem:[%s13 + $0x328] sm:$0xff]
      %v2777 = vld [vmem:[%s13 + $0x330] sm:$0xff]
      %v2778 = vld [vmem:[%s13 + $0x338] sm:$0xff]
      %v2779 = vld [vmem:[%s13 + $0x340] sm:$0xff]
      %v2780 = vld [vmem:[%s13 + $0x348] sm:$0xff]
      %v2781 = vld [vmem:[%s13 + $0x350] sm:$0xff]
      %v2782 = vld [vmem:[%s13 + $0x358] sm:$0xff]
      %v2783 = vld [vmem:[%s13 + $0x360] sm:$0xff]
      %v2784 = vld [vmem:[%s13 + $0x368] sm:$0xff]
      %v2785 = vld [vmem:[%s13 + $0x370] sm:$0xff]
      %v2786 = vld [vmem:[%s13 + $0x378] sm:$0xff]
      %v2787 = vld [vmem:[%s13 + $0x380] sm:$0xff]
      %v2788 = vld [vmem:[%s13 + $0x388] sm:$0xff]
      %v2789 = vld [vmem:[%s13 + $0x390] sm:$0xff]
      %v2790 = vld [vmem:[%s13 + $0x398] sm:$0xff]
      %v2791 = vld [vmem:[%s13 + $0x3a0] sm:$0xff]
      %v2792 = vld [vmem:[%s13 + $0x3a8] sm:$0xff]
      %v2793 = vld [vmem:[%s13 + $0x3b0] sm:$0xff]
      %v2794 = vld [vmem:[%s13 + $0x3b8] sm:$0xff]
      %v2795 = vld [vmem:[%s13 + $0x3c0] sm:$0xff]
      %v2796 = vld [vmem:[%s13 + $0x3c8] sm:$0xff]
      %v2797 = vld [vmem:[%s13 + $0x3d0] sm:$0xff]
      %v2798 = vld [vmem:[%s13 + $0x3d8] sm:$0xff]
      %v2799 = vld [vmem:[%s13 + $0x3e0] sm:$0xff]
      %v2800 = vld [vmem:[%s13 + $0x3e8] sm:$0xff]
      %v2801 = vld [vmem:[%s13 + $0x3f0] sm:$0xff]
      %v2802 = vld [vmem:[%s13 + $0x3f8] sm:$0xff]
      %v2803 = vld [vmem:[%s13 + $0x400] sm:$0xff]
      %v2804 = vld [vmem:[%s13 + $0x408] sm:$0xff]
      %v2805 = vld [vmem:[%s13 + $0x410] sm:$0xff]
      %v2806 = vld [vmem:[%s13 + $0x418] sm:$0xff]
      %v2807 = vld [vmem:[%s13 + $0x420] sm:$0xff]
      %v2808 = vld [vmem:[%s13 + $0x428] sm:$0xff]
      %v2809 = vld [vmem:[%s13 + $0x430] sm:$0xff]
      %v2810 = vld [vmem:[%s13 + $0x438] sm:$0xff]
      %v2811 = vld [vmem:[%s13 + $0x440] sm:$0xff]
      %v2812 = vld [vmem:[%s13 + $0x448] sm:$0xff]
      %v2813 = vld [vmem:[%s13 + $0x450] sm:$0xff]
      %v2814 = vld [vmem:[%s13 + $0x458] sm:$0xff]
      %v2815 = vld [vmem:[%s13 + $0x460] sm:$0xff]
      %v2816 = vld [vmem:[%s13 + $0x468] sm:$0xff]
      %v2817 = vld [vmem:[%s13 + $0x470] sm:$0xff]
      %v2818 = vld [vmem:[%s13 + $0x478] sm:$0xff]
      %v2819 = vld [vmem:[%s13 + $0x480] sm:$0xff]
      %v2820 = vld [vmem:[%s13 + $0x488] sm:$0xff]
      %v2821 = vld [vmem:[%s13 + $0x490] sm:$0xff]
      %v2822 = vld [vmem:[%s13 + $0x498] sm:$0xff]
      %v2823 = vld [vmem:[%s13 + $0x4a0] sm:$0xff]
      %v2824 = vld [vmem:[%s13 + $0x4a8] sm:$0xff]
      %v2825 = vld [vmem:[%s13 + $0x4b0] sm:$0xff]
      %v2826 = vld [vmem:[%s13 + $0x4b8] sm:$0xff]
      %v2827 = vld [vmem:[%s13 + $0x4c0] sm:$0xff]
      %v2828 = vld [vmem:[%s13 + $0x4c8] sm:$0xff]
      %v2829 = vld [vmem:[%s13 + $0x4d0] sm:$0xff]
      %v2830 = vld [vmem:[%s13 + $0x4d8] sm:$0xff]
      %v2831 = vld [vmem:[%s13 + $0x4e0] sm:$0xff]
      %v2832 = vld [vmem:[%s13 + $0x4e8] sm:$0xff]
      %v2833 = vld [vmem:[%s13 + $0x4f0] sm:$0xff]
      %v2834 = vld [vmem:[%s13 + $0x4f8] sm:$0xff]
      %v2835 = vld [vmem:[%s13 + $0x500] sm:$0xff]
      %v2836 = vld [vmem:[%s13 + $0x508] sm:$0xff]
      %v2837 = vld [vmem:[%s13 + $0x510] sm:$0xff]
      %v2838 = vld [vmem:[%s13 + $0x518] sm:$0xff]
      %v2839 = vld [vmem:[%s13 + $0x520] sm:$0xff]
      %v2840 = vld [vmem:[%s13 + $0x528] sm:$0xff]
      %v2841 = vld [vmem:[%s13 + $0x530] sm:$0xff]
      %v2842 = vld [vmem:[%s13 + $0x538] sm:$0xff]
      %v2843 = vld [vmem:[%s13 + $0x540] sm:$0xff]
      %v2844 = vld [vmem:[%s13 + $0x548] sm:$0xff]
      %v2845 = vld [vmem:[%s13 + $0x550] sm:$0xff]
      %v2846 = vld [vmem:[%s13 + $0x558] sm:$0xff]
      %v2847 = vld [vmem:[%s13 + $0x560] sm:$0xff]
      %v2848 = vld [vmem:[%s13 + $0x568] sm:$0xff]
      %v2849 = vld [vmem:[%s13 + $0x570] sm:$0xff]
      %v2850 = vld [vmem:[%s13 + $0x578] sm:$0xff]
      %v2851 = vld [vmem:[%s13 + $0x580] sm:$0xff]
      %v2852 = vld [vmem:[%s13 + $0x588] sm:$0xff]
      %v2853 = vld [vmem:[%s13 + $0x590] sm:$0xff]
      %v2854 = vld [vmem:[%s13 + $0x598] sm:$0xff]
      %v2855 = vld [vmem:[%s13 + $0x5a0] sm:$0xff]
      %v2856 = vld [vmem:[%s13 + $0x5a8] sm:$0xff]
      %v2857 = vld [vmem:[%s13 + $0x5b0] sm:$0xff]
      %v2858 = vld [vmem:[%s13 + $0x5b8] sm:$0xff]
      %v2859 = vld [vmem:[%s13 + $0x5c0] sm:$0xff]
      %v2860 = vld [vmem:[%s13 + $0x5c8] sm:$0xff]
      %v2861 = vld [vmem:[%s13 + $0x5d0] sm:$0xff]
      %v2862 = vld [vmem:[%s13 + $0x5d8] sm:$0xff]
      %v2863 = vld [vmem:[%s13 + $0x5e0] sm:$0xff]
      %v2864 = vld [vmem:[%s13 + $0x5e8] sm:$0xff]
      %v2865 = vld [vmem:[%s13 + $0x5f0] sm:$0xff]
      %v2866 = vld [vmem:[%s13 + $0x5f8] sm:$0xff]
      %2867 = vmatprep.subr.mxu0 %v2721
      %2868 = vmatpush1.msra.mxu0 %v2720
      %2869 = vmatprep.subr.mxu0 %v2718
      %2870 = vmatpush1.msra.mxu0 %v2717
      %2871 = vmatprep.subr.mxu0 %v2715
      %2872 = vmatpush1.msra.mxu0 %v2714
      %2873 = vmatprep.subr.mxu0 %v2712
      %2874 = vmatpush1.msra.mxu0 %v2711
      %2875 = vmatprep.subr.mxu0 %v2709
      %2876 = vmatpush1.msra.mxu0 %v2708
      %2877 = vmatprep.subr.mxu0 %v2706
      %2878 = vmatpush1.msra.mxu0 %v2705
      %2879 = vmatprep.subr.mxu0 %v2703
      %2880 = vmatpush1.msra.mxu0 %v2702
      %2881 = vmatprep.subr.mxu0 %v2700
      %2882 = vmatpush1.msra.mxu0 %v2699
      %2883 = vmatprep.subr.mxu0 %v2697
      %2884 = vmatpush1.msra.mxu0 %v2696
      %2885 = vmatprep.subr.mxu0 %v2694
      %2886 = vmatpush1.msra.mxu0 %v2693
      %2887 = vmatprep.subr.mxu0 %v2691
      %2888 = vmatpush1.msra.mxu0 %v2690
      %2889 = vmatprep.subr.mxu0 %v2688
      %2890 = vmatpush1.msra.mxu0 %v2687
      %2891 = vmatprep.subr.mxu0 %v2685
      %2892 = vmatpush1.msra.mxu0 %v2684
      %2893 = vmatprep.subr.mxu0 %v2682
      %2894 = vmatpush1.msra.mxu0 %v2681
      %2895 = vmatprep.subr.mxu0 %v2679
      %2896 = vmatpush1.msra.mxu0 %v2678
      %2897 = vmatprep.subr.mxu0 %v2676
      %2898 = vmatpush1.msra.mxu0 %v2675
      %2899 = vmatprep.subr.mxu0 %v2769
      %2900 = vmatpush2.msra.mxu0 %v2768
      %2901 = vmatprep.subr.mxu0 %v2766
      %2902 = vmatpush2.msra.mxu0 %v2765
      %2903 = vmatprep.subr.mxu0 %v2763
      %2904 = vmatpush2.msra.mxu0 %v2762
      %2905 = vmatprep.subr.mxu0 %v2760
      %2906 = vmatpush2.msra.mxu0 %v2759
      %2907 = vmatprep.subr.mxu0 %v2757
      %2908 = vmatpush2.msra.mxu0 %v2756
      %2909 = vmatprep.subr.mxu0 %v2754
      %2910 = vmatpush2.msra.mxu0 %v2753
      %2911 = vmatprep.subr.mxu0 %v2751
      %2912 = vmatpush2.msra.mxu0 %v2750
      %2913 = vmatprep.subr.mxu0 %v2748
      %2914 = vmatpush2.msra.mxu0 %v2747
      %2915 = vmatprep.subr.mxu0 %v2745
      %2916 = vmatpush2.msra.mxu0 %v2744
      %2917 = vmatprep.subr.mxu0 %v2742
      %2918 = vmatpush2.msra.mxu0 %v2741
      %2919 = vmatprep.subr.mxu0 %v2739
      %2920 = vmatpush2.msra.mxu0 %v2738
      %2921 = vmatprep.subr.mxu0 %v2736
      %2922 = vmatpush2.msra.mxu0 %v2735
      %2923 = vmatprep.subr.mxu0 %v2733
      %2924 = vmatpush2.msra.mxu0 %v2732
      %2925 = vmatprep.subr.mxu0 %v2730
      %2926 = vmatpush2.msra.mxu0 %v2729
      %2927 = vmatprep.subr.mxu0 %v2727
      %2928 = vmatpush2.msra.mxu0 %v2726
      %2929 = vmatprep.subr.mxu0 %v2724
      %2930 = vmatpush2.msra.mxu0 %v2723
      %2931 = vmatprep.mubr.f32.mxu0 %v2672
      %2932 = vmatmul.mubr.f32.gmra.mxu0 %v2671
      %v2933 = vpop.f32.mrf.mxu0
      %v2934 = vadd.f32 0.0, %v2933
      %v2935 = vpop.f32.mrf.mxu0
      %v2936 = vadd.f32 0.0, %v2935
      %2937 = vdwg.mxu0
      %2938 = vmatprep.subr.mxu0 %v2817
      %2939 = vmatpush1.msra.mxu0 %v2816
      %2940 = vmatprep.subr.mxu0 %v2814
      %2941 = vmatpush1.msra.mxu0 %v2813
      %2942 = vmatprep.subr.mxu0 %v2811
      %2943 = vmatpush1.msra.mxu0 %v2810
      %2944 = vmatprep.subr.mxu0 %v2808
      %2945 = vmatpush1.msra.mxu0 %v2807
      %2946 = vmatprep.subr.mxu0 %v2805
      %2947 = vmatpush1.msra.mxu0 %v2804
      %2948 = vmatprep.subr.mxu0 %v2802
      %2949 = vmatpush1.msra.mxu0 %v2801
      %2950 = vmatprep.subr.mxu0 %v2799
      %2951 = vmatpush1.msra.mxu0 %v2798
      %2952 = vmatprep.subr.mxu0 %v2796
      %2953 = vmatpush1.msra.mxu0 %v2795
      %2954 = vmatprep.subr.mxu0 %v2793
      %2955 = vmatpush1.msra.mxu0 %v2792
      %2956 = vmatprep.subr.mxu0 %v2790
      %2957 = vmatpush1.msra.mxu0 %v2789
      %2958 = vmatprep.subr.mxu0 %v2787
      %2959 = vmatpush1.msra.mxu0 %v2786
      %2960 = vmatprep.subr.mxu0 %v2784
      %2961 = vmatpush1.msra.mxu0 %v2783
      %2962 = vmatprep.subr.mxu0 %v2781
      %2963 = vmatpush1.msra.mxu0 %v2780
      %2964 = vmatprep.subr.mxu0 %v2778
      %2965 = vmatpush1.msra.mxu0 %v2777
      %2966 = vmatprep.subr.mxu0 %v2775
      %2967 = vmatpush1.msra.mxu0 %v2774
      %2968 = vmatprep.subr.mxu0 %v2772
      %2969 = vmatpush1.msra.mxu0 %v2771
      %2970 = vmatprep.subr.mxu0 %v2865
      %2971 = vmatpush2.msra.mxu0 %v2864
      %2972 = vmatprep.subr.mxu0 %v2862
      %2973 = vmatpush2.msra.mxu0 %v2861
      %2974 = vmatprep.subr.mxu0 %v2859
      %2975 = vmatpush2.msra.mxu0 %v2858
      %2976 = vmatprep.subr.mxu0 %v2856
      %2977 = vmatpush2.msra.mxu0 %v2855
      %2978 = vmatprep.subr.mxu0 %v2853
      %2979 = vmatpush2.msra.mxu0 %v2852
      %2980 = vmatprep.subr.mxu0 %v2850
      %2981 = vmatpush2.msra.mxu0 %v2849
      %2982 = vmatprep.subr.mxu0 %v2847
      %2983 = vmatpush2.msra.mxu0 %v2846
      %2984 = vmatprep.subr.mxu0 %v2844
      %2985 = vmatpush2.msra.mxu0 %v2843
      %2986 = vmatprep.subr.mxu0 %v2841
      %2987 = vmatpush2.msra.mxu0 %v2840
      %2988 = vmatprep.subr.mxu0 %v2838
      %2989 = vmatpush2.msra.mxu0 %v2837
      %2990 = vmatprep.subr.mxu0 %v2835
      %2991 = vmatpush2.msra.mxu0 %v2834
      %2992 = vmatprep.subr.mxu0 %v2832
      %2993 = vmatpush2.msra.mxu0 %v2831
      %2994 = vmatprep.subr.mxu0 %v2829
      %2995 = vmatpush2.msra.mxu0 %v2828
      %2996 = vmatprep.subr.mxu0 %v2826
      %2997 = vmatpush2.msra.mxu0 %v2825
      %2998 = vmatprep.subr.mxu0 %v2823
      %2999 = vmatpush2.msra.mxu0 %v2822
      %3000 = vmatprep.subr.mxu0 %v2820
      %3001 = vmatpush2.msra.mxu0 %v2819
      %3002 = vmatprep.mubr.f32.mxu0 %v2674
      %3003 = vmatmul.mubr.f32.gmra.mxu0 %v2673
      %v3004 = vpop.f32.mrf.mxu0
      %v3005 = vadd.f32 %v2934, %v3004
      %v3006 = vpop.f32.mrf.mxu0
      %v3007 = vadd.f32 %v2936, %v3006
      %3008 = vdwg.mxu0
      %3009 = vmatprep.subr.mxu0 0.0
      %3010 = vmatpush1.msra.mxu0 %v2722
      %3011 = vmatprep.subr.mxu0 0.0
      %3012 = vmatpush1.msra.mxu0 %v2719
      %3013 = vmatprep.subr.mxu0 0.0
      %3014 = vmatpush1.msra.mxu0 %v2716
      %3015 = vmatprep.subr.mxu0 0.0
      %3016 = vmatpush1.msra.mxu0 %v2713
      %3017 = vmatprep.subr.mxu0 0.0
      %3018 = vmatpush1.msra.mxu0 %v2710
      %3019 = vmatprep.subr.mxu0 0.0
      %3020 = vmatpush1.msra.mxu0 %v2707
      %3021 = vmatprep.subr.mxu0 0.0
      %3022 = vmatpush1.msra.mxu0 %v2704
      %3023 = vmatprep.subr.mxu0 0.0
      %3024 = vmatpush1.msra.mxu0 %v2701
      %3025 = vmatprep.subr.mxu0 0.0
      %3026 = vmatpush1.msra.mxu0 %v2698
      %3027 = vmatprep.subr.mxu0 0.0
      %3028 = vmatpush1.msra.mxu0 %v2695
      %3029 = vmatprep.subr.mxu0 0.0
      %3030 = vmatpush1.msra.mxu0 %v2692
      %3031 = vmatprep.subr.mxu0 0.0
      %3032 = vmatpush1.msra.mxu0 %v2689
      %3033 = vmatprep.subr.mxu0 0.0
      %3034 = vmatpush1.msra.mxu0 %v2686
      %3035 = vmatprep.subr.mxu0 0.0
      %3036 = vmatpush1.msra.mxu0 %v2683
      %3037 = vmatprep.subr.mxu0 0.0
      %3038 = vmatpush1.msra.mxu0 %v2680
      %3039 = vmatprep.subr.mxu0 0.0
      %3040 = vmatpush1.msra.mxu0 %v2677
      %3041 = vmatprep.subr.mxu0 0.0
      %3042 = vmatpush2.msra.mxu0 %v2770
      %3043 = vmatprep.subr.mxu0 0.0
      %3044 = vmatpush2.msra.mxu0 %v2767
      %3045 = vmatprep.subr.mxu0 0.0
      %3046 = vmatpush2.msra.mxu0 %v2764
      %3047 = vmatprep.subr.mxu0 0.0
      %3048 = vmatpush2.msra.mxu0 %v2761
      %3049 = vmatprep.subr.mxu0 0.0
      %3050 = vmatpush2.msra.mxu0 %v2758
      %3051 = vmatprep.subr.mxu0 0.0
      %3052 = vmatpush2.msra.mxu0 %v2755
      %3053 = vmatprep.subr.mxu0 0.0
      %3054 = vmatpush2.msra.mxu0 %v2752
      %3055 = vmatprep.subr.mxu0 0.0
      %3056 = vmatpush2.msra.mxu0 %v2749
      %3057 = vmatprep.subr.mxu0 0.0
      %3058 = vmatpush2.msra.mxu0 %v2746
      %3059 = vmatprep.subr.mxu0 0.0
      %3060 = vmatpush2.msra.mxu0 %v2743
      %3061 = vmatprep.subr.mxu0 0.0
      %3062 = vmatpush2.msra.mxu0 %v2740
      %3063 = vmatprep.subr.mxu0 0.0
      %3064 = vmatpush2.msra.mxu0 %v2737
      %3065 = vmatprep.subr.mxu0 0.0
      %3066 = vmatpush2.msra.mxu0 %v2734
      %3067 = vmatprep.subr.mxu0 0.0
      %3068 = vmatpush2.msra.mxu0 %v2731
      %3069 = vmatprep.subr.mxu0 0.0
      %3070 = vmatpush2.msra.mxu0 %v2728
      %3071 = vmatprep.subr.mxu0 0.0
      %3072 = vmatpush2.msra.mxu0 %v2725
      %3073 = vmatprep.mubr.f32.mxu0 %v2672
      %3074 = vmatmul.mubr.f32.gmra.mxu0 %v2671
      %v3075 = vpop.f32.mrf.mxu0
      %v3076 = vadd.f32 0.0, %v3075
      %v3077 = vpop.f32.mrf.mxu0
      %3078 = vdwg.mxu0
      %3079 = vmatprep.subr.mxu0 0.0
      %3080 = vmatpush1.msra.mxu0 %v2818
      %3081 = vmatprep.subr.mxu0 0.0
      %3082 = vmatpush1.msra.mxu0 %v2815
      %3083 = vmatprep.subr.mxu0 0.0
      %3084 = vmatpush1.msra.mxu0 %v2812
      %3085 = vmatprep.subr.mxu0 0.0
      %3086 = vmatpush1.msra.mxu0 %v2809
      %3087 = vmatprep.subr.mxu0 0.0
      %3088 = vmatpush1.msra.mxu0 %v2806
      %3089 = vmatprep.subr.mxu0 0.0
      %3090 = vmatpush1.msra.mxu0 %v2803
      %3091 = vmatprep.subr.mxu0 0.0
      %3092 = vmatpush1.msra.mxu0 %v2800
      %3093 = vmatprep.subr.mxu0 0.0
      %3094 = vmatpush1.msra.mxu0 %v2797
      %3095 = vmatprep.subr.mxu0 0.0
      %3096 = vmatpush1.msra.mxu0 %v2794
      %3097 = vmatprep.subr.mxu0 0.0
      %3098 = vmatpush1.msra.mxu0 %v2791
      %3099 = vmatprep.subr.mxu0 0.0
      %3100 = vmatpush1.msra.mxu0 %v2788
      %3101 = vmatprep.subr.mxu0 0.0
      %3102 = vmatpush1.msra.mxu0 %v2785
      %3103 = vmatprep.subr.mxu0 0.0
      %3104 = vmatpush1.msra.mxu0 %v2782
      %3105 = vmatprep.subr.mxu0 0.0
      %3106 = vmatpush1.msra.mxu0 %v2779
      %3107 = vmatprep.subr.mxu0 0.0
      %3108 = vmatpush1.msra.mxu0 %v2776
      %3109 = vmatprep.subr.mxu0 0.0
      %3110 = vmatpush1.msra.mxu0 %v2773
      %3111 = vmatprep.subr.mxu0 0.0
      %3112 = vmatpush2.msra.mxu0 %v2866
      %3113 = vmatprep.subr.mxu0 0.0
      %3114 = vmatpush2.msra.mxu0 %v2863
      %3115 = vmatprep.subr.mxu0 0.0
      %3116 = vmatpush2.msra.mxu0 %v2860
      %3117 = vmatprep.subr.mxu0 0.0
      %3118 = vmatpush2.msra.mxu0 %v2857
      %3119 = vmatprep.subr.mxu0 0.0
      %3120 = vmatpush2.msra.mxu0 %v2854
      %3121 = vmatprep.subr.mxu0 0.0
      %3122 = vmatpush2.msra.mxu0 %v2851
      %3123 = vmatprep.subr.mxu0 0.0
      %3124 = vmatpush2.msra.mxu0 %v2848
      %3125 = vmatprep.subr.mxu0 0.0
      %3126 = vmatpush2.msra.mxu0 %v2845
      %3127 = vmatprep.subr.mxu0 0.0
      %3128 = vmatpush2.msra.mxu0 %v2842
      %3129 = vmatprep.subr.mxu0 0.0
      %3130 = vmatpush2.msra.mxu0 %v2839
      %3131 = vmatprep.subr.mxu0 0.0
      %3132 = vmatpush2.msra.mxu0 %v2836
      %3133 = vmatprep.subr.mxu0 0.0
      %3134 = vmatpush2.msra.mxu0 %v2833
      %3135 = vmatprep.subr.mxu0 0.0
      %3136 = vmatpush2.msra.mxu0 %v2830
      %3137 = vmatprep.subr.mxu0 0.0
      %3138 = vmatpush2.msra.mxu0 %v2827
      %3139 = vmatprep.subr.mxu0 0.0
      %3140 = vmatpush2.msra.mxu0 %v2824
      %3141 = vmatprep.subr.mxu0 0.0
      %3142 = vmatpush2.msra.mxu0 %v2821
      %3143 = vmatprep.mubr.f32.mxu0 %v2674
      %3144 = vmatmul.mubr.f32.gmra.mxu0 %v2673
      %v3145 = vpop.f32.mrf.mxu0
      %v3146 = vadd.f32 %v3076, %v3145
      %v3147 = vpop.f32.mrf.mxu0
      %3148 = vdwg.mxu0
      %v3149 = vld [vmem:[%s5] sm:$0xff]
      %3153 = vrot.lane.b32.xlu0 %v3005, 127
      %v3154 = vpop.permute.xlu0 %3153
      %3155 = vrot.lane.b32.xlu0 %v3007, 127
      %v3156 = vpop.permute.xlu0 %3155
      %3157 = vrot.lane.b32.xlu0 %v3146, 127
      %v3158 = vpop.permute.xlu0 %3157
      %v3159 = vsel %vm2468, %v3154, %v3156
      %v3160 = vsel %vm2468, %v3156, %v3158
      %3163 = vrot.lane.b32.xlu0 %v3005, 126
      %v3164 = vpop.permute.xlu0 %3163
      %3165 = vrot.lane.b32.xlu0 %v3007, 126
      %v3166 = vpop.permute.xlu0 %3165
      %3167 = vrot.lane.b32.xlu0 %v3146, 126
      %v3168 = vpop.permute.xlu0 %3167
      %v3169 = vsel %vm2487, %v3164, %v3166
      %v3170 = vsel %vm2487, %v3166, %v3168
      %3173 = vset.pattern.permute.xlu0 3
      %3174 = vperm.xlu0 %3173, %v963
      %v3175 = vpop.permute.xlu0 %3174
      %v3178 = vsel %vm2501, %v3149, 0
      %3180 = vmatprep.subr.mxu0 0.0
      %3181 = vmatpush1.msra.mxu0 0.0
      %3182 = vmatprep.subr.mxu0 0.0
      %3183 = vmatpush1.msra.mxu0 0.0
      %3184 = vmatprep.subr.mxu0 0.0
      %3185 = vmatpush1.msra.mxu0 0.0
      %3186 = vmatprep.subr.mxu0 0.0
      %3187 = vmatpush1.msra.mxu0 0.0
      %3188 = vmatprep.subr.mxu0 0.0
      %3189 = vmatpush1.msra.mxu0 0.0
      %3190 = vmatprep.subr.mxu0 0.0
      %3191 = vmatpush1.msra.mxu0 0.0
      %3192 = vmatprep.subr.mxu0 0.0
      %3193 = vmatpush1.msra.mxu0 0.0
      %3194 = vmatprep.subr.mxu0 0.0
      %3195 = vmatpush1.msra.mxu0 0.0
      %3196 = vmatprep.subr.mxu0 0.0
      %3197 = vmatpush1.msra.mxu0 0.0
      %3198 = vmatprep.subr.mxu0 0.0
      %3199 = vmatpush1.msra.mxu0 0.0
      %3200 = vmatprep.subr.mxu0 0.0
      %3201 = vmatpush1.msra.mxu0 0.0
      %3202 = vmatprep.subr.mxu0 0.0
      %3203 = vmatpush1.msra.mxu0 0.0
      %3204 = vmatprep.subr.mxu0 0.0
      %3205 = vmatpush1.msra.mxu0 0.0
      %3206 = vmatprep.subr.mxu0 %v3170
      %3207 = vmatpush1.msra.mxu0 %v3169
      %3208 = vmatprep.subr.mxu0 %v3160
      %3209 = vmatpush1.msra.mxu0 %v3159
      %3210 = vmatprep.subr.mxu0 %v3007
      %3211 = vmatpush1.msra.mxu0 %v3005
      %3212 = vmatprep.subr.mxu0 0.0
      %3213 = vmatpush2.msra.mxu0 0.0
      %3214 = vmatprep.subr.mxu0 0.0
      %3215 = vmatpush2.msra.mxu0 0.0
      %3216 = vmatprep.subr.mxu0 0.0
      %3217 = vmatpush2.msra.mxu0 0.0
      %3218 = vmatprep.subr.mxu0 0.0
      %3219 = vmatpush2.msra.mxu0 0.0
      %3220 = vmatprep.subr.mxu0 0.0
      %3221 = vmatpush2.msra.mxu0 0.0
      %3222 = vmatprep.subr.mxu0 0.0
      %3223 = vmatpush2.msra.mxu0 0.0
      %3224 = vmatprep.subr.mxu0 0.0
      %3225 = vmatpush2.msra.mxu0 0.0
      %3226 = vmatprep.subr.mxu0 0.0
      %3227 = vmatpush2.msra.mxu0 0.0
      %3228 = vmatprep.subr.mxu0 0.0
      %3229 = vmatpush2.msra.mxu0 0.0
      %3230 = vmatprep.subr.mxu0 0.0
      %3231 = vmatpush2.msra.mxu0 0.0
      %3232 = vmatprep.subr.mxu0 0.0
      %3233 = vmatpush2.msra.mxu0 0.0
      %3234 = vmatprep.subr.mxu0 0.0
      %3235 = vmatpush2.msra.mxu0 0.0
      %3236 = vmatprep.subr.mxu0 0.0
      %3237 = vmatpush2.msra.mxu0 0.0
      %3238 = vmatprep.subr.mxu0 0.0
      %3239 = vmatpush2.msra.mxu0 0.0
      %3240 = vmatprep.subr.mxu0 0.0
      %3241 = vmatpush2.msra.mxu0 0.0
      %3242 = vmatprep.subr.mxu0 0.0
      %3243 = vmatpush2.msra.mxu0 0.0
      %3244 = vmatprep.mubr.f32.mxu0 0.0
      %3245 = vmatmul.mubr.f32.gmra.mxu0 %v3178
      %v3246 = vpop.f32.mrf.mxu0
      %v3247 = vadd.f32 %v3175, %v3246
      %v3248 = vpop.f32.mrf.mxu0
      %v3249 = vadd.f32 %v3175, %v3248
      %3250 = vdwg.mxu0
      %vm3251 = vcmp.ge.f32.partialorder %v3247, 0.0
      %vm3252 = vcmp.ge.f32.partialorder %v3249, 0.0
      %v3253 = vmul.f32 %v3247, 0.01
      %v3254 = vmul.f32 %v3249, 0.01
      %v3255 = vsel %vm3251, %v3247, %v3253
      %v3256 = vsel %vm3252, %v3249, %v3254
      %3257 = vset.pattern.permute.xlu0 4
      %3258 = vperm.xlu0 %3257, %v963
      %v3259 = vpop.permute.xlu0 %3258
      %v3261 = vmul.f32 %v3255, %v3259
      %v3262 = vmul.f32 %v3256, %v3259
      %3263 = vset.pattern.permute.xlu0 5
      %3264 = vperm.xlu0 %3263, %v963
      %v3265 = vpop.permute.xlu0 %3264
      %v3267 = vadd.f32 %v3261, %v3265
      %v3268 = vadd.f32 %v3262, %v3265
      %v3269 = vld [vmem:[%s15] sm:$0xff]
      %v3270 = vld [vmem:[%s15 + $0x8] sm:$0xff]
      %v3271 = vld [vmem:[%s15 + $0x10] sm:$0xff]
      %v3272 = vld [vmem:[%s15 + $0x18] sm:$0xff]
      %v3273 = vld [vmem:[%s15 + $0x20] sm:$0xff]
      %v3274 = vld [vmem:[%s15 + $0x28] sm:$0xff]
      %v3275 = vld [vmem:[%s15 + $0x30] sm:$0xff]
      %v3276 = vld [vmem:[%s15 + $0x38] sm:$0xff]
      %v3277 = vld [vmem:[%s15 + $0x40] sm:$0xff]
      %v3278 = vld [vmem:[%s15 + $0x48] sm:$0xff]
      %v3279 = vld [vmem:[%s15 + $0x50] sm:$0xff]
      %v3280 = vld [vmem:[%s15 + $0x58] sm:$0xff]
      %v3281 = vld [vmem:[%s15 + $0x60] sm:$0xff]
      %v3282 = vld [vmem:[%s15 + $0x68] sm:$0xff]
      %v3283 = vld [vmem:[%s15 + $0x70] sm:$0xff]
      %v3284 = vld [vmem:[%s15 + $0x78] sm:$0xff]
      %v3285 = vld [vmem:[%s15 + $0x80] sm:$0xff]
      %v3286 = vld [vmem:[%s15 + $0x88] sm:$0xff]
      %v3287 = vld [vmem:[%s15 + $0x90] sm:$0xff]
      %v3288 = vld [vmem:[%s15 + $0x98] sm:$0xff]
      %v3289 = vld [vmem:[%s15 + $0xa0] sm:$0xff]
      %v3290 = vld [vmem:[%s15 + $0xa8] sm:$0xff]
      %v3291 = vld [vmem:[%s15 + $0xb0] sm:$0xff]
      %v3292 = vld [vmem:[%s15 + $0xb8] sm:$0xff]
      %v3293 = vld [vmem:[%s15 + $0xc0] sm:$0xff]
      %v3294 = vld [vmem:[%s15 + $0xc8] sm:$0xff]
      %v3295 = vld [vmem:[%s15 + $0xd0] sm:$0xff]
      %v3296 = vld [vmem:[%s15 + $0xd8] sm:$0xff]
      %v3297 = vld [vmem:[%s15 + $0xe0] sm:$0xff]
      %v3298 = vld [vmem:[%s15 + $0xe8] sm:$0xff]
      %v3299 = vld [vmem:[%s15 + $0xf0] sm:$0xff]
      %v3300 = vld [vmem:[%s15 + $0xf8] sm:$0xff]
      %v3301 = vld [vmem:[%s15 + $0x100] sm:$0xff]
      %v3302 = vld [vmem:[%s15 + $0x108] sm:$0xff]
      %v3303 = vld [vmem:[%s15 + $0x110] sm:$0xff]
      %v3304 = vld [vmem:[%s15 + $0x118] sm:$0xff]
      %v3305 = vld [vmem:[%s15 + $0x120] sm:$0xff]
      %v3306 = vld [vmem:[%s15 + $0x128] sm:$0xff]
      %v3307 = vld [vmem:[%s15 + $0x130] sm:$0xff]
      %v3308 = vld [vmem:[%s15 + $0x138] sm:$0xff]
      %v3309 = vld [vmem:[%s15 + $0x140] sm:$0xff]
      %v3310 = vld [vmem:[%s15 + $0x148] sm:$0xff]
      %v3311 = vld [vmem:[%s15 + $0x150] sm:$0xff]
      %v3312 = vld [vmem:[%s15 + $0x158] sm:$0xff]
      %v3313 = vld [vmem:[%s15 + $0x160] sm:$0xff]
      %v3314 = vld [vmem:[%s15 + $0x168] sm:$0xff]
      %v3315 = vld [vmem:[%s15 + $0x170] sm:$0xff]
      %v3316 = vld [vmem:[%s15 + $0x178] sm:$0xff]
      %v3317 = vld [vmem:[%s15 + $0x180] sm:$0xff]
      %v3318 = vld [vmem:[%s15 + $0x188] sm:$0xff]
      %v3319 = vld [vmem:[%s15 + $0x190] sm:$0xff]
      %v3320 = vld [vmem:[%s15 + $0x198] sm:$0xff]
      %v3321 = vld [vmem:[%s15 + $0x1a0] sm:$0xff]
      %v3322 = vld [vmem:[%s15 + $0x1a8] sm:$0xff]
      %v3323 = vld [vmem:[%s15 + $0x1b0] sm:$0xff]
      %v3324 = vld [vmem:[%s15 + $0x1b8] sm:$0xff]
      %v3325 = vld [vmem:[%s15 + $0x1c0] sm:$0xff]
      %v3326 = vld [vmem:[%s15 + $0x1c8] sm:$0xff]
      %v3327 = vld [vmem:[%s15 + $0x1d0] sm:$0xff]
      %v3328 = vld [vmem:[%s15 + $0x1d8] sm:$0xff]
      %v3329 = vld [vmem:[%s15 + $0x1e0] sm:$0xff]
      %v3330 = vld [vmem:[%s15 + $0x1e8] sm:$0xff]
      %v3331 = vld [vmem:[%s15 + $0x1f0] sm:$0xff]
      %v3332 = vld [vmem:[%s15 + $0x1f8] sm:$0xff]
      %v3333 = vld [vmem:[%s15 + $0x200] sm:$0xff]
      %v3334 = vld [vmem:[%s15 + $0x208] sm:$0xff]
      %v3335 = vld [vmem:[%s15 + $0x210] sm:$0xff]
      %v3336 = vld [vmem:[%s15 + $0x218] sm:$0xff]
      %v3337 = vld [vmem:[%s15 + $0x220] sm:$0xff]
      %v3338 = vld [vmem:[%s15 + $0x228] sm:$0xff]
      %v3339 = vld [vmem:[%s15 + $0x230] sm:$0xff]
      %v3340 = vld [vmem:[%s15 + $0x238] sm:$0xff]
      %v3341 = vld [vmem:[%s15 + $0x240] sm:$0xff]
      %v3342 = vld [vmem:[%s15 + $0x248] sm:$0xff]
      %v3343 = vld [vmem:[%s15 + $0x250] sm:$0xff]
      %v3344 = vld [vmem:[%s15 + $0x258] sm:$0xff]
      %v3345 = vld [vmem:[%s15 + $0x260] sm:$0xff]
      %v3346 = vld [vmem:[%s15 + $0x268] sm:$0xff]
      %v3347 = vld [vmem:[%s15 + $0x270] sm:$0xff]
      %v3348 = vld [vmem:[%s15 + $0x278] sm:$0xff]
      %v3349 = vld [vmem:[%s15 + $0x280] sm:$0xff]
      %v3350 = vld [vmem:[%s15 + $0x288] sm:$0xff]
      %v3351 = vld [vmem:[%s15 + $0x290] sm:$0xff]
      %v3352 = vld [vmem:[%s15 + $0x298] sm:$0xff]
      %v3353 = vld [vmem:[%s15 + $0x2a0] sm:$0xff]
      %v3354 = vld [vmem:[%s15 + $0x2a8] sm:$0xff]
      %v3355 = vld [vmem:[%s15 + $0x2b0] sm:$0xff]
      %v3356 = vld [vmem:[%s15 + $0x2b8] sm:$0xff]
      %v3357 = vld [vmem:[%s15 + $0x2c0] sm:$0xff]
      %v3358 = vld [vmem:[%s15 + $0x2c8] sm:$0xff]
      %v3359 = vld [vmem:[%s15 + $0x2d0] sm:$0xff]
      %v3360 = vld [vmem:[%s15 + $0x2d8] sm:$0xff]
      %v3361 = vld [vmem:[%s15 + $0x2e0] sm:$0xff]
      %v3362 = vld [vmem:[%s15 + $0x2e8] sm:$0xff]
      %v3363 = vld [vmem:[%s15 + $0x2f0] sm:$0xff]
      %v3364 = vld [vmem:[%s15 + $0x2f8] sm:$0xff]
      %v3365 = vld [vmem:[%s15 + $0x300] sm:$0xff]
      %v3366 = vld [vmem:[%s15 + $0x308] sm:$0xff]
      %v3367 = vld [vmem:[%s15 + $0x310] sm:$0xff]
      %v3368 = vld [vmem:[%s15 + $0x318] sm:$0xff]
      %v3369 = vld [vmem:[%s15 + $0x320] sm:$0xff]
      %v3370 = vld [vmem:[%s15 + $0x328] sm:$0xff]
      %v3371 = vld [vmem:[%s15 + $0x330] sm:$0xff]
      %v3372 = vld [vmem:[%s15 + $0x338] sm:$0xff]
      %v3373 = vld [vmem:[%s15 + $0x340] sm:$0xff]
      %v3374 = vld [vmem:[%s15 + $0x348] sm:$0xff]
      %v3375 = vld [vmem:[%s15 + $0x350] sm:$0xff]
      %v3376 = vld [vmem:[%s15 + $0x358] sm:$0xff]
      %v3377 = vld [vmem:[%s15 + $0x360] sm:$0xff]
      %v3378 = vld [vmem:[%s15 + $0x368] sm:$0xff]
      %v3379 = vld [vmem:[%s15 + $0x370] sm:$0xff]
      %v3380 = vld [vmem:[%s15 + $0x378] sm:$0xff]
      %v3381 = vld [vmem:[%s15 + $0x380] sm:$0xff]
      %v3382 = vld [vmem:[%s15 + $0x388] sm:$0xff]
      %v3383 = vld [vmem:[%s15 + $0x390] sm:$0xff]
      %v3384 = vld [vmem:[%s15 + $0x398] sm:$0xff]
      %v3385 = vld [vmem:[%s15 + $0x3a0] sm:$0xff]
      %v3386 = vld [vmem:[%s15 + $0x3a8] sm:$0xff]
      %v3387 = vld [vmem:[%s15 + $0x3b0] sm:$0xff]
      %v3388 = vld [vmem:[%s15 + $0x3b8] sm:$0xff]
      %v3389 = vld [vmem:[%s15 + $0x3c0] sm:$0xff]
      %v3390 = vld [vmem:[%s15 + $0x3c8] sm:$0xff]
      %v3391 = vld [vmem:[%s15 + $0x3d0] sm:$0xff]
      %v3392 = vld [vmem:[%s15 + $0x3d8] sm:$0xff]
      %v3393 = vld [vmem:[%s15 + $0x3e0] sm:$0xff]
      %v3394 = vld [vmem:[%s15 + $0x3e8] sm:$0xff]
      %v3395 = vld [vmem:[%s15 + $0x3f0] sm:$0xff]
      %v3396 = vld [vmem:[%s15 + $0x3f8] sm:$0xff]
      %v3397 = vld [vmem:[%s15 + $0x400] sm:$0xff]
      %v3398 = vld [vmem:[%s15 + $0x408] sm:$0xff]
      %v3399 = vld [vmem:[%s15 + $0x410] sm:$0xff]
      %v3400 = vld [vmem:[%s15 + $0x418] sm:$0xff]
      %v3401 = vld [vmem:[%s15 + $0x420] sm:$0xff]
      %v3402 = vld [vmem:[%s15 + $0x428] sm:$0xff]
      %v3403 = vld [vmem:[%s15 + $0x430] sm:$0xff]
      %v3404 = vld [vmem:[%s15 + $0x438] sm:$0xff]
      %v3405 = vld [vmem:[%s15 + $0x440] sm:$0xff]
      %v3406 = vld [vmem:[%s15 + $0x448] sm:$0xff]
      %v3407 = vld [vmem:[%s15 + $0x450] sm:$0xff]
      %v3408 = vld [vmem:[%s15 + $0x458] sm:$0xff]
      %v3409 = vld [vmem:[%s15 + $0x460] sm:$0xff]
      %v3410 = vld [vmem:[%s15 + $0x468] sm:$0xff]
      %v3411 = vld [vmem:[%s15 + $0x470] sm:$0xff]
      %v3412 = vld [vmem:[%s15 + $0x478] sm:$0xff]
      %v3413 = vld [vmem:[%s15 + $0x480] sm:$0xff]
      %v3414 = vld [vmem:[%s15 + $0x488] sm:$0xff]
      %v3415 = vld [vmem:[%s15 + $0x490] sm:$0xff]
      %v3416 = vld [vmem:[%s15 + $0x498] sm:$0xff]
      %v3417 = vld [vmem:[%s15 + $0x4a0] sm:$0xff]
      %v3418 = vld [vmem:[%s15 + $0x4a8] sm:$0xff]
      %v3419 = vld [vmem:[%s15 + $0x4b0] sm:$0xff]
      %v3420 = vld [vmem:[%s15 + $0x4b8] sm:$0xff]
      %v3421 = vld [vmem:[%s15 + $0x4c0] sm:$0xff]
      %v3422 = vld [vmem:[%s15 + $0x4c8] sm:$0xff]
      %v3423 = vld [vmem:[%s15 + $0x4d0] sm:$0xff]
      %v3424 = vld [vmem:[%s15 + $0x4d8] sm:$0xff]
      %v3425 = vld [vmem:[%s15 + $0x4e0] sm:$0xff]
      %v3426 = vld [vmem:[%s15 + $0x4e8] sm:$0xff]
      %v3427 = vld [vmem:[%s15 + $0x4f0] sm:$0xff]
      %v3428 = vld [vmem:[%s15 + $0x4f8] sm:$0xff]
      %v3429 = vld [vmem:[%s15 + $0x500] sm:$0xff]
      %v3430 = vld [vmem:[%s15 + $0x508] sm:$0xff]
      %v3431 = vld [vmem:[%s15 + $0x510] sm:$0xff]
      %v3432 = vld [vmem:[%s15 + $0x518] sm:$0xff]
      %v3433 = vld [vmem:[%s15 + $0x520] sm:$0xff]
      %v3434 = vld [vmem:[%s15 + $0x528] sm:$0xff]
      %v3435 = vld [vmem:[%s15 + $0x530] sm:$0xff]
      %v3436 = vld [vmem:[%s15 + $0x538] sm:$0xff]
      %v3437 = vld [vmem:[%s15 + $0x540] sm:$0xff]
      %v3438 = vld [vmem:[%s15 + $0x548] sm:$0xff]
      %v3439 = vld [vmem:[%s15 + $0x550] sm:$0xff]
      %v3440 = vld [vmem:[%s15 + $0x558] sm:$0xff]
      %v3441 = vld [vmem:[%s15 + $0x560] sm:$0xff]
      %v3442 = vld [vmem:[%s15 + $0x568] sm:$0xff]
      %v3443 = vld [vmem:[%s15 + $0x570] sm:$0xff]
      %v3444 = vld [vmem:[%s15 + $0x578] sm:$0xff]
      %v3445 = vld [vmem:[%s15 + $0x580] sm:$0xff]
      %v3446 = vld [vmem:[%s15 + $0x588] sm:$0xff]
      %v3447 = vld [vmem:[%s15 + $0x590] sm:$0xff]
      %v3448 = vld [vmem:[%s15 + $0x598] sm:$0xff]
      %v3449 = vld [vmem:[%s15 + $0x5a0] sm:$0xff]
      %v3450 = vld [vmem:[%s15 + $0x5a8] sm:$0xff]
      %v3451 = vld [vmem:[%s15 + $0x5b0] sm:$0xff]
      %v3452 = vld [vmem:[%s15 + $0x5b8] sm:$0xff]
      %v3453 = vld [vmem:[%s15 + $0x5c0] sm:$0xff]
      %v3454 = vld [vmem:[%s15 + $0x5c8] sm:$0xff]
      %v3455 = vld [vmem:[%s15 + $0x5d0] sm:$0xff]
      %v3456 = vld [vmem:[%s15 + $0x5d8] sm:$0xff]
      %v3457 = vld [vmem:[%s15 + $0x5e0] sm:$0xff]
      %v3458 = vld [vmem:[%s15 + $0x5e8] sm:$0xff]
      %v3459 = vld [vmem:[%s15 + $0x5f0] sm:$0xff]
      %v3460 = vld [vmem:[%s15 + $0x5f8] sm:$0xff]
      %v3461 = vld [vmem:[%s15 + $0x600] sm:$0xff]
      %v3462 = vld [vmem:[%s15 + $0x608] sm:$0xff]
      %v3463 = vld [vmem:[%s15 + $0x610] sm:$0xff]
      %v3464 = vld [vmem:[%s15 + $0x618] sm:$0xff]
      %v3465 = vld [vmem:[%s15 + $0x620] sm:$0xff]
      %v3466 = vld [vmem:[%s15 + $0x628] sm:$0xff]
      %v3467 = vld [vmem:[%s15 + $0x630] sm:$0xff]
      %v3468 = vld [vmem:[%s15 + $0x638] sm:$0xff]
      %v3469 = vld [vmem:[%s15 + $0x640] sm:$0xff]
      %v3470 = vld [vmem:[%s15 + $0x648] sm:$0xff]
      %v3471 = vld [vmem:[%s15 + $0x650] sm:$0xff]
      %v3472 = vld [vmem:[%s15 + $0x658] sm:$0xff]
      %v3473 = vld [vmem:[%s15 + $0x660] sm:$0xff]
      %v3474 = vld [vmem:[%s15 + $0x668] sm:$0xff]
      %v3475 = vld [vmem:[%s15 + $0x670] sm:$0xff]
      %v3476 = vld [vmem:[%s15 + $0x678] sm:$0xff]
      %v3477 = vld [vmem:[%s15 + $0x680] sm:$0xff]
      %v3478 = vld [vmem:[%s15 + $0x688] sm:$0xff]
      %v3479 = vld [vmem:[%s15 + $0x690] sm:$0xff]
      %v3480 = vld [vmem:[%s15 + $0x698] sm:$0xff]
      %v3481 = vld [vmem:[%s15 + $0x6a0] sm:$0xff]
      %v3482 = vld [vmem:[%s15 + $0x6a8] sm:$0xff]
      %v3483 = vld [vmem:[%s15 + $0x6b0] sm:$0xff]
      %v3484 = vld [vmem:[%s15 + $0x6b8] sm:$0xff]
      %v3485 = vld [vmem:[%s15 + $0x6c0] sm:$0xff]
      %v3486 = vld [vmem:[%s15 + $0x6c8] sm:$0xff]
      %v3487 = vld [vmem:[%s15 + $0x6d0] sm:$0xff]
      %v3488 = vld [vmem:[%s15 + $0x6d8] sm:$0xff]
      %v3489 = vld [vmem:[%s15 + $0x6e0] sm:$0xff]
      %v3490 = vld [vmem:[%s15 + $0x6e8] sm:$0xff]
      %v3491 = vld [vmem:[%s15 + $0x6f0] sm:$0xff]
      %v3492 = vld [vmem:[%s15 + $0x6f8] sm:$0xff]
      %v3493 = vld [vmem:[%s15 + $0x700] sm:$0xff]
      %v3494 = vld [vmem:[%s15 + $0x708] sm:$0xff]
      %v3495 = vld [vmem:[%s15 + $0x710] sm:$0xff]
      %v3496 = vld [vmem:[%s15 + $0x718] sm:$0xff]
      %v3497 = vld [vmem:[%s15 + $0x720] sm:$0xff]
      %v3498 = vld [vmem:[%s15 + $0x728] sm:$0xff]
      %v3499 = vld [vmem:[%s15 + $0x730] sm:$0xff]
      %v3500 = vld [vmem:[%s15 + $0x738] sm:$0xff]
      %v3501 = vld [vmem:[%s15 + $0x740] sm:$0xff]
      %v3502 = vld [vmem:[%s15 + $0x748] sm:$0xff]
      %v3503 = vld [vmem:[%s15 + $0x750] sm:$0xff]
      %v3504 = vld [vmem:[%s15 + $0x758] sm:$0xff]
      %v3505 = vld [vmem:[%s15 + $0x760] sm:$0xff]
      %v3506 = vld [vmem:[%s15 + $0x768] sm:$0xff]
      %v3507 = vld [vmem:[%s15 + $0x770] sm:$0xff]
      %v3508 = vld [vmem:[%s15 + $0x778] sm:$0xff]
      %v3509 = vld [vmem:[%s15 + $0x780] sm:$0xff]
      %v3510 = vld [vmem:[%s15 + $0x788] sm:$0xff]
      %v3511 = vld [vmem:[%s15 + $0x790] sm:$0xff]
      %v3512 = vld [vmem:[%s15 + $0x798] sm:$0xff]
      %v3513 = vld [vmem:[%s15 + $0x7a0] sm:$0xff]
      %v3514 = vld [vmem:[%s15 + $0x7a8] sm:$0xff]
      %v3515 = vld [vmem:[%s15 + $0x7b0] sm:$0xff]
      %v3516 = vld [vmem:[%s15 + $0x7b8] sm:$0xff]
      %v3517 = vld [vmem:[%s15 + $0x7c0] sm:$0xff]
      %v3518 = vld [vmem:[%s15 + $0x7c8] sm:$0xff]
      %v3519 = vld [vmem:[%s15 + $0x7d0] sm:$0xff]
      %v3520 = vld [vmem:[%s15 + $0x7d8] sm:$0xff]
      %v3521 = vld [vmem:[%s15 + $0x7e0] sm:$0xff]
      %v3522 = vld [vmem:[%s15 + $0x7e8] sm:$0xff]
      %v3523 = vld [vmem:[%s15 + $0x7f0] sm:$0xff]
      %v3524 = vld [vmem:[%s15 + $0x7f8] sm:$0xff]
      %3525 = vmatprep.subr.mxu0 %v3300
      %3526 = vmatpush1.msra.mxu0 %v3299
      %3527 = vmatprep.subr.mxu0 %v3298
      %3528 = vmatpush1.msra.mxu0 %v3297
      %3529 = vmatprep.subr.mxu0 %v3296
      %3530 = vmatpush1.msra.mxu0 %v3295
      %3531 = vmatprep.subr.mxu0 %v3294
      %3532 = vmatpush1.msra.mxu0 %v3293
      %3533 = vmatprep.subr.mxu0 %v3292
      %3534 = vmatpush1.msra.mxu0 %v3291
      %3535 = vmatprep.subr.mxu0 %v3290
      %3536 = vmatpush1.msra.mxu0 %v3289
      %3537 = vmatprep.subr.mxu0 %v3288
      %3538 = vmatpush1.msra.mxu0 %v3287
      %3539 = vmatprep.subr.mxu0 %v3286
      %3540 = vmatpush1.msra.mxu0 %v3285
      %3541 = vmatprep.subr.mxu0 %v3284
      %3542 = vmatpush1.msra.mxu0 %v3283
      %3543 = vmatprep.subr.mxu0 %v3282
      %3544 = vmatpush1.msra.mxu0 %v3281
      %3545 = vmatprep.subr.mxu0 %v3280
      %3546 = vmatpush1.msra.mxu0 %v3279
      %3547 = vmatprep.subr.mxu0 %v3278
      %3548 = vmatpush1.msra.mxu0 %v3277
      %3549 = vmatprep.subr.mxu0 %v3276
      %3550 = vmatpush1.msra.mxu0 %v3275
      %3551 = vmatprep.subr.mxu0 %v3274
      %3552 = vmatpush1.msra.mxu0 %v3273
      %3553 = vmatprep.subr.mxu0 %v3272
      %3554 = vmatpush1.msra.mxu0 %v3271
      %3555 = vmatprep.subr.mxu0 %v3270
      %3556 = vmatpush1.msra.mxu0 %v3269
      %3557 = vmatprep.subr.mxu0 %v3332
      %3558 = vmatpush2.msra.mxu0 %v3331
      %3559 = vmatprep.subr.mxu0 %v3330
      %3560 = vmatpush2.msra.mxu0 %v3329
      %3561 = vmatprep.subr.mxu0 %v3328
      %3562 = vmatpush2.msra.mxu0 %v3327
      %3563 = vmatprep.subr.mxu0 %v3326
      %3564 = vmatpush2.msra.mxu0 %v3325
      %3565 = vmatprep.subr.mxu0 %v3324
      %3566 = vmatpush2.msra.mxu0 %v3323
      %3567 = vmatprep.subr.mxu0 %v3322
      %3568 = vmatpush2.msra.mxu0 %v3321
      %3569 = vmatprep.subr.mxu0 %v3320
      %3570 = vmatpush2.msra.mxu0 %v3319
      %3571 = vmatprep.subr.mxu0 %v3318
      %3572 = vmatpush2.msra.mxu0 %v3317
      %3573 = vmatprep.subr.mxu0 %v3316
      %3574 = vmatpush2.msra.mxu0 %v3315
      %3575 = vmatprep.subr.mxu0 %v3314
      %3576 = vmatpush2.msra.mxu0 %v3313
      %3577 = vmatprep.subr.mxu0 %v3312
      %3578 = vmatpush2.msra.mxu0 %v3311
      %3579 = vmatprep.subr.mxu0 %v3310
      %3580 = vmatpush2.msra.mxu0 %v3309
      %3581 = vmatprep.subr.mxu0 %v3308
      %3582 = vmatpush2.msra.mxu0 %v3307
      %3583 = vmatprep.subr.mxu0 %v3306
      %3584 = vmatpush2.msra.mxu0 %v3305
      %3585 = vmatprep.subr.mxu0 %v3304
      %3586 = vmatpush2.msra.mxu0 %v3303
      %3587 = vmatprep.subr.mxu0 %v3302
      %3588 = vmatpush2.msra.mxu0 %v3301
      %3589 = vmatprep.mubr.f32.mxu0 %v956
      %3590 = vmatmul.mubr.f32.gmra.mxu0 %v955
      %v3591 = vpop.f32.mrf.mxu0
      %v3592 = vadd.f32 0.0, %v3591
      %v3593 = vpop.f32.mrf.mxu0
      %v3594 = vadd.f32 0.0, %v3593
      %3595 = vdwg.mxu0
      %3596 = vmatprep.subr.mxu0 %v3364
      %3597 = vmatpush1.msra.mxu0 %v3363
      %3598 = vmatprep.subr.mxu0 %v3362
      %3599 = vmatpush1.msra.mxu0 %v3361
      %3600 = vmatprep.subr.mxu0 %v3360
      %3601 = vmatpush1.msra.mxu0 %v3359
      %3602 = vmatprep.subr.mxu0 %v3358
      %3603 = vmatpush1.msra.mxu0 %v3357
      %3604 = vmatprep.subr.mxu0 %v3356
      %3605 = vmatpush1.msra.mxu0 %v3355
      %3606 = vmatprep.subr.mxu0 %v3354
      %3607 = vmatpush1.msra.mxu0 %v3353
      %3608 = vmatprep.subr.mxu0 %v3352
      %3609 = vmatpush1.msra.mxu0 %v3351
      %3610 = vmatprep.subr.mxu0 %v3350
      %3611 = vmatpush1.msra.mxu0 %v3349
      %3612 = vmatprep.subr.mxu0 %v3348
      %3613 = vmatpush1.msra.mxu0 %v3347
      %3614 = vmatprep.subr.mxu0 %v3346
      %3615 = vmatpush1.msra.mxu0 %v3345
      %3616 = vmatprep.subr.mxu0 %v3344
      %3617 = vmatpush1.msra.mxu0 %v3343
      %3618 = vmatprep.subr.mxu0 %v3342
      %3619 = vmatpush1.msra.mxu0 %v3341
      %3620 = vmatprep.subr.mxu0 %v3340
      %3621 = vmatpush1.msra.mxu0 %v3339
      %3622 = vmatprep.subr.mxu0 %v3338
      %3623 = vmatpush1.msra.mxu0 %v3337
      %3624 = vmatprep.subr.mxu0 %v3336
      %3625 = vmatpush1.msra.mxu0 %v3335
      %3626 = vmatprep.subr.mxu0 %v3334
      %3627 = vmatpush1.msra.mxu0 %v3333
      %3628 = vmatprep.subr.mxu0 %v3396
      %3629 = vmatpush2.msra.mxu0 %v3395
      %3630 = vmatprep.subr.mxu0 %v3394
      %3631 = vmatpush2.msra.mxu0 %v3393
      %3632 = vmatprep.subr.mxu0 %v3392
      %3633 = vmatpush2.msra.mxu0 %v3391
      %3634 = vmatprep.subr.mxu0 %v3390
      %3635 = vmatpush2.msra.mxu0 %v3389
      %3636 = vmatprep.subr.mxu0 %v3388
      %3637 = vmatpush2.msra.mxu0 %v3387
      %3638 = vmatprep.subr.mxu0 %v3386
      %3639 = vmatpush2.msra.mxu0 %v3385
      %3640 = vmatprep.subr.mxu0 %v3384
      %3641 = vmatpush2.msra.mxu0 %v3383
      %3642 = vmatprep.subr.mxu0 %v3382
      %3643 = vmatpush2.msra.mxu0 %v3381
      %3644 = vmatprep.subr.mxu0 %v3380
      %3645 = vmatpush2.msra.mxu0 %v3379
      %3646 = vmatprep.subr.mxu0 %v3378
      %3647 = vmatpush2.msra.mxu0 %v3377
      %3648 = vmatprep.subr.mxu0 %v3376
      %3649 = vmatpush2.msra.mxu0 %v3375
      %3650 = vmatprep.subr.mxu0 %v3374
      %3651 = vmatpush2.msra.mxu0 %v3373
      %3652 = vmatprep.subr.mxu0 %v3372
      %3653 = vmatpush2.msra.mxu0 %v3371
      %3654 = vmatprep.subr.mxu0 %v3370
      %3655 = vmatpush2.msra.mxu0 %v3369
      %3656 = vmatprep.subr.mxu0 %v3368
      %3657 = vmatpush2.msra.mxu0 %v3367
      %3658 = vmatprep.subr.mxu0 %v3366
      %3659 = vmatpush2.msra.mxu0 %v3365
      %3660 = vmatprep.mubr.f32.mxu0 %v958
      %3661 = vmatmul.mubr.f32.gmra.mxu0 %v957
      %v3662 = vpop.f32.mrf.mxu0
      %v3663 = vadd.f32 %v3592, %v3662
      %v3664 = vpop.f32.mrf.mxu0
      %v3665 = vadd.f32 %v3594, %v3664
      %3666 = vdwg.mxu0
      %3667 = vmatprep.subr.mxu0 %v3428
      %3668 = vmatpush1.msra.mxu0 %v3427
      %3669 = vmatprep.subr.mxu0 %v3426
      %3670 = vmatpush1.msra.mxu0 %v3425
      %3671 = vmatprep.subr.mxu0 %v3424
      %3672 = vmatpush1.msra.mxu0 %v3423
      %3673 = vmatprep.subr.mxu0 %v3422
      %3674 = vmatpush1.msra.mxu0 %v3421
      %3675 = vmatprep.subr.mxu0 %v3420
      %3676 = vmatpush1.msra.mxu0 %v3419
      %3677 = vmatprep.subr.mxu0 %v3418
      %3678 = vmatpush1.msra.mxu0 %v3417
      %3679 = vmatprep.subr.mxu0 %v3416
      %3680 = vmatpush1.msra.mxu0 %v3415
      %3681 = vmatprep.subr.mxu0 %v3414
      %3682 = vmatpush1.msra.mxu0 %v3413
      %3683 = vmatprep.subr.mxu0 %v3412
      %3684 = vmatpush1.msra.mxu0 %v3411
      %3685 = vmatprep.subr.mxu0 %v3410
      %3686 = vmatpush1.msra.mxu0 %v3409
      %3687 = vmatprep.subr.mxu0 %v3408
      %3688 = vmatpush1.msra.mxu0 %v3407
      %3689 = vmatprep.subr.mxu0 %v3406
      %3690 = vmatpush1.msra.mxu0 %v3405
      %3691 = vmatprep.subr.mxu0 %v3404
      %3692 = vmatpush1.msra.mxu0 %v3403
      %3693 = vmatprep.subr.mxu0 %v3402
      %3694 = vmatpush1.msra.mxu0 %v3401
      %3695 = vmatprep.subr.mxu0 %v3400
      %3696 = vmatpush1.msra.mxu0 %v3399
      %3697 = vmatprep.subr.mxu0 %v3398
      %3698 = vmatpush1.msra.mxu0 %v3397
      %3699 = vmatprep.subr.mxu0 %v3460
      %3700 = vmatpush2.msra.mxu0 %v3459
      %3701 = vmatprep.subr.mxu0 %v3458
      %3702 = vmatpush2.msra.mxu0 %v3457
      %3703 = vmatprep.subr.mxu0 %v3456
      %3704 = vmatpush2.msra.mxu0 %v3455
      %3705 = vmatprep.subr.mxu0 %v3454
      %3706 = vmatpush2.msra.mxu0 %v3453
      %3707 = vmatprep.subr.mxu0 %v3452
      %3708 = vmatpush2.msra.mxu0 %v3451
      %3709 = vmatprep.subr.mxu0 %v3450
      %3710 = vmatpush2.msra.mxu0 %v3449
      %3711 = vmatprep.subr.mxu0 %v3448
      %3712 = vmatpush2.msra.mxu0 %v3447
      %3713 = vmatprep.subr.mxu0 %v3446
      %3714 = vmatpush2.msra.mxu0 %v3445
      %3715 = vmatprep.subr.mxu0 %v3444
      %3716 = vmatpush2.msra.mxu0 %v3443
      %3717 = vmatprep.subr.mxu0 %v3442
      %3718 = vmatpush2.msra.mxu0 %v3441
      %3719 = vmatprep.subr.mxu0 %v3440
      %3720 = vmatpush2.msra.mxu0 %v3439
      %3721 = vmatprep.subr.mxu0 %v3438
      %3722 = vmatpush2.msra.mxu0 %v3437
      %3723 = vmatprep.subr.mxu0 %v3436
      %3724 = vmatpush2.msra.mxu0 %v3435
      %3725 = vmatprep.subr.mxu0 %v3434
      %3726 = vmatpush2.msra.mxu0 %v3433
      %3727 = vmatprep.subr.mxu0 %v3432
      %3728 = vmatpush2.msra.mxu0 %v3431
      %3729 = vmatprep.subr.mxu0 %v3430
      %3730 = vmatpush2.msra.mxu0 %v3429
      %3731 = vmatprep.mubr.f32.mxu0 %v960
      %3732 = vmatmul.mubr.f32.gmra.mxu0 %v959
      %v3733 = vpop.f32.mrf.mxu0
      %v3734 = vadd.f32 %v3663, %v3733
      %v3735 = vpop.f32.mrf.mxu0
      %v3736 = vadd.f32 %v3665, %v3735
      %3737 = vdwg.mxu0
      %3738 = vmatprep.subr.mxu0 %v3492
      %3739 = vmatpush1.msra.mxu0 %v3491
      %3740 = vmatprep.subr.mxu0 %v3490
      %3741 = vmatpush1.msra.mxu0 %v3489
      %3742 = vmatprep.subr.mxu0 %v3488
      %3743 = vmatpush1.msra.mxu0 %v3487
      %3744 = vmatprep.subr.mxu0 %v3486
      %3745 = vmatpush1.msra.mxu0 %v3485
      %3746 = vmatprep.subr.mxu0 %v3484
      %3747 = vmatpush1.msra.mxu0 %v3483
      %3748 = vmatprep.subr.mxu0 %v3482
      %3749 = vmatpush1.msra.mxu0 %v3481
      %3750 = vmatprep.subr.mxu0 %v3480
      %3751 = vmatpush1.msra.mxu0 %v3479
      %3752 = vmatprep.subr.mxu0 %v3478
      %3753 = vmatpush1.msra.mxu0 %v3477
      %3754 = vmatprep.subr.mxu0 %v3476
      %3755 = vmatpush1.msra.mxu0 %v3475
      %3756 = vmatprep.subr.mxu0 %v3474
      %3757 = vmatpush1.msra.mxu0 %v3473
      %3758 = vmatprep.subr.mxu0 %v3472
      %3759 = vmatpush1.msra.mxu0 %v3471
      %3760 = vmatprep.subr.mxu0 %v3470
      %3761 = vmatpush1.msra.mxu0 %v3469
      %3762 = vmatprep.subr.mxu0 %v3468
      %3763 = vmatpush1.msra.mxu0 %v3467
      %3764 = vmatprep.subr.mxu0 %v3466
      %3765 = vmatpush1.msra.mxu0 %v3465
      %3766 = vmatprep.subr.mxu0 %v3464
      %3767 = vmatpush1.msra.mxu0 %v3463
      %3768 = vmatprep.subr.mxu0 %v3462
      %3769 = vmatpush1.msra.mxu0 %v3461
      %3770 = vmatprep.subr.mxu0 %v3524
      %3771 = vmatpush2.msra.mxu0 %v3523
      %3772 = vmatprep.subr.mxu0 %v3522
      %3773 = vmatpush2.msra.mxu0 %v3521
      %3774 = vmatprep.subr.mxu0 %v3520
      %3775 = vmatpush2.msra.mxu0 %v3519
      %3776 = vmatprep.subr.mxu0 %v3518
      %3777 = vmatpush2.msra.mxu0 %v3517
      %3778 = vmatprep.subr.mxu0 %v3516
      %3779 = vmatpush2.msra.mxu0 %v3515
      %3780 = vmatprep.subr.mxu0 %v3514
      %3781 = vmatpush2.msra.mxu0 %v3513
      %3782 = vmatprep.subr.mxu0 %v3512
      %3783 = vmatpush2.msra.mxu0 %v3511
      %3784 = vmatprep.subr.mxu0 %v3510
      %3785 = vmatpush2.msra.mxu0 %v3509
      %3786 = vmatprep.subr.mxu0 %v3508
      %3787 = vmatpush2.msra.mxu0 %v3507
      %3788 = vmatprep.subr.mxu0 %v3506
      %3789 = vmatpush2.msra.mxu0 %v3505
      %3790 = vmatprep.subr.mxu0 %v3504
      %3791 = vmatpush2.msra.mxu0 %v3503
      %3792 = vmatprep.subr.mxu0 %v3502
      %3793 = vmatpush2.msra.mxu0 %v3501
      %3794 = vmatprep.subr.mxu0 %v3500
      %3795 = vmatpush2.msra.mxu0 %v3499
      %3796 = vmatprep.subr.mxu0 %v3498
      %3797 = vmatpush2.msra.mxu0 %v3497
      %3798 = vmatprep.subr.mxu0 %v3496
      %3799 = vmatpush2.msra.mxu0 %v3495
      %3800 = vmatprep.subr.mxu0 %v3494
      %3801 = vmatpush2.msra.mxu0 %v3493
      %3802 = vmatprep.mubr.f32.mxu0 %v962
      %3803 = vmatmul.mubr.f32.gmra.mxu0 %v961
      %v3804 = vpop.f32.mrf.mxu0
      %v3805 = vadd.f32 %v3734, %v3804
      %v3806 = vpop.f32.mrf.mxu0
      %v3807 = vadd.f32 %v3736, %v3806
      %3808 = vdwg.mxu0
      %v3809 = vld [vmem:[%s7] sm:$0xff]
      %3810 = vset.pattern.permute.xlu0 6
      %3811 = vperm.xlu0 %3810, %v963
      %v3812 = vpop.permute.xlu0 %3811
      %vm3814 = vcmask 64512
      %v3816 = vsel %vm3814, %v3809, 0
      %3818 = vmatprep.subr.mxu0 0.0
      %3819 = vmatpush1.msra.mxu0 0.0
      %3820 = vmatprep.subr.mxu0 0.0
      %3821 = vmatpush1.msra.mxu0 0.0
      %3822 = vmatprep.subr.mxu0 0.0
      %3823 = vmatpush1.msra.mxu0 0.0
      %3824 = vmatprep.subr.mxu0 0.0
      %3825 = vmatpush1.msra.mxu0 0.0
      %3826 = vmatprep.subr.mxu0 0.0
      %3827 = vmatpush1.msra.mxu0 0.0
      %3828 = vmatprep.subr.mxu0 0.0
      %3829 = vmatpush1.msra.mxu0 0.0
      %3830 = vmatprep.subr.mxu0 0.0
      %3831 = vmatpush1.msra.mxu0 0.0
      %3832 = vmatprep.subr.mxu0 0.0
      %3833 = vmatpush1.msra.mxu0 0.0
      %3834 = vmatprep.subr.mxu0 0.0
      %3835 = vmatpush1.msra.mxu0 0.0
      %3836 = vmatprep.subr.mxu0 0.0
      %3837 = vmatpush1.msra.mxu0 0.0
      %3838 = vmatprep.subr.mxu0 0.0
      %3839 = vmatpush1.msra.mxu0 0.0
      %3840 = vmatprep.subr.mxu0 0.0
      %3841 = vmatpush1.msra.mxu0 0.0
      %3842 = vmatprep.subr.mxu0 0.0
      %3843 = vmatpush1.msra.mxu0 0.0
      %3844 = vmatprep.subr.mxu0 0.0
      %3845 = vmatpush1.msra.mxu0 0.0
      %3846 = vmatprep.subr.mxu0 0.0
      %3847 = vmatpush1.msra.mxu0 0.0
      %3848 = vmatprep.subr.mxu0 %v3807
      %3849 = vmatpush1.msra.mxu0 %v3805
      %3850 = vmatprep.subr.mxu0 0.0
      %3851 = vmatpush2.msra.mxu0 0.0
      %3852 = vmatprep.subr.mxu0 0.0
      %3853 = vmatpush2.msra.mxu0 0.0
      %3854 = vmatprep.subr.mxu0 0.0
      %3855 = vmatpush2.msra.mxu0 0.0
      %3856 = vmatprep.subr.mxu0 0.0
      %3857 = vmatpush2.msra.mxu0 0.0
      %3858 = vmatprep.subr.mxu0 0.0
      %3859 = vmatpush2.msra.mxu0 0.0
      %3860 = vmatprep.subr.mxu0 0.0
      %3861 = vmatpush2.msra.mxu0 0.0
      %3862 = vmatprep.subr.mxu0 0.0
      %3863 = vmatpush2.msra.mxu0 0.0
      %3864 = vmatprep.subr.mxu0 0.0
      %3865 = vmatpush2.msra.mxu0 0.0
      %3866 = vmatprep.subr.mxu0 0.0
      %3867 = vmatpush2.msra.mxu0 0.0
      %3868 = vmatprep.subr.mxu0 0.0
      %3869 = vmatpush2.msra.mxu0 0.0
      %3870 = vmatprep.subr.mxu0 0.0
      %3871 = vmatpush2.msra.mxu0 0.0
      %3872 = vmatprep.subr.mxu0 0.0
      %3873 = vmatpush2.msra.mxu0 0.0
      %3874 = vmatprep.subr.mxu0 0.0
      %3875 = vmatpush2.msra.mxu0 0.0
      %3876 = vmatprep.subr.mxu0 0.0
      %3877 = vmatpush2.msra.mxu0 0.0
      %3878 = vmatprep.subr.mxu0 0.0
      %3879 = vmatpush2.msra.mxu0 0.0
      %3880 = vmatprep.subr.mxu0 0.0
      %3881 = vmatpush2.msra.mxu0 0.0
      %3882 = vmatprep.mubr.f32.mxu0 0.0
      %3883 = vmatmul.mubr.f32.gmra.mxu0 %v3816
      %v3884 = vpop.f32.mrf.mxu0
      %v3885 = vadd.f32 %v3812, %v3884
      %v3886 = vpop.f32.mrf.mxu0
      %v3887 = vadd.f32 %v3812, %v3886
      %3888 = vdwg.mxu0
      %v3889 = vadd.f32 %v3267, %v3885
      %v3890 = vadd.f32 %v3268, %v3887
      %vm3891 = vcmp.ge.f32.partialorder %v3889, 0.0
      %vm3892 = vcmp.ge.f32.partialorder %v3890, 0.0
      %v3893 = vmul.f32 %v3889, 0.01
      %v3894 = vmul.f32 %v3890, 0.01
      %v3895 = vsel %vm3891, %v3889, %v3893
      %v3896 = vsel %vm3892, %v3890, %v3894
      %v3897 = vld [vmem:[%s23] sm:$0xff]
      %v3898 = vld [vmem:[%s25] sm:$0xff]
      %v3899 = vld [vmem:[%s25 + $0x8] sm:$0xff]
      %v3900 = vld [vmem:[%s25 + $0x10] sm:$0xff]
      %v3901 = vld [vmem:[%s25 + $0x18] sm:$0xff]
      %v3902 = vld [vmem:[%s25 + $0x20] sm:$0xff]
      %v3903 = vld [vmem:[%s25 + $0x28] sm:$0xff]
      %v3904 = vld [vmem:[%s25 + $0x30] sm:$0xff]
      %v3905 = vld [vmem:[%s25 + $0x38] sm:$0xff]
      %v3906 = vld [vmem:[%s25 + $0x40] sm:$0xff]
      %v3907 = vld [vmem:[%s25 + $0x48] sm:$0xff]
      %v3908 = vld [vmem:[%s25 + $0x50] sm:$0xff]
      %v3909 = vld [vmem:[%s25 + $0x58] sm:$0xff]
      %v3910 = vld [vmem:[%s25 + $0x60] sm:$0xff]
      %v3911 = vld [vmem:[%s25 + $0x68] sm:$0xff]
      %v3912 = vld [vmem:[%s25 + $0x70] sm:$0xff]
      %v3913 = vld [vmem:[%s25 + $0x78] sm:$0xff]
      %v3914 = vld [vmem:[%s25 + $0x80] sm:$0xff]
      %v3915 = vld [vmem:[%s25 + $0x88] sm:$0xff]
      %v3916 = vld [vmem:[%s25 + $0x90] sm:$0xff]
      %v3917 = vld [vmem:[%s25 + $0x98] sm:$0xff]
      %v3918 = vld [vmem:[%s25 + $0xa0] sm:$0xff]
      %v3919 = vld [vmem:[%s25 + $0xa8] sm:$0xff]
      %v3920 = vld [vmem:[%s25 + $0xb0] sm:$0xff]
      %v3921 = vld [vmem:[%s25 + $0xb8] sm:$0xff]
      %v3922 = vld [vmem:[%s25 + $0xc0] sm:$0xff]
      %v3923 = vld [vmem:[%s25 + $0xc8] sm:$0xff]
      %v3924 = vld [vmem:[%s25 + $0xd0] sm:$0xff]
      %v3925 = vld [vmem:[%s25 + $0xd8] sm:$0xff]
      %v3926 = vld [vmem:[%s25 + $0xe0] sm:$0xff]
      %v3927 = vld [vmem:[%s25 + $0xe8] sm:$0xff]
      %v3928 = vld [vmem:[%s25 + $0xf0] sm:$0xff]
      %v3929 = vld [vmem:[%s25 + $0xf8] sm:$0xff]
      %v3930 = vld [vmem:[%s25 + $0x100] sm:$0xff]
      %v3931 = vld [vmem:[%s25 + $0x108] sm:$0xff]
      %v3932 = vld [vmem:[%s25 + $0x110] sm:$0xff]
      %v3933 = vld [vmem:[%s25 + $0x118] sm:$0xff]
      %v3934 = vld [vmem:[%s25 + $0x120] sm:$0xff]
      %v3935 = vld [vmem:[%s25 + $0x128] sm:$0xff]
      %v3936 = vld [vmem:[%s25 + $0x130] sm:$0xff]
      %v3937 = vld [vmem:[%s25 + $0x138] sm:$0xff]
      %v3938 = vld [vmem:[%s25 + $0x140] sm:$0xff]
      %v3939 = vld [vmem:[%s25 + $0x148] sm:$0xff]
      %v3940 = vld [vmem:[%s25 + $0x150] sm:$0xff]
      %v3941 = vld [vmem:[%s25 + $0x158] sm:$0xff]
      %v3942 = vld [vmem:[%s25 + $0x160] sm:$0xff]
      %v3943 = vld [vmem:[%s25 + $0x168] sm:$0xff]
      %v3944 = vld [vmem:[%s25 + $0x170] sm:$0xff]
      %v3945 = vld [vmem:[%s25 + $0x178] sm:$0xff]
      %v3946 = vld [vmem:[%s25 + $0x180] sm:$0xff]
      %v3947 = vld [vmem:[%s25 + $0x188] sm:$0xff]
      %v3948 = vld [vmem:[%s25 + $0x190] sm:$0xff]
      %v3949 = vld [vmem:[%s25 + $0x198] sm:$0xff]
      %v3950 = vld [vmem:[%s25 + $0x1a0] sm:$0xff]
      %v3951 = vld [vmem:[%s25 + $0x1a8] sm:$0xff]
      %v3952 = vld [vmem:[%s25 + $0x1b0] sm:$0xff]
      %v3953 = vld [vmem:[%s25 + $0x1b8] sm:$0xff]
      %v3954 = vld [vmem:[%s25 + $0x1c0] sm:$0xff]
      %v3955 = vld [vmem:[%s25 + $0x1c8] sm:$0xff]
      %v3956 = vld [vmem:[%s25 + $0x1d0] sm:$0xff]
      %v3957 = vld [vmem:[%s25 + $0x1d8] sm:$0xff]
      %v3958 = vld [vmem:[%s25 + $0x1e0] sm:$0xff]
      %v3959 = vld [vmem:[%s25 + $0x1e8] sm:$0xff]
      %v3960 = vld [vmem:[%s25 + $0x1f0] sm:$0xff]
      %v3961 = vld [vmem:[%s25 + $0x1f8] sm:$0xff]
      %3962 = vmatprep.subr.mxu0 %v3929
      %3963 = vmatpush1.msra.mxu0 %v3928
      %3964 = vmatprep.subr.mxu0 %v3927
      %3965 = vmatpush1.msra.mxu0 %v3926
      %3966 = vmatprep.subr.mxu0 %v3925
      %3967 = vmatpush1.msra.mxu0 %v3924
      %3968 = vmatprep.subr.mxu0 %v3923
      %3969 = vmatpush1.msra.mxu0 %v3922
      %3970 = vmatprep.subr.mxu0 %v3921
      %3971 = vmatpush1.msra.mxu0 %v3920
      %3972 = vmatprep.subr.mxu0 %v3919
      %3973 = vmatpush1.msra.mxu0 %v3918
      %3974 = vmatprep.subr.mxu0 %v3917
      %3975 = vmatpush1.msra.mxu0 %v3916
      %3976 = vmatprep.subr.mxu0 %v3915
      %3977 = vmatpush1.msra.mxu0 %v3914
      %3978 = vmatprep.subr.mxu0 %v3913
      %3979 = vmatpush1.msra.mxu0 %v3912
      %3980 = vmatprep.subr.mxu0 %v3911
      %3981 = vmatpush1.msra.mxu0 %v3910
      %3982 = vmatprep.subr.mxu0 %v3909
      %3983 = vmatpush1.msra.mxu0 %v3908
      %3984 = vmatprep.subr.mxu0 %v3907
      %3985 = vmatpush1.msra.mxu0 %v3906
      %3986 = vmatprep.subr.mxu0 %v3905
      %3987 = vmatpush1.msra.mxu0 %v3904
      %3988 = vmatprep.subr.mxu0 %v3903
      %3989 = vmatpush1.msra.mxu0 %v3902
      %3990 = vmatprep.subr.mxu0 %v3901
      %3991 = vmatpush1.msra.mxu0 %v3900
      %3992 = vmatprep.subr.mxu0 %v3899
      %3993 = vmatpush1.msra.mxu0 %v3898
      %3994 = vmatprep.subr.mxu0 %v3961
      %3995 = vmatpush2.msra.mxu0 %v3960
      %3996 = vmatprep.subr.mxu0 %v3959
      %3997 = vmatpush2.msra.mxu0 %v3958
      %3998 = vmatprep.subr.mxu0 %v3957
      %3999 = vmatpush2.msra.mxu0 %v3956
      %4000 = vmatprep.subr.mxu0 %v3955
      %4001 = vmatpush2.msra.mxu0 %v3954
      %4002 = vmatprep.subr.mxu0 %v3953
      %4003 = vmatpush2.msra.mxu0 %v3952
      %4004 = vmatprep.subr.mxu0 %v3951
      %4005 = vmatpush2.msra.mxu0 %v3950
      %4006 = vmatprep.subr.mxu0 %v3949
      %4007 = vmatpush2.msra.mxu0 %v3948
      %4008 = vmatprep.subr.mxu0 %v3947
      %4009 = vmatpush2.msra.mxu0 %v3946
      %4010 = vmatprep.subr.mxu0 %v3945
      %4011 = vmatpush2.msra.mxu0 %v3944
      %4012 = vmatprep.subr.mxu0 %v3943
      %4013 = vmatpush2.msra.mxu0 %v3942
      %4014 = vmatprep.subr.mxu0 %v3941
      %4015 = vmatpush2.msra.mxu0 %v3940
      %4016 = vmatprep.subr.mxu0 %v3939
      %4017 = vmatpush2.msra.mxu0 %v3938
      %4018 = vmatprep.subr.mxu0 %v3937
      %4019 = vmatpush2.msra.mxu0 %v3936
      %4020 = vmatprep.subr.mxu0 %v3935
      %4021 = vmatpush2.msra.mxu0 %v3934
      %4022 = vmatprep.subr.mxu0 %v3933
      %4023 = vmatpush2.msra.mxu0 %v3932
      %4024 = vmatprep.subr.mxu0 %v3931
      %4025 = vmatpush2.msra.mxu0 %v3930
      %4026 = vmatprep.mubr.f32.mxu0 %v3896
      %4027 = vmatmul.mubr.f32.gmra.mxu0 %v3895
      %v4028 = vpop.f32.mrf.mxu0
      %v4029 = vadd.f32 0.0, %v4028
      %v4030 = vpop.f32.mrf.mxu0
      %v4031 = vadd.f32 0.0, %v4030
      %4032 = vdwg.mxu0
      %v4033 = vld [vmem:[%s17] sm:$0xff]
      %4036 = vrot.lane.b32.xlu0 %v4029, 127
      %v4037 = vpop.permute.xlu0 %4036
      %4038 = vrot.lane.b32.xlu0 %v4031, 127
      %v4039 = vpop.permute.xlu0 %4038
      %v4040 = vsel %vm2468, %v4037, %v4039
      %4042 = vrot.lane.b32.xlu0 %v4029, 126
      %v4043 = vpop.permute.xlu0 %4042
      %4044 = vrot.lane.b32.xlu0 %v4031, 126
      %v4045 = vpop.permute.xlu0 %4044
      %v4046 = vsel %vm2487, %v4043, %v4045
      %4049 = vset.pattern.permute.xlu0 0
      %4050 = vperm.xlu0 %4049, %v3897
      %v4051 = vpop.permute.xlu0 %4050
      %v4054 = vsel %vm2501, %v4033, 0
      %4056 = vmatprep.subr.mxu0 0.0
      %4057 = vmatpush1.msra.mxu0 0.0
      %4058 = vmatprep.subr.mxu0 0.0
      %4059 = vmatpush1.msra.mxu0 0.0
      %4060 = vmatprep.subr.mxu0 0.0
      %4061 = vmatpush1.msra.mxu0 0.0
      %4062 = vmatprep.subr.mxu0 0.0
      %4063 = vmatpush1.msra.mxu0 0.0
      %4064 = vmatprep.subr.mxu0 0.0
      %4065 = vmatpush1.msra.mxu0 0.0
      %4066 = vmatprep.subr.mxu0 0.0
      %4067 = vmatpush1.msra.mxu0 0.0
      %4068 = vmatprep.subr.mxu0 0.0
      %4069 = vmatpush1.msra.mxu0 0.0
      %4070 = vmatprep.subr.mxu0 0.0
      %4071 = vmatpush1.msra.mxu0 0.0
      %4072 = vmatprep.subr.mxu0 0.0
      %4073 = vmatpush1.msra.mxu0 0.0
      %4074 = vmatprep.subr.mxu0 0.0
      %4075 = vmatpush1.msra.mxu0 0.0
      %4076 = vmatprep.subr.mxu0 0.0
      %4077 = vmatpush1.msra.mxu0 0.0
      %4078 = vmatprep.subr.mxu0 0.0
      %4079 = vmatpush1.msra.mxu0 0.0
      %4080 = vmatprep.subr.mxu0 0.0
      %4081 = vmatpush1.msra.mxu0 0.0
      %4082 = vmatprep.subr.mxu0 0.0
      %4083 = vmatpush1.msra.mxu0 %v4046
      %4084 = vmatprep.subr.mxu0 0.0
      %4085 = vmatpush1.msra.mxu0 %v4040
      %4086 = vmatprep.subr.mxu0 0.0
      %4087 = vmatpush1.msra.mxu0 %v4029
      %4088 = vmatprep.subr.mxu0 0.0
      %4089 = vmatpush2.msra.mxu0 0.0
      %4090 = vmatprep.subr.mxu0 0.0
      %4091 = vmatpush2.msra.mxu0 0.0
      %4092 = vmatprep.subr.mxu0 0.0
      %4093 = vmatpush2.msra.mxu0 0.0
      %4094 = vmatprep.subr.mxu0 0.0
      %4095 = vmatpush2.msra.mxu0 0.0
      %4096 = vmatprep.subr.mxu0 0.0
      %4097 = vmatpush2.msra.mxu0 0.0
      %4098 = vmatprep.subr.mxu0 0.0
      %4099 = vmatpush2.msra.mxu0 0.0
      %4100 = vmatprep.subr.mxu0 0.0
      %4101 = vmatpush2.msra.mxu0 0.0
      %4102 = vmatprep.subr.mxu0 0.0
      %4103 = vmatpush2.msra.mxu0 0.0
      %4104 = vmatprep.subr.mxu0 0.0
      %4105 = vmatpush2.msra.mxu0 0.0
      %4106 = vmatprep.subr.mxu0 0.0
      %4107 = vmatpush2.msra.mxu0 0.0
      %4108 = vmatprep.subr.mxu0 0.0
      %4109 = vmatpush2.msra.mxu0 0.0
      %4110 = vmatprep.subr.mxu0 0.0
      %4111 = vmatpush2.msra.mxu0 0.0
      %4112 = vmatprep.subr.mxu0 0.0
      %4113 = vmatpush2.msra.mxu0 0.0
      %4114 = vmatprep.subr.mxu0 0.0
      %4115 = vmatpush2.msra.mxu0 0.0
      %4116 = vmatprep.subr.mxu0 0.0
      %4117 = vmatpush2.msra.mxu0 0.0
      %4118 = vmatprep.subr.mxu0 0.0
      %4119 = vmatpush2.msra.mxu0 0.0
      %4120 = vmatprep.mubr.f32.mxu0 0.0
      %4121 = vmatmul.mubr.f32.gmra.mxu0 %v4054
      %v4122 = vpop.f32.mrf.mxu0
      %v4123 = vadd.f32 %v4051, %v4122
      %v4124 = vpop.f32.mrf.mxu0
      %4125 = vdwg.mxu0
      %vm4126 = vcmp.ge.f32.partialorder %v4123, 0.0
      %v4127 = vmul.f32 %v4123, 0.01
      %v4128 = vsel %vm4126, %v4123, %v4127
      %4129 = vset.pattern.permute.xlu0 1
      %4130 = vperm.xlu0 %4129, %v3897
      %v4131 = vpop.permute.xlu0 %4130
      %v4133 = vmul.f32 %v4128, %v4131
      %4134 = vset.pattern.permute.xlu0 2
      %4135 = vperm.xlu0 %4134, %v3897
      %v4136 = vpop.permute.xlu0 %4135
      %v4138 = vadd.f32 %v4133, %v4136
      %v4139 = vld [vmem:[%s27] sm:$0xff]
      %v4140 = vld [vmem:[%s27 + $0x8] sm:$0xff]
      %v4141 = vld [vmem:[%s27 + $0x10] sm:$0xff]
      %v4142 = vld [vmem:[%s27 + $0x18] sm:$0xff]
      %v4143 = vld [vmem:[%s27 + $0x20] sm:$0xff]
      %v4144 = vld [vmem:[%s27 + $0x28] sm:$0xff]
      %v4145 = vld [vmem:[%s27 + $0x30] sm:$0xff]
      %v4146 = vld [vmem:[%s27 + $0x38] sm:$0xff]
      %v4147 = vld [vmem:[%s27 + $0x40] sm:$0xff]
      %v4148 = vld [vmem:[%s27 + $0x48] sm:$0xff]
      %v4149 = vld [vmem:[%s27 + $0x50] sm:$0xff]
      %v4150 = vld [vmem:[%s27 + $0x58] sm:$0xff]
      %v4151 = vld [vmem:[%s27 + $0x60] sm:$0xff]
      %v4152 = vld [vmem:[%s27 + $0x68] sm:$0xff]
      %v4153 = vld [vmem:[%s27 + $0x70] sm:$0xff]
      %v4154 = vld [vmem:[%s27 + $0x78] sm:$0xff]
      %4155 = vmatprep.subr.mxu0 0.0
      %4156 = vmatpush1.msra.mxu0 %v4154
      %4157 = vmatprep.subr.mxu0 0.0
      %4158 = vmatpush1.msra.mxu0 %v4153
      %4159 = vmatprep.subr.mxu0 0.0
      %4160 = vmatpush1.msra.mxu0 %v4152
      %4161 = vmatprep.subr.mxu0 0.0
      %4162 = vmatpush1.msra.mxu0 %v4151
      %4163 = vmatprep.subr.mxu0 0.0
      %4164 = vmatpush1.msra.mxu0 %v4150
      %4165 = vmatprep.subr.mxu0 0.0
      %4166 = vmatpush1.msra.mxu0 %v4149
      %4167 = vmatprep.subr.mxu0 0.0
      %4168 = vmatpush1.msra.mxu0 %v4148
      %4169 = vmatprep.subr.mxu0 0.0
      %4170 = vmatpush1.msra.mxu0 %v4147
      %4171 = vmatprep.subr.mxu0 0.0
      %4172 = vmatpush1.msra.mxu0 %v4146
      %4173 = vmatprep.subr.mxu0 0.0
      %4174 = vmatpush1.msra.mxu0 %v4145
      %4175 = vmatprep.subr.mxu0 0.0
      %4176 = vmatpush1.msra.mxu0 %v4144
      %4177 = vmatprep.subr.mxu0 0.0
      %4178 = vmatpush1.msra.mxu0 %v4143
      %4179 = vmatprep.subr.mxu0 0.0
      %4180 = vmatpush1.msra.mxu0 %v4142
      %4181 = vmatprep.subr.mxu0 0.0
      %4182 = vmatpush1.msra.mxu0 %v4141
      %4183 = vmatprep.subr.mxu0 0.0
      %4184 = vmatpush1.msra.mxu0 %v4140
      %4185 = vmatprep.subr.mxu0 0.0
      %4186 = vmatpush1.msra.mxu0 %v4139
      %4187 = vmatprep.subr.mxu0 0.0
      %4188 = vmatpush2.msra.mxu0 0.0
      %4189 = vmatprep.subr.mxu0 0.0
      %4190 = vmatpush2.msra.mxu0 0.0
      %4191 = vmatprep.subr.mxu0 0.0
      %4192 = vmatpush2.msra.mxu0 0.0
      %4193 = vmatprep.subr.mxu0 0.0
      %4194 = vmatpush2.msra.mxu0 0.0
      %4195 = vmatprep.subr.mxu0 0.0
      %4196 = vmatpush2.msra.mxu0 0.0
      %4197 = vmatprep.subr.mxu0 0.0
      %4198 = vmatpush2.msra.mxu0 0.0
      %4199 = vmatprep.subr.mxu0 0.0
      %4200 = vmatpush2.msra.mxu0 0.0
      %4201 = vmatprep.subr.mxu0 0.0
      %4202 = vmatpush2.msra.mxu0 0.0
      %4203 = vmatprep.subr.mxu0 0.0
      %4204 = vmatpush2.msra.mxu0 0.0
      %4205 = vmatprep.subr.mxu0 0.0
      %4206 = vmatpush2.msra.mxu0 0.0
      %4207 = vmatprep.subr.mxu0 0.0
      %4208 = vmatpush2.msra.mxu0 0.0
      %4209 = vmatprep.subr.mxu0 0.0
      %4210 = vmatpush2.msra.mxu0 0.0
      %4211 = vmatprep.subr.mxu0 0.0
      %4212 = vmatpush2.msra.mxu0 0.0
      %4213 = vmatprep.subr.mxu0 0.0
      %4214 = vmatpush2.msra.mxu0 0.0
      %4215 = vmatprep.subr.mxu0 0.0
      %4216 = vmatpush2.msra.mxu0 0.0
      %4217 = vmatprep.subr.mxu0 0.0
      %4218 = vmatpush2.msra.mxu0 0.0
      %4219 = vmatprep.mubr.f32.mxu0 0.0
      %4220 = vmatmul.mubr.f32.gmra.mxu0 %v4138
      %v4221 = vpop.f32.mrf.mxu0
      %v4222 = vadd.f32 0.0, %v4221
      %v4223 = vpop.f32.mrf.mxu0
      %4224 = vdwg.mxu0
      %v4225 = vld [vmem:[%s19] sm:$0xff]
      %4227 = vrot.lane.b32.xlu0 %v4222, 127
      %v4228 = vpop.permute.xlu0 %4227
      %4230 = vrot.lane.b32.xlu0 %v4222, 126
      %v4231 = vpop.permute.xlu0 %4230
      %4233 = vset.pattern.permute.xlu0 3
      %4234 = vperm.xlu0 %4233, %v3897
      %v4235 = vpop.permute.xlu0 %4234
      %v4238 = vsel %vm2501, %v4225, 0
      %4240 = vmatprep.subr.mxu0 0.0
      %4241 = vmatpush1.msra.mxu0 0.0
      %4242 = vmatprep.subr.mxu0 0.0
      %4243 = vmatpush1.msra.mxu0 0.0
      %4244 = vmatprep.subr.mxu0 0.0
      %4245 = vmatpush1.msra.mxu0 0.0
      %4246 = vmatprep.subr.mxu0 0.0
      %4247 = vmatpush1.msra.mxu0 0.0
      %4248 = vmatprep.subr.mxu0 0.0
      %4249 = vmatpush1.msra.mxu0 0.0
      %4250 = vmatprep.subr.mxu0 0.0
      %4251 = vmatpush1.msra.mxu0 0.0
      %4252 = vmatprep.subr.mxu0 0.0
      %4253 = vmatpush1.msra.mxu0 0.0
      %4254 = vmatprep.subr.mxu0 0.0
      %4255 = vmatpush1.msra.mxu0 0.0
      %4256 = vmatprep.subr.mxu0 0.0
      %4257 = vmatpush1.msra.mxu0 0.0
      %4258 = vmatprep.subr.mxu0 0.0
      %4259 = vmatpush1.msra.mxu0 0.0
      %4260 = vmatprep.subr.mxu0 0.0
      %4261 = vmatpush1.msra.mxu0 0.0
      %4262 = vmatprep.subr.mxu0 0.0
      %4263 = vmatpush1.msra.mxu0 0.0
      %4264 = vmatprep.subr.mxu0 0.0
      %4265 = vmatpush1.msra.mxu0 0.0
      %4266 = vmatprep.subr.mxu0 0.0
      %4267 = vmatpush1.msra.mxu0 %v4231
      %4268 = vmatprep.subr.mxu0 0.0
      %4269 = vmatpush1.msra.mxu0 %v4228
      %4270 = vmatprep.subr.mxu0 0.0
      %4271 = vmatpush1.msra.mxu0 %v4222
      %4272 = vmatprep.subr.mxu0 0.0
      %4273 = vmatpush2.msra.mxu0 0.0
      %4274 = vmatprep.subr.mxu0 0.0
      %4275 = vmatpush2.msra.mxu0 0.0
      %4276 = vmatprep.subr.mxu0 0.0
      %4277 = vmatpush2.msra.mxu0 0.0
      %4278 = vmatprep.subr.mxu0 0.0
      %4279 = vmatpush2.msra.mxu0 0.0
      %4280 = vmatprep.subr.mxu0 0.0
      %4281 = vmatpush2.msra.mxu0 0.0
      %4282 = vmatprep.subr.mxu0 0.0
      %4283 = vmatpush2.msra.mxu0 0.0
      %4284 = vmatprep.subr.mxu0 0.0
      %4285 = vmatpush2.msra.mxu0 0.0
      %4286 = vmatprep.subr.mxu0 0.0
      %4287 = vmatpush2.msra.mxu0 0.0
      %4288 = vmatprep.subr.mxu0 0.0
      %4289 = vmatpush2.msra.mxu0 0.0
      %4290 = vmatprep.subr.mxu0 0.0
      %4291 = vmatpush2.msra.mxu0 0.0
      %4292 = vmatprep.subr.mxu0 0.0
      %4293 = vmatpush2.msra.mxu0 0.0
      %4294 = vmatprep.subr.mxu0 0.0
      %4295 = vmatpush2.msra.mxu0 0.0
      %4296 = vmatprep.subr.mxu0 0.0
      %4297 = vmatpush2.msra.mxu0 0.0
      %4298 = vmatprep.subr.mxu0 0.0
      %4299 = vmatpush2.msra.mxu0 0.0
      %4300 = vmatprep.subr.mxu0 0.0
      %4301 = vmatpush2.msra.mxu0 0.0
      %4302 = vmatprep.subr.mxu0 0.0
      %4303 = vmatpush2.msra.mxu0 0.0
      %4304 = vmatprep.mubr.f32.mxu0 0.0
      %4305 = vmatmul.mubr.f32.gmra.mxu0 %v4238
      %v4306 = vpop.f32.mrf.mxu0
      %v4307 = vadd.f32 %v4235, %v4306
      %v4308 = vpop.f32.mrf.mxu0
      %4309 = vdwg.mxu0
      %vm4310 = vcmp.ge.f32.partialorder %v4307, 0.0
      %v4311 = vmul.f32 %v4307, 0.01
      %v4312 = vsel %vm4310, %v4307, %v4311
      %4313 = vset.pattern.permute.xlu0 4
      %4314 = vperm.xlu0 %4313, %v3897
      %v4315 = vpop.permute.xlu0 %4314
      %v4317 = vmul.f32 %v4312, %v4315
      %4318 = vset.pattern.permute.xlu0 5
      %4319 = vperm.xlu0 %4318, %v3897
      %v4320 = vpop.permute.xlu0 %4319
      %v4322 = vadd.f32 %v4317, %v4320
      %v4323 = vld [vmem:[%s29] sm:$0xff]
      %v4324 = vld [vmem:[%s29 + $0x8] sm:$0xff]
      %v4325 = vld [vmem:[%s29 + $0x10] sm:$0xff]
      %v4326 = vld [vmem:[%s29 + $0x18] sm:$0xff]
      %v4327 = vld [vmem:[%s29 + $0x20] sm:$0xff]
      %v4328 = vld [vmem:[%s29 + $0x28] sm:$0xff]
      %v4329 = vld [vmem:[%s29 + $0x30] sm:$0xff]
      %v4330 = vld [vmem:[%s29 + $0x38] sm:$0xff]
      %v4331 = vld [vmem:[%s29 + $0x40] sm:$0xff]
      %v4332 = vld [vmem:[%s29 + $0x48] sm:$0xff]
      %v4333 = vld [vmem:[%s29 + $0x50] sm:$0xff]
      %v4334 = vld [vmem:[%s29 + $0x58] sm:$0xff]
      %v4335 = vld [vmem:[%s29 + $0x60] sm:$0xff]
      %v4336 = vld [vmem:[%s29 + $0x68] sm:$0xff]
      %v4337 = vld [vmem:[%s29 + $0x70] sm:$0xff]
      %v4338 = vld [vmem:[%s29 + $0x78] sm:$0xff]
      %v4339 = vld [vmem:[%s29 + $0x80] sm:$0xff]
      %v4340 = vld [vmem:[%s29 + $0x88] sm:$0xff]
      %v4341 = vld [vmem:[%s29 + $0x90] sm:$0xff]
      %v4342 = vld [vmem:[%s29 + $0x98] sm:$0xff]
      %v4343 = vld [vmem:[%s29 + $0xa0] sm:$0xff]
      %v4344 = vld [vmem:[%s29 + $0xa8] sm:$0xff]
      %v4345 = vld [vmem:[%s29 + $0xb0] sm:$0xff]
      %v4346 = vld [vmem:[%s29 + $0xb8] sm:$0xff]
      %v4347 = vld [vmem:[%s29 + $0xc0] sm:$0xff]
      %v4348 = vld [vmem:[%s29 + $0xc8] sm:$0xff]
      %v4349 = vld [vmem:[%s29 + $0xd0] sm:$0xff]
      %v4350 = vld [vmem:[%s29 + $0xd8] sm:$0xff]
      %v4351 = vld [vmem:[%s29 + $0xe0] sm:$0xff]
      %v4352 = vld [vmem:[%s29 + $0xe8] sm:$0xff]
      %v4353 = vld [vmem:[%s29 + $0xf0] sm:$0xff]
      %v4354 = vld [vmem:[%s29 + $0xf8] sm:$0xff]
      %4355 = vmatprep.subr.mxu0 0.0
      %4356 = vmatpush1.msra.mxu0 %v4338
      %4357 = vmatprep.subr.mxu0 0.0
      %4358 = vmatpush1.msra.mxu0 %v4337
      %4359 = vmatprep.subr.mxu0 0.0
      %4360 = vmatpush1.msra.mxu0 %v4336
      %4361 = vmatprep.subr.mxu0 0.0
      %4362 = vmatpush1.msra.mxu0 %v4335
      %4363 = vmatprep.subr.mxu0 0.0
      %4364 = vmatpush1.msra.mxu0 %v4334
      %4365 = vmatprep.subr.mxu0 0.0
      %4366 = vmatpush1.msra.mxu0 %v4333
      %4367 = vmatprep.subr.mxu0 0.0
      %4368 = vmatpush1.msra.mxu0 %v4332
      %4369 = vmatprep.subr.mxu0 0.0
      %4370 = vmatpush1.msra.mxu0 %v4331
      %4371 = vmatprep.subr.mxu0 0.0
      %4372 = vmatpush1.msra.mxu0 %v4330
      %4373 = vmatprep.subr.mxu0 0.0
      %4374 = vmatpush1.msra.mxu0 %v4329
      %4375 = vmatprep.subr.mxu0 0.0
      %4376 = vmatpush1.msra.mxu0 %v4328
      %4377 = vmatprep.subr.mxu0 0.0
      %4378 = vmatpush1.msra.mxu0 %v4327
      %4379 = vmatprep.subr.mxu0 0.0
      %4380 = vmatpush1.msra.mxu0 %v4326
      %4381 = vmatprep.subr.mxu0 0.0
      %4382 = vmatpush1.msra.mxu0 %v4325
      %4383 = vmatprep.subr.mxu0 0.0
      %4384 = vmatpush1.msra.mxu0 %v4324
      %4385 = vmatprep.subr.mxu0 0.0
      %4386 = vmatpush1.msra.mxu0 %v4323
      %4387 = vmatprep.subr.mxu0 0.0
      %4388 = vmatpush2.msra.mxu0 %v4354
      %4389 = vmatprep.subr.mxu0 0.0
      %4390 = vmatpush2.msra.mxu0 %v4353
      %4391 = vmatprep.subr.mxu0 0.0
      %4392 = vmatpush2.msra.mxu0 %v4352
      %4393 = vmatprep.subr.mxu0 0.0
      %4394 = vmatpush2.msra.mxu0 %v4351
      %4395 = vmatprep.subr.mxu0 0.0
      %4396 = vmatpush2.msra.mxu0 %v4350
      %4397 = vmatprep.subr.mxu0 0.0
      %4398 = vmatpush2.msra.mxu0 %v4349
      %4399 = vmatprep.subr.mxu0 0.0
      %4400 = vmatpush2.msra.mxu0 %v4348
      %4401 = vmatprep.subr.mxu0 0.0
      %4402 = vmatpush2.msra.mxu0 %v4347
      %4403 = vmatprep.subr.mxu0 0.0
      %4404 = vmatpush2.msra.mxu0 %v4346
      %4405 = vmatprep.subr.mxu0 0.0
      %4406 = vmatpush2.msra.mxu0 %v4345
      %4407 = vmatprep.subr.mxu0 0.0
      %4408 = vmatpush2.msra.mxu0 %v4344
      %4409 = vmatprep.subr.mxu0 0.0
      %4410 = vmatpush2.msra.mxu0 %v4343
      %4411 = vmatprep.subr.mxu0 0.0
      %4412 = vmatpush2.msra.mxu0 %v4342
      %4413 = vmatprep.subr.mxu0 0.0
      %4414 = vmatpush2.msra.mxu0 %v4341
      %4415 = vmatprep.subr.mxu0 0.0
      %4416 = vmatpush2.msra.mxu0 %v4340
      %4417 = vmatprep.subr.mxu0 0.0
      %4418 = vmatpush2.msra.mxu0 %v4339
      %4419 = vmatprep.mubr.f32.mxu0 %v3896
      %4420 = vmatmul.mubr.f32.gmra.mxu0 %v3895
      %v4421 = vpop.f32.mrf.mxu0
      %v4422 = vadd.f32 0.0, %v4421
      %v4423 = vpop.f32.mrf.mxu0
      %4424 = vdwg.mxu0
      %v4425 = vld [vmem:[%s21] sm:$0xff]
      %4426 = vset.pattern.permute.xlu0 6
      %4427 = vperm.xlu0 %4426, %v3897
      %v4428 = vpop.permute.xlu0 %4427
      %v4431 = vsel %vm3814, %v4425, 0
      %4433 = vmatprep.subr.mxu0 0.0
      %4434 = vmatpush1.msra.mxu0 0.0
      %4435 = vmatprep.subr.mxu0 0.0
      %4436 = vmatpush1.msra.mxu0 0.0
      %4437 = vmatprep.subr.mxu0 0.0
      %4438 = vmatpush1.msra.mxu0 0.0
      %4439 = vmatprep.subr.mxu0 0.0
      %4440 = vmatpush1.msra.mxu0 0.0
      %4441 = vmatprep.subr.mxu0 0.0
      %4442 = vmatpush1.msra.mxu0 0.0
      %4443 = vmatprep.subr.mxu0 0.0
      %4444 = vmatpush1.msra.mxu0 0.0
      %4445 = vmatprep.subr.mxu0 0.0
      %4446 = vmatpush1.msra.mxu0 0.0
      %4447 = vmatprep.subr.mxu0 0.0
      %4448 = vmatpush1.msra.mxu0 0.0
      %4449 = vmatprep.subr.mxu0 0.0
      %4450 = vmatpush1.msra.mxu0 0.0
      %4451 = vmatprep.subr.mxu0 0.0
      %4452 = vmatpush1.msra.mxu0 0.0
      %4453 = vmatprep.subr.mxu0 0.0
      %4454 = vmatpush1.msra.mxu0 0.0
      %4455 = vmatprep.subr.mxu0 0.0
      %4456 = vmatpush1.msra.mxu0 0.0
      %4457 = vmatprep.subr.mxu0 0.0
      %4458 = vmatpush1.msra.mxu0 0.0
      %4459 = vmatprep.subr.mxu0 0.0
      %4460 = vmatpush1.msra.mxu0 0.0
      %4461 = vmatprep.subr.mxu0 0.0
      %4462 = vmatpush1.msra.mxu0 0.0
      %4463 = vmatprep.subr.mxu0 0.0
      %4464 = vmatpush1.msra.mxu0 %v4422
      %4465 = vmatprep.subr.mxu0 0.0
      %4466 = vmatpush2.msra.mxu0 0.0
      %4467 = vmatprep.subr.mxu0 0.0
      %4468 = vmatpush2.msra.mxu0 0.0
      %4469 = vmatprep.subr.mxu0 0.0
      %4470 = vmatpush2.msra.mxu0 0.0
      %4471 = vmatprep.subr.mxu0 0.0
      %4472 = vmatpush2.msra.mxu0 0.0
      %4473 = vmatprep.subr.mxu0 0.0
      %4474 = vmatpush2.msra.mxu0 0.0
      %4475 = vmatprep.subr.mxu0 0.0
      %4476 = vmatpush2.msra.mxu0 0.0
      %4477 = vmatprep.subr.mxu0 0.0
      %4478 = vmatpush2.msra.mxu0 0.0
      %4479 = vmatprep.subr.mxu0 0.0
      %4480 = vmatpush2.msra.mxu0 0.0
      %4481 = vmatprep.subr.mxu0 0.0
      %4482 = vmatpush2.msra.mxu0 0.0
      %4483 = vmatprep.subr.mxu0 0.0
      %4484 = vmatpush2.msra.mxu0 0.0
      %4485 = vmatprep.subr.mxu0 0.0
      %4486 = vmatpush2.msra.mxu0 0.0
      %4487 = vmatprep.subr.mxu0 0.0
      %4488 = vmatpush2.msra.mxu0 0.0
      %4489 = vmatprep.subr.mxu0 0.0
      %4490 = vmatpush2.msra.mxu0 0.0
      %4491 = vmatprep.subr.mxu0 0.0
      %4492 = vmatpush2.msra.mxu0 0.0
      %4493 = vmatprep.subr.mxu0 0.0
      %4494 = vmatpush2.msra.mxu0 0.0
      %4495 = vmatprep.subr.mxu0 0.0
      %4496 = vmatpush2.msra.mxu0 0.0
      %4497 = vmatprep.mubr.f32.mxu0 0.0
      %4498 = vmatmul.mubr.f32.gmra.mxu0 %v4431
      %v4499 = vpop.f32.mrf.mxu0
      %v4500 = vadd.f32 %v4428, %v4499
      %v4501 = vpop.f32.mrf.mxu0
      %4502 = vdwg.mxu0
      %v4503 = vadd.f32 %v4322, %v4500
      %vm4504 = vcmp.ge.f32.partialorder %v4503, 0.0
      %v4505 = vmul.f32 %v4503, 0.01
      %v4506 = vsel %vm4504, %v4503, %v4505
      %v4507 = vld [vmem:[%s37] sm:$0xff]
      %v4508 = vld [vmem:[%s37 + $0x8] sm:$0xff]
      %v4509 = vld [vmem:[%s39] sm:$0xff]
      %v4510 = vld [vmem:[%s39 + $0x8] sm:$0xff]
      %v4511 = vld [vmem:[%s39 + $0x10] sm:$0xff]
      %v4512 = vld [vmem:[%s39 + $0x18] sm:$0xff]
      %v4513 = vld [vmem:[%s39 + $0x20] sm:$0xff]
      %v4514 = vld [vmem:[%s39 + $0x28] sm:$0xff]
      %v4515 = vld [vmem:[%s39 + $0x30] sm:$0xff]
      %v4516 = vld [vmem:[%s39 + $0x38] sm:$0xff]
      %vm4517 = vcmask 523264
      %v4519 = vsel %vm4517, %v4506, 0
      %4521 = vmatprep.subr.mxu0 0.0
      %4522 = vmatpush1.msra.mxu0 0.0
      %4523 = vmatprep.subr.mxu0 0.0
      %4524 = vmatpush1.msra.mxu0 0.0
      %4525 = vmatprep.subr.mxu0 0.0
      %4526 = vmatpush1.msra.mxu0 0.0
      %4527 = vmatprep.subr.mxu0 0.0
      %4528 = vmatpush1.msra.mxu0 0.0
      %4529 = vmatprep.subr.mxu0 0.0
      %4530 = vmatpush1.msra.mxu0 0.0
      %4531 = vmatprep.subr.mxu0 0.0
      %4532 = vmatpush1.msra.mxu0 0.0
      %4533 = vmatprep.subr.mxu0 0.0
      %4534 = vmatpush1.msra.mxu0 0.0
      %4535 = vmatprep.subr.mxu0 0.0
      %4536 = vmatpush1.msra.mxu0 0.0
      %4537 = vmatprep.subr.mxu0 0.0
      %4538 = vmatpush1.msra.mxu0 %v4516
      %4539 = vmatprep.subr.mxu0 0.0
      %4540 = vmatpush1.msra.mxu0 %v4515
      %4541 = vmatprep.subr.mxu0 0.0
      %4542 = vmatpush1.msra.mxu0 %v4514
      %4543 = vmatprep.subr.mxu0 0.0
      %4544 = vmatpush1.msra.mxu0 %v4513
      %4545 = vmatprep.subr.mxu0 0.0
      %4546 = vmatpush1.msra.mxu0 %v4512
      %4547 = vmatprep.subr.mxu0 0.0
      %4548 = vmatpush1.msra.mxu0 %v4511
      %4549 = vmatprep.subr.mxu0 0.0
      %4550 = vmatpush1.msra.mxu0 %v4510
      %4551 = vmatprep.subr.mxu0 0.0
      %4552 = vmatpush1.msra.mxu0 %v4509
      %4553 = vmatprep.subr.mxu0 0.0
      %4554 = vmatpush2.msra.mxu0 0.0
      %4555 = vmatprep.subr.mxu0 0.0
      %4556 = vmatpush2.msra.mxu0 0.0
      %4557 = vmatprep.subr.mxu0 0.0
      %4558 = vmatpush2.msra.mxu0 0.0
      %4559 = vmatprep.subr.mxu0 0.0
      %4560 = vmatpush2.msra.mxu0 0.0
      %4561 = vmatprep.subr.mxu0 0.0
      %4562 = vmatpush2.msra.mxu0 0.0
      %4563 = vmatprep.subr.mxu0 0.0
      %4564 = vmatpush2.msra.mxu0 0.0
      %4565 = vmatprep.subr.mxu0 0.0
      %4566 = vmatpush2.msra.mxu0 0.0
      %4567 = vmatprep.subr.mxu0 0.0
      %4568 = vmatpush2.msra.mxu0 0.0
      %4569 = vmatprep.subr.mxu0 0.0
      %4570 = vmatpush2.msra.mxu0 0.0
      %4571 = vmatprep.subr.mxu0 0.0
      %4572 = vmatpush2.msra.mxu0 0.0
      %4573 = vmatprep.subr.mxu0 0.0
      %4574 = vmatpush2.msra.mxu0 0.0
      %4575 = vmatprep.subr.mxu0 0.0
      %4576 = vmatpush2.msra.mxu0 0.0
      %4577 = vmatprep.subr.mxu0 0.0
      %4578 = vmatpush2.msra.mxu0 0.0
      %4579 = vmatprep.subr.mxu0 0.0
      %4580 = vmatpush2.msra.mxu0 0.0
      %4581 = vmatprep.subr.mxu0 0.0
      %4582 = vmatpush2.msra.mxu0 0.0
      %4583 = vmatprep.subr.mxu0 0.0
      %4584 = vmatpush2.msra.mxu0 0.0
      %4585 = vmatprep.mubr.f32.mxu0 0.0
      %4586 = vmatmul.mubr.f32.gmra.mxu0 %v4519
      %v4587 = vpop.f32.mrf.mxu0
      %v4588 = vadd.f32 0.0, %v4587
      %v4589 = vpop.f32.mrf.mxu0
      %4590 = vdwg.mxu0
      %v4591 = vld [vmem:[%s31] sm:$0xff]
      %v4592 = vld [vmem:[%s31 + $0x8] sm:$0xff]
      %4594 = vrot.lane.b32.xlu0 %v4588, 127
      %v4595 = vpop.permute.xlu0 %4594
      %4597 = vrot.lane.b32.xlu0 %v4588, 126
      %v4598 = vpop.permute.xlu0 %4597
      %4601 = vset.pattern.permute.xlu0 0
      %4602 = vperm.xlu0 %4601, %v4507
      %v4603 = vpop.permute.xlu0 %4602
      %4606 = vset.pattern.permute.xlu0 0
      %4607 = vperm.xlu0 %4606, %v4508
      %v4608 = vpop.permute.xlu0 %4607
      %v4611 = vsel %vm2501, %v4591, 0
      %v4614 = vsel %vm2501, %v4592, 0
      %4616 = vmatprep.subr.mxu0 0.0
      %4617 = vmatpush1.msra.mxu0 0.0
      %4618 = vmatprep.subr.mxu0 0.0
      %4619 = vmatpush1.msra.mxu0 0.0
      %4620 = vmatprep.subr.mxu0 0.0
      %4621 = vmatpush1.msra.mxu0 0.0
      %4622 = vmatprep.subr.mxu0 0.0
      %4623 = vmatpush1.msra.mxu0 0.0
      %4624 = vmatprep.subr.mxu0 0.0
      %4625 = vmatpush1.msra.mxu0 0.0
      %4626 = vmatprep.subr.mxu0 0.0
      %4627 = vmatpush1.msra.mxu0 0.0
      %4628 = vmatprep.subr.mxu0 0.0
      %4629 = vmatpush1.msra.mxu0 0.0
      %4630 = vmatprep.subr.mxu0 0.0
      %4631 = vmatpush1.msra.mxu0 0.0
      %4632 = vmatprep.subr.mxu0 0.0
      %4633 = vmatpush1.msra.mxu0 0.0
      %4634 = vmatprep.subr.mxu0 0.0
      %4635 = vmatpush1.msra.mxu0 0.0
      %4636 = vmatprep.subr.mxu0 0.0
      %4637 = vmatpush1.msra.mxu0 0.0
      %4638 = vmatprep.subr.mxu0 0.0
      %4639 = vmatpush1.msra.mxu0 0.0
      %4640 = vmatprep.subr.mxu0 0.0
      %4641 = vmatpush1.msra.mxu0 0.0
      %4642 = vmatprep.subr.mxu0 0.0
      %4643 = vmatpush1.msra.mxu0 %v4598
      %4644 = vmatprep.subr.mxu0 0.0
      %4645 = vmatpush1.msra.mxu0 %v4595
      %4646 = vmatprep.subr.mxu0 0.0
      %4647 = vmatpush1.msra.mxu0 %v4588
      %4648 = vmatprep.subr.mxu0 0.0
      %4649 = vmatpush2.msra.mxu0 0.0
      %4650 = vmatprep.subr.mxu0 0.0
      %4651 = vmatpush2.msra.mxu0 0.0
      %4652 = vmatprep.subr.mxu0 0.0
      %4653 = vmatpush2.msra.mxu0 0.0
      %4654 = vmatprep.subr.mxu0 0.0
      %4655 = vmatpush2.msra.mxu0 0.0
      %4656 = vmatprep.subr.mxu0 0.0
      %4657 = vmatpush2.msra.mxu0 0.0
      %4658 = vmatprep.subr.mxu0 0.0
      %4659 = vmatpush2.msra.mxu0 0.0
      %4660 = vmatprep.subr.mxu0 0.0
      %4661 = vmatpush2.msra.mxu0 0.0
      %4662 = vmatprep.subr.mxu0 0.0
      %4663 = vmatpush2.msra.mxu0 0.0
      %4664 = vmatprep.subr.mxu0 0.0
      %4665 = vmatpush2.msra.mxu0 0.0
      %4666 = vmatprep.subr.mxu0 0.0
      %4667 = vmatpush2.msra.mxu0 0.0
      %4668 = vmatprep.subr.mxu0 0.0
      %4669 = vmatpush2.msra.mxu0 0.0
      %4670 = vmatprep.subr.mxu0 0.0
      %4671 = vmatpush2.msra.mxu0 0.0
      %4672 = vmatprep.subr.mxu0 0.0
      %4673 = vmatpush2.msra.mxu0 0.0
      %4674 = vmatprep.subr.mxu0 0.0
      %4675 = vmatpush2.msra.mxu0 0.0
      %4676 = vmatprep.subr.mxu0 0.0
      %4677 = vmatpush2.msra.mxu0 0.0
      %4678 = vmatprep.subr.mxu0 0.0
      %4679 = vmatpush2.msra.mxu0 0.0
      %4680 = vmatprep.mubr.f32.mxu0 0.0
      %4681 = vmatmul.mubr.f32.gmra.mxu0 %v4611
      %v4682 = vpop.f32.mrf.mxu0
      %v4683 = vadd.f32 %v4603, %v4682
      %v4684 = vpop.f32.mrf.mxu0
      %4685 = vmatprep.mubr.f32.mxu0 0.0
      %4686 = vmatmul.mubr.f32.gmra.mxu0 %v4614
      %v4687 = vpop.f32.mrf.mxu0
      %v4688 = vadd.f32 %v4608, %v4687
      %v4689 = vpop.f32.mrf.mxu0
      %4690 = vdwg.mxu0
      %vm4691 = vcmp.ge.f32.partialorder %v4683, 0.0
      %vm4692 = vcmp.ge.f32.partialorder %v4688, 0.0
      %v4693 = vmul.f32 %v4683, 0.01
      %v4694 = vmul.f32 %v4688, 0.01
      %v4695 = vsel %vm4691, %v4683, %v4693
      %v4696 = vsel %vm4692, %v4688, %v4694
      %4697 = vset.pattern.permute.xlu0 1
      %4698 = vperm.xlu0 %4697, %v4507
      %v4699 = vpop.permute.xlu0 %4698
      %4701 = vset.pattern.permute.xlu0 1
      %4702 = vperm.xlu0 %4701, %v4508
      %v4703 = vpop.permute.xlu0 %4702
      %v4705 = vmul.f32 %v4695, %v4699
      %v4706 = vmul.f32 %v4696, %v4703
      %4707 = vset.pattern.permute.xlu0 2
      %4708 = vperm.xlu0 %4707, %v4507
      %v4709 = vpop.permute.xlu0 %4708
      %4711 = vset.pattern.permute.xlu0 2
      %4712 = vperm.xlu0 %4711, %v4508
      %v4713 = vpop.permute.xlu0 %4712
      %v4715 = vadd.f32 %v4705, %v4709
      %v4716 = vadd.f32 %v4706, %v4713
      %v4717 = vld [vmem:[%s41] sm:$0xff]
      %v4718 = vld [vmem:[%s41 + $0x8] sm:$0xff]
      %v4719 = vld [vmem:[%s41 + $0x10] sm:$0xff]
      %v4720 = vld [vmem:[%s41 + $0x18] sm:$0xff]
      %vm4721 = vcmask 261120
      %v4723 = vsel %vm4721, %v4715, 0
      %v4726 = vsel %vm4721, %v4716, 0
      %4728 = vmatprep.subr.mxu0 0.0
      %4729 = vmatpush1.msra.mxu0 0.0
      %4730 = vmatprep.subr.mxu0 0.0
      %4731 = vmatpush1.msra.mxu0 0.0
      %4732 = vmatprep.subr.mxu0 0.0
      %4733 = vmatpush1.msra.mxu0 0.0
      %4734 = vmatprep.subr.mxu0 0.0
      %4735 = vmatpush1.msra.mxu0 0.0
      %4736 = vmatprep.subr.mxu0 0.0
      %4737 = vmatpush1.msra.mxu0 0.0
      %4738 = vmatprep.subr.mxu0 0.0
      %4739 = vmatpush1.msra.mxu0 0.0
      %4740 = vmatprep.subr.mxu0 0.0
      %4741 = vmatpush1.msra.mxu0 0.0
      %4742 = vmatprep.subr.mxu0 0.0
      %4743 = vmatpush1.msra.mxu0 0.0
      %4744 = vmatprep.subr.mxu0 0.0
      %4745 = vmatpush1.msra.mxu0 0.0
      %4746 = vmatprep.subr.mxu0 0.0
      %4747 = vmatpush1.msra.mxu0 0.0
      %4748 = vmatprep.subr.mxu0 0.0
      %4749 = vmatpush1.msra.mxu0 0.0
      %4750 = vmatprep.subr.mxu0 0.0
      %4751 = vmatpush1.msra.mxu0 0.0
      %4752 = vmatprep.subr.mxu0 0.0
      %4753 = vmatpush1.msra.mxu0 %v4720
      %4754 = vmatprep.subr.mxu0 0.0
      %4755 = vmatpush1.msra.mxu0 %v4719
      %4756 = vmatprep.subr.mxu0 0.0
      %4757 = vmatpush1.msra.mxu0 %v4718
      %4758 = vmatprep.subr.mxu0 0.0
      %4759 = vmatpush1.msra.mxu0 %v4717
      %4760 = vmatprep.subr.mxu0 0.0
      %4761 = vmatpush2.msra.mxu0 0.0
      %4762 = vmatprep.subr.mxu0 0.0
      %4763 = vmatpush2.msra.mxu0 0.0
      %4764 = vmatprep.subr.mxu0 0.0
      %4765 = vmatpush2.msra.mxu0 0.0
      %4766 = vmatprep.subr.mxu0 0.0
      %4767 = vmatpush2.msra.mxu0 0.0
      %4768 = vmatprep.subr.mxu0 0.0
      %4769 = vmatpush2.msra.mxu0 0.0
      %4770 = vmatprep.subr.mxu0 0.0
      %4771 = vmatpush2.msra.mxu0 0.0
      %4772 = vmatprep.subr.mxu0 0.0
      %4773 = vmatpush2.msra.mxu0 0.0
      %4774 = vmatprep.subr.mxu0 0.0
      %4775 = vmatpush2.msra.mxu0 0.0
      %4776 = vmatprep.subr.mxu0 0.0
      %4777 = vmatpush2.msra.mxu0 0.0
      %4778 = vmatprep.subr.mxu0 0.0
      %4779 = vmatpush2.msra.mxu0 0.0
      %4780 = vmatprep.subr.mxu0 0.0
      %4781 = vmatpush2.msra.mxu0 0.0
      %4782 = vmatprep.subr.mxu0 0.0
      %4783 = vmatpush2.msra.mxu0 0.0
      %4784 = vmatprep.subr.mxu0 0.0
      %4785 = vmatpush2.msra.mxu0 0.0
      %4786 = vmatprep.subr.mxu0 0.0
      %4787 = vmatpush2.msra.mxu0 0.0
      %4788 = vmatprep.subr.mxu0 0.0
      %4789 = vmatpush2.msra.mxu0 0.0
      %4790 = vmatprep.subr.mxu0 0.0
      %4791 = vmatpush2.msra.mxu0 0.0
      %4792 = vmatprep.mubr.f32.mxu0 0.0
      %4793 = vmatmul.mubr.f32.gmra.mxu0 %v4723
      %v4794 = vpop.f32.mrf.mxu0
      %v4795 = vadd.f32 0.0, %v4794
      %v4796 = vpop.f32.mrf.mxu0
      %4797 = vmatprep.mubr.f32.mxu0 0.0
      %4798 = vmatmul.mubr.f32.gmra.mxu0 %v4726
      %v4799 = vpop.f32.mrf.mxu0
      %v4800 = vadd.f32 0.0, %v4799
      %v4801 = vpop.f32.mrf.mxu0
      %4802 = vdwg.mxu0
      %v4803 = vld [vmem:[%s33] sm:$0xff]
      %v4804 = vld [vmem:[%s33 + $0x8] sm:$0xff]
      %4807 = vrot.lane.b32.xlu0 %v4795, 127
      %v4808 = vpop.permute.xlu0 %4807
      %4809 = vrot.lane.b32.xlu0 %v4800, 127
      %v4810 = vpop.permute.xlu0 %4809
      %4813 = vrot.lane.b32.xlu0 %v4795, 126
      %v4814 = vpop.permute.xlu0 %4813
      %4815 = vrot.lane.b32.xlu0 %v4800, 126
      %v4816 = vpop.permute.xlu0 %4815
      %4819 = vset.pattern.permute.xlu0 3
      %4820 = vperm.xlu0 %4819, %v4507
      %v4821 = vpop.permute.xlu0 %4820
      %4823 = vset.pattern.permute.xlu0 3
      %4824 = vperm.xlu0 %4823, %v4508
      %v4825 = vpop.permute.xlu0 %4824
      %vm4827 = vcmask 392192
      %v4829 = vsel %vm4827, %v4803, 0
      %v4832 = vsel %vm4827, %v4804, 0
      %4834 = vmatprep.subr.mxu0 0.0
      %4835 = vmatpush1.msra.mxu0 0.0
      %4836 = vmatprep.subr.mxu0 0.0
      %4837 = vmatpush1.msra.mxu0 0.0
      %4838 = vmatprep.subr.mxu0 0.0
      %4839 = vmatpush1.msra.mxu0 0.0
      %4840 = vmatprep.subr.mxu0 0.0
      %4841 = vmatpush1.msra.mxu0 0.0
      %4842 = vmatprep.subr.mxu0 0.0
      %4843 = vmatpush1.msra.mxu0 0.0
      %4844 = vmatprep.subr.mxu0 0.0
      %4845 = vmatpush1.msra.mxu0 0.0
      %4846 = vmatprep.subr.mxu0 0.0
      %4847 = vmatpush1.msra.mxu0 0.0
      %4848 = vmatprep.subr.mxu0 0.0
      %4849 = vmatpush1.msra.mxu0 0.0
      %4850 = vmatprep.subr.mxu0 0.0
      %4851 = vmatpush1.msra.mxu0 0.0
      %4852 = vmatprep.subr.mxu0 0.0
      %4853 = vmatpush1.msra.mxu0 0.0
      %4854 = vmatprep.subr.mxu0 0.0
      %4855 = vmatpush1.msra.mxu0 %v4816
      %4856 = vmatprep.subr.mxu0 0.0
      %4857 = vmatpush1.msra.mxu0 %v4814
      %4858 = vmatprep.subr.mxu0 0.0
      %4859 = vmatpush1.msra.mxu0 %v4810
      %4860 = vmatprep.subr.mxu0 0.0
      %4861 = vmatpush1.msra.mxu0 %v4808
      %4862 = vmatprep.subr.mxu0 0.0
      %4863 = vmatpush1.msra.mxu0 %v4800
      %4864 = vmatprep.subr.mxu0 0.0
      %4865 = vmatpush1.msra.mxu0 %v4795
      %4866 = vmatprep.subr.mxu0 0.0
      %4867 = vmatpush2.msra.mxu0 0.0
      %4868 = vmatprep.subr.mxu0 0.0
      %4869 = vmatpush2.msra.mxu0 0.0
      %4870 = vmatprep.subr.mxu0 0.0
      %4871 = vmatpush2.msra.mxu0 0.0
      %4872 = vmatprep.subr.mxu0 0.0
      %4873 = vmatpush2.msra.mxu0 0.0
      %4874 = vmatprep.subr.mxu0 0.0
      %4875 = vmatpush2.msra.mxu0 0.0
      %4876 = vmatprep.subr.mxu0 0.0
      %4877 = vmatpush2.msra.mxu0 0.0
      %4878 = vmatprep.subr.mxu0 0.0
      %4879 = vmatpush2.msra.mxu0 0.0
      %4880 = vmatprep.subr.mxu0 0.0
      %4881 = vmatpush2.msra.mxu0 0.0
      %4882 = vmatprep.subr.mxu0 0.0
      %4883 = vmatpush2.msra.mxu0 0.0
      %4884 = vmatprep.subr.mxu0 0.0
      %4885 = vmatpush2.msra.mxu0 0.0
      %4886 = vmatprep.subr.mxu0 0.0
      %4887 = vmatpush2.msra.mxu0 0.0
      %4888 = vmatprep.subr.mxu0 0.0
      %4889 = vmatpush2.msra.mxu0 0.0
      %4890 = vmatprep.subr.mxu0 0.0
      %4891 = vmatpush2.msra.mxu0 0.0
      %4892 = vmatprep.subr.mxu0 0.0
      %4893 = vmatpush2.msra.mxu0 0.0
      %4894 = vmatprep.subr.mxu0 0.0
      %4895 = vmatpush2.msra.mxu0 0.0
      %4896 = vmatprep.subr.mxu0 0.0
      %4897 = vmatpush2.msra.mxu0 0.0
      %4898 = vmatprep.mubr.f32.mxu0 0.0
      %4899 = vmatmul.mubr.f32.gmra.mxu0 %v4829
      %v4900 = vpop.f32.mrf.mxu0
      %v4901 = vadd.f32 %v4821, %v4900
      %v4902 = vpop.f32.mrf.mxu0
      %4903 = vmatprep.mubr.f32.mxu0 0.0
      %4904 = vmatmul.mubr.f32.gmra.mxu0 %v4832
      %v4905 = vpop.f32.mrf.mxu0
      %v4906 = vadd.f32 %v4825, %v4905
      %v4907 = vpop.f32.mrf.mxu0
      %4908 = vdwg.mxu0
      %vm4909 = vcmp.ge.f32.partialorder %v4901, 0.0
      %vm4910 = vcmp.ge.f32.partialorder %v4906, 0.0
      %v4911 = vmul.f32 %v4901, 0.01
      %v4912 = vmul.f32 %v4906, 0.01
      %v4913 = vsel %vm4909, %v4901, %v4911
      %v4914 = vsel %vm4910, %v4906, %v4912
      %4915 = vset.pattern.permute.xlu0 4
      %4916 = vperm.xlu0 %4915, %v4507
      %v4917 = vpop.permute.xlu0 %4916
      %4919 = vset.pattern.permute.xlu0 4
      %4920 = vperm.xlu0 %4919, %v4508
      %v4921 = vpop.permute.xlu0 %4920
      %v4923 = vmul.f32 %v4913, %v4917
      %v4924 = vmul.f32 %v4914, %v4921
      %4925 = vset.pattern.permute.xlu0 5
      %4926 = vperm.xlu0 %4925, %v4507
      %v4927 = vpop.permute.xlu0 %4926
      %4929 = vset.pattern.permute.xlu0 5
      %4930 = vperm.xlu0 %4929, %v4508
      %v4931 = vpop.permute.xlu0 %4930
      %v4933 = vadd.f32 %v4923, %v4927
      %v4934 = vadd.f32 %v4924, %v4931
      %v4935 = vld [vmem:[%s43] sm:$0xff]
      %v4936 = vld [vmem:[%s43 + $0x8] sm:$0xff]
      %v4937 = vld [vmem:[%s43 + $0x10] sm:$0xff]
      %v4938 = vld [vmem:[%s43 + $0x18] sm:$0xff]
      %v4939 = vld [vmem:[%s43 + $0x20] sm:$0xff]
      %v4940 = vld [vmem:[%s43 + $0x28] sm:$0xff]
      %v4941 = vld [vmem:[%s43 + $0x30] sm:$0xff]
      %v4942 = vld [vmem:[%s43 + $0x38] sm:$0xff]
      %4943 = vmatprep.subr.mxu0 0.0
      %4944 = vmatpush1.msra.mxu0 0.0
      %4945 = vmatprep.subr.mxu0 0.0
      %4946 = vmatpush1.msra.mxu0 0.0
      %4947 = vmatprep.subr.mxu0 0.0
      %4948 = vmatpush1.msra.mxu0 0.0
      %4949 = vmatprep.subr.mxu0 0.0
      %4950 = vmatpush1.msra.mxu0 0.0
      %4951 = vmatprep.subr.mxu0 0.0
      %4952 = vmatpush1.msra.mxu0 0.0
      %4953 = vmatprep.subr.mxu0 0.0
      %4954 = vmatpush1.msra.mxu0 0.0
      %4955 = vmatprep.subr.mxu0 0.0
      %4956 = vmatpush1.msra.mxu0 0.0
      %4957 = vmatprep.subr.mxu0 0.0
      %4958 = vmatpush1.msra.mxu0 0.0
      %4959 = vmatprep.subr.mxu0 0.0
      %4960 = vmatpush1.msra.mxu0 %v4942
      %4961 = vmatprep.subr.mxu0 0.0
      %4962 = vmatpush1.msra.mxu0 %v4941
      %4963 = vmatprep.subr.mxu0 0.0
      %4964 = vmatpush1.msra.mxu0 %v4940
      %4965 = vmatprep.subr.mxu0 0.0
      %4966 = vmatpush1.msra.mxu0 %v4939
      %4967 = vmatprep.subr.mxu0 0.0
      %4968 = vmatpush1.msra.mxu0 %v4938
      %4969 = vmatprep.subr.mxu0 0.0
      %4970 = vmatpush1.msra.mxu0 %v4937
      %4971 = vmatprep.subr.mxu0 0.0
      %4972 = vmatpush1.msra.mxu0 %v4936
      %4973 = vmatprep.subr.mxu0 0.0
      %4974 = vmatpush1.msra.mxu0 %v4935
      %4975 = vmatprep.subr.mxu0 0.0
      %4976 = vmatpush2.msra.mxu0 0.0
      %4977 = vmatprep.subr.mxu0 0.0
      %4978 = vmatpush2.msra.mxu0 0.0
      %4979 = vmatprep.subr.mxu0 0.0
      %4980 = vmatpush2.msra.mxu0 0.0
      %4981 = vmatprep.subr.mxu0 0.0
      %4982 = vmatpush2.msra.mxu0 0.0
      %4983 = vmatprep.subr.mxu0 0.0
      %4984 = vmatpush2.msra.mxu0 0.0
      %4985 = vmatprep.subr.mxu0 0.0
      %4986 = vmatpush2.msra.mxu0 0.0
      %4987 = vmatprep.subr.mxu0 0.0
      %4988 = vmatpush2.msra.mxu0 0.0
      %4989 = vmatprep.subr.mxu0 0.0
      %4990 = vmatpush2.msra.mxu0 0.0
      %4991 = vmatprep.subr.mxu0 0.0
      %4992 = vmatpush2.msra.mxu0 0.0
      %4993 = vmatprep.subr.mxu0 0.0
      %4994 = vmatpush2.msra.mxu0 0.0
      %4995 = vmatprep.subr.mxu0 0.0
      %4996 = vmatpush2.msra.mxu0 0.0
      %4997 = vmatprep.subr.mxu0 0.0
      %4998 = vmatpush2.msra.mxu0 0.0
      %4999 = vmatprep.subr.mxu0 0.0
      %5000 = vmatpush2.msra.mxu0 0.0
      %5001 = vmatprep.subr.mxu0 0.0
      %5002 = vmatpush2.msra.mxu0 0.0
      %5003 = vmatprep.subr.mxu0 0.0
      %5004 = vmatpush2.msra.mxu0 0.0
      %5005 = vmatprep.subr.mxu0 0.0
      %5006 = vmatpush2.msra.mxu0 0.0
      %5007 = vmatprep.mubr.f32.mxu0 0.0
      %5008 = vmatmul.mubr.f32.gmra.mxu0 %v4519
      %v5009 = vpop.f32.mrf.mxu0
      %v5010 = vadd.f32 0.0, %v5009
      %v5011 = vpop.f32.mrf.mxu0
      %5012 = vdwg.mxu0
      %v5013 = vld [vmem:[%s35] sm:$0xff]
      %v5014 = vld [vmem:[%s35 + $0x8] sm:$0xff]
      %5015 = vset.pattern.permute.xlu0 6
      %5016 = vperm.xlu0 %5015, %v4507
      %v5017 = vpop.permute.xlu0 %5016
      %5019 = vset.pattern.permute.xlu0 6
      %5020 = vperm.xlu0 %5019, %v4508
      %v5021 = vpop.permute.xlu0 %5020
      %v5024 = vsel %vm3814, %v5013, 0
      %v5027 = vsel %vm3814, %v5014, 0
      %5029 = vmatprep.subr.mxu0 0.0
      %5030 = vmatpush1.msra.mxu0 0.0
      %5031 = vmatprep.subr.mxu0 0.0
      %5032 = vmatpush1.msra.mxu0 0.0
      %5033 = vmatprep.subr.mxu0 0.0
      %5034 = vmatpush1.msra.mxu0 0.0
      %5035 = vmatprep.subr.mxu0 0.0
      %5036 = vmatpush1.msra.mxu0 0.0
      %5037 = vmatprep.subr.mxu0 0.0
      %5038 = vmatpush1.msra.mxu0 0.0
      %5039 = vmatprep.subr.mxu0 0.0
      %5040 = vmatpush1.msra.mxu0 0.0
      %5041 = vmatprep.subr.mxu0 0.0
      %5042 = vmatpush1.msra.mxu0 0.0
      %5043 = vmatprep.subr.mxu0 0.0
      %5044 = vmatpush1.msra.mxu0 0.0
      %5045 = vmatprep.subr.mxu0 0.0
      %5046 = vmatpush1.msra.mxu0 0.0
      %5047 = vmatprep.subr.mxu0 0.0
      %5048 = vmatpush1.msra.mxu0 0.0
      %5049 = vmatprep.subr.mxu0 0.0
      %5050 = vmatpush1.msra.mxu0 0.0
      %5051 = vmatprep.subr.mxu0 0.0
      %5052 = vmatpush1.msra.mxu0 0.0
      %5053 = vmatprep.subr.mxu0 0.0
      %5054 = vmatpush1.msra.mxu0 0.0
      %5055 = vmatprep.subr.mxu0 0.0
      %5056 = vmatpush1.msra.mxu0 0.0
      %5057 = vmatprep.subr.mxu0 0.0
      %5058 = vmatpush1.msra.mxu0 0.0
      %5059 = vmatprep.subr.mxu0 0.0
      %5060 = vmatpush1.msra.mxu0 %v5010
      %5061 = vmatprep.subr.mxu0 0.0
      %5062 = vmatpush2.msra.mxu0 0.0
      %5063 = vmatprep.subr.mxu0 0.0
      %5064 = vmatpush2.msra.mxu0 0.0
      %5065 = vmatprep.subr.mxu0 0.0
      %5066 = vmatpush2.msra.mxu0 0.0
      %5067 = vmatprep.subr.mxu0 0.0
      %5068 = vmatpush2.msra.mxu0 0.0
      %5069 = vmatprep.subr.mxu0 0.0
      %5070 = vmatpush2.msra.mxu0 0.0
      %5071 = vmatprep.subr.mxu0 0.0
      %5072 = vmatpush2.msra.mxu0 0.0
      %5073 = vmatprep.subr.mxu0 0.0
      %5074 = vmatpush2.msra.mxu0 0.0
      %5075 = vmatprep.subr.mxu0 0.0
      %5076 = vmatpush2.msra.mxu0 0.0
      %5077 = vmatprep.subr.mxu0 0.0
      %5078 = vmatpush2.msra.mxu0 0.0
      %5079 = vmatprep.subr.mxu0 0.0
      %5080 = vmatpush2.msra.mxu0 0.0
      %5081 = vmatprep.subr.mxu0 0.0
      %5082 = vmatpush2.msra.mxu0 0.0
      %5083 = vmatprep.subr.mxu0 0.0
      %5084 = vmatpush2.msra.mxu0 0.0
      %5085 = vmatprep.subr.mxu0 0.0
      %5086 = vmatpush2.msra.mxu0 0.0
      %5087 = vmatprep.subr.mxu0 0.0
      %5088 = vmatpush2.msra.mxu0 0.0
      %5089 = vmatprep.subr.mxu0 0.0
      %5090 = vmatpush2.msra.mxu0 0.0
      %5091 = vmatprep.subr.mxu0 0.0
      %5092 = vmatpush2.msra.mxu0 0.0
      %5093 = vmatprep.mubr.f32.mxu0 0.0
      %5094 = vmatmul.mubr.f32.gmra.mxu0 %v5024
      %v5095 = vpop.f32.mrf.mxu0
      %v5096 = vadd.f32 %v5017, %v5095
      %v5097 = vpop.f32.mrf.mxu0
      %5098 = vmatprep.mubr.f32.mxu0 0.0
      %5099 = vmatmul.mubr.f32.gmra.mxu0 %v5027
      %v5100 = vpop.f32.mrf.mxu0
      %v5101 = vadd.f32 %v5021, %v5100
      %v5102 = vpop.f32.mrf.mxu0
      %5103 = vdwg.mxu0
      %v5104 = vadd.f32 %v4933, %v5096
      %v5105 = vadd.f32 %v4934, %v5101
      %vm5106 = vcmp.ge.f32.partialorder %v5104, 0.0
      %vm5107 = vcmp.ge.f32.partialorder %v5105, 0.0
      %v5108 = vmul.f32 %v5104, 0.01
      %v5109 = vmul.f32 %v5105, 0.01
      %v5110 = vsel %vm5106, %v5104, %v5108
      %v5111 = vsel %vm5107, %v5105, %v5109
      %v5112 = vld [vmem:[%s51] sm:$0xff]
      %v5113 = vld [vmem:[%s53] sm:$0xff]
      %v5114 = vld [vmem:[%s53 + $0x8] sm:$0xff]
      %vm5115 = vcmask 130048
      %v5117 = vsel %vm5115, %v5110, 0
      %v5120 = vsel %vm5115, %v5111, 0
      %5122 = vmatprep.subr.mxu0 0.0
      %5123 = vmatpush1.msra.mxu0 0.0
      %5124 = vmatprep.subr.mxu0 0.0
      %5125 = vmatpush1.msra.mxu0 0.0
      %5126 = vmatprep.subr.mxu0 0.0
      %5127 = vmatpush1.msra.mxu0 0.0
      %5128 = vmatprep.subr.mxu0 0.0
      %5129 = vmatpush1.msra.mxu0 0.0
      %5130 = vmatprep.subr.mxu0 0.0
      %5131 = vmatpush1.msra.mxu0 0.0
      %5132 = vmatprep.subr.mxu0 0.0
      %5133 = vmatpush1.msra.mxu0 0.0
      %5134 = vmatprep.subr.mxu0 0.0
      %5135 = vmatpush1.msra.mxu0 0.0
      %5136 = vmatprep.subr.mxu0 0.0
      %5137 = vmatpush1.msra.mxu0 0.0
      %5138 = vmatprep.subr.mxu0 0.0
      %5139 = vmatpush1.msra.mxu0 0.0
      %5140 = vmatprep.subr.mxu0 0.0
      %5141 = vmatpush1.msra.mxu0 0.0
      %5142 = vmatprep.subr.mxu0 0.0
      %5143 = vmatpush1.msra.mxu0 0.0
      %5144 = vmatprep.subr.mxu0 0.0
      %5145 = vmatpush1.msra.mxu0 0.0
      %5146 = vmatprep.subr.mxu0 0.0
      %5147 = vmatpush1.msra.mxu0 0.0
      %5148 = vmatprep.subr.mxu0 0.0
      %5149 = vmatpush1.msra.mxu0 0.0
      %5150 = vmatprep.subr.mxu0 0.0
      %5151 = vmatpush1.msra.mxu0 %v5114
      %5152 = vmatprep.subr.mxu0 0.0
      %5153 = vmatpush1.msra.mxu0 %v5113
      %5154 = vmatprep.subr.mxu0 0.0
      %5155 = vmatpush2.msra.mxu0 0.0
      %5156 = vmatprep.subr.mxu0 0.0
      %5157 = vmatpush2.msra.mxu0 0.0
      %5158 = vmatprep.subr.mxu0 0.0
      %5159 = vmatpush2.msra.mxu0 0.0
      %5160 = vmatprep.subr.mxu0 0.0
      %5161 = vmatpush2.msra.mxu0 0.0
      %5162 = vmatprep.subr.mxu0 0.0
      %5163 = vmatpush2.msra.mxu0 0.0
      %5164 = vmatprep.subr.mxu0 0.0
      %5165 = vmatpush2.msra.mxu0 0.0
      %5166 = vmatprep.subr.mxu0 0.0
      %5167 = vmatpush2.msra.mxu0 0.0
      %5168 = vmatprep.subr.mxu0 0.0
      %5169 = vmatpush2.msra.mxu0 0.0
      %5170 = vmatprep.subr.mxu0 0.0
      %5171 = vmatpush2.msra.mxu0 0.0
      %5172 = vmatprep.subr.mxu0 0.0
      %5173 = vmatpush2.msra.mxu0 0.0
      %5174 = vmatprep.subr.mxu0 0.0
      %5175 = vmatpush2.msra.mxu0 0.0
      %5176 = vmatprep.subr.mxu0 0.0
      %5177 = vmatpush2.msra.mxu0 0.0
      %5178 = vmatprep.subr.mxu0 0.0
      %5179 = vmatpush2.msra.mxu0 0.0
      %5180 = vmatprep.subr.mxu0 0.0
      %5181 = vmatpush2.msra.mxu0 0.0
      %5182 = vmatprep.subr.mxu0 0.0
      %5183 = vmatpush2.msra.mxu0 0.0
      %5184 = vmatprep.subr.mxu0 0.0
      %5185 = vmatpush2.msra.mxu0 0.0
      %5186 = vmatprep.mubr.f32.mxu0 0.0
      %5187 = vmatmul.mubr.f32.gmra.mxu0 %v5117
      %v5188 = vpop.f32.mrf.mxu0
      %v5189 = vadd.f32 0.0, %v5188
      %v5190 = vpop.f32.mrf.mxu0
      %5191 = vmatprep.mubr.f32.mxu0 0.0
      %5192 = vmatmul.mubr.f32.gmra.mxu0 %v5120
      %v5193 = vpop.f32.mrf.mxu0
      %v5194 = vadd.f32 0.0, %v5193
      %v5195 = vpop.f32.mrf.mxu0
      %5196 = vdwg.mxu0
      %v5197 = vld [vmem:[%s45] sm:$0xff]
      %5200 = vrot.lane.b32.xlu0 %v5189, 127
      %v5201 = vpop.permute.xlu0 %5200
      %5202 = vrot.lane.b32.xlu0 %v5194, 127
      %v5203 = vpop.permute.xlu0 %5202
      %5206 = vrot.lane.b32.xlu0 %v5189, 126
      %v5207 = vpop.permute.xlu0 %5206
      %5208 = vrot.lane.b32.xlu0 %v5194, 126
      %v5209 = vpop.permute.xlu0 %5208
      %5213 = vset.pattern.permute.xlu0 0
      %5214 = vperm.xlu0 %5213, %v5112
      %v5215 = vpop.permute.xlu0 %5214
      %v5218 = vsel %vm4827, %v5197, 0
      %5220 = vmatprep.subr.mxu0 0.0
      %5221 = vmatpush1.msra.mxu0 0.0
      %5222 = vmatprep.subr.mxu0 0.0
      %5223 = vmatpush1.msra.mxu0 0.0
      %5224 = vmatprep.subr.mxu0 0.0
      %5225 = vmatpush1.msra.mxu0 0.0
      %5226 = vmatprep.subr.mxu0 0.0
      %5227 = vmatpush1.msra.mxu0 0.0
      %5228 = vmatprep.subr.mxu0 0.0
      %5229 = vmatpush1.msra.mxu0 0.0
      %5230 = vmatprep.subr.mxu0 0.0
      %5231 = vmatpush1.msra.mxu0 0.0
      %5232 = vmatprep.subr.mxu0 0.0
      %5233 = vmatpush1.msra.mxu0 0.0
      %5234 = vmatprep.subr.mxu0 0.0
      %5235 = vmatpush1.msra.mxu0 0.0
      %5236 = vmatprep.subr.mxu0 0.0
      %5237 = vmatpush1.msra.mxu0 0.0
      %5238 = vmatprep.subr.mxu0 0.0
      %5239 = vmatpush1.msra.mxu0 0.0
      %5240 = vmatprep.subr.mxu0 0.0
      %5241 = vmatpush1.msra.mxu0 %v5209
      %5242 = vmatprep.subr.mxu0 0.0
      %5243 = vmatpush1.msra.mxu0 %v5207
      %5244 = vmatprep.subr.mxu0 0.0
      %5245 = vmatpush1.msra.mxu0 %v5203
      %5246 = vmatprep.subr.mxu0 0.0
      %5247 = vmatpush1.msra.mxu0 %v5201
      %5248 = vmatprep.subr.mxu0 0.0
      %5249 = vmatpush1.msra.mxu0 %v5194
      %5250 = vmatprep.subr.mxu0 0.0
      %5251 = vmatpush1.msra.mxu0 %v5189
      %5252 = vmatprep.subr.mxu0 0.0
      %5253 = vmatpush2.msra.mxu0 0.0
      %5254 = vmatprep.subr.mxu0 0.0
      %5255 = vmatpush2.msra.mxu0 0.0
      %5256 = vmatprep.subr.mxu0 0.0
      %5257 = vmatpush2.msra.mxu0 0.0
      %5258 = vmatprep.subr.mxu0 0.0
      %5259 = vmatpush2.msra.mxu0 0.0
      %5260 = vmatprep.subr.mxu0 0.0
      %5261 = vmatpush2.msra.mxu0 0.0
      %5262 = vmatprep.subr.mxu0 0.0
      %5263 = vmatpush2.msra.mxu0 0.0
      %5264 = vmatprep.subr.mxu0 0.0
      %5265 = vmatpush2.msra.mxu0 0.0
      %5266 = vmatprep.subr.mxu0 0.0
      %5267 = vmatpush2.msra.mxu0 0.0
      %5268 = vmatprep.subr.mxu0 0.0
      %5269 = vmatpush2.msra.mxu0 0.0
      %5270 = vmatprep.subr.mxu0 0.0
      %5271 = vmatpush2.msra.mxu0 0.0
      %5272 = vmatprep.subr.mxu0 0.0
      %5273 = vmatpush2.msra.mxu0 0.0
      %5274 = vmatprep.subr.mxu0 0.0
      %5275 = vmatpush2.msra.mxu0 0.0
      %5276 = vmatprep.subr.mxu0 0.0
      %5277 = vmatpush2.msra.mxu0 0.0
      %5278 = vmatprep.subr.mxu0 0.0
      %5279 = vmatpush2.msra.mxu0 0.0
      %5280 = vmatprep.subr.mxu0 0.0
      %5281 = vmatpush2.msra.mxu0 0.0
      %5282 = vmatprep.subr.mxu0 0.0
      %5283 = vmatpush2.msra.mxu0 0.0
      %5284 = vmatprep.mubr.f32.mxu0 0.0
      %5285 = vmatmul.mubr.f32.gmra.mxu0 %v5218
      %v5286 = vpop.f32.mrf.mxu0
      %v5287 = vadd.f32 %v5215, %v5286
      %v5288 = vpop.f32.mrf.mxu0
      %5289 = vdwg.mxu0
      %vm5290 = vcmp.ge.f32.partialorder %v5287, 0.0
      %v5291 = vmul.f32 %v5287, 0.01
      %v5292 = vsel %vm5290, %v5287, %v5291
      %5293 = vset.pattern.permute.xlu0 1
      %5294 = vperm.xlu0 %5293, %v5112
      %v5295 = vpop.permute.xlu0 %5294
      %v5297 = vmul.f32 %v5292, %v5295
      %5298 = vset.pattern.permute.xlu0 2
      %5299 = vperm.xlu0 %5298, %v5112
      %v5300 = vpop.permute.xlu0 %5299
      %v5302 = vadd.f32 %v5297, %v5300
      %v5303 = vld [vmem:[%s55] sm:$0xff]
      %v5305 = vsel %vm3814, %v5302, 0
      %5307 = vmatprep.subr.mxu0 0.0
      %5308 = vmatpush1.msra.mxu0 0.0
      %5309 = vmatprep.subr.mxu0 0.0
      %5310 = vmatpush1.msra.mxu0 0.0
      %5311 = vmatprep.subr.mxu0 0.0
      %5312 = vmatpush1.msra.mxu0 0.0
      %5313 = vmatprep.subr.mxu0 0.0
      %5314 = vmatpush1.msra.mxu0 0.0
      %5315 = vmatprep.subr.mxu0 0.0
      %5316 = vmatpush1.msra.mxu0 0.0
      %5317 = vmatprep.subr.mxu0 0.0
      %5318 = vmatpush1.msra.mxu0 0.0
      %5319 = vmatprep.subr.mxu0 0.0
      %5320 = vmatpush1.msra.mxu0 0.0
      %5321 = vmatprep.subr.mxu0 0.0
      %5322 = vmatpush1.msra.mxu0 0.0
      %5323 = vmatprep.subr.mxu0 0.0
      %5324 = vmatpush1.msra.mxu0 0.0
      %5325 = vmatprep.subr.mxu0 0.0
      %5326 = vmatpush1.msra.mxu0 0.0
      %5327 = vmatprep.subr.mxu0 0.0
      %5328 = vmatpush1.msra.mxu0 0.0
      %5329 = vmatprep.subr.mxu0 0.0
      %5330 = vmatpush1.msra.mxu0 0.0
      %5331 = vmatprep.subr.mxu0 0.0
      %5332 = vmatpush1.msra.mxu0 0.0
      %5333 = vmatprep.subr.mxu0 0.0
      %5334 = vmatpush1.msra.mxu0 0.0
      %5335 = vmatprep.subr.mxu0 0.0
      %5336 = vmatpush1.msra.mxu0 0.0
      %5337 = vmatprep.subr.mxu0 0.0
      %5338 = vmatpush1.msra.mxu0 %v5303
      %5339 = vmatprep.subr.mxu0 0.0
      %5340 = vmatpush2.msra.mxu0 0.0
      %5341 = vmatprep.subr.mxu0 0.0
      %5342 = vmatpush2.msra.mxu0 0.0
      %5343 = vmatprep.subr.mxu0 0.0
      %5344 = vmatpush2.msra.mxu0 0.0
      %5345 = vmatprep.subr.mxu0 0.0
      %5346 = vmatpush2.msra.mxu0 0.0
      %5347 = vmatprep.subr.mxu0 0.0
      %5348 = vmatpush2.msra.mxu0 0.0
      %5349 = vmatprep.subr.mxu0 0.0
      %5350 = vmatpush2.msra.mxu0 0.0
      %5351 = vmatprep.subr.mxu0 0.0
      %5352 = vmatpush2.msra.mxu0 0.0
      %5353 = vmatprep.subr.mxu0 0.0
      %5354 = vmatpush2.msra.mxu0 0.0
      %5355 = vmatprep.subr.mxu0 0.0
      %5356 = vmatpush2.msra.mxu0 0.0
      %5357 = vmatprep.subr.mxu0 0.0
      %5358 = vmatpush2.msra.mxu0 0.0
      %5359 = vmatprep.subr.mxu0 0.0
      %5360 = vmatpush2.msra.mxu0 0.0
      %5361 = vmatprep.subr.mxu0 0.0
      %5362 = vmatpush2.msra.mxu0 0.0
      %5363 = vmatprep.subr.mxu0 0.0
      %5364 = vmatpush2.msra.mxu0 0.0
      %5365 = vmatprep.subr.mxu0 0.0
      %5366 = vmatpush2.msra.mxu0 0.0
      %5367 = vmatprep.subr.mxu0 0.0
      %5368 = vmatpush2.msra.mxu0 0.0
      %5369 = vmatprep.subr.mxu0 0.0
      %5370 = vmatpush2.msra.mxu0 0.0
      %5371 = vmatprep.mubr.f32.mxu0 0.0
      %5372 = vmatmul.mubr.f32.gmra.mxu0 %v5305
      %v5373 = vpop.f32.mrf.mxu0
      %v5374 = vadd.f32 0.0, %v5373
      %v5375 = vpop.f32.mrf.mxu0
      %5376 = vdwg.mxu0
      %v5377 = vld [vmem:[%s47] sm:$0xff]
      %5379 = vrot.lane.b32.xlu0 %v5374, 127
      %v5380 = vpop.permute.xlu0 %5379
      %5382 = vrot.lane.b32.xlu0 %v5374, 126
      %v5383 = vpop.permute.xlu0 %5382
      %5385 = vset.pattern.permute.xlu0 3
      %5386 = vperm.xlu0 %5385, %v5112
      %v5387 = vpop.permute.xlu0 %5386
      %v5390 = vsel %vm2501, %v5377, 0
      %5392 = vmatprep.subr.mxu0 0.0
      %5393 = vmatpush1.msra.mxu0 0.0
      %5394 = vmatprep.subr.mxu0 0.0
      %5395 = vmatpush1.msra.mxu0 0.0
      %5396 = vmatprep.subr.mxu0 0.0
      %5397 = vmatpush1.msra.mxu0 0.0
      %5398 = vmatprep.subr.mxu0 0.0
      %5399 = vmatpush1.msra.mxu0 0.0
      %5400 = vmatprep.subr.mxu0 0.0
      %5401 = vmatpush1.msra.mxu0 0.0
      %5402 = vmatprep.subr.mxu0 0.0
      %5403 = vmatpush1.msra.mxu0 0.0
      %5404 = vmatprep.subr.mxu0 0.0
      %5405 = vmatpush1.msra.mxu0 0.0
      %5406 = vmatprep.subr.mxu0 0.0
      %5407 = vmatpush1.msra.mxu0 0.0
      %5408 = vmatprep.subr.mxu0 0.0
      %5409 = vmatpush1.msra.mxu0 0.0
      %5410 = vmatprep.subr.mxu0 0.0
      %5411 = vmatpush1.msra.mxu0 0.0
      %5412 = vmatprep.subr.mxu0 0.0
      %5413 = vmatpush1.msra.mxu0 0.0
      %5414 = vmatprep.subr.mxu0 0.0
      %5415 = vmatpush1.msra.mxu0 0.0
      %5416 = vmatprep.subr.mxu0 0.0
      %5417 = vmatpush1.msra.mxu0 0.0
      %5418 = vmatprep.subr.mxu0 0.0
      %5419 = vmatpush1.msra.mxu0 %v5383
      %5420 = vmatprep.subr.mxu0 0.0
      %5421 = vmatpush1.msra.mxu0 %v5380
      %5422 = vmatprep.subr.mxu0 0.0
      %5423 = vmatpush1.msra.mxu0 %v5374
      %5424 = vmatprep.subr.mxu0 0.0
      %5425 = vmatpush2.msra.mxu0 0.0
      %5426 = vmatprep.subr.mxu0 0.0
      %5427 = vmatpush2.msra.mxu0 0.0
      %5428 = vmatprep.subr.mxu0 0.0
      %5429 = vmatpush2.msra.mxu0 0.0
      %5430 = vmatprep.subr.mxu0 0.0
      %5431 = vmatpush2.msra.mxu0 0.0
      %5432 = vmatprep.subr.mxu0 0.0
      %5433 = vmatpush2.msra.mxu0 0.0
      %5434 = vmatprep.subr.mxu0 0.0
      %5435 = vmatpush2.msra.mxu0 0.0
      %5436 = vmatprep.subr.mxu0 0.0
      %5437 = vmatpush2.msra.mxu0 0.0
      %5438 = vmatprep.subr.mxu0 0.0
      %5439 = vmatpush2.msra.mxu0 0.0
      %5440 = vmatprep.subr.mxu0 0.0
      %5441 = vmatpush2.msra.mxu0 0.0
      %5442 = vmatprep.subr.mxu0 0.0
      %5443 = vmatpush2.msra.mxu0 0.0
      %5444 = vmatprep.subr.mxu0 0.0
      %5445 = vmatpush2.msra.mxu0 0.0
      %5446 = vmatprep.subr.mxu0 0.0
      %5447 = vmatpush2.msra.mxu0 0.0
      %5448 = vmatprep.subr.mxu0 0.0
      %5449 = vmatpush2.msra.mxu0 0.0
      %5450 = vmatprep.subr.mxu0 0.0
      %5451 = vmatpush2.msra.mxu0 0.0
      %5452 = vmatprep.subr.mxu0 0.0
      %5453 = vmatpush2.msra.mxu0 0.0
      %5454 = vmatprep.subr.mxu0 0.0
      %5455 = vmatpush2.msra.mxu0 0.0
      %5456 = vmatprep.mubr.f32.mxu0 0.0
      %5457 = vmatmul.mubr.f32.gmra.mxu0 %v5390
      %v5458 = vpop.f32.mrf.mxu0
      %v5459 = vadd.f32 %v5387, %v5458
      %v5460 = vpop.f32.mrf.mxu0
      %5461 = vdwg.mxu0
      %vm5462 = vcmp.ge.f32.partialorder %v5459, 0.0
      %v5463 = vmul.f32 %v5459, 0.01
      %v5464 = vsel %vm5462, %v5459, %v5463
      %5465 = vset.pattern.permute.xlu0 4
      %5466 = vperm.xlu0 %5465, %v5112
      %v5467 = vpop.permute.xlu0 %5466
      %v5469 = vmul.f32 %v5464, %v5467
      %5470 = vset.pattern.permute.xlu0 5
      %5471 = vperm.xlu0 %5470, %v5112
      %v5472 = vpop.permute.xlu0 %5471
      %v5474 = vadd.f32 %v5469, %v5472
      %v5475 = vld [vmem:[%s57] sm:$0xff]
      %v5476 = vld [vmem:[%s57 + $0x8] sm:$0xff]
      %5477 = vmatprep.subr.mxu0 0.0
      %5478 = vmatpush1.msra.mxu0 0.0
      %5479 = vmatprep.subr.mxu0 0.0
      %5480 = vmatpush1.msra.mxu0 0.0
      %5481 = vmatprep.subr.mxu0 0.0
      %5482 = vmatpush1.msra.mxu0 0.0
      %5483 = vmatprep.subr.mxu0 0.0
      %5484 = vmatpush1.msra.mxu0 0.0
      %5485 = vmatprep.subr.mxu0 0.0
      %5486 = vmatpush1.msra.mxu0 0.0
      %5487 = vmatprep.subr.mxu0 0.0
      %5488 = vmatpush1.msra.mxu0 0.0
      %5489 = vmatprep.subr.mxu0 0.0
      %5490 = vmatpush1.msra.mxu0 0.0
      %5491 = vmatprep.subr.mxu0 0.0
      %5492 = vmatpush1.msra.mxu0 0.0
      %5493 = vmatprep.subr.mxu0 0.0
      %5494 = vmatpush1.msra.mxu0 0.0
      %5495 = vmatprep.subr.mxu0 0.0
      %5496 = vmatpush1.msra.mxu0 0.0
      %5497 = vmatprep.subr.mxu0 0.0
      %5498 = vmatpush1.msra.mxu0 0.0
      %5499 = vmatprep.subr.mxu0 0.0
      %5500 = vmatpush1.msra.mxu0 0.0
      %5501 = vmatprep.subr.mxu0 0.0
      %5502 = vmatpush1.msra.mxu0 0.0
      %5503 = vmatprep.subr.mxu0 0.0
      %5504 = vmatpush1.msra.mxu0 0.0
      %5505 = vmatprep.subr.mxu0 0.0
      %5506 = vmatpush1.msra.mxu0 %v5476
      %5507 = vmatprep.subr.mxu0 0.0
      %5508 = vmatpush1.msra.mxu0 %v5475
      %5509 = vmatprep.subr.mxu0 0.0
      %5510 = vmatpush2.msra.mxu0 0.0
      %5511 = vmatprep.subr.mxu0 0.0
      %5512 = vmatpush2.msra.mxu0 0.0
      %5513 = vmatprep.subr.mxu0 0.0
      %5514 = vmatpush2.msra.mxu0 0.0
      %5515 = vmatprep.subr.mxu0 0.0
      %5516 = vmatpush2.msra.mxu0 0.0
      %5517 = vmatprep.subr.mxu0 0.0
      %5518 = vmatpush2.msra.mxu0 0.0
      %5519 = vmatprep.subr.mxu0 0.0
      %5520 = vmatpush2.msra.mxu0 0.0
      %5521 = vmatprep.subr.mxu0 0.0
      %5522 = vmatpush2.msra.mxu0 0.0
      %5523 = vmatprep.subr.mxu0 0.0
      %5524 = vmatpush2.msra.mxu0 0.0
      %5525 = vmatprep.subr.mxu0 0.0
      %5526 = vmatpush2.msra.mxu0 0.0
      %5527 = vmatprep.subr.mxu0 0.0
      %5528 = vmatpush2.msra.mxu0 0.0
      %5529 = vmatprep.subr.mxu0 0.0
      %5530 = vmatpush2.msra.mxu0 0.0
      %5531 = vmatprep.subr.mxu0 0.0
      %5532 = vmatpush2.msra.mxu0 0.0
      %5533 = vmatprep.subr.mxu0 0.0
      %5534 = vmatpush2.msra.mxu0 0.0
      %5535 = vmatprep.subr.mxu0 0.0
      %5536 = vmatpush2.msra.mxu0 0.0
      %5537 = vmatprep.subr.mxu0 0.0
      %5538 = vmatpush2.msra.mxu0 0.0
      %5539 = vmatprep.subr.mxu0 0.0
      %5540 = vmatpush2.msra.mxu0 0.0
      %5541 = vmatprep.mubr.f32.mxu0 0.0
      %5542 = vmatmul.mubr.f32.gmra.mxu0 %v5117
      %v5543 = vpop.f32.mrf.mxu0
      %v5544 = vadd.f32 0.0, %v5543
      %v5545 = vpop.f32.mrf.mxu0
      %5546 = vmatprep.mubr.f32.mxu0 0.0
      %5547 = vmatmul.mubr.f32.gmra.mxu0 %v5120
      %v5548 = vpop.f32.mrf.mxu0
      %v5549 = vadd.f32 0.0, %v5548
      %v5550 = vpop.f32.mrf.mxu0
      %5551 = vdwg.mxu0
      %v5552 = vld [vmem:[%s49] sm:$0xff]
      %5553 = vset.pattern.permute.xlu0 6
      %5554 = vperm.xlu0 %5553, %v5112
      %v5555 = vpop.permute.xlu0 %5554
      %v5558 = vsel %vm5115, %v5552, 0
      %5560 = vmatprep.subr.mxu0 0.0
      %5561 = vmatpush1.msra.mxu0 0.0
      %5562 = vmatprep.subr.mxu0 0.0
      %5563 = vmatpush1.msra.mxu0 0.0
      %5564 = vmatprep.subr.mxu0 0.0
      %5565 = vmatpush1.msra.mxu0 0.0
      %5566 = vmatprep.subr.mxu0 0.0
      %5567 = vmatpush1.msra.mxu0 0.0
      %5568 = vmatprep.subr.mxu0 0.0
      %5569 = vmatpush1.msra.mxu0 0.0
      %5570 = vmatprep.subr.mxu0 0.0
      %5571 = vmatpush1.msra.mxu0 0.0
      %5572 = vmatprep.subr.mxu0 0.0
      %5573 = vmatpush1.msra.mxu0 0.0
      %5574 = vmatprep.subr.mxu0 0.0
      %5575 = vmatpush1.msra.mxu0 0.0
      %5576 = vmatprep.subr.mxu0 0.0
      %5577 = vmatpush1.msra.mxu0 0.0
      %5578 = vmatprep.subr.mxu0 0.0
      %5579 = vmatpush1.msra.mxu0 0.0
      %5580 = vmatprep.subr.mxu0 0.0
      %5581 = vmatpush1.msra.mxu0 0.0
      %5582 = vmatprep.subr.mxu0 0.0
      %5583 = vmatpush1.msra.mxu0 0.0
      %5584 = vmatprep.subr.mxu0 0.0
      %5585 = vmatpush1.msra.mxu0 0.0
      %5586 = vmatprep.subr.mxu0 0.0
      %5587 = vmatpush1.msra.mxu0 0.0
      %5588 = vmatprep.subr.mxu0 0.0
      %5589 = vmatpush1.msra.mxu0 %v5549
      %5590 = vmatprep.subr.mxu0 0.0
      %5591 = vmatpush1.msra.mxu0 %v5544
      %5592 = vmatprep.subr.mxu0 0.0
      %5593 = vmatpush2.msra.mxu0 0.0
      %5594 = vmatprep.subr.mxu0 0.0
      %5595 = vmatpush2.msra.mxu0 0.0
      %5596 = vmatprep.subr.mxu0 0.0
      %5597 = vmatpush2.msra.mxu0 0.0
      %5598 = vmatprep.subr.mxu0 0.0
      %5599 = vmatpush2.msra.mxu0 0.0
      %5600 = vmatprep.subr.mxu0 0.0
      %5601 = vmatpush2.msra.mxu0 0.0
      %5602 = vmatprep.subr.mxu0 0.0
      %5603 = vmatpush2.msra.mxu0 0.0
      %5604 = vmatprep.subr.mxu0 0.0
      %5605 = vmatpush2.msra.mxu0 0.0
      %5606 = vmatprep.subr.mxu0 0.0
      %5607 = vmatpush2.msra.mxu0 0.0
      %5608 = vmatprep.subr.mxu0 0.0
      %5609 = vmatpush2.msra.mxu0 0.0
      %5610 = vmatprep.subr.mxu0 0.0
      %5611 = vmatpush2.msra.mxu0 0.0
      %5612 = vmatprep.subr.mxu0 0.0
      %5613 = vmatpush2.msra.mxu0 0.0
      %5614 = vmatprep.subr.mxu0 0.0
      %5615 = vmatpush2.msra.mxu0 0.0
      %5616 = vmatprep.subr.mxu0 0.0
      %5617 = vmatpush2.msra.mxu0 0.0
      %5618 = vmatprep.subr.mxu0 0.0
      %5619 = vmatpush2.msra.mxu0 0.0
      %5620 = vmatprep.subr.mxu0 0.0
      %5621 = vmatpush2.msra.mxu0 0.0
      %5622 = vmatprep.subr.mxu0 0.0
      %5623 = vmatpush2.msra.mxu0 0.0
      %5624 = vmatprep.mubr.f32.mxu0 0.0
      %5625 = vmatmul.mubr.f32.gmra.mxu0 %v5558
      %v5626 = vpop.f32.mrf.mxu0
      %v5627 = vadd.f32 %v5555, %v5626
      %v5628 = vpop.f32.mrf.mxu0
      %5629 = vdwg.mxu0
      %v5630 = vadd.f32 %v5474, %v5627
      %vm5631 = vcmp.ge.f32.partialorder %v5630, 0.0
      %v5632 = vmul.f32 %v5630, 0.01
      %v5633 = vsel %vm5631, %v5630, %v5632
      %v5634 = vld [vmem:[%s59] sm:$0xff]
      %5636 = vrot.lane.b32.xlu0 %v5633, 127
      %v5637 = vpop.permute.xlu0 %5636
      %5639 = vrot.lane.b32.xlu0 %v5633, 126
      %v5640 = vpop.permute.xlu0 %5639
      %5642 = vrot.lane.b32.xlu0 %v5633, 125
      %v5643 = vpop.permute.xlu0 %5642
      %v5645 = vld [vmem:[%s61] sm:$0xff]
      %v5647 = vsel %vm4721, %v5634, 0
      %5649 = vmatprep.subr.mxu0 0.0
      %5650 = vmatpush1.msra.mxu0 0.0
      %5651 = vmatprep.subr.mxu0 0.0
      %5652 = vmatpush1.msra.mxu0 0.0
      %5653 = vmatprep.subr.mxu0 0.0
      %5654 = vmatpush1.msra.mxu0 0.0
      %5655 = vmatprep.subr.mxu0 0.0
      %5656 = vmatpush1.msra.mxu0 0.0
      %5657 = vmatprep.subr.mxu0 0.0
      %5658 = vmatpush1.msra.mxu0 0.0
      %5659 = vmatprep.subr.mxu0 0.0
      %5660 = vmatpush1.msra.mxu0 0.0
      %5661 = vmatprep.subr.mxu0 0.0
      %5662 = vmatpush1.msra.mxu0 0.0
      %5663 = vmatprep.subr.mxu0 0.0
      %5664 = vmatpush1.msra.mxu0 0.0
      %5665 = vmatprep.subr.mxu0 0.0
      %5666 = vmatpush1.msra.mxu0 0.0
      %5667 = vmatprep.subr.mxu0 0.0
      %5668 = vmatpush1.msra.mxu0 0.0
      %5669 = vmatprep.subr.mxu0 0.0
      %5670 = vmatpush1.msra.mxu0 0.0
      %5671 = vmatprep.subr.mxu0 0.0
      %5672 = vmatpush1.msra.mxu0 0.0
      %5673 = vmatprep.subr.mxu0 0.0
      %5674 = vmatpush1.msra.mxu0 %v5643
      %5675 = vmatprep.subr.mxu0 0.0
      %5676 = vmatpush1.msra.mxu0 %v5640
      %5677 = vmatprep.subr.mxu0 0.0
      %5678 = vmatpush1.msra.mxu0 %v5637
      %5679 = vmatprep.subr.mxu0 0.0
      %5680 = vmatpush1.msra.mxu0 %v5633
      %5681 = vmatprep.subr.mxu0 0.0
      %5682 = vmatpush2.msra.mxu0 0.0
      %5683 = vmatprep.subr.mxu0 0.0
      %5684 = vmatpush2.msra.mxu0 0.0
      %5685 = vmatprep.subr.mxu0 0.0
      %5686 = vmatpush2.msra.mxu0 0.0
      %5687 = vmatprep.subr.mxu0 0.0
      %5688 = vmatpush2.msra.mxu0 0.0
      %5689 = vmatprep.subr.mxu0 0.0
      %5690 = vmatpush2.msra.mxu0 0.0
      %5691 = vmatprep.subr.mxu0 0.0
      %5692 = vmatpush2.msra.mxu0 0.0
      %5693 = vmatprep.subr.mxu0 0.0
      %5694 = vmatpush2.msra.mxu0 0.0
      %5695 = vmatprep.subr.mxu0 0.0
      %5696 = vmatpush2.msra.mxu0 0.0
      %5697 = vmatprep.subr.mxu0 0.0
      %5698 = vmatpush2.msra.mxu0 0.0
      %5699 = vmatprep.subr.mxu0 0.0
      %5700 = vmatpush2.msra.mxu0 0.0
      %5701 = vmatprep.subr.mxu0 0.0
      %5702 = vmatpush2.msra.mxu0 0.0
      %5703 = vmatprep.subr.mxu0 0.0
      %5704 = vmatpush2.msra.mxu0 0.0
      %5705 = vmatprep.subr.mxu0 0.0
      %5706 = vmatpush2.msra.mxu0 0.0
      %5707 = vmatprep.subr.mxu0 0.0
      %5708 = vmatpush2.msra.mxu0 0.0
      %5709 = vmatprep.subr.mxu0 0.0
      %5710 = vmatpush2.msra.mxu0 0.0
      %5711 = vmatprep.subr.mxu0 0.0
      %5712 = vmatpush2.msra.mxu0 0.0
      %5713 = vmatprep.mubr.f32.mxu0 0.0
      %5714 = vmatmul.mubr.f32.gmra.mxu0 %v5647
      %v5715 = vpop.f32.mrf.mxu0
      %v5716 = vadd.f32 %v5645, %v5715
      %v5717 = vpop.f32.mrf.mxu0
      %5718 = vdwg.mxu0
      %v5719 = vxor.u32 %v5716, 2147483648
      %v5720 = vmul.f32 %v5719, 1.442695
      %v5721 = vpow.pop %v5720
      %v5722 = vadd.f32 %v5721, 1.0
      %v5723 = vrcp.pop %v5722
      %v5724 = vmul.f32 1.0, %v5723
      %vm5725 = vcmask 0
      %5726 = vst.msk [vmem:[%s954] sm:$0x1] %vm5725, %v5724
      %p5727 = scmp.lt.s32.totalorder %s74, 1
      %s5728 = scalar_select %p5727, %s74, 1
      %s5729 = scalar_lea.vmem %s63, %s5728
      // Predicated region
      $region145: #{dnet_forward.1} parent=143 // pred_check
        %p5730 = pneg %p748
      $region146: #{dnet_forward.1} parent=143 // pred_check_branch
        %5732 = sbr.rel (%p5730) target = $region148
      $region147: #{dnet_forward.1} parent=143 // pred_region
        _
      $region148: #{dnet_forward.1} parent=143 // pred_fallthru
        _
    $region144: #{dnet_forward.1} parent=5 // pred_fallthru
      _
    %p5733 = scmp.le.s32.totalorder 2, %s69
    // Predicated region
    $region149: #{dnet_forward.1} parent=5 // pred_check
      %p5734 = pneg %p5733
    $region150: #{dnet_forward.1} parent=5 // pred_check_branch
      %5736 = sbr.rel (%p5734) target = $region152
    $region151: #{dnet_forward.1} parent=5 // pred_region
      %s5737 = ssub.s32 %s69, 2
      // Predicated region
      $region153: #{dnet_forward.1} parent=151 // pred_check
        %p5738 = pneg %p754
      $region154: #{dnet_forward.1} parent=151 // pred_check_branch
        %5740 = sbr.rel (%p5738) target = $region156
      $region155: #{dnet_forward.1} parent=151 // pred_region
        %p5741 = scmp.lt.s32.totalorder %s75, 1
        %s5742 = scalar_select %p5741, %s75, 1
        %s5743 = scalar_lea.vmem %s63, %s5742
      $region156: #{dnet_forward.1} parent=151 // pred_fallthru
        _
    $region152: #{dnet_forward.1} parent=5 // pred_fallthru
      _
  $region6: #{dnet_forward.1} parent=0 // loop_footer
    %s73 = sadd.s32 1, %s69
  $region7: #{dnet_forward.1} parent=0 // loop_footer_branch
    %68 = sbr.rel target = $region3
  $region8: #{dnet_forward.1} parent=0 // loop_exit
    _

</llo_original>
